<compile_context>
chip_gen: v7x
topology: tpu7x:2x2x1
jax: 0.10.0
libtpu: 0.0.40
codegen_flags: <defaults>
</compile_context>

<pallas_src>
import jax
import jax.numpy as jnp
from jax import lax
from jax.experimental import pallas as pl
from jax.experimental.pallas import tpu as pltpu

EPS = 1e-5
LANE = 128


def double_conv(x_nhwc, w1, b1, g1, be1, w2, b2, g2, be2):
    """x_nhwc: (N,H,W,Cin) f32; weights HWIO; returns (N,H,W,Cout) f32."""
    # Conv biases accepted for interface parity with nn.Conv2d but unused: a
    # per-channel constant added before training-mode BatchNorm is exactly
    # cancelled by the batch-mean subtraction.
    del b1, b2
    N, H, W, Cin = x_nhwc.shape
    Cout = w1.shape[-1]
    K = LANE
    if 9 * Cin > K or 9 * Cout > K:
        # TODO(synk): direct lane packing (roll/concat) + N/H grid for larger C.
        raise NotImplementedError("lane-replicated tap packing requires 9*C <= 128")
    M = N * H * W
    inv_m = 1.0 / M

    # ---------- wrapper-side (XLA) layout prep: tiny, one-time ----------
    # Input: spatial halo pad + replicate channels into each of the 9 tap blocks.
    xp = jnp.pad(x_nhwc, ((0, 0), (1, 1), (1, 1), (0, 0)))
    x_rep = jnp.pad(jnp.tile(xp, (1, 1, 1, 9)),
                    ((0, 0), (0, 0), (0, 0), (0, K - 9 * Cin))).astype(jnp.bfloat16)

    # conv1 weight: HWIO -> (9*Cin, Cout) tap-major rows, pad K rows to 128,
    # replicate output columns 9x (so h1 comes out of the MXU tap-replicated).
    w1m = jnp.pad(w1.reshape(9 * Cin, Cout), ((0, K - 9 * Cin), (0, 0)))
    w1f = jnp.pad(jnp.tile(w1m, (1, 9)),
                  ((0, 0), (0, K - 9 * Cout))).astype(jnp.bfloat16)
    # conv2 weight: HWIO -> (9*Cout, Cout), pad both dims to 128.
    w2f = jnp.pad(w2.reshape(9 * Cout, Cout),
                  ((0, K - 9 * Cout), (0, K - Cout))).astype(jnp.bfloat16)

    # BN affine params: BN1 replicated per tap block, BN2 plain zero-padded.
    g1r = jnp.pad(jnp.tile(g1, 9), (0, K - 9 * Cout)).reshape(1, K).astype(jnp.float32)
    be1r = jnp.pad(jnp.tile(be1, 9), (0, K - 9 * Cout)).reshape(1, K).astype(jnp.float32)
    g2p = jnp.pad(g2, (0, K - Cout)).reshape(1, K).astype(jnp.float32)
    be2p = jnp.pad(be2, (0, K - Cout)).reshape(1, K).astype(jnp.float32)

    def kernel(x_ref, w1_ref, g1_ref, be1_ref, w2_ref, g2_ref, be2_ref,
               out_ref, h1pad_ref):
        lane = lax.broadcasted_iota(jnp.int32, (1, K), 1)

        def im2col(src_ref, c):
            # src_ref: (N, H+2, W+2, K) bf16, channels replicated per tap block.
            # Pack tap t = 3*dy+dx into lanes [t*c, (t+1)*c) via VPU selects.
            acc = jnp.zeros((M, K), jnp.bfloat16)
            for dy in range(3):
                for dx in range(3):
                    t = dy * 3 + dx
                    tap = src_ref[:, dy:dy + H, dx:dx + W, :].reshape(M, K)
                    sel = (lane >= t * c) & (lane < (t + 1) * c)
                    acc = jnp.where(sel, tap, acc)
            return acc

        def matmul_bn_relu(patches, w_ref, g_ref, be_ref):
            # one MXU matmul per conv: (M,128) bf16 x (128,128) bf16 -> f32
            y = jnp.dot(patches, w_ref[...], preferred_element_type=jnp.float32)
            mean = jnp.sum(y, axis=0, keepdims=True) * inv_m
            d = y - mean
            var = jnp.sum(d * d, axis=0, keepdims=True) * inv_m  # biased, shifted form
            scale = g_ref[...] * lax.rsqrt(var + EPS)
            return jnp.maximum(d * scale + be_ref[...], 0.0)

        # ---- conv1 + BN1 + ReLU (output lanes tap-replicated via w1f) ----
        h1 = matmul_bn_relu(im2col(x_ref, Cin), w1_ref, g1_ref, be1_ref)

        # ---- halo-pad h1 (dense zero + interior write), conv2 + BN2 + ReLU ----
        h1pad_ref[...] = jnp.zeros_like(h1pad_ref)
        h1pad_ref[:, 1:1 + H, 1:1 + W, :] = (
            h1.reshape(N, H, W, K).astype(h1pad_ref.dtype))
        h2 = matmul_bn_relu(im2col(h1pad_ref, Cout), w2_ref, g2_ref, be2_ref)

        # real-Cout f32 output (no padded slab, no wrapper slice)
        out_ref[...] = h2.reshape(N, H, W, K)[..., :Cout]

    vmem = pl.BlockSpec(memory_space=pltpu.MemorySpace.VMEM)
    return pl.pallas_call(
        kernel,
        out_shape=jax.ShapeDtypeStruct((N, H, W, Cout), jnp.float32),
        in_specs=[vmem] * 7,
        out_specs=vmem,
        scratch_shapes=[pltpu.VMEM((N, H + 2, W + 2, K), jnp.bfloat16)],
    )(x_rep, w1f, g1r, be1r, w2f, g2p, be2p)


def ref_double_conv(x_nhwc, w1, b1, g1, be1, w2, b2, g2, be2):
    """Pure-JAX f32 reference mirroring PyTorch semantics (NHWC layout).
    Keeps conv biases to verify they are cancelled by training-mode BN."""
    def conv(x, w, b):
        y = lax.conv_general_dilated(
            x, w, window_strides=(1, 1), padding=((1, 1), (1, 1)),
            dimension_numbers=('NHWC', 'HWIO', 'NHWC'),
            precision=lax.Precision.HIGHEST)
        return y + b

    def bn_relu(y, g, be):
        mean = jnp.mean(y, axis=(0, 1, 2), keepdims=True)
        var = jnp.mean((y - mean) ** 2, axis=(0, 1, 2), keepdims=True)
        return jnp.maximum((y - mean) / jnp.sqrt(var + EPS) * g + be, 0.0)

    y = bn_relu(conv(x_nhwc, w1, b1), g1, be1)
    return bn_relu(conv(y, w2, b2), g2, be2)


if __name__ == "__main__":
    N, Cin, H, W = 2, 4, 16, 16
    Cout = 8

    key = jax.random.PRNGKey(0)
    ks = jax.random.split(key, 9)
    # PyTorch-convention input (NCHW), transposed to the kernel's NHWC layout.
    x_nchw = jax.random.normal(ks[0], (N, Cin, H, W), jnp.float32)
    x_nhwc = jnp.transpose(x_nchw, (0, 2, 3, 1))

    # deterministic synthetic parameters (shapes per nn.Conv2d / nn.BatchNorm2d)
    w1 = 0.1 * jax.random.normal(ks[1], (3, 3, Cin, Cout), jnp.float32)   # HWIO
    b1 = 0.1 * jax.random.normal(ks[2], (Cout,), jnp.float32)
    g1 = 1.0 + 0.1 * jax.random.normal(ks[3], (Cout,), jnp.float32)
    be1 = 0.1 * jax.random.normal(ks[4], (Cout,), jnp.float32)
    w2 = 0.1 * jax.random.normal(ks[5], (3, 3, Cout, Cout), jnp.float32)  # HWIO
    b2 = 0.1 * jax.random.normal(ks[6], (Cout,), jnp.float32)
    g2 = 1.0 + 0.1 * jax.random.normal(ks[7], (Cout,), jnp.float32)
    be2 = 0.1 * jax.random.normal(ks[8], (Cout,), jnp.float32)

    out = jax.block_until_ready(
        double_conv(x_nhwc, w1, b1, g1, be1, w2, b2, g2, be2))
    ref = jax.block_until_ready(
        ref_double_conv(x_nhwc, w1, b1, g1, be1, w2, b2, g2, be2))

    assert out.shape == (N, H, W, Cout)
    max_err = float(jnp.max(jnp.abs(out - ref)))
    # bf16 MXU operands / bf16 activation buffers vs. f32 HIGHEST reference
    # -> loosened tolerance (structural bugs would give O(1) errors).
    assert jnp.allclose(out, ref, atol=5e-2, rtol=5e-2), f"max_err={max_err}"
    print("KERNEL_OK")
</pallas_src>

<mosaic_0001>
module attributes {stable_mosaic.version = 11 : i64} {
  func.func @kernel(%arg0: memref<2x18x18x128xbf16, #tpu.memory_space<vmem>>, %arg1: memref<128x128xbf16, #tpu.memory_space<vmem>>, %arg2: memref<1x128xf32, #tpu.memory_space<vmem>>, %arg3: memref<1x128xf32, #tpu.memory_space<vmem>>, %arg4: memref<128x128xbf16, #tpu.memory_space<vmem>>, %arg5: memref<1x128xf32, #tpu.memory_space<vmem>>, %arg6: memref<1x128xf32, #tpu.memory_space<vmem>>, %arg7: memref<2x16x16x8xf32, #tpu.memory_space<vmem>>, %arg8: memref<2x18x18x128xbf16, #tpu.memory_space<vmem>>) attributes {dimension_semantics = [], scalar_prefetch = 0 : i64, scratch_operands = 1 : i64, tpu.core_type = #tpu.core_type<tc>} {
    %0 = tpu.iota {dimensions = array<i32: 1>} : vector<1x128xi32>
    %cst = arith.constant 0.000000e+00 : bf16
    %1 = vector.broadcast %cst : bf16 to vector<512x128xbf16>
    %c0 = arith.constant 0 : index
    %c0_0 = arith.constant 0 : index
    %c0_1 = arith.constant 0 : index
    %c0_2 = arith.constant 0 : index
    %2 = vector.load %arg0[%c0, %c0_0, %c0_1, %c0_2] : memref<2x18x18x128xbf16, #tpu.memory_space<vmem>>, vector<2x16x16x128xbf16>
    %3 = vector.shape_cast %2 : vector<2x16x16x128xbf16> to vector<512x128xbf16>
    %c0_i32 = arith.constant 0 : i32
    %4 = vector.broadcast %c0_i32 : i32 to vector<1x128xi32>
    %5 = arith.cmpi sge, %0, %4 : vector<1x128xi32>
    %c4_i32 = arith.constant 4 : i32
    %6 = vector.broadcast %c4_i32 : i32 to vector<1x128xi32>
    %7 = arith.cmpi slt, %0, %6 : vector<1x128xi32>
    %8 = arith.andi %5, %7 : vector<1x128xi1>
    %9 = vector.shape_cast %8 : vector<1x128xi1> to vector<1x128xi1>
    %10 = vector.broadcast %9 : vector<1x128xi1> to vector<512x128xi1>
    %11 = arith.select %10, %3, %1 : vector<512x128xi1>, vector<512x128xbf16>
    %c0_3 = arith.constant 0 : index
    %c0_4 = arith.constant 0 : index
    %c1 = arith.constant 1 : index
    %c0_5 = arith.constant 0 : index
    %12 = vector.load %arg0[%c0_3, %c0_4, %c1, %c0_5] : memref<2x18x18x128xbf16, #tpu.memory_space<vmem>>, vector<2x16x16x128xbf16>
    %13 = vector.shape_cast %12 : vector<2x16x16x128xbf16> to vector<512x128xbf16>
    %c4_i32_6 = arith.constant 4 : i32
    %14 = vector.broadcast %c4_i32_6 : i32 to vector<1x128xi32>
    %15 = arith.cmpi sge, %0, %14 : vector<1x128xi32>
    %c8_i32 = arith.constant 8 : i32
    %16 = vector.broadcast %c8_i32 : i32 to vector<1x128xi32>
    %17 = arith.cmpi slt, %0, %16 : vector<1x128xi32>
    %18 = arith.andi %15, %17 : vector<1x128xi1>
    %19 = vector.shape_cast %18 : vector<1x128xi1> to vector<1x128xi1>
    %20 = vector.broadcast %19 : vector<1x128xi1> to vector<512x128xi1>
    %21 = arith.select %20, %13, %11 : vector<512x128xi1>, vector<512x128xbf16>
    %c0_7 = arith.constant 0 : index
    %c0_8 = arith.constant 0 : index
    %c2 = arith.constant 2 : index
    %c0_9 = arith.constant 0 : index
    %22 = vector.load %arg0[%c0_7, %c0_8, %c2, %c0_9] : memref<2x18x18x128xbf16, #tpu.memory_space<vmem>>, vector<2x16x16x128xbf16>
    %23 = vector.shape_cast %22 : vector<2x16x16x128xbf16> to vector<512x128xbf16>
    %c8_i32_10 = arith.constant 8 : i32
    %24 = vector.broadcast %c8_i32_10 : i32 to vector<1x128xi32>
    %25 = arith.cmpi sge, %0, %24 : vector<1x128xi32>
    %c12_i32 = arith.constant 12 : i32
    %26 = vector.broadcast %c12_i32 : i32 to vector<1x128xi32>
    %27 = arith.cmpi slt, %0, %26 : vector<1x128xi32>
    %28 = arith.andi %25, %27 : vector<1x128xi1>
    %29 = vector.shape_cast %28 : vector<1x128xi1> to vector<1x128xi1>
    %30 = vector.broadcast %29 : vector<1x128xi1> to vector<512x128xi1>
    %31 = arith.select %30, %23, %21 : vector<512x128xi1>, vector<512x128xbf16>
    %c0_11 = arith.constant 0 : index
    %c1_12 = arith.constant 1 : index
    %c0_13 = arith.constant 0 : index
    %c0_14 = arith.constant 0 : index
    %32 = vector.load %arg0[%c0_11, %c1_12, %c0_13, %c0_14] : memref<2x18x18x128xbf16, #tpu.memory_space<vmem>>, vector<2x16x16x128xbf16>
    %33 = vector.shape_cast %32 : vector<2x16x16x128xbf16> to vector<512x128xbf16>
    %c12_i32_15 = arith.constant 12 : i32
    %34 = vector.broadcast %c12_i32_15 : i32 to vector<1x128xi32>
    %35 = arith.cmpi sge, %0, %34 : vector<1x128xi32>
    %c16_i32 = arith.constant 16 : i32
    %36 = vector.broadcast %c16_i32 : i32 to vector<1x128xi32>
    %37 = arith.cmpi slt, %0, %36 : vector<1x128xi32>
    %38 = arith.andi %35, %37 : vector<1x128xi1>
    %39 = vector.shape_cast %38 : vector<1x128xi1> to vector<1x128xi1>
    %40 = vector.broadcast %39 : vector<1x128xi1> to vector<512x128xi1>
    %41 = arith.select %40, %33, %31 : vector<512x128xi1>, vector<512x128xbf16>
    %c0_16 = arith.constant 0 : index
    %c1_17 = arith.constant 1 : index
    %c1_18 = arith.constant 1 : index
    %c0_19 = arith.constant 0 : index
    %42 = vector.load %arg0[%c0_16, %c1_17, %c1_18, %c0_19] : memref<2x18x18x128xbf16, #tpu.memory_space<vmem>>, vector<2x16x16x128xbf16>
    %43 = vector.shape_cast %42 : vector<2x16x16x128xbf16> to vector<512x128xbf16>
    %c16_i32_20 = arith.constant 16 : i32
    %44 = vector.broadcast %c16_i32_20 : i32 to vector<1x128xi32>
    %45 = arith.cmpi sge, %0, %44 : vector<1x128xi32>
    %c20_i32 = arith.constant 20 : i32
    %46 = vector.broadcast %c20_i32 : i32 to vector<1x128xi32>
    %47 = arith.cmpi slt, %0, %46 : vector<1x128xi32>
    %48 = arith.andi %45, %47 : vector<1x128xi1>
    %49 = vector.shape_cast %48 : vector<1x128xi1> to vector<1x128xi1>
    %50 = vector.broadcast %49 : vector<1x128xi1> to vector<512x128xi1>
    %51 = arith.select %50, %43, %41 : vector<512x128xi1>, vector<512x128xbf16>
    %c0_21 = arith.constant 0 : index
    %c1_22 = arith.constant 1 : index
    %c2_23 = arith.constant 2 : index
    %c0_24 = arith.constant 0 : index
    %52 = vector.load %arg0[%c0_21, %c1_22, %c2_23, %c0_24] : memref<2x18x18x128xbf16, #tpu.memory_space<vmem>>, vector<2x16x16x128xbf16>
    %53 = vector.shape_cast %52 : vector<2x16x16x128xbf16> to vector<512x128xbf16>
    %c20_i32_25 = arith.constant 20 : i32
    %54 = vector.broadcast %c20_i32_25 : i32 to vector<1x128xi32>
    %55 = arith.cmpi sge, %0, %54 : vector<1x128xi32>
    %c24_i32 = arith.constant 24 : i32
    %56 = vector.broadcast %c24_i32 : i32 to vector<1x128xi32>
    %57 = arith.cmpi slt, %0, %56 : vector<1x128xi32>
    %58 = arith.andi %55, %57 : vector<1x128xi1>
    %59 = vector.shape_cast %58 : vector<1x128xi1> to vector<1x128xi1>
    %60 = vector.broadcast %59 : vector<1x128xi1> to vector<512x128xi1>
    %61 = arith.select %60, %53, %51 : vector<512x128xi1>, vector<512x128xbf16>
    %c0_26 = arith.constant 0 : index
    %c2_27 = arith.constant 2 : index
    %c0_28 = arith.constant 0 : index
    %c0_29 = arith.constant 0 : index
    %62 = vector.load %arg0[%c0_26, %c2_27, %c0_28, %c0_29] : memref<2x18x18x128xbf16, #tpu.memory_space<vmem>>, vector<2x16x16x128xbf16>
    %63 = vector.shape_cast %62 : vector<2x16x16x128xbf16> to vector<512x128xbf16>
    %c24_i32_30 = arith.constant 24 : i32
    %64 = vector.broadcast %c24_i32_30 : i32 to vector<1x128xi32>
    %65 = arith.cmpi sge, %0, %64 : vector<1x128xi32>
    %c28_i32 = arith.constant 28 : i32
    %66 = vector.broadcast %c28_i32 : i32 to vector<1x128xi32>
    %67 = arith.cmpi slt, %0, %66 : vector<1x128xi32>
    %68 = arith.andi %65, %67 : vector<1x128xi1>
    %69 = vector.shape_cast %68 : vector<1x128xi1> to vector<1x128xi1>
    %70 = vector.broadcast %69 : vector<1x128xi1> to vector<512x128xi1>
    %71 = arith.select %70, %63, %61 : vector<512x128xi1>, vector<512x128xbf16>
    %c0_31 = arith.constant 0 : index
    %c2_32 = arith.constant 2 : index
    %c1_33 = arith.constant 1 : index
    %c0_34 = arith.constant 0 : index
    %72 = vector.load %arg0[%c0_31, %c2_32, %c1_33, %c0_34] : memref<2x18x18x128xbf16, #tpu.memory_space<vmem>>, vector<2x16x16x128xbf16>
    %73 = vector.shape_cast %72 : vector<2x16x16x128xbf16> to vector<512x128xbf16>
    %c28_i32_35 = arith.constant 28 : i32
    %74 = vector.broadcast %c28_i32_35 : i32 to vector<1x128xi32>
    %75 = arith.cmpi sge, %0, %74 : vector<1x128xi32>
    %c32_i32 = arith.constant 32 : i32
    %76 = vector.broadcast %c32_i32 : i32 to vector<1x128xi32>
    %77 = arith.cmpi slt, %0, %76 : vector<1x128xi32>
    %78 = arith.andi %75, %77 : vector<1x128xi1>
    %79 = vector.shape_cast %78 : vector<1x128xi1> to vector<1x128xi1>
    %80 = vector.broadcast %79 : vector<1x128xi1> to vector<512x128xi1>
    %81 = arith.select %80, %73, %71 : vector<512x128xi1>, vector<512x128xbf16>
    %c0_36 = arith.constant 0 : index
    %c2_37 = arith.constant 2 : index
    %c2_38 = arith.constant 2 : index
    %c0_39 = arith.constant 0 : index
    %82 = vector.load %arg0[%c0_36, %c2_37, %c2_38, %c0_39] : memref<2x18x18x128xbf16, #tpu.memory_space<vmem>>, vector<2x16x16x128xbf16>
    %83 = vector.shape_cast %82 : vector<2x16x16x128xbf16> to vector<512x128xbf16>
    %c32_i32_40 = arith.constant 32 : i32
    %84 = vector.broadcast %c32_i32_40 : i32 to vector<1x128xi32>
    %85 = arith.cmpi sge, %0, %84 : vector<1x128xi32>
    %c36_i32 = arith.constant 36 : i32
    %86 = vector.broadcast %c36_i32 : i32 to vector<1x128xi32>
    %87 = arith.cmpi slt, %0, %86 : vector<1x128xi32>
    %88 = arith.andi %85, %87 : vector<1x128xi1>
    %89 = vector.shape_cast %88 : vector<1x128xi1> to vector<1x128xi1>
    %90 = vector.broadcast %89 : vector<1x128xi1> to vector<512x128xi1>
    %91 = arith.select %90, %83, %81 : vector<512x128xi1>, vector<512x128xbf16>
    %c0_41 = arith.constant 0 : index
    %c0_42 = arith.constant 0 : index
    %92 = vector.load %arg1[%c0_41, %c0_42] : memref<128x128xbf16, #tpu.memory_space<vmem>>, vector<128x128xbf16>
    %cst_43 = arith.constant dense<0.000000e+00> : vector<512x128xf32>
    %93 = tpu.matmul %91, %92, %cst_43 {dimension_numbers = #tpu.dot_dimension_numbers<[1], [0], [0], [1], [0, 0, 1, 1], [], []>} : vector<512x128xbf16>, vector<128x128xbf16>, vector<512x128xf32> -> vector<512x128xf32>
    %cst_44 = arith.constant dense<0.000000e+00> : vector<128xf32>
    %94 = vector.multi_reduction <add>, %93, %cst_44 [0] : vector<512x128xf32> to vector<128xf32>
    %95 = vector.shape_cast %94 : vector<128xf32> to vector<1x128xf32>
    %cst_45 = arith.constant 0.001953125 : f32
    %96 = vector.broadcast %cst_45 : f32 to vector<1x128xf32>
    %97 = arith.mulf %95, %96 : vector<1x128xf32>
    %98 = vector.broadcast %97 : vector<1x128xf32> to vector<512x128xf32>
    %99 = arith.subf %93, %98 : vector<512x128xf32>
    %100 = arith.mulf %99, %99 : vector<512x128xf32>
    %cst_46 = arith.constant dense<0.000000e+00> : vector<128xf32>
    %101 = vector.multi_reduction <add>, %100, %cst_46 [0] : vector<512x128xf32> to vector<128xf32>
    %102 = vector.shape_cast %101 : vector<128xf32> to vector<1x128xf32>
    %cst_47 = arith.constant 0.001953125 : f32
    %103 = vector.broadcast %cst_47 : f32 to vector<1x128xf32>
    %104 = arith.mulf %102, %103 : vector<1x128xf32>
    %c0_48 = arith.constant 0 : index
    %c0_49 = arith.constant 0 : index
    %105 = vector.load %arg2[%c0_48, %c0_49] : memref<1x128xf32, #tpu.memory_space<vmem>>, vector<1x128xf32>
    %cst_50 = arith.constant 9.99999974E-6 : f32
    %106 = vector.broadcast %cst_50 : f32 to vector<1x128xf32>
    %107 = arith.addf %104, %106 : vector<1x128xf32>
    %108 = math.rsqrt %107 : vector<1x128xf32>
    %109 = arith.mulf %105, %108 : vector<1x128xf32>
    %110 = vector.broadcast %109 : vector<1x128xf32> to vector<512x128xf32>
    %111 = arith.mulf %99, %110 : vector<512x128xf32>
    %c0_51 = arith.constant 0 : index
    %c0_52 = arith.constant 0 : index
    %112 = vector.load %arg3[%c0_51, %c0_52] : memref<1x128xf32, #tpu.memory_space<vmem>>, vector<1x128xf32>
    %113 = vector.broadcast %112 : vector<1x128xf32> to vector<512x128xf32>
    %114 = arith.addf %111, %113 : vector<512x128xf32>
    %cst_53 = arith.constant 0.000000e+00 : f32
    %115 = vector.broadcast %cst_53 : f32 to vector<512x128xf32>
    %116 = arith.maximumf %114, %115 : vector<512x128xf32>
    %cst_54 = arith.constant 0.000000e+00 : bf16
    %117 = vector.broadcast %cst_54 : bf16 to vector<2x18x18x128xbf16>
    %c0_55 = arith.constant 0 : index
    %c0_56 = arith.constant 0 : index
    %c0_57 = arith.constant 0 : index
    %c0_58 = arith.constant 0 : index
    %118 = vector.load %arg8[%c0_55, %c0_56, %c0_57, %c0_58] : memref<2x18x18x128xbf16, #tpu.memory_space<vmem>>, vector<2x18x18x128xbf16>
    tpu.vector_store %arg8[%c0_55, %c0_56, %c0_57, %c0_58], %117 {strides = array<i32>} : memref<2x18x18x128xbf16, #tpu.memory_space<vmem>>, vector<2x18x18x128xbf16>,
    %119 = vector.shape_cast %116 : vector<512x128xf32> to vector<2x16x16x128xf32>
    %120 = arith.truncf %119 : vector<2x16x16x128xf32> to vector<2x16x16x128xbf16>
    %c0_59 = arith.constant 0 : index
    %c1_60 = arith.constant 1 : index
    %c1_61 = arith.constant 1 : index
    %c0_62 = arith.constant 0 : index
    %121 = vector.load %arg8[%c0_59, %c1_60, %c1_61, %c0_62] : memref<2x18x18x128xbf16, #tpu.memory_space<vmem>>, vector<2x16x16x128xbf16>
    tpu.vector_store %arg8[%c0_59, %c1_60, %c1_61, %c0_62], %120 {strides = array<i32>} : memref<2x18x18x128xbf16, #tpu.memory_space<vmem>>, vector<2x16x16x128xbf16>,
    %cst_63 = arith.constant 0.000000e+00 : bf16
    %122 = vector.broadcast %cst_63 : bf16 to vector<512x128xbf16>
    %c0_64 = arith.constant 0 : index
    %c0_65 = arith.constant 0 : index
    %c0_66 = arith.constant 0 : index
    %c0_67 = arith.constant 0 : index
    %123 = vector.load %arg8[%c0_64, %c0_65, %c0_66, %c0_67] : memref<2x18x18x128xbf16, #tpu.memory_space<vmem>>, vector<2x16x16x128xbf16>
    %124 = vector.shape_cast %123 : vector<2x16x16x128xbf16> to vector<512x128xbf16>
    %c0_i32_68 = arith.constant 0 : i32
    %125 = vector.broadcast %c0_i32_68 : i32 to vector<1x128xi32>
    %126 = arith.cmpi sge, %0, %125 : vector<1x128xi32>
    %c8_i32_69 = arith.constant 8 : i32
    %127 = vector.broadcast %c8_i32_69 : i32 to vector<1x128xi32>
    %128 = arith.cmpi slt, %0, %127 : vector<1x128xi32>
    %129 = arith.andi %126, %128 : vector<1x128xi1>
    %130 = vector.shape_cast %129 : vector<1x128xi1> to vector<1x128xi1>
    %131 = vector.broadcast %130 : vector<1x128xi1> to vector<512x128xi1>
    %132 = arith.select %131, %124, %122 : vector<512x128xi1>, vector<512x128xbf16>
    %c0_70 = arith.constant 0 : index
    %c0_71 = arith.constant 0 : index
    %c1_72 = arith.constant 1 : index
    %c0_73 = arith.constant 0 : index
    %133 = vector.load %arg8[%c0_70, %c0_71, %c1_72, %c0_73] : memref<2x18x18x128xbf16, #tpu.memory_space<vmem>>, vector<2x16x16x128xbf16>
    %134 = vector.shape_cast %133 : vector<2x16x16x128xbf16> to vector<512x128xbf16>
    %c8_i32_74 = arith.constant 8 : i32
    %135 = vector.broadcast %c8_i32_74 : i32 to vector<1x128xi32>
    %136 = arith.cmpi sge, %0, %135 : vector<1x128xi32>
    %c16_i32_75 = arith.constant 16 : i32
    %137 = vector.broadcast %c16_i32_75 : i32 to vector<1x128xi32>
    %138 = arith.cmpi slt, %0, %137 : vector<1x128xi32>
    %139 = arith.andi %136, %138 : vector<1x128xi1>
    %140 = vector.shape_cast %139 : vector<1x128xi1> to vector<1x128xi1>
    %141 = vector.broadcast %140 : vector<1x128xi1> to vector<512x128xi1>
    %142 = arith.select %141, %134, %132 : vector<512x128xi1>, vector<512x128xbf16>
    %c0_76 = arith.constant 0 : index
    %c0_77 = arith.constant 0 : index
    %c2_78 = arith.constant 2 : index
    %c0_79 = arith.constant 0 : index
    %143 = vector.load %arg8[%c0_76, %c0_77, %c2_78, %c0_79] : memref<2x18x18x128xbf16, #tpu.memory_space<vmem>>, vector<2x16x16x128xbf16>
    %144 = vector.shape_cast %143 : vector<2x16x16x128xbf16> to vector<512x128xbf16>
    %c16_i32_80 = arith.constant 16 : i32
    %145 = vector.broadcast %c16_i32_80 : i32 to vector<1x128xi32>
    %146 = arith.cmpi sge, %0, %145 : vector<1x128xi32>
    %c24_i32_81 = arith.constant 24 : i32
    %147 = vector.broadcast %c24_i32_81 : i32 to vector<1x128xi32>
    %148 = arith.cmpi slt, %0, %147 : vector<1x128xi32>
    %149 = arith.andi %146, %148 : vector<1x128xi1>
    %150 = vector.shape_cast %149 : vector<1x128xi1> to vector<1x128xi1>
    %151 = vector.broadcast %150 : vector<1x128xi1> to vector<512x128xi1>
    %152 = arith.select %151, %144, %142 : vector<512x128xi1>, vector<512x128xbf16>
    %c0_82 = arith.constant 0 : index
    %c1_83 = arith.constant 1 : index
    %c0_84 = arith.constant 0 : index
    %c0_85 = arith.constant 0 : index
    %153 = vector.load %arg8[%c0_82, %c1_83, %c0_84, %c0_85] : memref<2x18x18x128xbf16, #tpu.memory_space<vmem>>, vector<2x16x16x128xbf16>
    %154 = vector.shape_cast %153 : vector<2x16x16x128xbf16> to vector<512x128xbf16>
    %c24_i32_86 = arith.constant 24 : i32
    %155 = vector.broadcast %c24_i32_86 : i32 to vector<1x128xi32>
    %156 = arith.cmpi sge, %0, %155 : vector<1x128xi32>
    %c32_i32_87 = arith.constant 32 : i32
    %157 = vector.broadcast %c32_i32_87 : i32 to vector<1x128xi32>
    %158 = arith.cmpi slt, %0, %157 : vector<1x128xi32>
    %159 = arith.andi %156, %158 : vector<1x128xi1>
    %160 = vector.shape_cast %159 : vector<1x128xi1> to vector<1x128xi1>
    %161 = vector.broadcast %160 : vector<1x128xi1> to vector<512x128xi1>
    %162 = arith.select %161, %154, %152 : vector<512x128xi1>, vector<512x128xbf16>
    %c0_88 = arith.constant 0 : index
    %c1_89 = arith.constant 1 : index
    %c1_90 = arith.constant 1 : index
    %c0_91 = arith.constant 0 : index
    %163 = vector.load %arg8[%c0_88, %c1_89, %c1_90, %c0_91] : memref<2x18x18x128xbf16, #tpu.memory_space<vmem>>, vector<2x16x16x128xbf16>
    %164 = vector.shape_cast %163 : vector<2x16x16x128xbf16> to vector<512x128xbf16>
    %c32_i32_92 = arith.constant 32 : i32
    %165 = vector.broadcast %c32_i32_92 : i32 to vector<1x128xi32>
    %166 = arith.cmpi sge, %0, %165 : vector<1x128xi32>
    %c40_i32 = arith.constant 40 : i32
    %167 = vector.broadcast %c40_i32 : i32 to vector<1x128xi32>
    %168 = arith.cmpi slt, %0, %167 : vector<1x128xi32>
    %169 = arith.andi %166, %168 : vector<1x128xi1>
    %170 = vector.shape_cast %169 : vector<1x128xi1> to vector<1x128xi1>
    %171 = vector.broadcast %170 : vector<1x128xi1> to vector<512x128xi1>
    %172 = arith.select %171, %164, %162 : vector<512x128xi1>, vector<512x128xbf16>
    %c0_93 = arith.constant 0 : index
    %c1_94 = arith.constant 1 : index
    %c2_95 = arith.constant 2 : index
    %c0_96 = arith.constant 0 : index
    %173 = vector.load %arg8[%c0_93, %c1_94, %c2_95, %c0_96] : memref<2x18x18x128xbf16, #tpu.memory_space<vmem>>, vector<2x16x16x128xbf16>
    %174 = vector.shape_cast %173 : vector<2x16x16x128xbf16> to vector<512x128xbf16>
    %c40_i32_97 = arith.constant 40 : i32
    %175 = vector.broadcast %c40_i32_97 : i32 to vector<1x128xi32>
    %176 = arith.cmpi sge, %0, %175 : vector<1x128xi32>
    %c48_i32 = arith.constant 48 : i32
    %177 = vector.broadcast %c48_i32 : i32 to vector<1x128xi32>
    %178 = arith.cmpi slt, %0, %177 : vector<1x128xi32>
    %179 = arith.andi %176, %178 : vector<1x128xi1>
    %180 = vector.shape_cast %179 : vector<1x128xi1> to vector<1x128xi1>
    %181 = vector.broadcast %180 : vector<1x128xi1> to vector<512x128xi1>
    %182 = arith.select %181, %174, %172 : vector<512x128xi1>, vector<512x128xbf16>
    %c0_98 = arith.constant 0 : index
    %c2_99 = arith.constant 2 : index
    %c0_100 = arith.constant 0 : index
    %c0_101 = arith.constant 0 : index
    %183 = vector.load %arg8[%c0_98, %c2_99, %c0_100, %c0_101] : memref<2x18x18x128xbf16, #tpu.memory_space<vmem>>, vector<2x16x16x128xbf16>
    %184 = vector.shape_cast %183 : vector<2x16x16x128xbf16> to vector<512x128xbf16>
    %c48_i32_102 = arith.constant 48 : i32
    %185 = vector.broadcast %c48_i32_102 : i32 to vector<1x128xi32>
    %186 = arith.cmpi sge, %0, %185 : vector<1x128xi32>
    %c56_i32 = arith.constant 56 : i32
    %187 = vector.broadcast %c56_i32 : i32 to vector<1x128xi32>
    %188 = arith.cmpi slt, %0, %187 : vector<1x128xi32>
    %189 = arith.andi %186, %188 : vector<1x128xi1>
    %190 = vector.shape_cast %189 : vector<1x128xi1> to vector<1x128xi1>
    %191 = vector.broadcast %190 : vector<1x128xi1> to vector<512x128xi1>
    %192 = arith.select %191, %184, %182 : vector<512x128xi1>, vector<512x128xbf16>
    %c0_103 = arith.constant 0 : index
    %c2_104 = arith.constant 2 : index
    %c1_105 = arith.constant 1 : index
    %c0_106 = arith.constant 0 : index
    %193 = vector.load %arg8[%c0_103, %c2_104, %c1_105, %c0_106] : memref<2x18x18x128xbf16, #tpu.memory_space<vmem>>, vector<2x16x16x128xbf16>
    %194 = vector.shape_cast %193 : vector<2x16x16x128xbf16> to vector<512x128xbf16>
    %c56_i32_107 = arith.constant 56 : i32
    %195 = vector.broadcast %c56_i32_107 : i32 to vector<1x128xi32>
    %196 = arith.cmpi sge, %0, %195 : vector<1x128xi32>
    %c64_i32 = arith.constant 64 : i32
    %197 = vector.broadcast %c64_i32 : i32 to vector<1x128xi32>
    %198 = arith.cmpi slt, %0, %197 : vector<1x128xi32>
    %199 = arith.andi %196, %198 : vector<1x128xi1>
    %200 = vector.shape_cast %199 : vector<1x128xi1> to vector<1x128xi1>
    %201 = vector.broadcast %200 : vector<1x128xi1> to vector<512x128xi1>
    %202 = arith.select %201, %194, %192 : vector<512x128xi1>, vector<512x128xbf16>
    %c0_108 = arith.constant 0 : index
    %c2_109 = arith.constant 2 : index
    %c2_110 = arith.constant 2 : index
    %c0_111 = arith.constant 0 : index
    %203 = vector.load %arg8[%c0_108, %c2_109, %c2_110, %c0_111] : memref<2x18x18x128xbf16, #tpu.memory_space<vmem>>, vector<2x16x16x128xbf16>
    %204 = vector.shape_cast %203 : vector<2x16x16x128xbf16> to vector<512x128xbf16>
    %c64_i32_112 = arith.constant 64 : i32
    %205 = vector.broadcast %c64_i32_112 : i32 to vector<1x128xi32>
    %206 = arith.cmpi sge, %0, %205 : vector<1x128xi32>
    %c72_i32 = arith.constant 72 : i32
    %207 = vector.broadcast %c72_i32 : i32 to vector<1x128xi32>
    %208 = arith.cmpi slt, %0, %207 : vector<1x128xi32>
    %209 = arith.andi %206, %208 : vector<1x128xi1>
    %210 = vector.shape_cast %209 : vector<1x128xi1> to vector<1x128xi1>
    %211 = vector.broadcast %210 : vector<1x128xi1> to vector<512x128xi1>
    %212 = arith.select %211, %204, %202 : vector<512x128xi1>, vector<512x128xbf16>
    %c0_113 = arith.constant 0 : index
    %c0_114 = arith.constant 0 : index
    %213 = vector.load %arg4[%c0_113, %c0_114] : memref<128x128xbf16, #tpu.memory_space<vmem>>, vector<128x128xbf16>
    %cst_115 = arith.constant dense<0.000000e+00> : vector<512x128xf32>
    %214 = tpu.matmul %212, %213, %cst_115 {dimension_numbers = #tpu.dot_dimension_numbers<[1], [0], [0], [1], [0, 0, 1, 1], [], []>} : vector<512x128xbf16>, vector<128x128xbf16>, vector<512x128xf32> -> vector<512x128xf32>
    %cst_116 = arith.constant dense<0.000000e+00> : vector<128xf32>
    %215 = vector.multi_reduction <add>, %214, %cst_116 [0] : vector<512x128xf32> to vector<128xf32>
    %216 = vector.shape_cast %215 : vector<128xf32> to vector<1x128xf32>
    %cst_117 = arith.constant 0.001953125 : f32
    %217 = vector.broadcast %cst_117 : f32 to vector<1x128xf32>
    %218 = arith.mulf %216, %217 : vector<1x128xf32>
    %219 = vector.broadcast %218 : vector<1x128xf32> to vector<512x128xf32>
    %220 = arith.subf %214, %219 : vector<512x128xf32>
    %221 = arith.mulf %220, %220 : vector<512x128xf32>
    %cst_118 = arith.constant dense<0.000000e+00> : vector<128xf32>
    %222 = vector.multi_reduction <add>, %221, %cst_118 [0] : vector<512x128xf32> to vector<128xf32>
    %223 = vector.shape_cast %222 : vector<128xf32> to vector<1x128xf32>
    %cst_119 = arith.constant 0.001953125 : f32
    %224 = vector.broadcast %cst_119 : f32 to vector<1x128xf32>
    %225 = arith.mulf %223, %224 : vector<1x128xf32>
    %c0_120 = arith.constant 0 : index
    %c0_121 = arith.constant 0 : index
    %226 = vector.load %arg5[%c0_120, %c0_121] : memref<1x128xf32, #tpu.memory_space<vmem>>, vector<1x128xf32>
    %cst_122 = arith.constant 9.99999974E-6 : f32
    %227 = vector.broadcast %cst_122 : f32 to vector<1x128xf32>
    %228 = arith.addf %225, %227 : vector<1x128xf32>
    %229 = math.rsqrt %228 : vector<1x128xf32>
    %230 = arith.mulf %226, %229 : vector<1x128xf32>
    %231 = vector.broadcast %230 : vector<1x128xf32> to vector<512x128xf32>
    %232 = arith.mulf %220, %231 : vector<512x128xf32>
    %c0_123 = arith.constant 0 : index
    %c0_124 = arith.constant 0 : index
    %233 = vector.load %arg6[%c0_123, %c0_124] : memref<1x128xf32, #tpu.memory_space<vmem>>, vector<1x128xf32>
    %234 = vector.broadcast %233 : vector<1x128xf32> to vector<512x128xf32>
    %235 = arith.addf %232, %234 : vector<512x128xf32>
    %cst_125 = arith.constant 0.000000e+00 : f32
    %236 = vector.broadcast %cst_125 : f32 to vector<512x128xf32>
    %237 = arith.maximumf %235, %236 : vector<512x128xf32>
    %238 = vector.shape_cast %237 : vector<512x128xf32> to vector<2x16x16x128xf32>
    %239 = vector.extract_strided_slice %238 {offsets = [0, 0, 0, 0], sizes = [2, 16, 16, 8], strides = [1, 1, 1, 1]} : vector<2x16x16x128xf32> to vector<2x16x16x8xf32>
    %c0_126 = arith.constant 0 : index
    %c0_127 = arith.constant 0 : index
    %c0_128 = arith.constant 0 : index
    %c0_129 = arith.constant 0 : index
    %240 = vector.load %arg7[%c0_126, %c0_127, %c0_128, %c0_129] : memref<2x16x16x8xf32, #tpu.memory_space<vmem>>, vector<2x16x16x8xf32>
    tpu.vector_store %arg7[%c0_126, %c0_127, %c0_128, %c0_129], %239 {strides = array<i32>} : memref<2x16x16x8xf32, #tpu.memory_space<vmem>>, vector<2x16x16x8xf32>,
    return
  }
}

</mosaic_0001>

<llo_original>
// kernel: tpu_custom_call.1
$region0: #{tpu_custom_call.1}
  #allocation0 [shape = 'u32[]', space=smem, size = 0x4, offset = 0x4, fixed_abs, tag = 'smem constant byte address 0x4 - core index']
  #allocation1 [shape = 'u32[144,128]{1,0:T(1,128)}', space=vmem, size = 0x12000, scoped, tag = 'internal scratch']
  #allocation2 [shape = 'bf16[2,18,18,128]{3,2,1,0:T(8,128)(2,1)}', space=vmem, size = 0x36000, scoped, tag = 'scratch operand']
  %s0 = inlined_call_operand.vmem [shape: bf16[2,18,18,128], index: 0, kind: input, shape index: {}]
  %s1 = inlined_call_operand.vmem [shape: bf16[128,128], index: 1, kind: input, shape index: {}]
  %s2 = inlined_call_operand.vmem [shape: f32[1,128], index: 2, kind: input, shape index: {}]
  %s3 = inlined_call_operand.vmem [shape: f32[1,128], index: 3, kind: input, shape index: {}]
  %s4 = inlined_call_operand.vmem [shape: bf16[128,128], index: 4, kind: input, shape index: {}]
  %s5 = inlined_call_operand.vmem [shape: f32[1,128], index: 5, kind: input, shape index: {}]
  %s6 = inlined_call_operand.vmem [shape: f32[1,128], index: 6, kind: input, shape index: {}]
  %s7 = inlined_call_operand.vmem [shape: f32[2,16,16,8], index: 7, kind: output, shape index: {}]
  %s8 = sld [smem:[#allocation0]]
  $region38: #{tpu_custom_call.1} parent=0
    _
  %s10 = ssub.s32 1, %s8
  %s11 = scalar_select 0, %s10, %s8
  // Predicated region
  $region2: #{tpu_custom_call.1} parent=0 // pred_check
    _
  $region3: #{tpu_custom_call.1} parent=0 // pred_check_branch
    %13 = sbr.rel (0) target = $region5
  $region4: #{tpu_custom_call.1} parent=0 // pred_region
    _
  $region5: #{tpu_custom_call.1} parent=0 // pred_fallthru
    _
  // Predicated region
  $region6: #{tpu_custom_call.1} parent=0 // pred_check
    _
  $region7: #{tpu_custom_call.1} parent=0 // pred_check_branch
    %15 = sbr.rel (0) target = $region9
  $region8: #{tpu_custom_call.1} parent=0 // pred_region
    _
  $region9: #{tpu_custom_call.1} parent=0 // pred_fallthru
    _
  // Predicated region
  $region10: #{tpu_custom_call.1} parent=0 // pred_check
    _
  $region11: #{tpu_custom_call.1} parent=0 // pred_check_branch
    %17 = sbr.rel (0) target = $region13
  $region12: #{tpu_custom_call.1} parent=0 // pred_region
    _
  $region13: #{tpu_custom_call.1} parent=0 // pred_fallthru
    _
  // Predicated region
  $region14: #{tpu_custom_call.1} parent=0 // pred_check
    _
  $region15: #{tpu_custom_call.1} parent=0 // pred_check_branch
    %19 = sbr.rel (0) target = $region17
  $region16: #{tpu_custom_call.1} parent=0 // pred_region
    _
  $region17: #{tpu_custom_call.1} parent=0 // pred_fallthru
    _
  // Predicated region
  $region18: #{tpu_custom_call.1} parent=0 // pred_check
    _
  $region19: #{tpu_custom_call.1} parent=0 // pred_check_branch
    %21 = sbr.rel (0) target = $region21
  $region20: #{tpu_custom_call.1} parent=0 // pred_region
    _
  $region21: #{tpu_custom_call.1} parent=0 // pred_fallthru
    _
  // Predicated region
  $region22: #{tpu_custom_call.1} parent=0 // pred_check
    _
  $region23: #{tpu_custom_call.1} parent=0 // pred_check_branch
    %23 = sbr.rel (0) target = $region25
  $region24: #{tpu_custom_call.1} parent=0 // pred_region
    _
  $region25: #{tpu_custom_call.1} parent=0 // pred_fallthru
    _
  // Predicated region
  $region26: #{tpu_custom_call.1} parent=0 // pred_check
    _
  $region27: #{tpu_custom_call.1} parent=0 // pred_check_branch
    %25 = sbr.rel (0) target = $region29
  $region28: #{tpu_custom_call.1} parent=0 // pred_region
    _
  $region29: #{tpu_custom_call.1} parent=0 // pred_fallthru
    _
  %v27 = vlaneseq
  %v28 = vand.u32 %v27, 127
  %v29 = vld [vmem:[%s0] sm:$0xf]
  %v30 = vld [vmem:[%s0 + $0x4] sm:$0xf]
  %v31 = vld [vmem:[%s0 + $0xc] sm:$0xf]
  %v32 = vld [vmem:[%s0 + $0x10] sm:$0xf]
  %v33 = vld [vmem:[%s0 + $0x18] sm:$0xf]
  %v34 = vld [vmem:[%s0 + $0x1c] sm:$0xf]
  %v35 = vld [vmem:[%s0 + $0x24] sm:$0xf]
  %v36 = vld [vmem:[%s0 + $0x28] sm:$0xf]
  %v37 = vld [vmem:[%s0 + $0x30] sm:$0xf]
  %v38 = vld [vmem:[%s0 + $0x34] sm:$0xf]
  %v39 = vld [vmem:[%s0 + $0x3c] sm:$0xf]
  %v40 = vld [vmem:[%s0 + $0x40] sm:$0xf]
  %v41 = vld [vmem:[%s0 + $0x48] sm:$0xf]
  %v42 = vld [vmem:[%s0 + $0x4c] sm:$0xf]
  %v43 = vld [vmem:[%s0 + $0x54] sm:$0xf]
  %v44 = vld [vmem:[%s0 + $0x58] sm:$0xf]
  %v45 = vld [vmem:[%s0 + $0x60] sm:$0xf]
  %v46 = vld [vmem:[%s0 + $0x64] sm:$0xf]
  %v47 = vld [vmem:[%s0 + $0x6c] sm:$0xf]
  %v48 = vld [vmem:[%s0 + $0x70] sm:$0xf]
  %v49 = vld [vmem:[%s0 + $0x78] sm:$0xf]
  %v50 = vld [vmem:[%s0 + $0x7c] sm:$0xf]
  %v51 = vld [vmem:[%s0 + $0x84] sm:$0xf]
  %v52 = vld [vmem:[%s0 + $0x88] sm:$0xf]
  %v53 = vld [vmem:[%s0 + $0x90] sm:$0xf]
  %v54 = vld [vmem:[%s0 + $0x94] sm:$0xf]
  %v55 = vld [vmem:[%s0 + $0x9c] sm:$0xf]
  %v56 = vld [vmem:[%s0 + $0xa0] sm:$0xf]
  %v57 = vld [vmem:[%s0 + $0xa8] sm:$0xf]
  %v58 = vld [vmem:[%s0 + $0xac] sm:$0xf]
  %v59 = vld [vmem:[%s0 + $0xb4] sm:$0xf]
  %v60 = vld [vmem:[%s0 + $0xb8] sm:$0xf]
  %v61 = vld [vmem:[%s0 + $0xd8] sm:$0xf]
  %v62 = vld [vmem:[%s0 + $0xdc] sm:$0xf]
  %v63 = vld [vmem:[%s0 + $0xe4] sm:$0xf]
  %v64 = vld [vmem:[%s0 + $0xe8] sm:$0xf]
  %v65 = vld [vmem:[%s0 + $0xf0] sm:$0xf]
  %v66 = vld [vmem:[%s0 + $0xf4] sm:$0xf]
  %v67 = vld [vmem:[%s0 + $0xfc] sm:$0xf]
  %v68 = vld [vmem:[%s0 + $0x100] sm:$0xf]
  %v69 = vld [vmem:[%s0 + $0x108] sm:$0xf]
  %v70 = vld [vmem:[%s0 + $0x10c] sm:$0xf]
  %v71 = vld [vmem:[%s0 + $0x114] sm:$0xf]
  %v72 = vld [vmem:[%s0 + $0x118] sm:$0xf]
  %v73 = vld [vmem:[%s0 + $0x120] sm:$0xf]
  %v74 = vld [vmem:[%s0 + $0x124] sm:$0xf]
  %v75 = vld [vmem:[%s0 + $0x12c] sm:$0xf]
  %v76 = vld [vmem:[%s0 + $0x130] sm:$0xf]
  %v77 = vld [vmem:[%s0 + $0x138] sm:$0xf]
  %v78 = vld [vmem:[%s0 + $0x13c] sm:$0xf]
  %v79 = vld [vmem:[%s0 + $0x144] sm:$0xf]
  %v80 = vld [vmem:[%s0 + $0x148] sm:$0xf]
  %v81 = vld [vmem:[%s0 + $0x150] sm:$0xf]
  %v82 = vld [vmem:[%s0 + $0x154] sm:$0xf]
  %v83 = vld [vmem:[%s0 + $0x15c] sm:$0xf]
  %v84 = vld [vmem:[%s0 + $0x160] sm:$0xf]
  %v85 = vld [vmem:[%s0 + $0x168] sm:$0xf]
  %v86 = vld [vmem:[%s0 + $0x16c] sm:$0xf]
  %v87 = vld [vmem:[%s0 + $0x174] sm:$0xf]
  %v88 = vld [vmem:[%s0 + $0x178] sm:$0xf]
  %v89 = vld [vmem:[%s0 + $0x180] sm:$0xf]
  %v90 = vld [vmem:[%s0 + $0x184] sm:$0xf]
  %v91 = vld [vmem:[%s0 + $0x18c] sm:$0xf]
  %v92 = vld [vmem:[%s0 + $0x190] sm:$0xf]
  %vm93 = vcmp.ge.s32.totalorder %v28, 0
  %vm94 = vcmp.lt.s32.totalorder %v28, 4
  %vm95 = vmand %vm93, %vm94
  %v96 = vsel %vm95, 1, 0
  %vm97 = vcmp.eq.s32.totalorder %v96, 1
  %vm98 = vmpackc.low %vm97, %vm97
  %v99 = vsel %vm98, %v29, 0
  %v100 = vsel %vm98, %v30, 0
  %v101 = vsel %vm98, %v31, 0
  %v102 = vsel %vm98, %v32, 0
  %v103 = vsel %vm98, %v33, 0
  %v104 = vsel %vm98, %v34, 0
  %v105 = vsel %vm98, %v35, 0
  %v106 = vsel %vm98, %v36, 0
  %v107 = vsel %vm98, %v37, 0
  %v108 = vsel %vm98, %v38, 0
  %v109 = vsel %vm98, %v39, 0
  %v110 = vsel %vm98, %v40, 0
  %v111 = vsel %vm98, %v41, 0
  %v112 = vsel %vm98, %v42, 0
  %v113 = vsel %vm98, %v43, 0
  %v114 = vsel %vm98, %v44, 0
  %v115 = vsel %vm98, %v45, 0
  %v116 = vsel %vm98, %v46, 0
  %v117 = vsel %vm98, %v47, 0
  %v118 = vsel %vm98, %v48, 0
  %v119 = vsel %vm98, %v49, 0
  %v120 = vsel %vm98, %v50, 0
  %v121 = vsel %vm98, %v51, 0
  %v122 = vsel %vm98, %v52, 0
  %v123 = vsel %vm98, %v53, 0
  %v124 = vsel %vm98, %v54, 0
  %v125 = vsel %vm98, %v55, 0
  %v126 = vsel %vm98, %v56, 0
  %v127 = vsel %vm98, %v57, 0
  %v128 = vsel %vm98, %v58, 0
  %v129 = vsel %vm98, %v59, 0
  %v130 = vsel %vm98, %v60, 0
  %v131 = vsel %vm98, %v61, 0
  %v132 = vsel %vm98, %v62, 0
  %v133 = vsel %vm98, %v63, 0
  %v134 = vsel %vm98, %v64, 0
  %v135 = vsel %vm98, %v65, 0
  %v136 = vsel %vm98, %v66, 0
  %v137 = vsel %vm98, %v67, 0
  %v138 = vsel %vm98, %v68, 0
  %v139 = vsel %vm98, %v69, 0
  %v140 = vsel %vm98, %v70, 0
  %v141 = vsel %vm98, %v71, 0
  %v142 = vsel %vm98, %v72, 0
  %v143 = vsel %vm98, %v73, 0
  %v144 = vsel %vm98, %v74, 0
  %v145 = vsel %vm98, %v75, 0
  %v146 = vsel %vm98, %v76, 0
  %v147 = vsel %vm98, %v77, 0
  %v148 = vsel %vm98, %v78, 0
  %v149 = vsel %vm98, %v79, 0
  %v150 = vsel %vm98, %v80, 0
  %v151 = vsel %vm98, %v81, 0
  %v152 = vsel %vm98, %v82, 0
  %v153 = vsel %vm98, %v83, 0
  %v154 = vsel %vm98, %v84, 0
  %v155 = vsel %vm98, %v85, 0
  %v156 = vsel %vm98, %v86, 0
  %v157 = vsel %vm98, %v87, 0
  %v158 = vsel %vm98, %v88, 0
  %v159 = vsel %vm98, %v89, 0
  %v160 = vsel %vm98, %v90, 0
  %v161 = vsel %vm98, %v91, 0
  %v162 = vsel %vm98, %v92, 0
  %v163 = vld [vmem:[%s0 + $0x8] sm:$0x1]
  %v164 = vld [vmem:[%s0 + $0x14] sm:$0x1]
  %v165 = vld [vmem:[%s0 + $0x20] sm:$0x1]
  %v166 = vld [vmem:[%s0 + $0x2c] sm:$0x1]
  %v167 = vld [vmem:[%s0 + $0x38] sm:$0x1]
  %v168 = vld [vmem:[%s0 + $0x44] sm:$0x1]
  %v169 = vld [vmem:[%s0 + $0x50] sm:$0x1]
  %v170 = vld [vmem:[%s0 + $0x5c] sm:$0x1]
  %v171 = vld [vmem:[%s0 + $0x68] sm:$0x1]
  %v172 = vld [vmem:[%s0 + $0x74] sm:$0x1]
  %v173 = vld [vmem:[%s0 + $0x80] sm:$0x1]
  %v174 = vld [vmem:[%s0 + $0x8c] sm:$0x1]
  %v175 = vld [vmem:[%s0 + $0x98] sm:$0x1]
  %v176 = vld [vmem:[%s0 + $0xa4] sm:$0x1]
  %v177 = vld [vmem:[%s0 + $0xb0] sm:$0x1]
  %v178 = vld [vmem:[%s0 + $0xbc] sm:$0x1]
  %v179 = vld [vmem:[%s0 + $0xe0] sm:$0x1]
  %v180 = vld [vmem:[%s0 + $0xec] sm:$0x1]
  %v181 = vld [vmem:[%s0 + $0xf8] sm:$0x1]
  %v182 = vld [vmem:[%s0 + $0x104] sm:$0x1]
  %v183 = vld [vmem:[%s0 + $0x110] sm:$0x1]
  %v184 = vld [vmem:[%s0 + $0x11c] sm:$0x1]
  %v185 = vld [vmem:[%s0 + $0x128] sm:$0x1]
  %v186 = vld [vmem:[%s0 + $0x134] sm:$0x1]
  %v187 = vld [vmem:[%s0 + $0x140] sm:$0x1]
  %v188 = vld [vmem:[%s0 + $0x14c] sm:$0x1]
  %v189 = vld [vmem:[%s0 + $0x158] sm:$0x1]
  %v190 = vld [vmem:[%s0 + $0x164] sm:$0x1]
  %v191 = vld [vmem:[%s0 + $0x170] sm:$0x1]
  %v192 = vld [vmem:[%s0 + $0x17c] sm:$0x1]
  %v193 = vld [vmem:[%s0 + $0x188] sm:$0x1]
  %v194 = vld [vmem:[%s0 + $0x194] sm:$0x1]
  %vm195 = vsmask.f32 3328
  %vm196 = vsmask.f32 7440
  %vm197 = vmor %vm195, %vm196
  %v199 = vshrl.u32 %v29, 16
  %v201 = vrot.slane %v199, 4
  %v202 = vshll.u32 %v29, 16
  %v204 = vrot.slane %v202, 5
  %v205 = vor.u32 %v201, %v204
  %v206 = vrot.slane %v205, 4
  %v208 = vshll.u32 %v30, 16
  %v210 = vrot.slane %v208, 5
  %v211 = vsel %vm197, %v206, %v210
  %v212 = vshrl.u32 %v30, 16
  %v214 = vrot.slane %v212, 4
  %v215 = vor.u32 %v214, %v210
  %v216 = vrot.slane %v215, 4
  %v218 = vshll.u32 %v163, 16
  %v220 = vrot.slane %v218, 5
  %v221 = vsel %vm197, %v216, %v220
  %v223 = vshrl.u32 %v31, 16
  %v225 = vrot.slane %v223, 4
  %v226 = vshll.u32 %v31, 16
  %v228 = vrot.slane %v226, 5
  %v229 = vor.u32 %v225, %v228
  %v230 = vrot.slane %v229, 4
  %v232 = vshll.u32 %v32, 16
  %v234 = vrot.slane %v232, 5
  %v235 = vsel %vm197, %v230, %v234
  %v236 = vshrl.u32 %v32, 16
  %v238 = vrot.slane %v236, 4
  %v239 = vor.u32 %v238, %v234
  %v240 = vrot.slane %v239, 4
  %v242 = vshll.u32 %v164, 16
  %v244 = vrot.slane %v242, 5
  %v245 = vsel %vm197, %v240, %v244
  %v247 = vshrl.u32 %v33, 16
  %v249 = vrot.slane %v247, 4
  %v250 = vshll.u32 %v33, 16
  %v252 = vrot.slane %v250, 5
  %v253 = vor.u32 %v249, %v252
  %v254 = vrot.slane %v253, 4
  %v256 = vshll.u32 %v34, 16
  %v258 = vrot.slane %v256, 5
  %v259 = vsel %vm197, %v254, %v258
  %v260 = vshrl.u32 %v34, 16
  %v262 = vrot.slane %v260, 4
  %v263 = vor.u32 %v262, %v258
  %v264 = vrot.slane %v263, 4
  %v266 = vshll.u32 %v165, 16
  %v268 = vrot.slane %v266, 5
  %v269 = vsel %vm197, %v264, %v268
  %v271 = vshrl.u32 %v35, 16
  %v273 = vrot.slane %v271, 4
  %v274 = vshll.u32 %v35, 16
  %v276 = vrot.slane %v274, 5
  %v277 = vor.u32 %v273, %v276
  %v278 = vrot.slane %v277, 4
  %v280 = vshll.u32 %v36, 16
  %v282 = vrot.slane %v280, 5
  %v283 = vsel %vm197, %v278, %v282
  %v284 = vshrl.u32 %v36, 16
  %v286 = vrot.slane %v284, 4
  %v287 = vor.u32 %v286, %v282
  %v288 = vrot.slane %v287, 4
  %v290 = vshll.u32 %v166, 16
  %v292 = vrot.slane %v290, 5
  %v293 = vsel %vm197, %v288, %v292
  %v295 = vshrl.u32 %v37, 16
  %v297 = vrot.slane %v295, 4
  %v298 = vshll.u32 %v37, 16
  %v300 = vrot.slane %v298, 5
  %v301 = vor.u32 %v297, %v300
  %v302 = vrot.slane %v301, 4
  %v304 = vshll.u32 %v38, 16
  %v306 = vrot.slane %v304, 5
  %v307 = vsel %vm197, %v302, %v306
  %v308 = vshrl.u32 %v38, 16
  %v310 = vrot.slane %v308, 4
  %v311 = vor.u32 %v310, %v306
  %v312 = vrot.slane %v311, 4
  %v314 = vshll.u32 %v167, 16
  %v316 = vrot.slane %v314, 5
  %v317 = vsel %vm197, %v312, %v316
  %v319 = vshrl.u32 %v39, 16
  %v321 = vrot.slane %v319, 4
  %v322 = vshll.u32 %v39, 16
  %v324 = vrot.slane %v322, 5
  %v325 = vor.u32 %v321, %v324
  %v326 = vrot.slane %v325, 4
  %v328 = vshll.u32 %v40, 16
  %v330 = vrot.slane %v328, 5
  %v331 = vsel %vm197, %v326, %v330
  %v332 = vshrl.u32 %v40, 16
  %v334 = vrot.slane %v332, 4
  %v335 = vor.u32 %v334, %v330
  %v336 = vrot.slane %v335, 4
  %v338 = vshll.u32 %v168, 16
  %v340 = vrot.slane %v338, 5
  %v341 = vsel %vm197, %v336, %v340
  %v343 = vshrl.u32 %v41, 16
  %v345 = vrot.slane %v343, 4
  %v346 = vshll.u32 %v41, 16
  %v348 = vrot.slane %v346, 5
  %v349 = vor.u32 %v345, %v348
  %v350 = vrot.slane %v349, 4
  %v352 = vshll.u32 %v42, 16
  %v354 = vrot.slane %v352, 5
  %v355 = vsel %vm197, %v350, %v354
  %v356 = vshrl.u32 %v42, 16
  %v358 = vrot.slane %v356, 4
  %v359 = vor.u32 %v358, %v354
  %v360 = vrot.slane %v359, 4
  %v362 = vshll.u32 %v169, 16
  %v364 = vrot.slane %v362, 5
  %v365 = vsel %vm197, %v360, %v364
  %v367 = vshrl.u32 %v43, 16
  %v369 = vrot.slane %v367, 4
  %v370 = vshll.u32 %v43, 16
  %v372 = vrot.slane %v370, 5
  %v373 = vor.u32 %v369, %v372
  %v374 = vrot.slane %v373, 4
  %v376 = vshll.u32 %v44, 16
  %v378 = vrot.slane %v376, 5
  %v379 = vsel %vm197, %v374, %v378
  %v380 = vshrl.u32 %v44, 16
  %v382 = vrot.slane %v380, 4
  %v383 = vor.u32 %v382, %v378
  %v384 = vrot.slane %v383, 4
  %v386 = vshll.u32 %v170, 16
  %v388 = vrot.slane %v386, 5
  %v389 = vsel %vm197, %v384, %v388
  %v391 = vshrl.u32 %v45, 16
  %v393 = vrot.slane %v391, 4
  %v394 = vshll.u32 %v45, 16
  %v396 = vrot.slane %v394, 5
  %v397 = vor.u32 %v393, %v396
  %v398 = vrot.slane %v397, 4
  %v400 = vshll.u32 %v46, 16
  %v402 = vrot.slane %v400, 5
  %v403 = vsel %vm197, %v398, %v402
  %v404 = vshrl.u32 %v46, 16
  %v406 = vrot.slane %v404, 4
  %v407 = vor.u32 %v406, %v402
  %v408 = vrot.slane %v407, 4
  %v410 = vshll.u32 %v171, 16
  %v412 = vrot.slane %v410, 5
  %v413 = vsel %vm197, %v408, %v412
  %v415 = vshrl.u32 %v47, 16
  %v417 = vrot.slane %v415, 4
  %v418 = vshll.u32 %v47, 16
  %v420 = vrot.slane %v418, 5
  %v421 = vor.u32 %v417, %v420
  %v422 = vrot.slane %v421, 4
  %v424 = vshll.u32 %v48, 16
  %v426 = vrot.slane %v424, 5
  %v427 = vsel %vm197, %v422, %v426
  %v428 = vshrl.u32 %v48, 16
  %v430 = vrot.slane %v428, 4
  %v431 = vor.u32 %v430, %v426
  %v432 = vrot.slane %v431, 4
  %v434 = vshll.u32 %v172, 16
  %v436 = vrot.slane %v434, 5
  %v437 = vsel %vm197, %v432, %v436
  %v439 = vshrl.u32 %v49, 16
  %v441 = vrot.slane %v439, 4
  %v442 = vshll.u32 %v49, 16
  %v444 = vrot.slane %v442, 5
  %v445 = vor.u32 %v441, %v444
  %v446 = vrot.slane %v445, 4
  %v448 = vshll.u32 %v50, 16
  %v450 = vrot.slane %v448, 5
  %v451 = vsel %vm197, %v446, %v450
  %v452 = vshrl.u32 %v50, 16
  %v454 = vrot.slane %v452, 4
  %v455 = vor.u32 %v454, %v450
  %v456 = vrot.slane %v455, 4
  %v458 = vshll.u32 %v173, 16
  %v460 = vrot.slane %v458, 5
  %v461 = vsel %vm197, %v456, %v460
  %v463 = vshrl.u32 %v51, 16
  %v465 = vrot.slane %v463, 4
  %v466 = vshll.u32 %v51, 16
  %v468 = vrot.slane %v466, 5
  %v469 = vor.u32 %v465, %v468
  %v470 = vrot.slane %v469, 4
  %v472 = vshll.u32 %v52, 16
  %v474 = vrot.slane %v472, 5
  %v475 = vsel %vm197, %v470, %v474
  %v476 = vshrl.u32 %v52, 16
  %v478 = vrot.slane %v476, 4
  %v479 = vor.u32 %v478, %v474
  %v480 = vrot.slane %v479, 4
  %v482 = vshll.u32 %v174, 16
  %v484 = vrot.slane %v482, 5
  %v485 = vsel %vm197, %v480, %v484
  %v487 = vshrl.u32 %v53, 16
  %v489 = vrot.slane %v487, 4
  %v490 = vshll.u32 %v53, 16
  %v492 = vrot.slane %v490, 5
  %v493 = vor.u32 %v489, %v492
  %v494 = vrot.slane %v493, 4
  %v496 = vshll.u32 %v54, 16
  %v498 = vrot.slane %v496, 5
  %v499 = vsel %vm197, %v494, %v498
  %v500 = vshrl.u32 %v54, 16
  %v502 = vrot.slane %v500, 4
  %v503 = vor.u32 %v502, %v498
  %v504 = vrot.slane %v503, 4
  %v506 = vshll.u32 %v175, 16
  %v508 = vrot.slane %v506, 5
  %v509 = vsel %vm197, %v504, %v508
  %v511 = vshrl.u32 %v55, 16
  %v513 = vrot.slane %v511, 4
  %v514 = vshll.u32 %v55, 16
  %v516 = vrot.slane %v514, 5
  %v517 = vor.u32 %v513, %v516
  %v518 = vrot.slane %v517, 4
  %v520 = vshll.u32 %v56, 16
  %v522 = vrot.slane %v520, 5
  %v523 = vsel %vm197, %v518, %v522
  %v524 = vshrl.u32 %v56, 16
  %v526 = vrot.slane %v524, 4
  %v527 = vor.u32 %v526, %v522
  %v528 = vrot.slane %v527, 4
  %v530 = vshll.u32 %v176, 16
  %v532 = vrot.slane %v530, 5
  %v533 = vsel %vm197, %v528, %v532
  %v535 = vshrl.u32 %v57, 16
  %v537 = vrot.slane %v535, 4
  %v538 = vshll.u32 %v57, 16
  %v540 = vrot.slane %v538, 5
  %v541 = vor.u32 %v537, %v540
  %v542 = vrot.slane %v541, 4
  %v544 = vshll.u32 %v58, 16
  %v546 = vrot.slane %v544, 5
  %v547 = vsel %vm197, %v542, %v546
  %v548 = vshrl.u32 %v58, 16
  %v550 = vrot.slane %v548, 4
  %v551 = vor.u32 %v550, %v546
  %v552 = vrot.slane %v551, 4
  %v554 = vshll.u32 %v177, 16
  %v556 = vrot.slane %v554, 5
  %v557 = vsel %vm197, %v552, %v556
  %v559 = vshrl.u32 %v59, 16
  %v561 = vrot.slane %v559, 4
  %v562 = vshll.u32 %v59, 16
  %v564 = vrot.slane %v562, 5
  %v565 = vor.u32 %v561, %v564
  %v566 = vrot.slane %v565, 4
  %v568 = vshll.u32 %v60, 16
  %v570 = vrot.slane %v568, 5
  %v571 = vsel %vm197, %v566, %v570
  %v572 = vshrl.u32 %v60, 16
  %v574 = vrot.slane %v572, 4
  %v575 = vor.u32 %v574, %v570
  %v576 = vrot.slane %v575, 4
  %v578 = vshll.u32 %v178, 16
  %v580 = vrot.slane %v578, 5
  %v581 = vsel %vm197, %v576, %v580
  %v583 = vshrl.u32 %v61, 16
  %v585 = vrot.slane %v583, 4
  %v586 = vshll.u32 %v61, 16
  %v588 = vrot.slane %v586, 5
  %v589 = vor.u32 %v585, %v588
  %v590 = vrot.slane %v589, 4
  %v592 = vshll.u32 %v62, 16
  %v594 = vrot.slane %v592, 5
  %v595 = vsel %vm197, %v590, %v594
  %v596 = vshrl.u32 %v62, 16
  %v598 = vrot.slane %v596, 4
  %v599 = vor.u32 %v598, %v594
  %v600 = vrot.slane %v599, 4
  %v602 = vshll.u32 %v179, 16
  %v604 = vrot.slane %v602, 5
  %v605 = vsel %vm197, %v600, %v604
  %v607 = vshrl.u32 %v63, 16
  %v609 = vrot.slane %v607, 4
  %v610 = vshll.u32 %v63, 16
  %v612 = vrot.slane %v610, 5
  %v613 = vor.u32 %v609, %v612
  %v614 = vrot.slane %v613, 4
  %v616 = vshll.u32 %v64, 16
  %v618 = vrot.slane %v616, 5
  %v619 = vsel %vm197, %v614, %v618
  %v620 = vshrl.u32 %v64, 16
  %v622 = vrot.slane %v620, 4
  %v623 = vor.u32 %v622, %v618
  %v624 = vrot.slane %v623, 4
  %v626 = vshll.u32 %v180, 16
  %v628 = vrot.slane %v626, 5
  %v629 = vsel %vm197, %v624, %v628
  %v631 = vshrl.u32 %v65, 16
  %v633 = vrot.slane %v631, 4
  %v634 = vshll.u32 %v65, 16
  %v636 = vrot.slane %v634, 5
  %v637 = vor.u32 %v633, %v636
  %v638 = vrot.slane %v637, 4
  %v640 = vshll.u32 %v66, 16
  %v642 = vrot.slane %v640, 5
  %v643 = vsel %vm197, %v638, %v642
  %v644 = vshrl.u32 %v66, 16
  %v646 = vrot.slane %v644, 4
  %v647 = vor.u32 %v646, %v642
  %v648 = vrot.slane %v647, 4
  %v650 = vshll.u32 %v181, 16
  %v652 = vrot.slane %v650, 5
  %v653 = vsel %vm197, %v648, %v652
  %v655 = vshrl.u32 %v67, 16
  %v657 = vrot.slane %v655, 4
  %v658 = vshll.u32 %v67, 16
  %v660 = vrot.slane %v658, 5
  %v661 = vor.u32 %v657, %v660
  %v662 = vrot.slane %v661, 4
  %v664 = vshll.u32 %v68, 16
  %v666 = vrot.slane %v664, 5
  %v667 = vsel %vm197, %v662, %v666
  %v668 = vshrl.u32 %v68, 16
  %v670 = vrot.slane %v668, 4
  %v671 = vor.u32 %v670, %v666
  %v672 = vrot.slane %v671, 4
  %v674 = vshll.u32 %v182, 16
  %v676 = vrot.slane %v674, 5
  %v677 = vsel %vm197, %v672, %v676
  %v679 = vshrl.u32 %v69, 16
  %v681 = vrot.slane %v679, 4
  %v682 = vshll.u32 %v69, 16
  %v684 = vrot.slane %v682, 5
  %v685 = vor.u32 %v681, %v684
  %v686 = vrot.slane %v685, 4
  %v688 = vshll.u32 %v70, 16
  %v690 = vrot.slane %v688, 5
  %v691 = vsel %vm197, %v686, %v690
  %v692 = vshrl.u32 %v70, 16
  %v694 = vrot.slane %v692, 4
  %v695 = vor.u32 %v694, %v690
  %v696 = vrot.slane %v695, 4
  %v698 = vshll.u32 %v183, 16
  %v700 = vrot.slane %v698, 5
  %v701 = vsel %vm197, %v696, %v700
  %v703 = vshrl.u32 %v71, 16
  %v705 = vrot.slane %v703, 4
  %v706 = vshll.u32 %v71, 16
  %v708 = vrot.slane %v706, 5
  %v709 = vor.u32 %v705, %v708
  %v710 = vrot.slane %v709, 4
  %v712 = vshll.u32 %v72, 16
  %v714 = vrot.slane %v712, 5
  %v715 = vsel %vm197, %v710, %v714
  %v716 = vshrl.u32 %v72, 16
  %v718 = vrot.slane %v716, 4
  %v719 = vor.u32 %v718, %v714
  %v720 = vrot.slane %v719, 4
  %v722 = vshll.u32 %v184, 16
  %v724 = vrot.slane %v722, 5
  %v725 = vsel %vm197, %v720, %v724
  %v727 = vshrl.u32 %v73, 16
  %v729 = vrot.slane %v727, 4
  %v730 = vshll.u32 %v73, 16
  %v732 = vrot.slane %v730, 5
  %v733 = vor.u32 %v729, %v732
  %v734 = vrot.slane %v733, 4
  %v736 = vshll.u32 %v74, 16
  %v738 = vrot.slane %v736, 5
  %v739 = vsel %vm197, %v734, %v738
  %v740 = vshrl.u32 %v74, 16
  %v742 = vrot.slane %v740, 4
  %v743 = vor.u32 %v742, %v738
  %v744 = vrot.slane %v743, 4
  %v746 = vshll.u32 %v185, 16
  %v748 = vrot.slane %v746, 5
  %v749 = vsel %vm197, %v744, %v748
  %v751 = vshrl.u32 %v75, 16
  %v753 = vrot.slane %v751, 4
  %v754 = vshll.u32 %v75, 16
  %v756 = vrot.slane %v754, 5
  %v757 = vor.u32 %v753, %v756
  %v758 = vrot.slane %v757, 4
  %v760 = vshll.u32 %v76, 16
  %v762 = vrot.slane %v760, 5
  %v763 = vsel %vm197, %v758, %v762
  %v764 = vshrl.u32 %v76, 16
  %v766 = vrot.slane %v764, 4
  %v767 = vor.u32 %v766, %v762
  %v768 = vrot.slane %v767, 4
  %v770 = vshll.u32 %v186, 16
  %v772 = vrot.slane %v770, 5
  %v773 = vsel %vm197, %v768, %v772
  %v775 = vshrl.u32 %v77, 16
  %v777 = vrot.slane %v775, 4
  %v778 = vshll.u32 %v77, 16
  %v780 = vrot.slane %v778, 5
  %v781 = vor.u32 %v777, %v780
  %v782 = vrot.slane %v781, 4
  %v784 = vshll.u32 %v78, 16
  %v786 = vrot.slane %v784, 5
  %v787 = vsel %vm197, %v782, %v786
  %v788 = vshrl.u32 %v78, 16
  %v790 = vrot.slane %v788, 4
  %v791 = vor.u32 %v790, %v786
  %v792 = vrot.slane %v791, 4
  %v794 = vshll.u32 %v187, 16
  %v796 = vrot.slane %v794, 5
  %v797 = vsel %vm197, %v792, %v796
  %v799 = vshrl.u32 %v79, 16
  %v801 = vrot.slane %v799, 4
  %v802 = vshll.u32 %v79, 16
  %v804 = vrot.slane %v802, 5
  %v805 = vor.u32 %v801, %v804
  %v806 = vrot.slane %v805, 4
  %v808 = vshll.u32 %v80, 16
  %v810 = vrot.slane %v808, 5
  %v811 = vsel %vm197, %v806, %v810
  %v812 = vshrl.u32 %v80, 16
  %v814 = vrot.slane %v812, 4
  %v815 = vor.u32 %v814, %v810
  %v816 = vrot.slane %v815, 4
  %v818 = vshll.u32 %v188, 16
  %v820 = vrot.slane %v818, 5
  %v821 = vsel %vm197, %v816, %v820
  %v823 = vshrl.u32 %v81, 16
  %v825 = vrot.slane %v823, 4
  %v826 = vshll.u32 %v81, 16
  %v828 = vrot.slane %v826, 5
  %v829 = vor.u32 %v825, %v828
  %v830 = vrot.slane %v829, 4
  %v832 = vshll.u32 %v82, 16
  %v834 = vrot.slane %v832, 5
  %v835 = vsel %vm197, %v830, %v834
  %v836 = vshrl.u32 %v82, 16
  %v838 = vrot.slane %v836, 4
  %v839 = vor.u32 %v838, %v834
  %v840 = vrot.slane %v839, 4
  %v842 = vshll.u32 %v189, 16
  %v844 = vrot.slane %v842, 5
  %v845 = vsel %vm197, %v840, %v844
  %v847 = vshrl.u32 %v83, 16
  %v849 = vrot.slane %v847, 4
  %v850 = vshll.u32 %v83, 16
  %v852 = vrot.slane %v850, 5
  %v853 = vor.u32 %v849, %v852
  %v854 = vrot.slane %v853, 4
  %v856 = vshll.u32 %v84, 16
  %v858 = vrot.slane %v856, 5
  %v859 = vsel %vm197, %v854, %v858
  %v860 = vshrl.u32 %v84, 16
  %v862 = vrot.slane %v860, 4
  %v863 = vor.u32 %v862, %v858
  %v864 = vrot.slane %v863, 4
  %v866 = vshll.u32 %v190, 16
  %v868 = vrot.slane %v866, 5
  %v869 = vsel %vm197, %v864, %v868
  %v871 = vshrl.u32 %v85, 16
  %v873 = vrot.slane %v871, 4
  %v874 = vshll.u32 %v85, 16
  %v876 = vrot.slane %v874, 5
  %v877 = vor.u32 %v873, %v876
  %v878 = vrot.slane %v877, 4
  %v880 = vshll.u32 %v86, 16
  %v882 = vrot.slane %v880, 5
  %v883 = vsel %vm197, %v878, %v882
  %v884 = vshrl.u32 %v86, 16
  %v886 = vrot.slane %v884, 4
  %v887 = vor.u32 %v886, %v882
  %v888 = vrot.slane %v887, 4
  %v890 = vshll.u32 %v191, 16
  %v892 = vrot.slane %v890, 5
  %v893 = vsel %vm197, %v888, %v892
  %v895 = vshrl.u32 %v87, 16
  %v897 = vrot.slane %v895, 4
  %v898 = vshll.u32 %v87, 16
  %v900 = vrot.slane %v898, 5
  %v901 = vor.u32 %v897, %v900
  %v902 = vrot.slane %v901, 4
  %v904 = vshll.u32 %v88, 16
  %v906 = vrot.slane %v904, 5
  %v907 = vsel %vm197, %v902, %v906
  %v908 = vshrl.u32 %v88, 16
  %v910 = vrot.slane %v908, 4
  %v911 = vor.u32 %v910, %v906
  %v912 = vrot.slane %v911, 4
  %v914 = vshll.u32 %v192, 16
  %v916 = vrot.slane %v914, 5
  %v917 = vsel %vm197, %v912, %v916
  %v919 = vshrl.u32 %v89, 16
  %v921 = vrot.slane %v919, 4
  %v922 = vshll.u32 %v89, 16
  %v924 = vrot.slane %v922, 5
  %v925 = vor.u32 %v921, %v924
  %v926 = vrot.slane %v925, 4
  %v928 = vshll.u32 %v90, 16
  %v930 = vrot.slane %v928, 5
  %v931 = vsel %vm197, %v926, %v930
  %v932 = vshrl.u32 %v90, 16
  %v934 = vrot.slane %v932, 4
  %v935 = vor.u32 %v934, %v930
  %v936 = vrot.slane %v935, 4
  %v938 = vshll.u32 %v193, 16
  %v940 = vrot.slane %v938, 5
  %v941 = vsel %vm197, %v936, %v940
  %v943 = vshrl.u32 %v91, 16
  %v945 = vrot.slane %v943, 4
  %v946 = vshll.u32 %v91, 16
  %v948 = vrot.slane %v946, 5
  %v949 = vor.u32 %v945, %v948
  %v950 = vrot.slane %v949, 4
  %v952 = vshll.u32 %v92, 16
  %v954 = vrot.slane %v952, 5
  %v955 = vsel %vm197, %v950, %v954
  %v956 = vshrl.u32 %v92, 16
  %v958 = vrot.slane %v956, 4
  %v959 = vor.u32 %v958, %v954
  %v960 = vrot.slane %v959, 4
  %v962 = vshll.u32 %v194, 16
  %v964 = vrot.slane %v962, 5
  %v965 = vsel %vm197, %v960, %v964
  %vm1030 = vcmp.ge.s32.totalorder %v28, 4
  %vm1031 = vcmp.lt.s32.totalorder %v28, 8
  %vm1032 = vmand %vm1030, %vm1031
  %v1033 = vsel %vm1032, 1, 0
  %vm1034 = vcmp.eq.s32.totalorder %v1033, 1
  %vm1035 = vmpackc.low %vm1034, %vm1034
  %v1036 = vsel %vm1035, %v211, %v99
  %v1037 = vsel %vm1035, %v221, %v100
  %v1038 = vsel %vm1035, %v235, %v101
  %v1039 = vsel %vm1035, %v245, %v102
  %v1040 = vsel %vm1035, %v259, %v103
  %v1041 = vsel %vm1035, %v269, %v104
  %v1042 = vsel %vm1035, %v283, %v105
  %v1043 = vsel %vm1035, %v293, %v106
  %v1044 = vsel %vm1035, %v307, %v107
  %v1045 = vsel %vm1035, %v317, %v108
  %v1046 = vsel %vm1035, %v331, %v109
  %v1047 = vsel %vm1035, %v341, %v110
  %v1048 = vsel %vm1035, %v355, %v111
  %v1049 = vsel %vm1035, %v365, %v112
  %v1050 = vsel %vm1035, %v379, %v113
  %v1051 = vsel %vm1035, %v389, %v114
  %v1052 = vsel %vm1035, %v403, %v115
  %v1053 = vsel %vm1035, %v413, %v116
  %v1054 = vsel %vm1035, %v427, %v117
  %v1055 = vsel %vm1035, %v437, %v118
  %v1056 = vsel %vm1035, %v451, %v119
  %v1057 = vsel %vm1035, %v461, %v120
  %v1058 = vsel %vm1035, %v475, %v121
  %v1059 = vsel %vm1035, %v485, %v122
  %v1060 = vsel %vm1035, %v499, %v123
  %v1061 = vsel %vm1035, %v509, %v124
  %v1062 = vsel %vm1035, %v523, %v125
  %v1063 = vsel %vm1035, %v533, %v126
  %v1064 = vsel %vm1035, %v547, %v127
  %v1065 = vsel %vm1035, %v557, %v128
  %v1066 = vsel %vm1035, %v571, %v129
  %v1067 = vsel %vm1035, %v581, %v130
  %v1068 = vsel %vm1035, %v595, %v131
  %v1069 = vsel %vm1035, %v605, %v132
  %v1070 = vsel %vm1035, %v619, %v133
  %v1071 = vsel %vm1035, %v629, %v134
  %v1072 = vsel %vm1035, %v643, %v135
  %v1073 = vsel %vm1035, %v653, %v136
  %v1074 = vsel %vm1035, %v667, %v137
  %v1075 = vsel %vm1035, %v677, %v138
  %v1076 = vsel %vm1035, %v691, %v139
  %v1077 = vsel %vm1035, %v701, %v140
  %v1078 = vsel %vm1035, %v715, %v141
  %v1079 = vsel %vm1035, %v725, %v142
  %v1080 = vsel %vm1035, %v739, %v143
  %v1081 = vsel %vm1035, %v749, %v144
  %v1082 = vsel %vm1035, %v763, %v145
  %v1083 = vsel %vm1035, %v773, %v146
  %v1084 = vsel %vm1035, %v787, %v147
  %v1085 = vsel %vm1035, %v797, %v148
  %v1086 = vsel %vm1035, %v811, %v149
  %v1087 = vsel %vm1035, %v821, %v150
  %v1088 = vsel %vm1035, %v835, %v151
  %v1089 = vsel %vm1035, %v845, %v152
  %v1090 = vsel %vm1035, %v859, %v153
  %v1091 = vsel %vm1035, %v869, %v154
  %v1092 = vsel %vm1035, %v883, %v155
  %v1093 = vsel %vm1035, %v893, %v156
  %v1094 = vsel %vm1035, %v907, %v157
  %v1095 = vsel %vm1035, %v917, %v158
  %v1096 = vsel %vm1035, %v931, %v159
  %v1097 = vsel %vm1035, %v941, %v160
  %v1098 = vsel %vm1035, %v955, %v161
  %v1099 = vsel %vm1035, %v965, %v162
  %v1100 = vld [vmem:[%s0] sm:$0xe]
  %v1101 = vld [vmem:[%s0 + $0xc] sm:$0xe]
  %v1102 = vld [vmem:[%s0 + $0x18] sm:$0xe]
  %v1103 = vld [vmem:[%s0 + $0x24] sm:$0xe]
  %v1104 = vld [vmem:[%s0 + $0x30] sm:$0xe]
  %v1105 = vld [vmem:[%s0 + $0x3c] sm:$0xe]
  %v1106 = vld [vmem:[%s0 + $0x48] sm:$0xe]
  %v1107 = vld [vmem:[%s0 + $0x54] sm:$0xe]
  %v1108 = vld [vmem:[%s0 + $0x60] sm:$0xe]
  %v1109 = vld [vmem:[%s0 + $0x6c] sm:$0xe]
  %v1110 = vld [vmem:[%s0 + $0x78] sm:$0xe]
  %v1111 = vld [vmem:[%s0 + $0x84] sm:$0xe]
  %v1112 = vld [vmem:[%s0 + $0x90] sm:$0xe]
  %v1113 = vld [vmem:[%s0 + $0x9c] sm:$0xe]
  %v1114 = vld [vmem:[%s0 + $0xa8] sm:$0xe]
  %v1115 = vld [vmem:[%s0 + $0xb4] sm:$0xe]
  %v1116 = vld [vmem:[%s0 + $0xd8] sm:$0xe]
  %v1117 = vld [vmem:[%s0 + $0xe4] sm:$0xe]
  %v1118 = vld [vmem:[%s0 + $0xf0] sm:$0xe]
  %v1119 = vld [vmem:[%s0 + $0xfc] sm:$0xe]
  %v1120 = vld [vmem:[%s0 + $0x108] sm:$0xe]
  %v1121 = vld [vmem:[%s0 + $0x114] sm:$0xe]
  %v1122 = vld [vmem:[%s0 + $0x120] sm:$0xe]
  %v1123 = vld [vmem:[%s0 + $0x12c] sm:$0xe]
  %v1124 = vld [vmem:[%s0 + $0x138] sm:$0xe]
  %v1125 = vld [vmem:[%s0 + $0x144] sm:$0xe]
  %v1126 = vld [vmem:[%s0 + $0x150] sm:$0xe]
  %v1127 = vld [vmem:[%s0 + $0x15c] sm:$0xe]
  %v1128 = vld [vmem:[%s0 + $0x168] sm:$0xe]
  %v1129 = vld [vmem:[%s0 + $0x174] sm:$0xe]
  %v1130 = vld [vmem:[%s0 + $0x180] sm:$0xe]
  %v1131 = vld [vmem:[%s0 + $0x18c] sm:$0xe]
  %vm1228 = vcmask 1042432
  %vm1229 = vcmask 1046532
  %vm1230 = vmor %vm1228, %vm1229
  %v1231 = vrot.slane %v1100, 5
  %v1232 = vrot.slane %v1231, 4
  %v1233 = vrot.slane %v30, 5
  %v1234 = vsel %vm1230, %v1232, %v1233
  %v1235 = vrot.slane %v1233, 4
  %v1236 = vrot.slane %v163, 5
  %v1237 = vsel %vm1230, %v1235, %v1236
  %v1238 = vrot.slane %v1101, 5
  %v1239 = vrot.slane %v1238, 4
  %v1240 = vrot.slane %v32, 5
  %v1241 = vsel %vm1230, %v1239, %v1240
  %v1242 = vrot.slane %v1240, 4
  %v1243 = vrot.slane %v164, 5
  %v1244 = vsel %vm1230, %v1242, %v1243
  %v1245 = vrot.slane %v1102, 5
  %v1246 = vrot.slane %v1245, 4
  %v1247 = vrot.slane %v34, 5
  %v1248 = vsel %vm1230, %v1246, %v1247
  %v1249 = vrot.slane %v1247, 4
  %v1250 = vrot.slane %v165, 5
  %v1251 = vsel %vm1230, %v1249, %v1250
  %v1252 = vrot.slane %v1103, 5
  %v1253 = vrot.slane %v1252, 4
  %v1254 = vrot.slane %v36, 5
  %v1255 = vsel %vm1230, %v1253, %v1254
  %v1256 = vrot.slane %v1254, 4
  %v1257 = vrot.slane %v166, 5
  %v1258 = vsel %vm1230, %v1256, %v1257
  %v1259 = vrot.slane %v1104, 5
  %v1260 = vrot.slane %v1259, 4
  %v1261 = vrot.slane %v38, 5
  %v1262 = vsel %vm1230, %v1260, %v1261
  %v1263 = vrot.slane %v1261, 4
  %v1264 = vrot.slane %v167, 5
  %v1265 = vsel %vm1230, %v1263, %v1264
  %v1266 = vrot.slane %v1105, 5
  %v1267 = vrot.slane %v1266, 4
  %v1268 = vrot.slane %v40, 5
  %v1269 = vsel %vm1230, %v1267, %v1268
  %v1270 = vrot.slane %v1268, 4
  %v1271 = vrot.slane %v168, 5
  %v1272 = vsel %vm1230, %v1270, %v1271
  %v1273 = vrot.slane %v1106, 5
  %v1274 = vrot.slane %v1273, 4
  %v1275 = vrot.slane %v42, 5
  %v1276 = vsel %vm1230, %v1274, %v1275
  %v1277 = vrot.slane %v1275, 4
  %v1278 = vrot.slane %v169, 5
  %v1279 = vsel %vm1230, %v1277, %v1278
  %v1280 = vrot.slane %v1107, 5
  %v1281 = vrot.slane %v1280, 4
  %v1282 = vrot.slane %v44, 5
  %v1283 = vsel %vm1230, %v1281, %v1282
  %v1284 = vrot.slane %v1282, 4
  %v1285 = vrot.slane %v170, 5
  %v1286 = vsel %vm1230, %v1284, %v1285
  %v1287 = vrot.slane %v1108, 5
  %v1288 = vrot.slane %v1287, 4
  %v1289 = vrot.slane %v46, 5
  %v1290 = vsel %vm1230, %v1288, %v1289
  %v1291 = vrot.slane %v1289, 4
  %v1292 = vrot.slane %v171, 5
  %v1293 = vsel %vm1230, %v1291, %v1292
  %v1294 = vrot.slane %v1109, 5
  %v1295 = vrot.slane %v1294, 4
  %v1296 = vrot.slane %v48, 5
  %v1297 = vsel %vm1230, %v1295, %v1296
  %v1298 = vrot.slane %v1296, 4
  %v1299 = vrot.slane %v172, 5
  %v1300 = vsel %vm1230, %v1298, %v1299
  %v1301 = vrot.slane %v1110, 5
  %v1302 = vrot.slane %v1301, 4
  %v1303 = vrot.slane %v50, 5
  %v1304 = vsel %vm1230, %v1302, %v1303
  %v1305 = vrot.slane %v1303, 4
  %v1306 = vrot.slane %v173, 5
  %v1307 = vsel %vm1230, %v1305, %v1306
  %v1308 = vrot.slane %v1111, 5
  %v1309 = vrot.slane %v1308, 4
  %v1310 = vrot.slane %v52, 5
  %v1311 = vsel %vm1230, %v1309, %v1310
  %v1312 = vrot.slane %v1310, 4
  %v1313 = vrot.slane %v174, 5
  %v1314 = vsel %vm1230, %v1312, %v1313
  %v1315 = vrot.slane %v1112, 5
  %v1316 = vrot.slane %v1315, 4
  %v1317 = vrot.slane %v54, 5
  %v1318 = vsel %vm1230, %v1316, %v1317
  %v1319 = vrot.slane %v1317, 4
  %v1320 = vrot.slane %v175, 5
  %v1321 = vsel %vm1230, %v1319, %v1320
  %v1322 = vrot.slane %v1113, 5
  %v1323 = vrot.slane %v1322, 4
  %v1324 = vrot.slane %v56, 5
  %v1325 = vsel %vm1230, %v1323, %v1324
  %v1326 = vrot.slane %v1324, 4
  %v1327 = vrot.slane %v176, 5
  %v1328 = vsel %vm1230, %v1326, %v1327
  %v1329 = vrot.slane %v1114, 5
  %v1330 = vrot.slane %v1329, 4
  %v1331 = vrot.slane %v58, 5
  %v1332 = vsel %vm1230, %v1330, %v1331
  %v1333 = vrot.slane %v1331, 4
  %v1334 = vrot.slane %v177, 5
  %v1335 = vsel %vm1230, %v1333, %v1334
  %v1336 = vrot.slane %v1115, 5
  %v1337 = vrot.slane %v1336, 4
  %v1338 = vrot.slane %v60, 5
  %v1339 = vsel %vm1230, %v1337, %v1338
  %v1340 = vrot.slane %v1338, 4
  %v1341 = vrot.slane %v178, 5
  %v1342 = vsel %vm1230, %v1340, %v1341
  %v1343 = vrot.slane %v1116, 5
  %v1344 = vrot.slane %v1343, 4
  %v1345 = vrot.slane %v62, 5
  %v1346 = vsel %vm1230, %v1344, %v1345
  %v1347 = vrot.slane %v1345, 4
  %v1348 = vrot.slane %v179, 5
  %v1349 = vsel %vm1230, %v1347, %v1348
  %v1350 = vrot.slane %v1117, 5
  %v1351 = vrot.slane %v1350, 4
  %v1352 = vrot.slane %v64, 5
  %v1353 = vsel %vm1230, %v1351, %v1352
  %v1354 = vrot.slane %v1352, 4
  %v1355 = vrot.slane %v180, 5
  %v1356 = vsel %vm1230, %v1354, %v1355
  %v1357 = vrot.slane %v1118, 5
  %v1358 = vrot.slane %v1357, 4
  %v1359 = vrot.slane %v66, 5
  %v1360 = vsel %vm1230, %v1358, %v1359
  %v1361 = vrot.slane %v1359, 4
  %v1362 = vrot.slane %v181, 5
  %v1363 = vsel %vm1230, %v1361, %v1362
  %v1364 = vrot.slane %v1119, 5
  %v1365 = vrot.slane %v1364, 4
  %v1366 = vrot.slane %v68, 5
  %v1367 = vsel %vm1230, %v1365, %v1366
  %v1368 = vrot.slane %v1366, 4
  %v1369 = vrot.slane %v182, 5
  %v1370 = vsel %vm1230, %v1368, %v1369
  %v1371 = vrot.slane %v1120, 5
  %v1372 = vrot.slane %v1371, 4
  %v1373 = vrot.slane %v70, 5
  %v1374 = vsel %vm1230, %v1372, %v1373
  %v1375 = vrot.slane %v1373, 4
  %v1376 = vrot.slane %v183, 5
  %v1377 = vsel %vm1230, %v1375, %v1376
  %v1378 = vrot.slane %v1121, 5
  %v1379 = vrot.slane %v1378, 4
  %v1380 = vrot.slane %v72, 5
  %v1381 = vsel %vm1230, %v1379, %v1380
  %v1382 = vrot.slane %v1380, 4
  %v1383 = vrot.slane %v184, 5
  %v1384 = vsel %vm1230, %v1382, %v1383
  %v1385 = vrot.slane %v1122, 5
  %v1386 = vrot.slane %v1385, 4
  %v1387 = vrot.slane %v74, 5
  %v1388 = vsel %vm1230, %v1386, %v1387
  %v1389 = vrot.slane %v1387, 4
  %v1390 = vrot.slane %v185, 5
  %v1391 = vsel %vm1230, %v1389, %v1390
  %v1392 = vrot.slane %v1123, 5
  %v1393 = vrot.slane %v1392, 4
  %v1394 = vrot.slane %v76, 5
  %v1395 = vsel %vm1230, %v1393, %v1394
  %v1396 = vrot.slane %v1394, 4
  %v1397 = vrot.slane %v186, 5
  %v1398 = vsel %vm1230, %v1396, %v1397
  %v1399 = vrot.slane %v1124, 5
  %v1400 = vrot.slane %v1399, 4
  %v1401 = vrot.slane %v78, 5
  %v1402 = vsel %vm1230, %v1400, %v1401
  %v1403 = vrot.slane %v1401, 4
  %v1404 = vrot.slane %v187, 5
  %v1405 = vsel %vm1230, %v1403, %v1404
  %v1406 = vrot.slane %v1125, 5
  %v1407 = vrot.slane %v1406, 4
  %v1408 = vrot.slane %v80, 5
  %v1409 = vsel %vm1230, %v1407, %v1408
  %v1410 = vrot.slane %v1408, 4
  %v1411 = vrot.slane %v188, 5
  %v1412 = vsel %vm1230, %v1410, %v1411
  %v1413 = vrot.slane %v1126, 5
  %v1414 = vrot.slane %v1413, 4
  %v1415 = vrot.slane %v82, 5
  %v1416 = vsel %vm1230, %v1414, %v1415
  %v1417 = vrot.slane %v1415, 4
  %v1418 = vrot.slane %v189, 5
  %v1419 = vsel %vm1230, %v1417, %v1418
  %v1420 = vrot.slane %v1127, 5
  %v1421 = vrot.slane %v1420, 4
  %v1422 = vrot.slane %v84, 5
  %v1423 = vsel %vm1230, %v1421, %v1422
  %v1424 = vrot.slane %v1422, 4
  %v1425 = vrot.slane %v190, 5
  %v1426 = vsel %vm1230, %v1424, %v1425
  %v1427 = vrot.slane %v1128, 5
  %v1428 = vrot.slane %v1427, 4
  %v1429 = vrot.slane %v86, 5
  %v1430 = vsel %vm1230, %v1428, %v1429
  %v1431 = vrot.slane %v1429, 4
  %v1432 = vrot.slane %v191, 5
  %v1433 = vsel %vm1230, %v1431, %v1432
  %v1434 = vrot.slane %v1129, 5
  %v1435 = vrot.slane %v1434, 4
  %v1436 = vrot.slane %v88, 5
  %v1437 = vsel %vm1230, %v1435, %v1436
  %v1438 = vrot.slane %v1436, 4
  %v1439 = vrot.slane %v192, 5
  %v1440 = vsel %vm1230, %v1438, %v1439
  %v1441 = vrot.slane %v1130, 5
  %v1442 = vrot.slane %v1441, 4
  %v1443 = vrot.slane %v90, 5
  %v1444 = vsel %vm1230, %v1442, %v1443
  %v1445 = vrot.slane %v1443, 4
  %v1446 = vrot.slane %v193, 5
  %v1447 = vsel %vm1230, %v1445, %v1446
  %v1448 = vrot.slane %v1131, 5
  %v1449 = vrot.slane %v1448, 4
  %v1450 = vrot.slane %v92, 5
  %v1451 = vsel %vm1230, %v1449, %v1450
  %v1452 = vrot.slane %v1450, 4
  %v1453 = vrot.slane %v194, 5
  %v1454 = vsel %vm1230, %v1452, %v1453
  %vm1519 = vcmp.ge.s32.totalorder %v28, 8
  %vm1520 = vcmp.lt.s32.totalorder %v28, 12
  %vm1521 = vmand %vm1519, %vm1520
  %v1522 = vsel %vm1521, 1, 0
  %vm1523 = vcmp.eq.s32.totalorder %v1522, 1
  %vm1524 = vmpackc.low %vm1523, %vm1523
  %v1525 = vsel %vm1524, %v1234, %v1036
  %v1526 = vsel %vm1524, %v1237, %v1037
  %v1527 = vsel %vm1524, %v1241, %v1038
  %v1528 = vsel %vm1524, %v1244, %v1039
  %v1529 = vsel %vm1524, %v1248, %v1040
  %v1530 = vsel %vm1524, %v1251, %v1041
  %v1531 = vsel %vm1524, %v1255, %v1042
  %v1532 = vsel %vm1524, %v1258, %v1043
  %v1533 = vsel %vm1524, %v1262, %v1044
  %v1534 = vsel %vm1524, %v1265, %v1045
  %v1535 = vsel %vm1524, %v1269, %v1046
  %v1536 = vsel %vm1524, %v1272, %v1047
  %v1537 = vsel %vm1524, %v1276, %v1048
  %v1538 = vsel %vm1524, %v1279, %v1049
  %v1539 = vsel %vm1524, %v1283, %v1050
  %v1540 = vsel %vm1524, %v1286, %v1051
  %v1541 = vsel %vm1524, %v1290, %v1052
  %v1542 = vsel %vm1524, %v1293, %v1053
  %v1543 = vsel %vm1524, %v1297, %v1054
  %v1544 = vsel %vm1524, %v1300, %v1055
  %v1545 = vsel %vm1524, %v1304, %v1056
  %v1546 = vsel %vm1524, %v1307, %v1057
  %v1547 = vsel %vm1524, %v1311, %v1058
  %v1548 = vsel %vm1524, %v1314, %v1059
  %v1549 = vsel %vm1524, %v1318, %v1060
  %v1550 = vsel %vm1524, %v1321, %v1061
  %v1551 = vsel %vm1524, %v1325, %v1062
  %v1552 = vsel %vm1524, %v1328, %v1063
  %v1553 = vsel %vm1524, %v1332, %v1064
  %v1554 = vsel %vm1524, %v1335, %v1065
  %v1555 = vsel %vm1524, %v1339, %v1066
  %v1556 = vsel %vm1524, %v1342, %v1067
  %v1557 = vsel %vm1524, %v1346, %v1068
  %v1558 = vsel %vm1524, %v1349, %v1069
  %v1559 = vsel %vm1524, %v1353, %v1070
  %v1560 = vsel %vm1524, %v1356, %v1071
  %v1561 = vsel %vm1524, %v1360, %v1072
  %v1562 = vsel %vm1524, %v1363, %v1073
  %v1563 = vsel %vm1524, %v1367, %v1074
  %v1564 = vsel %vm1524, %v1370, %v1075
  %v1565 = vsel %vm1524, %v1374, %v1076
  %v1566 = vsel %vm1524, %v1377, %v1077
  %v1567 = vsel %vm1524, %v1381, %v1078
  %v1568 = vsel %vm1524, %v1384, %v1079
  %v1569 = vsel %vm1524, %v1388, %v1080
  %v1570 = vsel %vm1524, %v1391, %v1081
  %v1571 = vsel %vm1524, %v1395, %v1082
  %v1572 = vsel %vm1524, %v1398, %v1083
  %v1573 = vsel %vm1524, %v1402, %v1084
  %v1574 = vsel %vm1524, %v1405, %v1085
  %v1575 = vsel %vm1524, %v1409, %v1086
  %v1576 = vsel %vm1524, %v1412, %v1087
  %v1577 = vsel %vm1524, %v1416, %v1088
  %v1578 = vsel %vm1524, %v1419, %v1089
  %v1579 = vsel %vm1524, %v1423, %v1090
  %v1580 = vsel %vm1524, %v1426, %v1091
  %v1581 = vsel %vm1524, %v1430, %v1092
  %v1582 = vsel %vm1524, %v1433, %v1093
  %v1583 = vsel %vm1524, %v1437, %v1094
  %v1584 = vsel %vm1524, %v1440, %v1095
  %v1585 = vsel %vm1524, %v1444, %v1096
  %v1586 = vsel %vm1524, %v1447, %v1097
  %v1587 = vsel %vm1524, %v1451, %v1098
  %v1588 = vsel %vm1524, %v1454, %v1099
  %s1589 = scalar_lea.vmem %s0, 12
  %v1590 = vld [vmem:[%s1589] sm:$0xf]
  %v1591 = vld [vmem:[%s1589 + $0x4] sm:$0xf]
  %v1592 = vld [vmem:[%s1589 + $0xc] sm:$0xf]
  %v1593 = vld [vmem:[%s1589 + $0x10] sm:$0xf]
  %v1594 = vld [vmem:[%s1589 + $0x18] sm:$0xf]
  %v1595 = vld [vmem:[%s1589 + $0x1c] sm:$0xf]
  %v1596 = vld [vmem:[%s1589 + $0x24] sm:$0xf]
  %v1597 = vld [vmem:[%s1589 + $0x28] sm:$0xf]
  %v1598 = vld [vmem:[%s1589 + $0x30] sm:$0xf]
  %v1599 = vld [vmem:[%s1589 + $0x34] sm:$0xf]
  %v1600 = vld [vmem:[%s1589 + $0x3c] sm:$0xf]
  %v1601 = vld [vmem:[%s1589 + $0x40] sm:$0xf]
  %v1602 = vld [vmem:[%s1589 + $0x48] sm:$0xf]
  %v1603 = vld [vmem:[%s1589 + $0x4c] sm:$0xf]
  %v1604 = vld [vmem:[%s1589 + $0x54] sm:$0xf]
  %v1605 = vld [vmem:[%s1589 + $0x58] sm:$0xf]
  %v1606 = vld [vmem:[%s1589 + $0x60] sm:$0xf]
  %v1607 = vld [vmem:[%s1589 + $0x64] sm:$0xf]
  %v1608 = vld [vmem:[%s1589 + $0x6c] sm:$0xf]
  %v1609 = vld [vmem:[%s1589 + $0x70] sm:$0xf]
  %v1610 = vld [vmem:[%s1589 + $0x78] sm:$0xf]
  %v1611 = vld [vmem:[%s1589 + $0x7c] sm:$0xf]
  %v1612 = vld [vmem:[%s1589 + $0x84] sm:$0xf]
  %v1613 = vld [vmem:[%s1589 + $0x88] sm:$0xf]
  %v1614 = vld [vmem:[%s1589 + $0x90] sm:$0xf]
  %v1615 = vld [vmem:[%s1589 + $0x94] sm:$0xf]
  %v1616 = vld [vmem:[%s1589 + $0x9c] sm:$0xf]
  %v1617 = vld [vmem:[%s1589 + $0xa0] sm:$0xf]
  %v1618 = vld [vmem:[%s1589 + $0xa8] sm:$0xf]
  %v1619 = vld [vmem:[%s1589 + $0xac] sm:$0xf]
  %v1620 = vld [vmem:[%s1589 + $0xb4] sm:$0xf]
  %v1621 = vld [vmem:[%s1589 + $0xb8] sm:$0xf]
  %v1622 = vld [vmem:[%s1589 + $0xd8] sm:$0xf]
  %v1623 = vld [vmem:[%s1589 + $0xdc] sm:$0xf]
  %v1624 = vld [vmem:[%s1589 + $0xe4] sm:$0xf]
  %v1625 = vld [vmem:[%s1589 + $0xe8] sm:$0xf]
  %v1626 = vld [vmem:[%s1589 + $0xf0] sm:$0xf]
  %v1627 = vld [vmem:[%s1589 + $0xf4] sm:$0xf]
  %v1628 = vld [vmem:[%s1589 + $0xfc] sm:$0xf]
  %v1629 = vld [vmem:[%s1589 + $0x100] sm:$0xf]
  %v1630 = vld [vmem:[%s1589 + $0x108] sm:$0xf]
  %v1631 = vld [vmem:[%s1589 + $0x10c] sm:$0xf]
  %v1632 = vld [vmem:[%s1589 + $0x114] sm:$0xf]
  %v1633 = vld [vmem:[%s1589 + $0x118] sm:$0xf]
  %v1634 = vld [vmem:[%s1589 + $0x120] sm:$0xf]
  %v1635 = vld [vmem:[%s1589 + $0x124] sm:$0xf]
  %v1636 = vld [vmem:[%s1589 + $0x12c] sm:$0xf]
  %v1637 = vld [vmem:[%s1589 + $0x130] sm:$0xf]
  %v1638 = vld [vmem:[%s1589 + $0x138] sm:$0xf]
  %v1639 = vld [vmem:[%s1589 + $0x13c] sm:$0xf]
  %v1640 = vld [vmem:[%s1589 + $0x144] sm:$0xf]
  %v1641 = vld [vmem:[%s1589 + $0x148] sm:$0xf]
  %v1642 = vld [vmem:[%s1589 + $0x150] sm:$0xf]
  %v1643 = vld [vmem:[%s1589 + $0x154] sm:$0xf]
  %v1644 = vld [vmem:[%s1589 + $0x15c] sm:$0xf]
  %v1645 = vld [vmem:[%s1589 + $0x160] sm:$0xf]
  %v1646 = vld [vmem:[%s1589 + $0x168] sm:$0xf]
  %v1647 = vld [vmem:[%s1589 + $0x16c] sm:$0xf]
  %v1648 = vld [vmem:[%s1589 + $0x174] sm:$0xf]
  %v1649 = vld [vmem:[%s1589 + $0x178] sm:$0xf]
  %v1650 = vld [vmem:[%s1589 + $0x180] sm:$0xf]
  %v1651 = vld [vmem:[%s1589 + $0x184] sm:$0xf]
  %v1652 = vld [vmem:[%s1589 + $0x18c] sm:$0xf]
  %v1653 = vld [vmem:[%s1589 + $0x190] sm:$0xf]
  %vm1654 = vcmp.ge.s32.totalorder %v28, 12
  %vm1655 = vcmp.lt.s32.totalorder %v28, 16
  %vm1656 = vmand %vm1654, %vm1655
  %v1657 = vsel %vm1656, 1, 0
  %vm1658 = vcmp.eq.s32.totalorder %v1657, 1
  %vm1659 = vmpackc.low %vm1658, %vm1658
  %v1660 = vsel %vm1659, %v1590, %v1525
  %v1661 = vsel %vm1659, %v1591, %v1526
  %v1662 = vsel %vm1659, %v1592, %v1527
  %v1663 = vsel %vm1659, %v1593, %v1528
  %v1664 = vsel %vm1659, %v1594, %v1529
  %v1665 = vsel %vm1659, %v1595, %v1530
  %v1666 = vsel %vm1659, %v1596, %v1531
  %v1667 = vsel %vm1659, %v1597, %v1532
  %v1668 = vsel %vm1659, %v1598, %v1533
  %v1669 = vsel %vm1659, %v1599, %v1534
  %v1670 = vsel %vm1659, %v1600, %v1535
  %v1671 = vsel %vm1659, %v1601, %v1536
  %v1672 = vsel %vm1659, %v1602, %v1537
  %v1673 = vsel %vm1659, %v1603, %v1538
  %v1674 = vsel %vm1659, %v1604, %v1539
  %v1675 = vsel %vm1659, %v1605, %v1540
  %v1676 = vsel %vm1659, %v1606, %v1541
  %v1677 = vsel %vm1659, %v1607, %v1542
  %v1678 = vsel %vm1659, %v1608, %v1543
  %v1679 = vsel %vm1659, %v1609, %v1544
  %v1680 = vsel %vm1659, %v1610, %v1545
  %v1681 = vsel %vm1659, %v1611, %v1546
  %v1682 = vsel %vm1659, %v1612, %v1547
  %v1683 = vsel %vm1659, %v1613, %v1548
  %v1684 = vsel %vm1659, %v1614, %v1549
  %v1685 = vsel %vm1659, %v1615, %v1550
  %v1686 = vsel %vm1659, %v1616, %v1551
  %v1687 = vsel %vm1659, %v1617, %v1552
  %v1688 = vsel %vm1659, %v1618, %v1553
  %v1689 = vsel %vm1659, %v1619, %v1554
  %v1690 = vsel %vm1659, %v1620, %v1555
  %v1691 = vsel %vm1659, %v1621, %v1556
  %v1692 = vsel %vm1659, %v1622, %v1557
  %v1693 = vsel %vm1659, %v1623, %v1558
  %v1694 = vsel %vm1659, %v1624, %v1559
  %v1695 = vsel %vm1659, %v1625, %v1560
  %v1696 = vsel %vm1659, %v1626, %v1561
  %v1697 = vsel %vm1659, %v1627, %v1562
  %v1698 = vsel %vm1659, %v1628, %v1563
  %v1699 = vsel %vm1659, %v1629, %v1564
  %v1700 = vsel %vm1659, %v1630, %v1565
  %v1701 = vsel %vm1659, %v1631, %v1566
  %v1702 = vsel %vm1659, %v1632, %v1567
  %v1703 = vsel %vm1659, %v1633, %v1568
  %v1704 = vsel %vm1659, %v1634, %v1569
  %v1705 = vsel %vm1659, %v1635, %v1570
  %v1706 = vsel %vm1659, %v1636, %v1571
  %v1707 = vsel %vm1659, %v1637, %v1572
  %v1708 = vsel %vm1659, %v1638, %v1573
  %v1709 = vsel %vm1659, %v1639, %v1574
  %v1710 = vsel %vm1659, %v1640, %v1575
  %v1711 = vsel %vm1659, %v1641, %v1576
  %v1712 = vsel %vm1659, %v1642, %v1577
  %v1713 = vsel %vm1659, %v1643, %v1578
  %v1714 = vsel %vm1659, %v1644, %v1579
  %v1715 = vsel %vm1659, %v1645, %v1580
  %v1716 = vsel %vm1659, %v1646, %v1581
  %v1717 = vsel %vm1659, %v1647, %v1582
  %v1718 = vsel %vm1659, %v1648, %v1583
  %v1719 = vsel %vm1659, %v1649, %v1584
  %v1720 = vsel %vm1659, %v1650, %v1585
  %v1721 = vsel %vm1659, %v1651, %v1586
  %v1722 = vsel %vm1659, %v1652, %v1587
  %v1723 = vsel %vm1659, %v1653, %v1588
  %v1724 = vld [vmem:[%s1589 + $0x8] sm:$0x1]
  %v1725 = vld [vmem:[%s1589 + $0x14] sm:$0x1]
  %v1726 = vld [vmem:[%s1589 + $0x20] sm:$0x1]
  %v1727 = vld [vmem:[%s1589 + $0x2c] sm:$0x1]
  %v1728 = vld [vmem:[%s1589 + $0x38] sm:$0x1]
  %v1729 = vld [vmem:[%s1589 + $0x44] sm:$0x1]
  %v1730 = vld [vmem:[%s1589 + $0x50] sm:$0x1]
  %v1731 = vld [vmem:[%s1589 + $0x5c] sm:$0x1]
  %v1732 = vld [vmem:[%s1589 + $0x68] sm:$0x1]
  %v1733 = vld [vmem:[%s1589 + $0x74] sm:$0x1]
  %v1734 = vld [vmem:[%s1589 + $0x80] sm:$0x1]
  %v1735 = vld [vmem:[%s1589 + $0x8c] sm:$0x1]
  %v1736 = vld [vmem:[%s1589 + $0x98] sm:$0x1]
  %v1737 = vld [vmem:[%s1589 + $0xa4] sm:$0x1]
  %v1738 = vld [vmem:[%s1589 + $0xb0] sm:$0x1]
  %v1739 = vld [vmem:[%s1589 + $0xbc] sm:$0x1]
  %v1740 = vld [vmem:[%s1589 + $0xe0] sm:$0x1]
  %v1741 = vld [vmem:[%s1589 + $0xec] sm:$0x1]
  %v1742 = vld [vmem:[%s1589 + $0xf8] sm:$0x1]
  %v1743 = vld [vmem:[%s1589 + $0x104] sm:$0x1]
  %v1744 = vld [vmem:[%s1589 + $0x110] sm:$0x1]
  %v1745 = vld [vmem:[%s1589 + $0x11c] sm:$0x1]
  %v1746 = vld [vmem:[%s1589 + $0x128] sm:$0x1]
  %v1747 = vld [vmem:[%s1589 + $0x134] sm:$0x1]
  %v1748 = vld [vmem:[%s1589 + $0x140] sm:$0x1]
  %v1749 = vld [vmem:[%s1589 + $0x14c] sm:$0x1]
  %v1750 = vld [vmem:[%s1589 + $0x158] sm:$0x1]
  %v1751 = vld [vmem:[%s1589 + $0x164] sm:$0x1]
  %v1752 = vld [vmem:[%s1589 + $0x170] sm:$0x1]
  %v1753 = vld [vmem:[%s1589 + $0x17c] sm:$0x1]
  %v1754 = vld [vmem:[%s1589 + $0x188] sm:$0x1]
  %v1755 = vld [vmem:[%s1589 + $0x194] sm:$0x1]
  %v1757 = vshrl.u32 %v1590, 16
  %v1759 = vrot.slane %v1757, 4
  %v1760 = vshll.u32 %v1590, 16
  %v1762 = vrot.slane %v1760, 5
  %v1763 = vor.u32 %v1759, %v1762
  %v1764 = vrot.slane %v1763, 4
  %v1766 = vshll.u32 %v1591, 16
  %v1768 = vrot.slane %v1766, 5
  %v1769 = vsel %vm197, %v1764, %v1768
  %v1770 = vshrl.u32 %v1591, 16
  %v1772 = vrot.slane %v1770, 4
  %v1773 = vor.u32 %v1772, %v1768
  %v1774 = vrot.slane %v1773, 4
  %v1776 = vshll.u32 %v1724, 16
  %v1778 = vrot.slane %v1776, 5
  %v1779 = vsel %vm197, %v1774, %v1778
  %v1781 = vshrl.u32 %v1592, 16
  %v1783 = vrot.slane %v1781, 4
  %v1784 = vshll.u32 %v1592, 16
  %v1786 = vrot.slane %v1784, 5
  %v1787 = vor.u32 %v1783, %v1786
  %v1788 = vrot.slane %v1787, 4
  %v1790 = vshll.u32 %v1593, 16
  %v1792 = vrot.slane %v1790, 5
  %v1793 = vsel %vm197, %v1788, %v1792
  %v1794 = vshrl.u32 %v1593, 16
  %v1796 = vrot.slane %v1794, 4
  %v1797 = vor.u32 %v1796, %v1792
  %v1798 = vrot.slane %v1797, 4
  %v1800 = vshll.u32 %v1725, 16
  %v1802 = vrot.slane %v1800, 5
  %v1803 = vsel %vm197, %v1798, %v1802
  %v1805 = vshrl.u32 %v1594, 16
  %v1807 = vrot.slane %v1805, 4
  %v1808 = vshll.u32 %v1594, 16
  %v1810 = vrot.slane %v1808, 5
  %v1811 = vor.u32 %v1807, %v1810
  %v1812 = vrot.slane %v1811, 4
  %v1814 = vshll.u32 %v1595, 16
  %v1816 = vrot.slane %v1814, 5
  %v1817 = vsel %vm197, %v1812, %v1816
  %v1818 = vshrl.u32 %v1595, 16
  %v1820 = vrot.slane %v1818, 4
  %v1821 = vor.u32 %v1820, %v1816
  %v1822 = vrot.slane %v1821, 4
  %v1824 = vshll.u32 %v1726, 16
  %v1826 = vrot.slane %v1824, 5
  %v1827 = vsel %vm197, %v1822, %v1826
  %v1829 = vshrl.u32 %v1596, 16
  %v1831 = vrot.slane %v1829, 4
  %v1832 = vshll.u32 %v1596, 16
  %v1834 = vrot.slane %v1832, 5
  %v1835 = vor.u32 %v1831, %v1834
  %v1836 = vrot.slane %v1835, 4
  %v1838 = vshll.u32 %v1597, 16
  %v1840 = vrot.slane %v1838, 5
  %v1841 = vsel %vm197, %v1836, %v1840
  %v1842 = vshrl.u32 %v1597, 16
  %v1844 = vrot.slane %v1842, 4
  %v1845 = vor.u32 %v1844, %v1840
  %v1846 = vrot.slane %v1845, 4
  %v1848 = vshll.u32 %v1727, 16
  %v1850 = vrot.slane %v1848, 5
  %v1851 = vsel %vm197, %v1846, %v1850
  %v1853 = vshrl.u32 %v1598, 16
  %v1855 = vrot.slane %v1853, 4
  %v1856 = vshll.u32 %v1598, 16
  %v1858 = vrot.slane %v1856, 5
  %v1859 = vor.u32 %v1855, %v1858
  %v1860 = vrot.slane %v1859, 4
  %v1862 = vshll.u32 %v1599, 16
  %v1864 = vrot.slane %v1862, 5
  %v1865 = vsel %vm197, %v1860, %v1864
  %v1866 = vshrl.u32 %v1599, 16
  %v1868 = vrot.slane %v1866, 4
  %v1869 = vor.u32 %v1868, %v1864
  %v1870 = vrot.slane %v1869, 4
  %v1872 = vshll.u32 %v1728, 16
  %v1874 = vrot.slane %v1872, 5
  %v1875 = vsel %vm197, %v1870, %v1874
  %v1877 = vshrl.u32 %v1600, 16
  %v1879 = vrot.slane %v1877, 4
  %v1880 = vshll.u32 %v1600, 16
  %v1882 = vrot.slane %v1880, 5
  %v1883 = vor.u32 %v1879, %v1882
  %v1884 = vrot.slane %v1883, 4
  %v1886 = vshll.u32 %v1601, 16
  %v1888 = vrot.slane %v1886, 5
  %v1889 = vsel %vm197, %v1884, %v1888
  %v1890 = vshrl.u32 %v1601, 16
  %v1892 = vrot.slane %v1890, 4
  %v1893 = vor.u32 %v1892, %v1888
  %v1894 = vrot.slane %v1893, 4
  %v1896 = vshll.u32 %v1729, 16
  %v1898 = vrot.slane %v1896, 5
  %v1899 = vsel %vm197, %v1894, %v1898
  %v1901 = vshrl.u32 %v1602, 16
  %v1903 = vrot.slane %v1901, 4
  %v1904 = vshll.u32 %v1602, 16
  %v1906 = vrot.slane %v1904, 5
  %v1907 = vor.u32 %v1903, %v1906
  %v1908 = vrot.slane %v1907, 4
  %v1910 = vshll.u32 %v1603, 16
  %v1912 = vrot.slane %v1910, 5
  %v1913 = vsel %vm197, %v1908, %v1912
  %v1914 = vshrl.u32 %v1603, 16
  %v1916 = vrot.slane %v1914, 4
  %v1917 = vor.u32 %v1916, %v1912
  %v1918 = vrot.slane %v1917, 4
  %v1920 = vshll.u32 %v1730, 16
  %v1922 = vrot.slane %v1920, 5
  %v1923 = vsel %vm197, %v1918, %v1922
  %v1925 = vshrl.u32 %v1604, 16
  %v1927 = vrot.slane %v1925, 4
  %v1928 = vshll.u32 %v1604, 16
  %v1930 = vrot.slane %v1928, 5
  %v1931 = vor.u32 %v1927, %v1930
  %v1932 = vrot.slane %v1931, 4
  %v1934 = vshll.u32 %v1605, 16
  %v1936 = vrot.slane %v1934, 5
  %v1937 = vsel %vm197, %v1932, %v1936
  %v1938 = vshrl.u32 %v1605, 16
  %v1940 = vrot.slane %v1938, 4
  %v1941 = vor.u32 %v1940, %v1936
  %v1942 = vrot.slane %v1941, 4
  %v1944 = vshll.u32 %v1731, 16
  %v1946 = vrot.slane %v1944, 5
  %v1947 = vsel %vm197, %v1942, %v1946
  %v1949 = vshrl.u32 %v1606, 16
  %v1951 = vrot.slane %v1949, 4
  %v1952 = vshll.u32 %v1606, 16
  %v1954 = vrot.slane %v1952, 5
  %v1955 = vor.u32 %v1951, %v1954
  %v1956 = vrot.slane %v1955, 4
  %v1958 = vshll.u32 %v1607, 16
  %v1960 = vrot.slane %v1958, 5
  %v1961 = vsel %vm197, %v1956, %v1960
  %v1962 = vshrl.u32 %v1607, 16
  %v1964 = vrot.slane %v1962, 4
  %v1965 = vor.u32 %v1964, %v1960
  %v1966 = vrot.slane %v1965, 4
  %v1968 = vshll.u32 %v1732, 16
  %v1970 = vrot.slane %v1968, 5
  %v1971 = vsel %vm197, %v1966, %v1970
  %v1973 = vshrl.u32 %v1608, 16
  %v1975 = vrot.slane %v1973, 4
  %v1976 = vshll.u32 %v1608, 16
  %v1978 = vrot.slane %v1976, 5
  %v1979 = vor.u32 %v1975, %v1978
  %v1980 = vrot.slane %v1979, 4
  %v1982 = vshll.u32 %v1609, 16
  %v1984 = vrot.slane %v1982, 5
  %v1985 = vsel %vm197, %v1980, %v1984
  %v1986 = vshrl.u32 %v1609, 16
  %v1988 = vrot.slane %v1986, 4
  %v1989 = vor.u32 %v1988, %v1984
  %v1990 = vrot.slane %v1989, 4
  %v1992 = vshll.u32 %v1733, 16
  %v1994 = vrot.slane %v1992, 5
  %v1995 = vsel %vm197, %v1990, %v1994
  %v1997 = vshrl.u32 %v1610, 16
  %v1999 = vrot.slane %v1997, 4
  %v2000 = vshll.u32 %v1610, 16
  %v2002 = vrot.slane %v2000, 5
  %v2003 = vor.u32 %v1999, %v2002
  %v2004 = vrot.slane %v2003, 4
  %v2006 = vshll.u32 %v1611, 16
  %v2008 = vrot.slane %v2006, 5
  %v2009 = vsel %vm197, %v2004, %v2008
  %v2010 = vshrl.u32 %v1611, 16
  %v2012 = vrot.slane %v2010, 4
  %v2013 = vor.u32 %v2012, %v2008
  %v2014 = vrot.slane %v2013, 4
  %v2016 = vshll.u32 %v1734, 16
  %v2018 = vrot.slane %v2016, 5
  %v2019 = vsel %vm197, %v2014, %v2018
  %v2021 = vshrl.u32 %v1612, 16
  %v2023 = vrot.slane %v2021, 4
  %v2024 = vshll.u32 %v1612, 16
  %v2026 = vrot.slane %v2024, 5
  %v2027 = vor.u32 %v2023, %v2026
  %v2028 = vrot.slane %v2027, 4
  %v2030 = vshll.u32 %v1613, 16
  %v2032 = vrot.slane %v2030, 5
  %v2033 = vsel %vm197, %v2028, %v2032
  %v2034 = vshrl.u32 %v1613, 16
  %v2036 = vrot.slane %v2034, 4
  %v2037 = vor.u32 %v2036, %v2032
  %v2038 = vrot.slane %v2037, 4
  %v2040 = vshll.u32 %v1735, 16
  %v2042 = vrot.slane %v2040, 5
  %v2043 = vsel %vm197, %v2038, %v2042
  %v2045 = vshrl.u32 %v1614, 16
  %v2047 = vrot.slane %v2045, 4
  %v2048 = vshll.u32 %v1614, 16
  %v2050 = vrot.slane %v2048, 5
  %v2051 = vor.u32 %v2047, %v2050
  %v2052 = vrot.slane %v2051, 4
  %v2054 = vshll.u32 %v1615, 16
  %v2056 = vrot.slane %v2054, 5
  %v2057 = vsel %vm197, %v2052, %v2056
  %v2058 = vshrl.u32 %v1615, 16
  %v2060 = vrot.slane %v2058, 4
  %v2061 = vor.u32 %v2060, %v2056
  %v2062 = vrot.slane %v2061, 4
  %v2064 = vshll.u32 %v1736, 16
  %v2066 = vrot.slane %v2064, 5
  %v2067 = vsel %vm197, %v2062, %v2066
  %v2069 = vshrl.u32 %v1616, 16
  %v2071 = vrot.slane %v2069, 4
  %v2072 = vshll.u32 %v1616, 16
  %v2074 = vrot.slane %v2072, 5
  %v2075 = vor.u32 %v2071, %v2074
  %v2076 = vrot.slane %v2075, 4
  %v2078 = vshll.u32 %v1617, 16
  %v2080 = vrot.slane %v2078, 5
  %v2081 = vsel %vm197, %v2076, %v2080
  %v2082 = vshrl.u32 %v1617, 16
  %v2084 = vrot.slane %v2082, 4
  %v2085 = vor.u32 %v2084, %v2080
  %v2086 = vrot.slane %v2085, 4
  %v2088 = vshll.u32 %v1737, 16
  %v2090 = vrot.slane %v2088, 5
  %v2091 = vsel %vm197, %v2086, %v2090
  %v2093 = vshrl.u32 %v1618, 16
  %v2095 = vrot.slane %v2093, 4
  %v2096 = vshll.u32 %v1618, 16
  %v2098 = vrot.slane %v2096, 5
  %v2099 = vor.u32 %v2095, %v2098
  %v2100 = vrot.slane %v2099, 4
  %v2102 = vshll.u32 %v1619, 16
  %v2104 = vrot.slane %v2102, 5
  %v2105 = vsel %vm197, %v2100, %v2104
  %v2106 = vshrl.u32 %v1619, 16
  %v2108 = vrot.slane %v2106, 4
  %v2109 = vor.u32 %v2108, %v2104
  %v2110 = vrot.slane %v2109, 4
  %v2112 = vshll.u32 %v1738, 16
  %v2114 = vrot.slane %v2112, 5
  %v2115 = vsel %vm197, %v2110, %v2114
  %v2117 = vshrl.u32 %v1620, 16
  %v2119 = vrot.slane %v2117, 4
  %v2120 = vshll.u32 %v1620, 16
  %v2122 = vrot.slane %v2120, 5
  %v2123 = vor.u32 %v2119, %v2122
  %v2124 = vrot.slane %v2123, 4
  %v2126 = vshll.u32 %v1621, 16
  %v2128 = vrot.slane %v2126, 5
  %v2129 = vsel %vm197, %v2124, %v2128
  %v2130 = vshrl.u32 %v1621, 16
  %v2132 = vrot.slane %v2130, 4
  %v2133 = vor.u32 %v2132, %v2128
  %v2134 = vrot.slane %v2133, 4
  %v2136 = vshll.u32 %v1739, 16
  %v2138 = vrot.slane %v2136, 5
  %v2139 = vsel %vm197, %v2134, %v2138
  %v2141 = vshrl.u32 %v1622, 16
  %v2143 = vrot.slane %v2141, 4
  %v2144 = vshll.u32 %v1622, 16
  %v2146 = vrot.slane %v2144, 5
  %v2147 = vor.u32 %v2143, %v2146
  %v2148 = vrot.slane %v2147, 4
  %v2150 = vshll.u32 %v1623, 16
  %v2152 = vrot.slane %v2150, 5
  %v2153 = vsel %vm197, %v2148, %v2152
  %v2154 = vshrl.u32 %v1623, 16
  %v2156 = vrot.slane %v2154, 4
  %v2157 = vor.u32 %v2156, %v2152
  %v2158 = vrot.slane %v2157, 4
  %v2160 = vshll.u32 %v1740, 16
  %v2162 = vrot.slane %v2160, 5
  %v2163 = vsel %vm197, %v2158, %v2162
  %v2165 = vshrl.u32 %v1624, 16
  %v2167 = vrot.slane %v2165, 4
  %v2168 = vshll.u32 %v1624, 16
  %v2170 = vrot.slane %v2168, 5
  %v2171 = vor.u32 %v2167, %v2170
  %v2172 = vrot.slane %v2171, 4
  %v2174 = vshll.u32 %v1625, 16
  %v2176 = vrot.slane %v2174, 5
  %v2177 = vsel %vm197, %v2172, %v2176
  %v2178 = vshrl.u32 %v1625, 16
  %v2180 = vrot.slane %v2178, 4
  %v2181 = vor.u32 %v2180, %v2176
  %v2182 = vrot.slane %v2181, 4
  %v2184 = vshll.u32 %v1741, 16
  %v2186 = vrot.slane %v2184, 5
  %v2187 = vsel %vm197, %v2182, %v2186
  %v2189 = vshrl.u32 %v1626, 16
  %v2191 = vrot.slane %v2189, 4
  %v2192 = vshll.u32 %v1626, 16
  %v2194 = vrot.slane %v2192, 5
  %v2195 = vor.u32 %v2191, %v2194
  %v2196 = vrot.slane %v2195, 4
  %v2198 = vshll.u32 %v1627, 16
  %v2200 = vrot.slane %v2198, 5
  %v2201 = vsel %vm197, %v2196, %v2200
  %v2202 = vshrl.u32 %v1627, 16
  %v2204 = vrot.slane %v2202, 4
  %v2205 = vor.u32 %v2204, %v2200
  %v2206 = vrot.slane %v2205, 4
  %v2208 = vshll.u32 %v1742, 16
  %v2210 = vrot.slane %v2208, 5
  %v2211 = vsel %vm197, %v2206, %v2210
  %v2213 = vshrl.u32 %v1628, 16
  %v2215 = vrot.slane %v2213, 4
  %v2216 = vshll.u32 %v1628, 16
  %v2218 = vrot.slane %v2216, 5
  %v2219 = vor.u32 %v2215, %v2218
  %v2220 = vrot.slane %v2219, 4
  %v2222 = vshll.u32 %v1629, 16
  %v2224 = vrot.slane %v2222, 5
  %v2225 = vsel %vm197, %v2220, %v2224
  %v2226 = vshrl.u32 %v1629, 16
  %v2228 = vrot.slane %v2226, 4
  %v2229 = vor.u32 %v2228, %v2224
  %v2230 = vrot.slane %v2229, 4
  %v2232 = vshll.u32 %v1743, 16
  %v2234 = vrot.slane %v2232, 5
  %v2235 = vsel %vm197, %v2230, %v2234
  %v2237 = vshrl.u32 %v1630, 16
  %v2239 = vrot.slane %v2237, 4
  %v2240 = vshll.u32 %v1630, 16
  %v2242 = vrot.slane %v2240, 5
  %v2243 = vor.u32 %v2239, %v2242
  %v2244 = vrot.slane %v2243, 4
  %v2246 = vshll.u32 %v1631, 16
  %v2248 = vrot.slane %v2246, 5
  %v2249 = vsel %vm197, %v2244, %v2248
  %v2250 = vshrl.u32 %v1631, 16
  %v2252 = vrot.slane %v2250, 4
  %v2253 = vor.u32 %v2252, %v2248
  %v2254 = vrot.slane %v2253, 4
  %v2256 = vshll.u32 %v1744, 16
  %v2258 = vrot.slane %v2256, 5
  %v2259 = vsel %vm197, %v2254, %v2258
  %v2261 = vshrl.u32 %v1632, 16
  %v2263 = vrot.slane %v2261, 4
  %v2264 = vshll.u32 %v1632, 16
  %v2266 = vrot.slane %v2264, 5
  %v2267 = vor.u32 %v2263, %v2266
  %v2268 = vrot.slane %v2267, 4
  %v2270 = vshll.u32 %v1633, 16
  %v2272 = vrot.slane %v2270, 5
  %v2273 = vsel %vm197, %v2268, %v2272
  %v2274 = vshrl.u32 %v1633, 16
  %v2276 = vrot.slane %v2274, 4
  %v2277 = vor.u32 %v2276, %v2272
  %v2278 = vrot.slane %v2277, 4
  %v2280 = vshll.u32 %v1745, 16
  %v2282 = vrot.slane %v2280, 5
  %v2283 = vsel %vm197, %v2278, %v2282
  %v2285 = vshrl.u32 %v1634, 16
  %v2287 = vrot.slane %v2285, 4
  %v2288 = vshll.u32 %v1634, 16
  %v2290 = vrot.slane %v2288, 5
  %v2291 = vor.u32 %v2287, %v2290
  %v2292 = vrot.slane %v2291, 4
  %v2294 = vshll.u32 %v1635, 16
  %v2296 = vrot.slane %v2294, 5
  %v2297 = vsel %vm197, %v2292, %v2296
  %v2298 = vshrl.u32 %v1635, 16
  %v2300 = vrot.slane %v2298, 4
  %v2301 = vor.u32 %v2300, %v2296
  %v2302 = vrot.slane %v2301, 4
  %v2304 = vshll.u32 %v1746, 16
  %v2306 = vrot.slane %v2304, 5
  %v2307 = vsel %vm197, %v2302, %v2306
  %v2309 = vshrl.u32 %v1636, 16
  %v2311 = vrot.slane %v2309, 4
  %v2312 = vshll.u32 %v1636, 16
  %v2314 = vrot.slane %v2312, 5
  %v2315 = vor.u32 %v2311, %v2314
  %v2316 = vrot.slane %v2315, 4
  %v2318 = vshll.u32 %v1637, 16
  %v2320 = vrot.slane %v2318, 5
  %v2321 = vsel %vm197, %v2316, %v2320
  %v2322 = vshrl.u32 %v1637, 16
  %v2324 = vrot.slane %v2322, 4
  %v2325 = vor.u32 %v2324, %v2320
  %v2326 = vrot.slane %v2325, 4
  %v2328 = vshll.u32 %v1747, 16
  %v2330 = vrot.slane %v2328, 5
  %v2331 = vsel %vm197, %v2326, %v2330
  %v2333 = vshrl.u32 %v1638, 16
  %v2335 = vrot.slane %v2333, 4
  %v2336 = vshll.u32 %v1638, 16
  %v2338 = vrot.slane %v2336, 5
  %v2339 = vor.u32 %v2335, %v2338
  %v2340 = vrot.slane %v2339, 4
  %v2342 = vshll.u32 %v1639, 16
  %v2344 = vrot.slane %v2342, 5
  %v2345 = vsel %vm197, %v2340, %v2344
  %v2346 = vshrl.u32 %v1639, 16
  %v2348 = vrot.slane %v2346, 4
  %v2349 = vor.u32 %v2348, %v2344
  %v2350 = vrot.slane %v2349, 4
  %v2352 = vshll.u32 %v1748, 16
  %v2354 = vrot.slane %v2352, 5
  %v2355 = vsel %vm197, %v2350, %v2354
  %v2357 = vshrl.u32 %v1640, 16
  %v2359 = vrot.slane %v2357, 4
  %v2360 = vshll.u32 %v1640, 16
  %v2362 = vrot.slane %v2360, 5
  %v2363 = vor.u32 %v2359, %v2362
  %v2364 = vrot.slane %v2363, 4
  %v2366 = vshll.u32 %v1641, 16
  %v2368 = vrot.slane %v2366, 5
  %v2369 = vsel %vm197, %v2364, %v2368
  %v2370 = vshrl.u32 %v1641, 16
  %v2372 = vrot.slane %v2370, 4
  %v2373 = vor.u32 %v2372, %v2368
  %v2374 = vrot.slane %v2373, 4
  %v2376 = vshll.u32 %v1749, 16
  %v2378 = vrot.slane %v2376, 5
  %v2379 = vsel %vm197, %v2374, %v2378
  %v2381 = vshrl.u32 %v1642, 16
  %v2383 = vrot.slane %v2381, 4
  %v2384 = vshll.u32 %v1642, 16
  %v2386 = vrot.slane %v2384, 5
  %v2387 = vor.u32 %v2383, %v2386
  %v2388 = vrot.slane %v2387, 4
  %v2390 = vshll.u32 %v1643, 16
  %v2392 = vrot.slane %v2390, 5
  %v2393 = vsel %vm197, %v2388, %v2392
  %v2394 = vshrl.u32 %v1643, 16
  %v2396 = vrot.slane %v2394, 4
  %v2397 = vor.u32 %v2396, %v2392
  %v2398 = vrot.slane %v2397, 4
  %v2400 = vshll.u32 %v1750, 16
  %v2402 = vrot.slane %v2400, 5
  %v2403 = vsel %vm197, %v2398, %v2402
  %v2405 = vshrl.u32 %v1644, 16
  %v2407 = vrot.slane %v2405, 4
  %v2408 = vshll.u32 %v1644, 16
  %v2410 = vrot.slane %v2408, 5
  %v2411 = vor.u32 %v2407, %v2410
  %v2412 = vrot.slane %v2411, 4
  %v2414 = vshll.u32 %v1645, 16
  %v2416 = vrot.slane %v2414, 5
  %v2417 = vsel %vm197, %v2412, %v2416
  %v2418 = vshrl.u32 %v1645, 16
  %v2420 = vrot.slane %v2418, 4
  %v2421 = vor.u32 %v2420, %v2416
  %v2422 = vrot.slane %v2421, 4
  %v2424 = vshll.u32 %v1751, 16
  %v2426 = vrot.slane %v2424, 5
  %v2427 = vsel %vm197, %v2422, %v2426
  %v2429 = vshrl.u32 %v1646, 16
  %v2431 = vrot.slane %v2429, 4
  %v2432 = vshll.u32 %v1646, 16
  %v2434 = vrot.slane %v2432, 5
  %v2435 = vor.u32 %v2431, %v2434
  %v2436 = vrot.slane %v2435, 4
  %v2438 = vshll.u32 %v1647, 16
  %v2440 = vrot.slane %v2438, 5
  %v2441 = vsel %vm197, %v2436, %v2440
  %v2442 = vshrl.u32 %v1647, 16
  %v2444 = vrot.slane %v2442, 4
  %v2445 = vor.u32 %v2444, %v2440
  %v2446 = vrot.slane %v2445, 4
  %v2448 = vshll.u32 %v1752, 16
  %v2450 = vrot.slane %v2448, 5
  %v2451 = vsel %vm197, %v2446, %v2450
  %v2453 = vshrl.u32 %v1648, 16
  %v2455 = vrot.slane %v2453, 4
  %v2456 = vshll.u32 %v1648, 16
  %v2458 = vrot.slane %v2456, 5
  %v2459 = vor.u32 %v2455, %v2458
  %v2460 = vrot.slane %v2459, 4
  %v2462 = vshll.u32 %v1649, 16
  %v2464 = vrot.slane %v2462, 5
  %v2465 = vsel %vm197, %v2460, %v2464
  %v2466 = vshrl.u32 %v1649, 16
  %v2468 = vrot.slane %v2466, 4
  %v2469 = vor.u32 %v2468, %v2464
  %v2470 = vrot.slane %v2469, 4
  %v2472 = vshll.u32 %v1753, 16
  %v2474 = vrot.slane %v2472, 5
  %v2475 = vsel %vm197, %v2470, %v2474
  %v2477 = vshrl.u32 %v1650, 16
  %v2479 = vrot.slane %v2477, 4
  %v2480 = vshll.u32 %v1650, 16
  %v2482 = vrot.slane %v2480, 5
  %v2483 = vor.u32 %v2479, %v2482
  %v2484 = vrot.slane %v2483, 4
  %v2486 = vshll.u32 %v1651, 16
  %v2488 = vrot.slane %v2486, 5
  %v2489 = vsel %vm197, %v2484, %v2488
  %v2490 = vshrl.u32 %v1651, 16
  %v2492 = vrot.slane %v2490, 4
  %v2493 = vor.u32 %v2492, %v2488
  %v2494 = vrot.slane %v2493, 4
  %v2496 = vshll.u32 %v1754, 16
  %v2498 = vrot.slane %v2496, 5
  %v2499 = vsel %vm197, %v2494, %v2498
  %v2501 = vshrl.u32 %v1652, 16
  %v2503 = vrot.slane %v2501, 4
  %v2504 = vshll.u32 %v1652, 16
  %v2506 = vrot.slane %v2504, 5
  %v2507 = vor.u32 %v2503, %v2506
  %v2508 = vrot.slane %v2507, 4
  %v2510 = vshll.u32 %v1653, 16
  %v2512 = vrot.slane %v2510, 5
  %v2513 = vsel %vm197, %v2508, %v2512
  %v2514 = vshrl.u32 %v1653, 16
  %v2516 = vrot.slane %v2514, 4
  %v2517 = vor.u32 %v2516, %v2512
  %v2518 = vrot.slane %v2517, 4
  %v2520 = vshll.u32 %v1755, 16
  %v2522 = vrot.slane %v2520, 5
  %v2523 = vsel %vm197, %v2518, %v2522
  %vm2588 = vcmp.ge.s32.totalorder %v28, 16
  %vm2589 = vcmp.lt.s32.totalorder %v28, 20
  %vm2590 = vmand %vm2588, %vm2589
  %v2591 = vsel %vm2590, 1, 0
  %vm2592 = vcmp.eq.s32.totalorder %v2591, 1
  %vm2593 = vmpackc.low %vm2592, %vm2592
  %v2594 = vsel %vm2593, %v1769, %v1660
  %v2595 = vsel %vm2593, %v1779, %v1661
  %v2596 = vsel %vm2593, %v1793, %v1662
  %v2597 = vsel %vm2593, %v1803, %v1663
  %v2598 = vsel %vm2593, %v1817, %v1664
  %v2599 = vsel %vm2593, %v1827, %v1665
  %v2600 = vsel %vm2593, %v1841, %v1666
  %v2601 = vsel %vm2593, %v1851, %v1667
  %v2602 = vsel %vm2593, %v1865, %v1668
  %v2603 = vsel %vm2593, %v1875, %v1669
  %v2604 = vsel %vm2593, %v1889, %v1670
  %v2605 = vsel %vm2593, %v1899, %v1671
  %v2606 = vsel %vm2593, %v1913, %v1672
  %v2607 = vsel %vm2593, %v1923, %v1673
  %v2608 = vsel %vm2593, %v1937, %v1674
  %v2609 = vsel %vm2593, %v1947, %v1675
  %v2610 = vsel %vm2593, %v1961, %v1676
  %v2611 = vsel %vm2593, %v1971, %v1677
  %v2612 = vsel %vm2593, %v1985, %v1678
  %v2613 = vsel %vm2593, %v1995, %v1679
  %v2614 = vsel %vm2593, %v2009, %v1680
  %v2615 = vsel %vm2593, %v2019, %v1681
  %v2616 = vsel %vm2593, %v2033, %v1682
  %v2617 = vsel %vm2593, %v2043, %v1683
  %v2618 = vsel %vm2593, %v2057, %v1684
  %v2619 = vsel %vm2593, %v2067, %v1685
  %v2620 = vsel %vm2593, %v2081, %v1686
  %v2621 = vsel %vm2593, %v2091, %v1687
  %v2622 = vsel %vm2593, %v2105, %v1688
  %v2623 = vsel %vm2593, %v2115, %v1689
  %v2624 = vsel %vm2593, %v2129, %v1690
  %v2625 = vsel %vm2593, %v2139, %v1691
  %v2626 = vsel %vm2593, %v2153, %v1692
  %v2627 = vsel %vm2593, %v2163, %v1693
  %v2628 = vsel %vm2593, %v2177, %v1694
  %v2629 = vsel %vm2593, %v2187, %v1695
  %v2630 = vsel %vm2593, %v2201, %v1696
  %v2631 = vsel %vm2593, %v2211, %v1697
  %v2632 = vsel %vm2593, %v2225, %v1698
  %v2633 = vsel %vm2593, %v2235, %v1699
  %v2634 = vsel %vm2593, %v2249, %v1700
  %v2635 = vsel %vm2593, %v2259, %v1701
  %v2636 = vsel %vm2593, %v2273, %v1702
  %v2637 = vsel %vm2593, %v2283, %v1703
  %v2638 = vsel %vm2593, %v2297, %v1704
  %v2639 = vsel %vm2593, %v2307, %v1705
  %v2640 = vsel %vm2593, %v2321, %v1706
  %v2641 = vsel %vm2593, %v2331, %v1707
  %v2642 = vsel %vm2593, %v2345, %v1708
  %v2643 = vsel %vm2593, %v2355, %v1709
  %v2644 = vsel %vm2593, %v2369, %v1710
  %v2645 = vsel %vm2593, %v2379, %v1711
  %v2646 = vsel %vm2593, %v2393, %v1712
  %v2647 = vsel %vm2593, %v2403, %v1713
  %v2648 = vsel %vm2593, %v2417, %v1714
  %v2649 = vsel %vm2593, %v2427, %v1715
  %v2650 = vsel %vm2593, %v2441, %v1716
  %v2651 = vsel %vm2593, %v2451, %v1717
  %v2652 = vsel %vm2593, %v2465, %v1718
  %v2653 = vsel %vm2593, %v2475, %v1719
  %v2654 = vsel %vm2593, %v2489, %v1720
  %v2655 = vsel %vm2593, %v2499, %v1721
  %v2656 = vsel %vm2593, %v2513, %v1722
  %v2657 = vsel %vm2593, %v2523, %v1723
  %v2658 = vld [vmem:[%s1589] sm:$0xe]
  %v2659 = vld [vmem:[%s1589 + $0xc] sm:$0xe]
  %v2660 = vld [vmem:[%s1589 + $0x18] sm:$0xe]
  %v2661 = vld [vmem:[%s1589 + $0x24] sm:$0xe]
  %v2662 = vld [vmem:[%s1589 + $0x30] sm:$0xe]
  %v2663 = vld [vmem:[%s1589 + $0x3c] sm:$0xe]
  %v2664 = vld [vmem:[%s1589 + $0x48] sm:$0xe]
  %v2665 = vld [vmem:[%s1589 + $0x54] sm:$0xe]
  %v2666 = vld [vmem:[%s1589 + $0x60] sm:$0xe]
  %v2667 = vld [vmem:[%s1589 + $0x6c] sm:$0xe]
  %v2668 = vld [vmem:[%s1589 + $0x78] sm:$0xe]
  %v2669 = vld [vmem:[%s1589 + $0x84] sm:$0xe]
  %v2670 = vld [vmem:[%s1589 + $0x90] sm:$0xe]
  %v2671 = vld [vmem:[%s1589 + $0x9c] sm:$0xe]
  %v2672 = vld [vmem:[%s1589 + $0xa8] sm:$0xe]
  %v2673 = vld [vmem:[%s1589 + $0xb4] sm:$0xe]
  %v2674 = vld [vmem:[%s1589 + $0xd8] sm:$0xe]
  %v2675 = vld [vmem:[%s1589 + $0xe4] sm:$0xe]
  %v2676 = vld [vmem:[%s1589 + $0xf0] sm:$0xe]
  %v2677 = vld [vmem:[%s1589 + $0xfc] sm:$0xe]
  %v2678 = vld [vmem:[%s1589 + $0x108] sm:$0xe]
  %v2679 = vld [vmem:[%s1589 + $0x114] sm:$0xe]
  %v2680 = vld [vmem:[%s1589 + $0x120] sm:$0xe]
  %v2681 = vld [vmem:[%s1589 + $0x12c] sm:$0xe]
  %v2682 = vld [vmem:[%s1589 + $0x138] sm:$0xe]
  %v2683 = vld [vmem:[%s1589 + $0x144] sm:$0xe]
  %v2684 = vld [vmem:[%s1589 + $0x150] sm:$0xe]
  %v2685 = vld [vmem:[%s1589 + $0x15c] sm:$0xe]
  %v2686 = vld [vmem:[%s1589 + $0x168] sm:$0xe]
  %v2687 = vld [vmem:[%s1589 + $0x174] sm:$0xe]
  %v2688 = vld [vmem:[%s1589 + $0x180] sm:$0xe]
  %v2689 = vld [vmem:[%s1589 + $0x18c] sm:$0xe]
  %v2786 = vrot.slane %v2658, 5
  %v2787 = vrot.slane %v2786, 4
  %v2788 = vrot.slane %v1591, 5
  %v2789 = vsel %vm1230, %v2787, %v2788
  %v2790 = vrot.slane %v2788, 4
  %v2791 = vrot.slane %v1724, 5
  %v2792 = vsel %vm1230, %v2790, %v2791
  %v2793 = vrot.slane %v2659, 5
  %v2794 = vrot.slane %v2793, 4
  %v2795 = vrot.slane %v1593, 5
  %v2796 = vsel %vm1230, %v2794, %v2795
  %v2797 = vrot.slane %v2795, 4
  %v2798 = vrot.slane %v1725, 5
  %v2799 = vsel %vm1230, %v2797, %v2798
  %v2800 = vrot.slane %v2660, 5
  %v2801 = vrot.slane %v2800, 4
  %v2802 = vrot.slane %v1595, 5
  %v2803 = vsel %vm1230, %v2801, %v2802
  %v2804 = vrot.slane %v2802, 4
  %v2805 = vrot.slane %v1726, 5
  %v2806 = vsel %vm1230, %v2804, %v2805
  %v2807 = vrot.slane %v2661, 5
  %v2808 = vrot.slane %v2807, 4
  %v2809 = vrot.slane %v1597, 5
  %v2810 = vsel %vm1230, %v2808, %v2809
  %v2811 = vrot.slane %v2809, 4
  %v2812 = vrot.slane %v1727, 5
  %v2813 = vsel %vm1230, %v2811, %v2812
  %v2814 = vrot.slane %v2662, 5
  %v2815 = vrot.slane %v2814, 4
  %v2816 = vrot.slane %v1599, 5
  %v2817 = vsel %vm1230, %v2815, %v2816
  %v2818 = vrot.slane %v2816, 4
  %v2819 = vrot.slane %v1728, 5
  %v2820 = vsel %vm1230, %v2818, %v2819
  %v2821 = vrot.slane %v2663, 5
  %v2822 = vrot.slane %v2821, 4
  %v2823 = vrot.slane %v1601, 5
  %v2824 = vsel %vm1230, %v2822, %v2823
  %v2825 = vrot.slane %v2823, 4
  %v2826 = vrot.slane %v1729, 5
  %v2827 = vsel %vm1230, %v2825, %v2826
  %v2828 = vrot.slane %v2664, 5
  %v2829 = vrot.slane %v2828, 4
  %v2830 = vrot.slane %v1603, 5
  %v2831 = vsel %vm1230, %v2829, %v2830
  %v2832 = vrot.slane %v2830, 4
  %v2833 = vrot.slane %v1730, 5
  %v2834 = vsel %vm1230, %v2832, %v2833
  %v2835 = vrot.slane %v2665, 5
  %v2836 = vrot.slane %v2835, 4
  %v2837 = vrot.slane %v1605, 5
  %v2838 = vsel %vm1230, %v2836, %v2837
  %v2839 = vrot.slane %v2837, 4
  %v2840 = vrot.slane %v1731, 5
  %v2841 = vsel %vm1230, %v2839, %v2840
  %v2842 = vrot.slane %v2666, 5
  %v2843 = vrot.slane %v2842, 4
  %v2844 = vrot.slane %v1607, 5
  %v2845 = vsel %vm1230, %v2843, %v2844
  %v2846 = vrot.slane %v2844, 4
  %v2847 = vrot.slane %v1732, 5
  %v2848 = vsel %vm1230, %v2846, %v2847
  %v2849 = vrot.slane %v2667, 5
  %v2850 = vrot.slane %v2849, 4
  %v2851 = vrot.slane %v1609, 5
  %v2852 = vsel %vm1230, %v2850, %v2851
  %v2853 = vrot.slane %v2851, 4
  %v2854 = vrot.slane %v1733, 5
  %v2855 = vsel %vm1230, %v2853, %v2854
  %v2856 = vrot.slane %v2668, 5
  %v2857 = vrot.slane %v2856, 4
  %v2858 = vrot.slane %v1611, 5
  %v2859 = vsel %vm1230, %v2857, %v2858
  %v2860 = vrot.slane %v2858, 4
  %v2861 = vrot.slane %v1734, 5
  %v2862 = vsel %vm1230, %v2860, %v2861
  %v2863 = vrot.slane %v2669, 5
  %v2864 = vrot.slane %v2863, 4
  %v2865 = vrot.slane %v1613, 5
  %v2866 = vsel %vm1230, %v2864, %v2865
  %v2867 = vrot.slane %v2865, 4
  %v2868 = vrot.slane %v1735, 5
  %v2869 = vsel %vm1230, %v2867, %v2868
  %v2870 = vrot.slane %v2670, 5
  %v2871 = vrot.slane %v2870, 4
  %v2872 = vrot.slane %v1615, 5
  %v2873 = vsel %vm1230, %v2871, %v2872
  %v2874 = vrot.slane %v2872, 4
  %v2875 = vrot.slane %v1736, 5
  %v2876 = vsel %vm1230, %v2874, %v2875
  %v2877 = vrot.slane %v2671, 5
  %v2878 = vrot.slane %v2877, 4
  %v2879 = vrot.slane %v1617, 5
  %v2880 = vsel %vm1230, %v2878, %v2879
  %v2881 = vrot.slane %v2879, 4
  %v2882 = vrot.slane %v1737, 5
  %v2883 = vsel %vm1230, %v2881, %v2882
  %v2884 = vrot.slane %v2672, 5
  %v2885 = vrot.slane %v2884, 4
  %v2886 = vrot.slane %v1619, 5
  %v2887 = vsel %vm1230, %v2885, %v2886
  %v2888 = vrot.slane %v2886, 4
  %v2889 = vrot.slane %v1738, 5
  %v2890 = vsel %vm1230, %v2888, %v2889
  %v2891 = vrot.slane %v2673, 5
  %v2892 = vrot.slane %v2891, 4
  %v2893 = vrot.slane %v1621, 5
  %v2894 = vsel %vm1230, %v2892, %v2893
  %v2895 = vrot.slane %v2893, 4
  %v2896 = vrot.slane %v1739, 5
  %v2897 = vsel %vm1230, %v2895, %v2896
  %v2898 = vrot.slane %v2674, 5
  %v2899 = vrot.slane %v2898, 4
  %v2900 = vrot.slane %v1623, 5
  %v2901 = vsel %vm1230, %v2899, %v2900
  %v2902 = vrot.slane %v2900, 4
  %v2903 = vrot.slane %v1740, 5
  %v2904 = vsel %vm1230, %v2902, %v2903
  %v2905 = vrot.slane %v2675, 5
  %v2906 = vrot.slane %v2905, 4
  %v2907 = vrot.slane %v1625, 5
  %v2908 = vsel %vm1230, %v2906, %v2907
  %v2909 = vrot.slane %v2907, 4
  %v2910 = vrot.slane %v1741, 5
  %v2911 = vsel %vm1230, %v2909, %v2910
  %v2912 = vrot.slane %v2676, 5
  %v2913 = vrot.slane %v2912, 4
  %v2914 = vrot.slane %v1627, 5
  %v2915 = vsel %vm1230, %v2913, %v2914
  %v2916 = vrot.slane %v2914, 4
  %v2917 = vrot.slane %v1742, 5
  %v2918 = vsel %vm1230, %v2916, %v2917
  %v2919 = vrot.slane %v2677, 5
  %v2920 = vrot.slane %v2919, 4
  %v2921 = vrot.slane %v1629, 5
  %v2922 = vsel %vm1230, %v2920, %v2921
  %v2923 = vrot.slane %v2921, 4
  %v2924 = vrot.slane %v1743, 5
  %v2925 = vsel %vm1230, %v2923, %v2924
  %v2926 = vrot.slane %v2678, 5
  %v2927 = vrot.slane %v2926, 4
  %v2928 = vrot.slane %v1631, 5
  %v2929 = vsel %vm1230, %v2927, %v2928
  %v2930 = vrot.slane %v2928, 4
  %v2931 = vrot.slane %v1744, 5
  %v2932 = vsel %vm1230, %v2930, %v2931
  %v2933 = vrot.slane %v2679, 5
  %v2934 = vrot.slane %v2933, 4
  %v2935 = vrot.slane %v1633, 5
  %v2936 = vsel %vm1230, %v2934, %v2935
  %v2937 = vrot.slane %v2935, 4
  %v2938 = vrot.slane %v1745, 5
  %v2939 = vsel %vm1230, %v2937, %v2938
  %v2940 = vrot.slane %v2680, 5
  %v2941 = vrot.slane %v2940, 4
  %v2942 = vrot.slane %v1635, 5
  %v2943 = vsel %vm1230, %v2941, %v2942
  %v2944 = vrot.slane %v2942, 4
  %v2945 = vrot.slane %v1746, 5
  %v2946 = vsel %vm1230, %v2944, %v2945
  %v2947 = vrot.slane %v2681, 5
  %v2948 = vrot.slane %v2947, 4
  %v2949 = vrot.slane %v1637, 5
  %v2950 = vsel %vm1230, %v2948, %v2949
  %v2951 = vrot.slane %v2949, 4
  %v2952 = vrot.slane %v1747, 5
  %v2953 = vsel %vm1230, %v2951, %v2952
  %v2954 = vrot.slane %v2682, 5
  %v2955 = vrot.slane %v2954, 4
  %v2956 = vrot.slane %v1639, 5
  %v2957 = vsel %vm1230, %v2955, %v2956
  %v2958 = vrot.slane %v2956, 4
  %v2959 = vrot.slane %v1748, 5
  %v2960 = vsel %vm1230, %v2958, %v2959
  %v2961 = vrot.slane %v2683, 5
  %v2962 = vrot.slane %v2961, 4
  %v2963 = vrot.slane %v1641, 5
  %v2964 = vsel %vm1230, %v2962, %v2963
  %v2965 = vrot.slane %v2963, 4
  %v2966 = vrot.slane %v1749, 5
  %v2967 = vsel %vm1230, %v2965, %v2966
  %v2968 = vrot.slane %v2684, 5
  %v2969 = vrot.slane %v2968, 4
  %v2970 = vrot.slane %v1643, 5
  %v2971 = vsel %vm1230, %v2969, %v2970
  %v2972 = vrot.slane %v2970, 4
  %v2973 = vrot.slane %v1750, 5
  %v2974 = vsel %vm1230, %v2972, %v2973
  %v2975 = vrot.slane %v2685, 5
  %v2976 = vrot.slane %v2975, 4
  %v2977 = vrot.slane %v1645, 5
  %v2978 = vsel %vm1230, %v2976, %v2977
  %v2979 = vrot.slane %v2977, 4
  %v2980 = vrot.slane %v1751, 5
  %v2981 = vsel %vm1230, %v2979, %v2980
  %v2982 = vrot.slane %v2686, 5
  %v2983 = vrot.slane %v2982, 4
  %v2984 = vrot.slane %v1647, 5
  %v2985 = vsel %vm1230, %v2983, %v2984
  %v2986 = vrot.slane %v2984, 4
  %v2987 = vrot.slane %v1752, 5
  %v2988 = vsel %vm1230, %v2986, %v2987
  %v2989 = vrot.slane %v2687, 5
  %v2990 = vrot.slane %v2989, 4
  %v2991 = vrot.slane %v1649, 5
  %v2992 = vsel %vm1230, %v2990, %v2991
  %v2993 = vrot.slane %v2991, 4
  %v2994 = vrot.slane %v1753, 5
  %v2995 = vsel %vm1230, %v2993, %v2994
  %v2996 = vrot.slane %v2688, 5
  %v2997 = vrot.slane %v2996, 4
  %v2998 = vrot.slane %v1651, 5
  %v2999 = vsel %vm1230, %v2997, %v2998
  %v3000 = vrot.slane %v2998, 4
  %v3001 = vrot.slane %v1754, 5
  %v3002 = vsel %vm1230, %v3000, %v3001
  %v3003 = vrot.slane %v2689, 5
  %v3004 = vrot.slane %v3003, 4
  %v3005 = vrot.slane %v1653, 5
  %v3006 = vsel %vm1230, %v3004, %v3005
  %v3007 = vrot.slane %v3005, 4
  %v3008 = vrot.slane %v1755, 5
  %v3009 = vsel %vm1230, %v3007, %v3008
  %vm3074 = vcmp.ge.s32.totalorder %v28, 20
  %vm3075 = vcmp.lt.s32.totalorder %v28, 24
  %vm3076 = vmand %vm3074, %vm3075
  %v3077 = vsel %vm3076, 1, 0
  %vm3078 = vcmp.eq.s32.totalorder %v3077, 1
  %vm3079 = vmpackc.low %vm3078, %vm3078
  %v3080 = vsel %vm3079, %v2789, %v2594
  %v3081 = vsel %vm3079, %v2792, %v2595
  %v3082 = vsel %vm3079, %v2796, %v2596
  %v3083 = vsel %vm3079, %v2799, %v2597
  %v3084 = vsel %vm3079, %v2803, %v2598
  %v3085 = vsel %vm3079, %v2806, %v2599
  %v3086 = vsel %vm3079, %v2810, %v2600
  %v3087 = vsel %vm3079, %v2813, %v2601
  %v3088 = vsel %vm3079, %v2817, %v2602
  %v3089 = vsel %vm3079, %v2820, %v2603
  %v3090 = vsel %vm3079, %v2824, %v2604
  %v3091 = vsel %vm3079, %v2827, %v2605
  %v3092 = vsel %vm3079, %v2831, %v2606
  %v3093 = vsel %vm3079, %v2834, %v2607
  %v3094 = vsel %vm3079, %v2838, %v2608
  %v3095 = vsel %vm3079, %v2841, %v2609
  %v3096 = vsel %vm3079, %v2845, %v2610
  %v3097 = vsel %vm3079, %v2848, %v2611
  %v3098 = vsel %vm3079, %v2852, %v2612
  %v3099 = vsel %vm3079, %v2855, %v2613
  %v3100 = vsel %vm3079, %v2859, %v2614
  %v3101 = vsel %vm3079, %v2862, %v2615
  %v3102 = vsel %vm3079, %v2866, %v2616
  %v3103 = vsel %vm3079, %v2869, %v2617
  %v3104 = vsel %vm3079, %v2873, %v2618
  %v3105 = vsel %vm3079, %v2876, %v2619
  %v3106 = vsel %vm3079, %v2880, %v2620
  %v3107 = vsel %vm3079, %v2883, %v2621
  %v3108 = vsel %vm3079, %v2887, %v2622
  %v3109 = vsel %vm3079, %v2890, %v2623
  %v3110 = vsel %vm3079, %v2894, %v2624
  %v3111 = vsel %vm3079, %v2897, %v2625
  %v3112 = vsel %vm3079, %v2901, %v2626
  %v3113 = vsel %vm3079, %v2904, %v2627
  %v3114 = vsel %vm3079, %v2908, %v2628
  %v3115 = vsel %vm3079, %v2911, %v2629
  %v3116 = vsel %vm3079, %v2915, %v2630
  %v3117 = vsel %vm3079, %v2918, %v2631
  %v3118 = vsel %vm3079, %v2922, %v2632
  %v3119 = vsel %vm3079, %v2925, %v2633
  %v3120 = vsel %vm3079, %v2929, %v2634
  %v3121 = vsel %vm3079, %v2932, %v2635
  %v3122 = vsel %vm3079, %v2936, %v2636
  %v3123 = vsel %vm3079, %v2939, %v2637
  %v3124 = vsel %vm3079, %v2943, %v2638
  %v3125 = vsel %vm3079, %v2946, %v2639
  %v3126 = vsel %vm3079, %v2950, %v2640
  %v3127 = vsel %vm3079, %v2953, %v2641
  %v3128 = vsel %vm3079, %v2957, %v2642
  %v3129 = vsel %vm3079, %v2960, %v2643
  %v3130 = vsel %vm3079, %v2964, %v2644
  %v3131 = vsel %vm3079, %v2967, %v2645
  %v3132 = vsel %vm3079, %v2971, %v2646
  %v3133 = vsel %vm3079, %v2974, %v2647
  %v3134 = vsel %vm3079, %v2978, %v2648
  %v3135 = vsel %vm3079, %v2981, %v2649
  %v3136 = vsel %vm3079, %v2985, %v2650
  %v3137 = vsel %vm3079, %v2988, %v2651
  %v3138 = vsel %vm3079, %v2992, %v2652
  %v3139 = vsel %vm3079, %v2995, %v2653
  %v3140 = vsel %vm3079, %v2999, %v2654
  %v3141 = vsel %vm3079, %v3002, %v2655
  %v3142 = vsel %vm3079, %v3006, %v2656
  %v3143 = vsel %vm3079, %v3009, %v2657
  %s3144 = scalar_lea.vmem %s0, 24
  %v3145 = vld [vmem:[%s3144] sm:$0xf]
  %v3146 = vld [vmem:[%s3144 + $0x4] sm:$0xf]
  %v3147 = vld [vmem:[%s3144 + $0xc] sm:$0xf]
  %v3148 = vld [vmem:[%s3144 + $0x10] sm:$0xf]
  %v3149 = vld [vmem:[%s3144 + $0x18] sm:$0xf]
  %v3150 = vld [vmem:[%s3144 + $0x1c] sm:$0xf]
  %v3151 = vld [vmem:[%s3144 + $0x24] sm:$0xf]
  %v3152 = vld [vmem:[%s3144 + $0x28] sm:$0xf]
  %v3153 = vld [vmem:[%s3144 + $0x30] sm:$0xf]
  %v3154 = vld [vmem:[%s3144 + $0x34] sm:$0xf]
  %v3155 = vld [vmem:[%s3144 + $0x3c] sm:$0xf]
  %v3156 = vld [vmem:[%s3144 + $0x40] sm:$0xf]
  %v3157 = vld [vmem:[%s3144 + $0x48] sm:$0xf]
  %v3158 = vld [vmem:[%s3144 + $0x4c] sm:$0xf]
  %v3159 = vld [vmem:[%s3144 + $0x54] sm:$0xf]
  %v3160 = vld [vmem:[%s3144 + $0x58] sm:$0xf]
  %v3161 = vld [vmem:[%s3144 + $0x60] sm:$0xf]
  %v3162 = vld [vmem:[%s3144 + $0x64] sm:$0xf]
  %v3163 = vld [vmem:[%s3144 + $0x6c] sm:$0xf]
  %v3164 = vld [vmem:[%s3144 + $0x70] sm:$0xf]
  %v3165 = vld [vmem:[%s3144 + $0x78] sm:$0xf]
  %v3166 = vld [vmem:[%s3144 + $0x7c] sm:$0xf]
  %v3167 = vld [vmem:[%s3144 + $0x84] sm:$0xf]
  %v3168 = vld [vmem:[%s3144 + $0x88] sm:$0xf]
  %v3169 = vld [vmem:[%s3144 + $0x90] sm:$0xf]
  %v3170 = vld [vmem:[%s3144 + $0x94] sm:$0xf]
  %v3171 = vld [vmem:[%s3144 + $0x9c] sm:$0xf]
  %v3172 = vld [vmem:[%s3144 + $0xa0] sm:$0xf]
  %v3173 = vld [vmem:[%s3144 + $0xa8] sm:$0xf]
  %v3174 = vld [vmem:[%s3144 + $0xac] sm:$0xf]
  %v3175 = vld [vmem:[%s3144 + $0xb4] sm:$0xf]
  %v3176 = vld [vmem:[%s3144 + $0xb8] sm:$0xf]
  %v3177 = vld [vmem:[%s3144 + $0xd8] sm:$0xf]
  %v3178 = vld [vmem:[%s3144 + $0xdc] sm:$0xf]
  %v3179 = vld [vmem:[%s3144 + $0xe4] sm:$0xf]
  %v3180 = vld [vmem:[%s3144 + $0xe8] sm:$0xf]
  %v3181 = vld [vmem:[%s3144 + $0xf0] sm:$0xf]
  %v3182 = vld [vmem:[%s3144 + $0xf4] sm:$0xf]
  %v3183 = vld [vmem:[%s3144 + $0xfc] sm:$0xf]
  %v3184 = vld [vmem:[%s3144 + $0x100] sm:$0xf]
  %v3185 = vld [vmem:[%s3144 + $0x108] sm:$0xf]
  %v3186 = vld [vmem:[%s3144 + $0x10c] sm:$0xf]
  %v3187 = vld [vmem:[%s3144 + $0x114] sm:$0xf]
  %v3188 = vld [vmem:[%s3144 + $0x118] sm:$0xf]
  %v3189 = vld [vmem:[%s3144 + $0x120] sm:$0xf]
  %v3190 = vld [vmem:[%s3144 + $0x124] sm:$0xf]
  %v3191 = vld [vmem:[%s3144 + $0x12c] sm:$0xf]
  %v3192 = vld [vmem:[%s3144 + $0x130] sm:$0xf]
  %v3193 = vld [vmem:[%s3144 + $0x138] sm:$0xf]
  %v3194 = vld [vmem:[%s3144 + $0x13c] sm:$0xf]
  %v3195 = vld [vmem:[%s3144 + $0x144] sm:$0xf]
  %v3196 = vld [vmem:[%s3144 + $0x148] sm:$0xf]
  %v3197 = vld [vmem:[%s3144 + $0x150] sm:$0xf]
  %v3198 = vld [vmem:[%s3144 + $0x154] sm:$0xf]
  %v3199 = vld [vmem:[%s3144 + $0x15c] sm:$0xf]
  %v3200 = vld [vmem:[%s3144 + $0x160] sm:$0xf]
  %v3201 = vld [vmem:[%s3144 + $0x168] sm:$0xf]
  %v3202 = vld [vmem:[%s3144 + $0x16c] sm:$0xf]
  %v3203 = vld [vmem:[%s3144 + $0x174] sm:$0xf]
  %v3204 = vld [vmem:[%s3144 + $0x178] sm:$0xf]
  %v3205 = vld [vmem:[%s3144 + $0x180] sm:$0xf]
  %v3206 = vld [vmem:[%s3144 + $0x184] sm:$0xf]
  %v3207 = vld [vmem:[%s3144 + $0x18c] sm:$0xf]
  %v3208 = vld [vmem:[%s3144 + $0x190] sm:$0xf]
  %vm3209 = vcmp.ge.s32.totalorder %v28, 24
  %vm3210 = vcmp.lt.s32.totalorder %v28, 28
  %vm3211 = vmand %vm3209, %vm3210
  %v3212 = vsel %vm3211, 1, 0
  %vm3213 = vcmp.eq.s32.totalorder %v3212, 1
  %vm3214 = vmpackc.low %vm3213, %vm3213
  %v3215 = vsel %vm3214, %v3145, %v3080
  %v3216 = vsel %vm3214, %v3146, %v3081
  %v3217 = vsel %vm3214, %v3147, %v3082
  %v3218 = vsel %vm3214, %v3148, %v3083
  %v3219 = vsel %vm3214, %v3149, %v3084
  %v3220 = vsel %vm3214, %v3150, %v3085
  %v3221 = vsel %vm3214, %v3151, %v3086
  %v3222 = vsel %vm3214, %v3152, %v3087
  %v3223 = vsel %vm3214, %v3153, %v3088
  %v3224 = vsel %vm3214, %v3154, %v3089
  %v3225 = vsel %vm3214, %v3155, %v3090
  %v3226 = vsel %vm3214, %v3156, %v3091
  %v3227 = vsel %vm3214, %v3157, %v3092
  %v3228 = vsel %vm3214, %v3158, %v3093
  %v3229 = vsel %vm3214, %v3159, %v3094
  %v3230 = vsel %vm3214, %v3160, %v3095
  %v3231 = vsel %vm3214, %v3161, %v3096
  %v3232 = vsel %vm3214, %v3162, %v3097
  %v3233 = vsel %vm3214, %v3163, %v3098
  %v3234 = vsel %vm3214, %v3164, %v3099
  %v3235 = vsel %vm3214, %v3165, %v3100
  %v3236 = vsel %vm3214, %v3166, %v3101
  %v3237 = vsel %vm3214, %v3167, %v3102
  %v3238 = vsel %vm3214, %v3168, %v3103
  %v3239 = vsel %vm3214, %v3169, %v3104
  %v3240 = vsel %vm3214, %v3170, %v3105
  %v3241 = vsel %vm3214, %v3171, %v3106
  %v3242 = vsel %vm3214, %v3172, %v3107
  %v3243 = vsel %vm3214, %v3173, %v3108
  %v3244 = vsel %vm3214, %v3174, %v3109
  %v3245 = vsel %vm3214, %v3175, %v3110
  %v3246 = vsel %vm3214, %v3176, %v3111
  %v3247 = vsel %vm3214, %v3177, %v3112
  %v3248 = vsel %vm3214, %v3178, %v3113
  %v3249 = vsel %vm3214, %v3179, %v3114
  %v3250 = vsel %vm3214, %v3180, %v3115
  %v3251 = vsel %vm3214, %v3181, %v3116
  %v3252 = vsel %vm3214, %v3182, %v3117
  %v3253 = vsel %vm3214, %v3183, %v3118
  %v3254 = vsel %vm3214, %v3184, %v3119
  %v3255 = vsel %vm3214, %v3185, %v3120
  %v3256 = vsel %vm3214, %v3186, %v3121
  %v3257 = vsel %vm3214, %v3187, %v3122
  %v3258 = vsel %vm3214, %v3188, %v3123
  %v3259 = vsel %vm3214, %v3189, %v3124
  %v3260 = vsel %vm3214, %v3190, %v3125
  %v3261 = vsel %vm3214, %v3191, %v3126
  %v3262 = vsel %vm3214, %v3192, %v3127
  %v3263 = vsel %vm3214, %v3193, %v3128
  %v3264 = vsel %vm3214, %v3194, %v3129
  %v3265 = vsel %vm3214, %v3195, %v3130
  %v3266 = vsel %vm3214, %v3196, %v3131
  %v3267 = vsel %vm3214, %v3197, %v3132
  %v3268 = vsel %vm3214, %v3198, %v3133
  %v3269 = vsel %vm3214, %v3199, %v3134
  %v3270 = vsel %vm3214, %v3200, %v3135
  %v3271 = vsel %vm3214, %v3201, %v3136
  %v3272 = vsel %vm3214, %v3202, %v3137
  %v3273 = vsel %vm3214, %v3203, %v3138
  %v3274 = vsel %vm3214, %v3204, %v3139
  %v3275 = vsel %vm3214, %v3205, %v3140
  %v3276 = vsel %vm3214, %v3206, %v3141
  %v3277 = vsel %vm3214, %v3207, %v3142
  %v3278 = vsel %vm3214, %v3208, %v3143
  %v3279 = vld [vmem:[%s3144 + $0x8] sm:$0x1]
  %v3280 = vld [vmem:[%s3144 + $0x14] sm:$0x1]
  %v3281 = vld [vmem:[%s3144 + $0x20] sm:$0x1]
  %v3282 = vld [vmem:[%s3144 + $0x2c] sm:$0x1]
  %v3283 = vld [vmem:[%s3144 + $0x38] sm:$0x1]
  %v3284 = vld [vmem:[%s3144 + $0x44] sm:$0x1]
  %v3285 = vld [vmem:[%s3144 + $0x50] sm:$0x1]
  %v3286 = vld [vmem:[%s3144 + $0x5c] sm:$0x1]
  %v3287 = vld [vmem:[%s3144 + $0x68] sm:$0x1]
  %v3288 = vld [vmem:[%s3144 + $0x74] sm:$0x1]
  %v3289 = vld [vmem:[%s3144 + $0x80] sm:$0x1]
  %v3290 = vld [vmem:[%s3144 + $0x8c] sm:$0x1]
  %v3291 = vld [vmem:[%s3144 + $0x98] sm:$0x1]
  %v3292 = vld [vmem:[%s3144 + $0xa4] sm:$0x1]
  %v3293 = vld [vmem:[%s3144 + $0xb0] sm:$0x1]
  %v3294 = vld [vmem:[%s3144 + $0xbc] sm:$0x1]
  %v3295 = vld [vmem:[%s3144 + $0xe0] sm:$0x1]
  %v3296 = vld [vmem:[%s3144 + $0xec] sm:$0x1]
  %v3297 = vld [vmem:[%s3144 + $0xf8] sm:$0x1]
  %v3298 = vld [vmem:[%s3144 + $0x104] sm:$0x1]
  %v3299 = vld [vmem:[%s3144 + $0x110] sm:$0x1]
  %v3300 = vld [vmem:[%s3144 + $0x11c] sm:$0x1]
  %v3301 = vld [vmem:[%s3144 + $0x128] sm:$0x1]
  %v3302 = vld [vmem:[%s3144 + $0x134] sm:$0x1]
  %v3303 = vld [vmem:[%s3144 + $0x140] sm:$0x1]
  %v3304 = vld [vmem:[%s3144 + $0x14c] sm:$0x1]
  %v3305 = vld [vmem:[%s3144 + $0x158] sm:$0x1]
  %v3306 = vld [vmem:[%s3144 + $0x164] sm:$0x1]
  %v3307 = vld [vmem:[%s3144 + $0x170] sm:$0x1]
  %v3308 = vld [vmem:[%s3144 + $0x17c] sm:$0x1]
  %v3309 = vld [vmem:[%s3144 + $0x188] sm:$0x1]
  %v3310 = vld [vmem:[%s3144 + $0x194] sm:$0x1]
  %v3312 = vshrl.u32 %v3145, 16
  %v3314 = vrot.slane %v3312, 4
  %v3315 = vshll.u32 %v3145, 16
  %v3317 = vrot.slane %v3315, 5
  %v3318 = vor.u32 %v3314, %v3317
  %v3319 = vrot.slane %v3318, 4
  %v3321 = vshll.u32 %v3146, 16
  %v3323 = vrot.slane %v3321, 5
  %v3324 = vsel %vm197, %v3319, %v3323
  %v3325 = vshrl.u32 %v3146, 16
  %v3327 = vrot.slane %v3325, 4
  %v3328 = vor.u32 %v3327, %v3323
  %v3329 = vrot.slane %v3328, 4
  %v3331 = vshll.u32 %v3279, 16
  %v3333 = vrot.slane %v3331, 5
  %v3334 = vsel %vm197, %v3329, %v3333
  %v3336 = vshrl.u32 %v3147, 16
  %v3338 = vrot.slane %v3336, 4
  %v3339 = vshll.u32 %v3147, 16
  %v3341 = vrot.slane %v3339, 5
  %v3342 = vor.u32 %v3338, %v3341
  %v3343 = vrot.slane %v3342, 4
  %v3345 = vshll.u32 %v3148, 16
  %v3347 = vrot.slane %v3345, 5
  %v3348 = vsel %vm197, %v3343, %v3347
  %v3349 = vshrl.u32 %v3148, 16
  %v3351 = vrot.slane %v3349, 4
  %v3352 = vor.u32 %v3351, %v3347
  %v3353 = vrot.slane %v3352, 4
  %v3355 = vshll.u32 %v3280, 16
  %v3357 = vrot.slane %v3355, 5
  %v3358 = vsel %vm197, %v3353, %v3357
  %v3360 = vshrl.u32 %v3149, 16
  %v3362 = vrot.slane %v3360, 4
  %v3363 = vshll.u32 %v3149, 16
  %v3365 = vrot.slane %v3363, 5
  %v3366 = vor.u32 %v3362, %v3365
  %v3367 = vrot.slane %v3366, 4
  %v3369 = vshll.u32 %v3150, 16
  %v3371 = vrot.slane %v3369, 5
  %v3372 = vsel %vm197, %v3367, %v3371
  %v3373 = vshrl.u32 %v3150, 16
  %v3375 = vrot.slane %v3373, 4
  %v3376 = vor.u32 %v3375, %v3371
  %v3377 = vrot.slane %v3376, 4
  %v3379 = vshll.u32 %v3281, 16
  %v3381 = vrot.slane %v3379, 5
  %v3382 = vsel %vm197, %v3377, %v3381
  %v3384 = vshrl.u32 %v3151, 16
  %v3386 = vrot.slane %v3384, 4
  %v3387 = vshll.u32 %v3151, 16
  %v3389 = vrot.slane %v3387, 5
  %v3390 = vor.u32 %v3386, %v3389
  %v3391 = vrot.slane %v3390, 4
  %v3393 = vshll.u32 %v3152, 16
  %v3395 = vrot.slane %v3393, 5
  %v3396 = vsel %vm197, %v3391, %v3395
  %v3397 = vshrl.u32 %v3152, 16
  %v3399 = vrot.slane %v3397, 4
  %v3400 = vor.u32 %v3399, %v3395
  %v3401 = vrot.slane %v3400, 4
  %v3403 = vshll.u32 %v3282, 16
  %v3405 = vrot.slane %v3403, 5
  %v3406 = vsel %vm197, %v3401, %v3405
  %v3408 = vshrl.u32 %v3153, 16
  %v3410 = vrot.slane %v3408, 4
  %v3411 = vshll.u32 %v3153, 16
  %v3413 = vrot.slane %v3411, 5
  %v3414 = vor.u32 %v3410, %v3413
  %v3415 = vrot.slane %v3414, 4
  %v3417 = vshll.u32 %v3154, 16
  %v3419 = vrot.slane %v3417, 5
  %v3420 = vsel %vm197, %v3415, %v3419
  %v3421 = vshrl.u32 %v3154, 16
  %v3423 = vrot.slane %v3421, 4
  %v3424 = vor.u32 %v3423, %v3419
  %v3425 = vrot.slane %v3424, 4
  %v3427 = vshll.u32 %v3283, 16
  %v3429 = vrot.slane %v3427, 5
  %v3430 = vsel %vm197, %v3425, %v3429
  %v3432 = vshrl.u32 %v3155, 16
  %v3434 = vrot.slane %v3432, 4
  %v3435 = vshll.u32 %v3155, 16
  %v3437 = vrot.slane %v3435, 5
  %v3438 = vor.u32 %v3434, %v3437
  %v3439 = vrot.slane %v3438, 4
  %v3441 = vshll.u32 %v3156, 16
  %v3443 = vrot.slane %v3441, 5
  %v3444 = vsel %vm197, %v3439, %v3443
  %v3445 = vshrl.u32 %v3156, 16
  %v3447 = vrot.slane %v3445, 4
  %v3448 = vor.u32 %v3447, %v3443
  %v3449 = vrot.slane %v3448, 4
  %v3451 = vshll.u32 %v3284, 16
  %v3453 = vrot.slane %v3451, 5
  %v3454 = vsel %vm197, %v3449, %v3453
  %v3456 = vshrl.u32 %v3157, 16
  %v3458 = vrot.slane %v3456, 4
  %v3459 = vshll.u32 %v3157, 16
  %v3461 = vrot.slane %v3459, 5
  %v3462 = vor.u32 %v3458, %v3461
  %v3463 = vrot.slane %v3462, 4
  %v3465 = vshll.u32 %v3158, 16
  %v3467 = vrot.slane %v3465, 5
  %v3468 = vsel %vm197, %v3463, %v3467
  %v3469 = vshrl.u32 %v3158, 16
  %v3471 = vrot.slane %v3469, 4
  %v3472 = vor.u32 %v3471, %v3467
  %v3473 = vrot.slane %v3472, 4
  %v3475 = vshll.u32 %v3285, 16
  %v3477 = vrot.slane %v3475, 5
  %v3478 = vsel %vm197, %v3473, %v3477
  %v3480 = vshrl.u32 %v3159, 16
  %v3482 = vrot.slane %v3480, 4
  %v3483 = vshll.u32 %v3159, 16
  %v3485 = vrot.slane %v3483, 5
  %v3486 = vor.u32 %v3482, %v3485
  %v3487 = vrot.slane %v3486, 4
  %v3489 = vshll.u32 %v3160, 16
  %v3491 = vrot.slane %v3489, 5
  %v3492 = vsel %vm197, %v3487, %v3491
  %v3493 = vshrl.u32 %v3160, 16
  %v3495 = vrot.slane %v3493, 4
  %v3496 = vor.u32 %v3495, %v3491
  %v3497 = vrot.slane %v3496, 4
  %v3499 = vshll.u32 %v3286, 16
  %v3501 = vrot.slane %v3499, 5
  %v3502 = vsel %vm197, %v3497, %v3501
  %v3504 = vshrl.u32 %v3161, 16
  %v3506 = vrot.slane %v3504, 4
  %v3507 = vshll.u32 %v3161, 16
  %v3509 = vrot.slane %v3507, 5
  %v3510 = vor.u32 %v3506, %v3509
  %v3511 = vrot.slane %v3510, 4
  %v3513 = vshll.u32 %v3162, 16
  %v3515 = vrot.slane %v3513, 5
  %v3516 = vsel %vm197, %v3511, %v3515
  %v3517 = vshrl.u32 %v3162, 16
  %v3519 = vrot.slane %v3517, 4
  %v3520 = vor.u32 %v3519, %v3515
  %v3521 = vrot.slane %v3520, 4
  %v3523 = vshll.u32 %v3287, 16
  %v3525 = vrot.slane %v3523, 5
  %v3526 = vsel %vm197, %v3521, %v3525
  %v3528 = vshrl.u32 %v3163, 16
  %v3530 = vrot.slane %v3528, 4
  %v3531 = vshll.u32 %v3163, 16
  %v3533 = vrot.slane %v3531, 5
  %v3534 = vor.u32 %v3530, %v3533
  %v3535 = vrot.slane %v3534, 4
  %v3537 = vshll.u32 %v3164, 16
  %v3539 = vrot.slane %v3537, 5
  %v3540 = vsel %vm197, %v3535, %v3539
  %v3541 = vshrl.u32 %v3164, 16
  %v3543 = vrot.slane %v3541, 4
  %v3544 = vor.u32 %v3543, %v3539
  %v3545 = vrot.slane %v3544, 4
  %v3547 = vshll.u32 %v3288, 16
  %v3549 = vrot.slane %v3547, 5
  %v3550 = vsel %vm197, %v3545, %v3549
  %v3552 = vshrl.u32 %v3165, 16
  %v3554 = vrot.slane %v3552, 4
  %v3555 = vshll.u32 %v3165, 16
  %v3557 = vrot.slane %v3555, 5
  %v3558 = vor.u32 %v3554, %v3557
  %v3559 = vrot.slane %v3558, 4
  %v3561 = vshll.u32 %v3166, 16
  %v3563 = vrot.slane %v3561, 5
  %v3564 = vsel %vm197, %v3559, %v3563
  %v3565 = vshrl.u32 %v3166, 16
  %v3567 = vrot.slane %v3565, 4
  %v3568 = vor.u32 %v3567, %v3563
  %v3569 = vrot.slane %v3568, 4
  %v3571 = vshll.u32 %v3289, 16
  %v3573 = vrot.slane %v3571, 5
  %v3574 = vsel %vm197, %v3569, %v3573
  %v3576 = vshrl.u32 %v3167, 16
  %v3578 = vrot.slane %v3576, 4
  %v3579 = vshll.u32 %v3167, 16
  %v3581 = vrot.slane %v3579, 5
  %v3582 = vor.u32 %v3578, %v3581
  %v3583 = vrot.slane %v3582, 4
  %v3585 = vshll.u32 %v3168, 16
  %v3587 = vrot.slane %v3585, 5
  %v3588 = vsel %vm197, %v3583, %v3587
  %v3589 = vshrl.u32 %v3168, 16
  %v3591 = vrot.slane %v3589, 4
  %v3592 = vor.u32 %v3591, %v3587
  %v3593 = vrot.slane %v3592, 4
  %v3595 = vshll.u32 %v3290, 16
  %v3597 = vrot.slane %v3595, 5
  %v3598 = vsel %vm197, %v3593, %v3597
  %v3600 = vshrl.u32 %v3169, 16
  %v3602 = vrot.slane %v3600, 4
  %v3603 = vshll.u32 %v3169, 16
  %v3605 = vrot.slane %v3603, 5
  %v3606 = vor.u32 %v3602, %v3605
  %v3607 = vrot.slane %v3606, 4
  %v3609 = vshll.u32 %v3170, 16
  %v3611 = vrot.slane %v3609, 5
  %v3612 = vsel %vm197, %v3607, %v3611
  %v3613 = vshrl.u32 %v3170, 16
  %v3615 = vrot.slane %v3613, 4
  %v3616 = vor.u32 %v3615, %v3611
  %v3617 = vrot.slane %v3616, 4
  %v3619 = vshll.u32 %v3291, 16
  %v3621 = vrot.slane %v3619, 5
  %v3622 = vsel %vm197, %v3617, %v3621
  %v3624 = vshrl.u32 %v3171, 16
  %v3626 = vrot.slane %v3624, 4
  %v3627 = vshll.u32 %v3171, 16
  %v3629 = vrot.slane %v3627, 5
  %v3630 = vor.u32 %v3626, %v3629
  %v3631 = vrot.slane %v3630, 4
  %v3633 = vshll.u32 %v3172, 16
  %v3635 = vrot.slane %v3633, 5
  %v3636 = vsel %vm197, %v3631, %v3635
  %v3637 = vshrl.u32 %v3172, 16
  %v3639 = vrot.slane %v3637, 4
  %v3640 = vor.u32 %v3639, %v3635
  %v3641 = vrot.slane %v3640, 4
  %v3643 = vshll.u32 %v3292, 16
  %v3645 = vrot.slane %v3643, 5
  %v3646 = vsel %vm197, %v3641, %v3645
  %v3648 = vshrl.u32 %v3173, 16
  %v3650 = vrot.slane %v3648, 4
  %v3651 = vshll.u32 %v3173, 16
  %v3653 = vrot.slane %v3651, 5
  %v3654 = vor.u32 %v3650, %v3653
  %v3655 = vrot.slane %v3654, 4
  %v3657 = vshll.u32 %v3174, 16
  %v3659 = vrot.slane %v3657, 5
  %v3660 = vsel %vm197, %v3655, %v3659
  %v3661 = vshrl.u32 %v3174, 16
  %v3663 = vrot.slane %v3661, 4
  %v3664 = vor.u32 %v3663, %v3659
  %v3665 = vrot.slane %v3664, 4
  %v3667 = vshll.u32 %v3293, 16
  %v3669 = vrot.slane %v3667, 5
  %v3670 = vsel %vm197, %v3665, %v3669
  %v3672 = vshrl.u32 %v3175, 16
  %v3674 = vrot.slane %v3672, 4
  %v3675 = vshll.u32 %v3175, 16
  %v3677 = vrot.slane %v3675, 5
  %v3678 = vor.u32 %v3674, %v3677
  %v3679 = vrot.slane %v3678, 4
  %v3681 = vshll.u32 %v3176, 16
  %v3683 = vrot.slane %v3681, 5
  %v3684 = vsel %vm197, %v3679, %v3683
  %v3685 = vshrl.u32 %v3176, 16
  %v3687 = vrot.slane %v3685, 4
  %v3688 = vor.u32 %v3687, %v3683
  %v3689 = vrot.slane %v3688, 4
  %v3691 = vshll.u32 %v3294, 16
  %v3693 = vrot.slane %v3691, 5
  %v3694 = vsel %vm197, %v3689, %v3693
  %v3696 = vshrl.u32 %v3177, 16
  %v3698 = vrot.slane %v3696, 4
  %v3699 = vshll.u32 %v3177, 16
  %v3701 = vrot.slane %v3699, 5
  %v3702 = vor.u32 %v3698, %v3701
  %v3703 = vrot.slane %v3702, 4
  %v3705 = vshll.u32 %v3178, 16
  %v3707 = vrot.slane %v3705, 5
  %v3708 = vsel %vm197, %v3703, %v3707
  %v3709 = vshrl.u32 %v3178, 16
  %v3711 = vrot.slane %v3709, 4
  %v3712 = vor.u32 %v3711, %v3707
  %v3713 = vrot.slane %v3712, 4
  %v3715 = vshll.u32 %v3295, 16
  %v3717 = vrot.slane %v3715, 5
  %v3718 = vsel %vm197, %v3713, %v3717
  %v3720 = vshrl.u32 %v3179, 16
  %v3722 = vrot.slane %v3720, 4
  %v3723 = vshll.u32 %v3179, 16
  %v3725 = vrot.slane %v3723, 5
  %v3726 = vor.u32 %v3722, %v3725
  %v3727 = vrot.slane %v3726, 4
  %v3729 = vshll.u32 %v3180, 16
  %v3731 = vrot.slane %v3729, 5
  %v3732 = vsel %vm197, %v3727, %v3731
  %v3733 = vshrl.u32 %v3180, 16
  %v3735 = vrot.slane %v3733, 4
  %v3736 = vor.u32 %v3735, %v3731
  %v3737 = vrot.slane %v3736, 4
  %v3739 = vshll.u32 %v3296, 16
  %v3741 = vrot.slane %v3739, 5
  %v3742 = vsel %vm197, %v3737, %v3741
  %v3744 = vshrl.u32 %v3181, 16
  %v3746 = vrot.slane %v3744, 4
  %v3747 = vshll.u32 %v3181, 16
  %v3749 = vrot.slane %v3747, 5
  %v3750 = vor.u32 %v3746, %v3749
  %v3751 = vrot.slane %v3750, 4
  %v3753 = vshll.u32 %v3182, 16
  %v3755 = vrot.slane %v3753, 5
  %v3756 = vsel %vm197, %v3751, %v3755
  %v3757 = vshrl.u32 %v3182, 16
  %v3759 = vrot.slane %v3757, 4
  %v3760 = vor.u32 %v3759, %v3755
  %v3761 = vrot.slane %v3760, 4
  %v3763 = vshll.u32 %v3297, 16
  %v3765 = vrot.slane %v3763, 5
  %v3766 = vsel %vm197, %v3761, %v3765
  %v3768 = vshrl.u32 %v3183, 16
  %v3770 = vrot.slane %v3768, 4
  %v3771 = vshll.u32 %v3183, 16
  %v3773 = vrot.slane %v3771, 5
  %v3774 = vor.u32 %v3770, %v3773
  %v3775 = vrot.slane %v3774, 4
  %v3777 = vshll.u32 %v3184, 16
  %v3779 = vrot.slane %v3777, 5
  %v3780 = vsel %vm197, %v3775, %v3779
  %v3781 = vshrl.u32 %v3184, 16
  %v3783 = vrot.slane %v3781, 4
  %v3784 = vor.u32 %v3783, %v3779
  %v3785 = vrot.slane %v3784, 4
  %v3787 = vshll.u32 %v3298, 16
  %v3789 = vrot.slane %v3787, 5
  %v3790 = vsel %vm197, %v3785, %v3789
  %v3792 = vshrl.u32 %v3185, 16
  %v3794 = vrot.slane %v3792, 4
  %v3795 = vshll.u32 %v3185, 16
  %v3797 = vrot.slane %v3795, 5
  %v3798 = vor.u32 %v3794, %v3797
  %v3799 = vrot.slane %v3798, 4
  %v3801 = vshll.u32 %v3186, 16
  %v3803 = vrot.slane %v3801, 5
  %v3804 = vsel %vm197, %v3799, %v3803
  %v3805 = vshrl.u32 %v3186, 16
  %v3807 = vrot.slane %v3805, 4
  %v3808 = vor.u32 %v3807, %v3803
  %v3809 = vrot.slane %v3808, 4
  %v3811 = vshll.u32 %v3299, 16
  %v3813 = vrot.slane %v3811, 5
  %v3814 = vsel %vm197, %v3809, %v3813
  %v3816 = vshrl.u32 %v3187, 16
  %v3818 = vrot.slane %v3816, 4
  %v3819 = vshll.u32 %v3187, 16
  %v3821 = vrot.slane %v3819, 5
  %v3822 = vor.u32 %v3818, %v3821
  %v3823 = vrot.slane %v3822, 4
  %v3825 = vshll.u32 %v3188, 16
  %v3827 = vrot.slane %v3825, 5
  %v3828 = vsel %vm197, %v3823, %v3827
  %v3829 = vshrl.u32 %v3188, 16
  %v3831 = vrot.slane %v3829, 4
  %v3832 = vor.u32 %v3831, %v3827
  %v3833 = vrot.slane %v3832, 4
  %v3835 = vshll.u32 %v3300, 16
  %v3837 = vrot.slane %v3835, 5
  %v3838 = vsel %vm197, %v3833, %v3837
  %v3840 = vshrl.u32 %v3189, 16
  %v3842 = vrot.slane %v3840, 4
  %v3843 = vshll.u32 %v3189, 16
  %v3845 = vrot.slane %v3843, 5
  %v3846 = vor.u32 %v3842, %v3845
  %v3847 = vrot.slane %v3846, 4
  %v3849 = vshll.u32 %v3190, 16
  %v3851 = vrot.slane %v3849, 5
  %v3852 = vsel %vm197, %v3847, %v3851
  %v3853 = vshrl.u32 %v3190, 16
  %v3855 = vrot.slane %v3853, 4
  %v3856 = vor.u32 %v3855, %v3851
  %v3857 = vrot.slane %v3856, 4
  %v3859 = vshll.u32 %v3301, 16
  %v3861 = vrot.slane %v3859, 5
  %v3862 = vsel %vm197, %v3857, %v3861
  %v3864 = vshrl.u32 %v3191, 16
  %v3866 = vrot.slane %v3864, 4
  %v3867 = vshll.u32 %v3191, 16
  %v3869 = vrot.slane %v3867, 5
  %v3870 = vor.u32 %v3866, %v3869
  %v3871 = vrot.slane %v3870, 4
  %v3873 = vshll.u32 %v3192, 16
  %v3875 = vrot.slane %v3873, 5
  %v3876 = vsel %vm197, %v3871, %v3875
  %v3877 = vshrl.u32 %v3192, 16
  %v3879 = vrot.slane %v3877, 4
  %v3880 = vor.u32 %v3879, %v3875
  %v3881 = vrot.slane %v3880, 4
  %v3883 = vshll.u32 %v3302, 16
  %v3885 = vrot.slane %v3883, 5
  %v3886 = vsel %vm197, %v3881, %v3885
  %v3888 = vshrl.u32 %v3193, 16
  %v3890 = vrot.slane %v3888, 4
  %v3891 = vshll.u32 %v3193, 16
  %v3893 = vrot.slane %v3891, 5
  %v3894 = vor.u32 %v3890, %v3893
  %v3895 = vrot.slane %v3894, 4
  %v3897 = vshll.u32 %v3194, 16
  %v3899 = vrot.slane %v3897, 5
  %v3900 = vsel %vm197, %v3895, %v3899
  %v3901 = vshrl.u32 %v3194, 16
  %v3903 = vrot.slane %v3901, 4
  %v3904 = vor.u32 %v3903, %v3899
  %v3905 = vrot.slane %v3904, 4
  %v3907 = vshll.u32 %v3303, 16
  %v3909 = vrot.slane %v3907, 5
  %v3910 = vsel %vm197, %v3905, %v3909
  %v3912 = vshrl.u32 %v3195, 16
  %v3914 = vrot.slane %v3912, 4
  %v3915 = vshll.u32 %v3195, 16
  %v3917 = vrot.slane %v3915, 5
  %v3918 = vor.u32 %v3914, %v3917
  %v3919 = vrot.slane %v3918, 4
  %v3921 = vshll.u32 %v3196, 16
  %v3923 = vrot.slane %v3921, 5
  %v3924 = vsel %vm197, %v3919, %v3923
  %v3925 = vshrl.u32 %v3196, 16
  %v3927 = vrot.slane %v3925, 4
  %v3928 = vor.u32 %v3927, %v3923
  %v3929 = vrot.slane %v3928, 4
  %v3931 = vshll.u32 %v3304, 16
  %v3933 = vrot.slane %v3931, 5
  %v3934 = vsel %vm197, %v3929, %v3933
  %v3936 = vshrl.u32 %v3197, 16
  %v3938 = vrot.slane %v3936, 4
  %v3939 = vshll.u32 %v3197, 16
  %v3941 = vrot.slane %v3939, 5
  %v3942 = vor.u32 %v3938, %v3941
  %v3943 = vrot.slane %v3942, 4
  %v3945 = vshll.u32 %v3198, 16
  %v3947 = vrot.slane %v3945, 5
  %v3948 = vsel %vm197, %v3943, %v3947
  %v3949 = vshrl.u32 %v3198, 16
  %v3951 = vrot.slane %v3949, 4
  %v3952 = vor.u32 %v3951, %v3947
  %v3953 = vrot.slane %v3952, 4
  %v3955 = vshll.u32 %v3305, 16
  %v3957 = vrot.slane %v3955, 5
  %v3958 = vsel %vm197, %v3953, %v3957
  %v3960 = vshrl.u32 %v3199, 16
  %v3962 = vrot.slane %v3960, 4
  %v3963 = vshll.u32 %v3199, 16
  %v3965 = vrot.slane %v3963, 5
  %v3966 = vor.u32 %v3962, %v3965
  %v3967 = vrot.slane %v3966, 4
  %v3969 = vshll.u32 %v3200, 16
  %v3971 = vrot.slane %v3969, 5
  %v3972 = vsel %vm197, %v3967, %v3971
  %v3973 = vshrl.u32 %v3200, 16
  %v3975 = vrot.slane %v3973, 4
  %v3976 = vor.u32 %v3975, %v3971
  %v3977 = vrot.slane %v3976, 4
  %v3979 = vshll.u32 %v3306, 16
  %v3981 = vrot.slane %v3979, 5
  %v3982 = vsel %vm197, %v3977, %v3981
  %v3984 = vshrl.u32 %v3201, 16
  %v3986 = vrot.slane %v3984, 4
  %v3987 = vshll.u32 %v3201, 16
  %v3989 = vrot.slane %v3987, 5
  %v3990 = vor.u32 %v3986, %v3989
  %v3991 = vrot.slane %v3990, 4
  %v3993 = vshll.u32 %v3202, 16
  %v3995 = vrot.slane %v3993, 5
  %v3996 = vsel %vm197, %v3991, %v3995
  %v3997 = vshrl.u32 %v3202, 16
  %v3999 = vrot.slane %v3997, 4
  %v4000 = vor.u32 %v3999, %v3995
  %v4001 = vrot.slane %v4000, 4
  %v4003 = vshll.u32 %v3307, 16
  %v4005 = vrot.slane %v4003, 5
  %v4006 = vsel %vm197, %v4001, %v4005
  %v4008 = vshrl.u32 %v3203, 16
  %v4010 = vrot.slane %v4008, 4
  %v4011 = vshll.u32 %v3203, 16
  %v4013 = vrot.slane %v4011, 5
  %v4014 = vor.u32 %v4010, %v4013
  %v4015 = vrot.slane %v4014, 4
  %v4017 = vshll.u32 %v3204, 16
  %v4019 = vrot.slane %v4017, 5
  %v4020 = vsel %vm197, %v4015, %v4019
  %v4021 = vshrl.u32 %v3204, 16
  %v4023 = vrot.slane %v4021, 4
  %v4024 = vor.u32 %v4023, %v4019
  %v4025 = vrot.slane %v4024, 4
  %v4027 = vshll.u32 %v3308, 16
  %v4029 = vrot.slane %v4027, 5
  %v4030 = vsel %vm197, %v4025, %v4029
  %v4032 = vshrl.u32 %v3205, 16
  %v4034 = vrot.slane %v4032, 4
  %v4035 = vshll.u32 %v3205, 16
  %v4037 = vrot.slane %v4035, 5
  %v4038 = vor.u32 %v4034, %v4037
  %v4039 = vrot.slane %v4038, 4
  %v4041 = vshll.u32 %v3206, 16
  %v4043 = vrot.slane %v4041, 5
  %v4044 = vsel %vm197, %v4039, %v4043
  %v4045 = vshrl.u32 %v3206, 16
  %v4047 = vrot.slane %v4045, 4
  %v4048 = vor.u32 %v4047, %v4043
  %v4049 = vrot.slane %v4048, 4
  %v4051 = vshll.u32 %v3309, 16
  %v4053 = vrot.slane %v4051, 5
  %v4054 = vsel %vm197, %v4049, %v4053
  %v4056 = vshrl.u32 %v3207, 16
  %v4058 = vrot.slane %v4056, 4
  %v4059 = vshll.u32 %v3207, 16
  %v4061 = vrot.slane %v4059, 5
  %v4062 = vor.u32 %v4058, %v4061
  %v4063 = vrot.slane %v4062, 4
  %v4065 = vshll.u32 %v3208, 16
  %v4067 = vrot.slane %v4065, 5
  %v4068 = vsel %vm197, %v4063, %v4067
  %v4069 = vshrl.u32 %v3208, 16
  %v4071 = vrot.slane %v4069, 4
  %v4072 = vor.u32 %v4071, %v4067
  %v4073 = vrot.slane %v4072, 4
  %v4075 = vshll.u32 %v3310, 16
  %v4077 = vrot.slane %v4075, 5
  %v4078 = vsel %vm197, %v4073, %v4077
  %vm4143 = vcmp.ge.s32.totalorder %v28, 28
  %vm4144 = vcmp.lt.s32.totalorder %v28, 32
  %vm4145 = vmand %vm4143, %vm4144
  %v4146 = vsel %vm4145, 1, 0
  %vm4147 = vcmp.eq.s32.totalorder %v4146, 1
  %vm4148 = vmpackc.low %vm4147, %vm4147
  %v4149 = vsel %vm4148, %v3324, %v3215
  %v4150 = vsel %vm4148, %v3334, %v3216
  %v4151 = vsel %vm4148, %v3348, %v3217
  %v4152 = vsel %vm4148, %v3358, %v3218
  %v4153 = vsel %vm4148, %v3372, %v3219
  %v4154 = vsel %vm4148, %v3382, %v3220
  %v4155 = vsel %vm4148, %v3396, %v3221
  %v4156 = vsel %vm4148, %v3406, %v3222
  %v4157 = vsel %vm4148, %v3420, %v3223
  %v4158 = vsel %vm4148, %v3430, %v3224
  %v4159 = vsel %vm4148, %v3444, %v3225
  %v4160 = vsel %vm4148, %v3454, %v3226
  %v4161 = vsel %vm4148, %v3468, %v3227
  %v4162 = vsel %vm4148, %v3478, %v3228
  %v4163 = vsel %vm4148, %v3492, %v3229
  %v4164 = vsel %vm4148, %v3502, %v3230
  %v4165 = vsel %vm4148, %v3516, %v3231
  %v4166 = vsel %vm4148, %v3526, %v3232
  %v4167 = vsel %vm4148, %v3540, %v3233
  %v4168 = vsel %vm4148, %v3550, %v3234
  %v4169 = vsel %vm4148, %v3564, %v3235
  %v4170 = vsel %vm4148, %v3574, %v3236
  %v4171 = vsel %vm4148, %v3588, %v3237
  %v4172 = vsel %vm4148, %v3598, %v3238
  %v4173 = vsel %vm4148, %v3612, %v3239
  %v4174 = vsel %vm4148, %v3622, %v3240
  %v4175 = vsel %vm4148, %v3636, %v3241
  %v4176 = vsel %vm4148, %v3646, %v3242
  %v4177 = vsel %vm4148, %v3660, %v3243
  %v4178 = vsel %vm4148, %v3670, %v3244
  %v4179 = vsel %vm4148, %v3684, %v3245
  %v4180 = vsel %vm4148, %v3694, %v3246
  %v4181 = vsel %vm4148, %v3708, %v3247
  %v4182 = vsel %vm4148, %v3718, %v3248
  %v4183 = vsel %vm4148, %v3732, %v3249
  %v4184 = vsel %vm4148, %v3742, %v3250
  %v4185 = vsel %vm4148, %v3756, %v3251
  %v4186 = vsel %vm4148, %v3766, %v3252
  %v4187 = vsel %vm4148, %v3780, %v3253
  %v4188 = vsel %vm4148, %v3790, %v3254
  %v4189 = vsel %vm4148, %v3804, %v3255
  %v4190 = vsel %vm4148, %v3814, %v3256
  %v4191 = vsel %vm4148, %v3828, %v3257
  %v4192 = vsel %vm4148, %v3838, %v3258
  %v4193 = vsel %vm4148, %v3852, %v3259
  %v4194 = vsel %vm4148, %v3862, %v3260
  %v4195 = vsel %vm4148, %v3876, %v3261
  %v4196 = vsel %vm4148, %v3886, %v3262
  %v4197 = vsel %vm4148, %v3900, %v3263
  %v4198 = vsel %vm4148, %v3910, %v3264
  %v4199 = vsel %vm4148, %v3924, %v3265
  %v4200 = vsel %vm4148, %v3934, %v3266
  %v4201 = vsel %vm4148, %v3948, %v3267
  %v4202 = vsel %vm4148, %v3958, %v3268
  %v4203 = vsel %vm4148, %v3972, %v3269
  %v4204 = vsel %vm4148, %v3982, %v3270
  %v4205 = vsel %vm4148, %v3996, %v3271
  %v4206 = vsel %vm4148, %v4006, %v3272
  %v4207 = vsel %vm4148, %v4020, %v3273
  %v4208 = vsel %vm4148, %v4030, %v3274
  %v4209 = vsel %vm4148, %v4044, %v3275
  %v4210 = vsel %vm4148, %v4054, %v3276
  %v4211 = vsel %vm4148, %v4068, %v3277
  %v4212 = vsel %vm4148, %v4078, %v3278
  %v4213 = vld [vmem:[%s3144] sm:$0xe]
  %v4214 = vld [vmem:[%s3144 + $0xc] sm:$0xe]
  %v4215 = vld [vmem:[%s3144 + $0x18] sm:$0xe]
  %v4216 = vld [vmem:[%s3144 + $0x24] sm:$0xe]
  %v4217 = vld [vmem:[%s3144 + $0x30] sm:$0xe]
  %v4218 = vld [vmem:[%s3144 + $0x3c] sm:$0xe]
  %v4219 = vld [vmem:[%s3144 + $0x48] sm:$0xe]
  %v4220 = vld [vmem:[%s3144 + $0x54] sm:$0xe]
  %v4221 = vld [vmem:[%s3144 + $0x60] sm:$0xe]
  %v4222 = vld [vmem:[%s3144 + $0x6c] sm:$0xe]
  %v4223 = vld [vmem:[%s3144 + $0x78] sm:$0xe]
  %v4224 = vld [vmem:[%s3144 + $0x84] sm:$0xe]
  %v4225 = vld [vmem:[%s3144 + $0x90] sm:$0xe]
  %v4226 = vld [vmem:[%s3144 + $0x9c] sm:$0xe]
  %v4227 = vld [vmem:[%s3144 + $0xa8] sm:$0xe]
  %v4228 = vld [vmem:[%s3144 + $0xb4] sm:$0xe]
  %v4229 = vld [vmem:[%s3144 + $0xd8] sm:$0xe]
  %v4230 = vld [vmem:[%s3144 + $0xe4] sm:$0xe]
  %v4231 = vld [vmem:[%s3144 + $0xf0] sm:$0xe]
  %v4232 = vld [vmem:[%s3144 + $0xfc] sm:$0xe]
  %v4233 = vld [vmem:[%s3144 + $0x108] sm:$0xe]
  %v4234 = vld [vmem:[%s3144 + $0x114] sm:$0xe]
  %v4235 = vld [vmem:[%s3144 + $0x120] sm:$0xe]
  %v4236 = vld [vmem:[%s3144 + $0x12c] sm:$0xe]
  %v4237 = vld [vmem:[%s3144 + $0x138] sm:$0xe]
  %v4238 = vld [vmem:[%s3144 + $0x144] sm:$0xe]
  %v4239 = vld [vmem:[%s3144 + $0x150] sm:$0xe]
  %v4240 = vld [vmem:[%s3144 + $0x15c] sm:$0xe]
  %v4241 = vld [vmem:[%s3144 + $0x168] sm:$0xe]
  %v4242 = vld [vmem:[%s3144 + $0x174] sm:$0xe]
  %v4243 = vld [vmem:[%s3144 + $0x180] sm:$0xe]
  %v4244 = vld [vmem:[%s3144 + $0x18c] sm:$0xe]
  %v4341 = vrot.slane %v4213, 5
  %v4342 = vrot.slane %v4341, 4
  %v4343 = vrot.slane %v3146, 5
  %v4344 = vsel %vm1230, %v4342, %v4343
  %v4345 = vrot.slane %v4343, 4
  %v4346 = vrot.slane %v3279, 5
  %v4347 = vsel %vm1230, %v4345, %v4346
  %v4348 = vrot.slane %v4214, 5
  %v4349 = vrot.slane %v4348, 4
  %v4350 = vrot.slane %v3148, 5
  %v4351 = vsel %vm1230, %v4349, %v4350
  %v4352 = vrot.slane %v4350, 4
  %v4353 = vrot.slane %v3280, 5
  %v4354 = vsel %vm1230, %v4352, %v4353
  %v4355 = vrot.slane %v4215, 5
  %v4356 = vrot.slane %v4355, 4
  %v4357 = vrot.slane %v3150, 5
  %v4358 = vsel %vm1230, %v4356, %v4357
  %v4359 = vrot.slane %v4357, 4
  %v4360 = vrot.slane %v3281, 5
  %v4361 = vsel %vm1230, %v4359, %v4360
  %v4362 = vrot.slane %v4216, 5
  %v4363 = vrot.slane %v4362, 4
  %v4364 = vrot.slane %v3152, 5
  %v4365 = vsel %vm1230, %v4363, %v4364
  %v4366 = vrot.slane %v4364, 4
  %v4367 = vrot.slane %v3282, 5
  %v4368 = vsel %vm1230, %v4366, %v4367
  %v4369 = vrot.slane %v4217, 5
  %v4370 = vrot.slane %v4369, 4
  %v4371 = vrot.slane %v3154, 5
  %v4372 = vsel %vm1230, %v4370, %v4371
  %v4373 = vrot.slane %v4371, 4
  %v4374 = vrot.slane %v3283, 5
  %v4375 = vsel %vm1230, %v4373, %v4374
  %v4376 = vrot.slane %v4218, 5
  %v4377 = vrot.slane %v4376, 4
  %v4378 = vrot.slane %v3156, 5
  %v4379 = vsel %vm1230, %v4377, %v4378
  %v4380 = vrot.slane %v4378, 4
  %v4381 = vrot.slane %v3284, 5
  %v4382 = vsel %vm1230, %v4380, %v4381
  %v4383 = vrot.slane %v4219, 5
  %v4384 = vrot.slane %v4383, 4
  %v4385 = vrot.slane %v3158, 5
  %v4386 = vsel %vm1230, %v4384, %v4385
  %v4387 = vrot.slane %v4385, 4
  %v4388 = vrot.slane %v3285, 5
  %v4389 = vsel %vm1230, %v4387, %v4388
  %v4390 = vrot.slane %v4220, 5
  %v4391 = vrot.slane %v4390, 4
  %v4392 = vrot.slane %v3160, 5
  %v4393 = vsel %vm1230, %v4391, %v4392
  %v4394 = vrot.slane %v4392, 4
  %v4395 = vrot.slane %v3286, 5
  %v4396 = vsel %vm1230, %v4394, %v4395
  %v4397 = vrot.slane %v4221, 5
  %v4398 = vrot.slane %v4397, 4
  %v4399 = vrot.slane %v3162, 5
  %v4400 = vsel %vm1230, %v4398, %v4399
  %v4401 = vrot.slane %v4399, 4
  %v4402 = vrot.slane %v3287, 5
  %v4403 = vsel %vm1230, %v4401, %v4402
  %v4404 = vrot.slane %v4222, 5
  %v4405 = vrot.slane %v4404, 4
  %v4406 = vrot.slane %v3164, 5
  %v4407 = vsel %vm1230, %v4405, %v4406
  %v4408 = vrot.slane %v4406, 4
  %v4409 = vrot.slane %v3288, 5
  %v4410 = vsel %vm1230, %v4408, %v4409
  %v4411 = vrot.slane %v4223, 5
  %v4412 = vrot.slane %v4411, 4
  %v4413 = vrot.slane %v3166, 5
  %v4414 = vsel %vm1230, %v4412, %v4413
  %v4415 = vrot.slane %v4413, 4
  %v4416 = vrot.slane %v3289, 5
  %v4417 = vsel %vm1230, %v4415, %v4416
  %v4418 = vrot.slane %v4224, 5
  %v4419 = vrot.slane %v4418, 4
  %v4420 = vrot.slane %v3168, 5
  %v4421 = vsel %vm1230, %v4419, %v4420
  %v4422 = vrot.slane %v4420, 4
  %v4423 = vrot.slane %v3290, 5
  %v4424 = vsel %vm1230, %v4422, %v4423
  %v4425 = vrot.slane %v4225, 5
  %v4426 = vrot.slane %v4425, 4
  %v4427 = vrot.slane %v3170, 5
  %v4428 = vsel %vm1230, %v4426, %v4427
  %v4429 = vrot.slane %v4427, 4
  %v4430 = vrot.slane %v3291, 5
  %v4431 = vsel %vm1230, %v4429, %v4430
  %v4432 = vrot.slane %v4226, 5
  %v4433 = vrot.slane %v4432, 4
  %v4434 = vrot.slane %v3172, 5
  %v4435 = vsel %vm1230, %v4433, %v4434
  %v4436 = vrot.slane %v4434, 4
  %v4437 = vrot.slane %v3292, 5
  %v4438 = vsel %vm1230, %v4436, %v4437
  %v4439 = vrot.slane %v4227, 5
  %v4440 = vrot.slane %v4439, 4
  %v4441 = vrot.slane %v3174, 5
  %v4442 = vsel %vm1230, %v4440, %v4441
  %v4443 = vrot.slane %v4441, 4
  %v4444 = vrot.slane %v3293, 5
  %v4445 = vsel %vm1230, %v4443, %v4444
  %v4446 = vrot.slane %v4228, 5
  %v4447 = vrot.slane %v4446, 4
  %v4448 = vrot.slane %v3176, 5
  %v4449 = vsel %vm1230, %v4447, %v4448
  %v4450 = vrot.slane %v4448, 4
  %v4451 = vrot.slane %v3294, 5
  %v4452 = vsel %vm1230, %v4450, %v4451
  %v4453 = vrot.slane %v4229, 5
  %v4454 = vrot.slane %v4453, 4
  %v4455 = vrot.slane %v3178, 5
  %v4456 = vsel %vm1230, %v4454, %v4455
  %v4457 = vrot.slane %v4455, 4
  %v4458 = vrot.slane %v3295, 5
  %v4459 = vsel %vm1230, %v4457, %v4458
  %v4460 = vrot.slane %v4230, 5
  %v4461 = vrot.slane %v4460, 4
  %v4462 = vrot.slane %v3180, 5
  %v4463 = vsel %vm1230, %v4461, %v4462
  %v4464 = vrot.slane %v4462, 4
  %v4465 = vrot.slane %v3296, 5
  %v4466 = vsel %vm1230, %v4464, %v4465
  %v4467 = vrot.slane %v4231, 5
  %v4468 = vrot.slane %v4467, 4
  %v4469 = vrot.slane %v3182, 5
  %v4470 = vsel %vm1230, %v4468, %v4469
  %v4471 = vrot.slane %v4469, 4
  %v4472 = vrot.slane %v3297, 5
  %v4473 = vsel %vm1230, %v4471, %v4472
  %v4474 = vrot.slane %v4232, 5
  %v4475 = vrot.slane %v4474, 4
  %v4476 = vrot.slane %v3184, 5
  %v4477 = vsel %vm1230, %v4475, %v4476
  %v4478 = vrot.slane %v4476, 4
  %v4479 = vrot.slane %v3298, 5
  %v4480 = vsel %vm1230, %v4478, %v4479
  %v4481 = vrot.slane %v4233, 5
  %v4482 = vrot.slane %v4481, 4
  %v4483 = vrot.slane %v3186, 5
  %v4484 = vsel %vm1230, %v4482, %v4483
  %v4485 = vrot.slane %v4483, 4
  %v4486 = vrot.slane %v3299, 5
  %v4487 = vsel %vm1230, %v4485, %v4486
  %v4488 = vrot.slane %v4234, 5
  %v4489 = vrot.slane %v4488, 4
  %v4490 = vrot.slane %v3188, 5
  %v4491 = vsel %vm1230, %v4489, %v4490
  %v4492 = vrot.slane %v4490, 4
  %v4493 = vrot.slane %v3300, 5
  %v4494 = vsel %vm1230, %v4492, %v4493
  %v4495 = vrot.slane %v4235, 5
  %v4496 = vrot.slane %v4495, 4
  %v4497 = vrot.slane %v3190, 5
  %v4498 = vsel %vm1230, %v4496, %v4497
  %v4499 = vrot.slane %v4497, 4
  %v4500 = vrot.slane %v3301, 5
  %v4501 = vsel %vm1230, %v4499, %v4500
  %v4502 = vrot.slane %v4236, 5
  %v4503 = vrot.slane %v4502, 4
  %v4504 = vrot.slane %v3192, 5
  %v4505 = vsel %vm1230, %v4503, %v4504
  %v4506 = vrot.slane %v4504, 4
  %v4507 = vrot.slane %v3302, 5
  %v4508 = vsel %vm1230, %v4506, %v4507
  %v4509 = vrot.slane %v4237, 5
  %v4510 = vrot.slane %v4509, 4
  %v4511 = vrot.slane %v3194, 5
  %v4512 = vsel %vm1230, %v4510, %v4511
  %v4513 = vrot.slane %v4511, 4
  %v4514 = vrot.slane %v3303, 5
  %v4515 = vsel %vm1230, %v4513, %v4514
  %v4516 = vrot.slane %v4238, 5
  %v4517 = vrot.slane %v4516, 4
  %v4518 = vrot.slane %v3196, 5
  %v4519 = vsel %vm1230, %v4517, %v4518
  %v4520 = vrot.slane %v4518, 4
  %v4521 = vrot.slane %v3304, 5
  %v4522 = vsel %vm1230, %v4520, %v4521
  %v4523 = vrot.slane %v4239, 5
  %v4524 = vrot.slane %v4523, 4
  %v4525 = vrot.slane %v3198, 5
  %v4526 = vsel %vm1230, %v4524, %v4525
  %v4527 = vrot.slane %v4525, 4
  %v4528 = vrot.slane %v3305, 5
  %v4529 = vsel %vm1230, %v4527, %v4528
  %v4530 = vrot.slane %v4240, 5
  %v4531 = vrot.slane %v4530, 4
  %v4532 = vrot.slane %v3200, 5
  %v4533 = vsel %vm1230, %v4531, %v4532
  %v4534 = vrot.slane %v4532, 4
  %v4535 = vrot.slane %v3306, 5
  %v4536 = vsel %vm1230, %v4534, %v4535
  %v4537 = vrot.slane %v4241, 5
  %v4538 = vrot.slane %v4537, 4
  %v4539 = vrot.slane %v3202, 5
  %v4540 = vsel %vm1230, %v4538, %v4539
  %v4541 = vrot.slane %v4539, 4
  %v4542 = vrot.slane %v3307, 5
  %v4543 = vsel %vm1230, %v4541, %v4542
  %v4544 = vrot.slane %v4242, 5
  %v4545 = vrot.slane %v4544, 4
  %v4546 = vrot.slane %v3204, 5
  %v4547 = vsel %vm1230, %v4545, %v4546
  %v4548 = vrot.slane %v4546, 4
  %v4549 = vrot.slane %v3308, 5
  %v4550 = vsel %vm1230, %v4548, %v4549
  %v4551 = vrot.slane %v4243, 5
  %v4552 = vrot.slane %v4551, 4
  %v4553 = vrot.slane %v3206, 5
  %v4554 = vsel %vm1230, %v4552, %v4553
  %v4555 = vrot.slane %v4553, 4
  %v4556 = vrot.slane %v3309, 5
  %v4557 = vsel %vm1230, %v4555, %v4556
  %v4558 = vrot.slane %v4244, 5
  %v4559 = vrot.slane %v4558, 4
  %v4560 = vrot.slane %v3208, 5
  %v4561 = vsel %vm1230, %v4559, %v4560
  %v4562 = vrot.slane %v4560, 4
  %v4563 = vrot.slane %v3310, 5
  %v4564 = vsel %vm1230, %v4562, %v4563
  %vm4629 = vcmp.ge.s32.totalorder %v28, 32
  %vm4630 = vcmp.lt.s32.totalorder %v28, 36
  %vm4631 = vmand %vm4629, %vm4630
  %v4632 = vsel %vm4631, 1, 0
  %vm4633 = vcmp.eq.s32.totalorder %v4632, 1
  %vm4634 = vmpackc.low %vm4633, %vm4633
  %v4635 = vsel %vm4634, %v4344, %v4149
  %v4636 = vsel %vm4634, %v4347, %v4150
  %v4637 = vsel %vm4634, %v4351, %v4151
  %v4638 = vsel %vm4634, %v4354, %v4152
  %v4639 = vsel %vm4634, %v4358, %v4153
  %v4640 = vsel %vm4634, %v4361, %v4154
  %v4641 = vsel %vm4634, %v4365, %v4155
  %v4642 = vsel %vm4634, %v4368, %v4156
  %v4643 = vsel %vm4634, %v4372, %v4157
  %v4644 = vsel %vm4634, %v4375, %v4158
  %v4645 = vsel %vm4634, %v4379, %v4159
  %v4646 = vsel %vm4634, %v4382, %v4160
  %v4647 = vsel %vm4634, %v4386, %v4161
  %v4648 = vsel %vm4634, %v4389, %v4162
  %v4649 = vsel %vm4634, %v4393, %v4163
  %v4650 = vsel %vm4634, %v4396, %v4164
  %v4651 = vsel %vm4634, %v4400, %v4165
  %v4652 = vsel %vm4634, %v4403, %v4166
  %v4653 = vsel %vm4634, %v4407, %v4167
  %v4654 = vsel %vm4634, %v4410, %v4168
  %v4655 = vsel %vm4634, %v4414, %v4169
  %v4656 = vsel %vm4634, %v4417, %v4170
  %v4657 = vsel %vm4634, %v4421, %v4171
  %v4658 = vsel %vm4634, %v4424, %v4172
  %v4659 = vsel %vm4634, %v4428, %v4173
  %v4660 = vsel %vm4634, %v4431, %v4174
  %v4661 = vsel %vm4634, %v4435, %v4175
  %v4662 = vsel %vm4634, %v4438, %v4176
  %v4663 = vsel %vm4634, %v4442, %v4177
  %v4664 = vsel %vm4634, %v4445, %v4178
  %v4665 = vsel %vm4634, %v4449, %v4179
  %v4666 = vsel %vm4634, %v4452, %v4180
  %v4667 = vsel %vm4634, %v4456, %v4181
  %v4668 = vsel %vm4634, %v4459, %v4182
  %v4669 = vsel %vm4634, %v4463, %v4183
  %v4670 = vsel %vm4634, %v4466, %v4184
  %v4671 = vsel %vm4634, %v4470, %v4185
  %v4672 = vsel %vm4634, %v4473, %v4186
  %v4673 = vsel %vm4634, %v4477, %v4187
  %v4674 = vsel %vm4634, %v4480, %v4188
  %v4675 = vsel %vm4634, %v4484, %v4189
  %v4676 = vsel %vm4634, %v4487, %v4190
  %v4677 = vsel %vm4634, %v4491, %v4191
  %v4678 = vsel %vm4634, %v4494, %v4192
  %v4679 = vsel %vm4634, %v4498, %v4193
  %v4680 = vsel %vm4634, %v4501, %v4194
  %v4681 = vsel %vm4634, %v4505, %v4195
  %v4682 = vsel %vm4634, %v4508, %v4196
  %v4683 = vsel %vm4634, %v4512, %v4197
  %v4684 = vsel %vm4634, %v4515, %v4198
  %v4685 = vsel %vm4634, %v4519, %v4199
  %v4686 = vsel %vm4634, %v4522, %v4200
  %v4687 = vsel %vm4634, %v4526, %v4201
  %v4688 = vsel %vm4634, %v4529, %v4202
  %v4689 = vsel %vm4634, %v4533, %v4203
  %v4690 = vsel %vm4634, %v4536, %v4204
  %v4691 = vsel %vm4634, %v4540, %v4205
  %v4692 = vsel %vm4634, %v4543, %v4206
  %v4693 = vsel %vm4634, %v4547, %v4207
  %v4694 = vsel %vm4634, %v4550, %v4208
  %v4695 = vsel %vm4634, %v4554, %v4209
  %v4696 = vsel %vm4634, %v4557, %v4210
  %v4697 = vsel %vm4634, %v4561, %v4211
  %v4698 = vsel %vm4634, %v4564, %v4212
  %v4699 = vld [vmem:[%s1] sm:$0xf]
  %v4700 = vld [vmem:[%s1 + $0x4] sm:$0xf]
  %v4701 = vld [vmem:[%s1 + $0x8] sm:$0xf]
  %v4702 = vld [vmem:[%s1 + $0xc] sm:$0xf]
  %v4703 = vld [vmem:[%s1 + $0x10] sm:$0xf]
  %v4704 = vld [vmem:[%s1 + $0x14] sm:$0xf]
  %v4705 = vld [vmem:[%s1 + $0x18] sm:$0xf]
  %v4706 = vld [vmem:[%s1 + $0x1c] sm:$0xf]
  %v4707 = vld [vmem:[%s1 + $0x20] sm:$0xf]
  %v4708 = vld [vmem:[%s1 + $0x24] sm:$0xf]
  %v4709 = vld [vmem:[%s1 + $0x28] sm:$0xf]
  %v4710 = vld [vmem:[%s1 + $0x2c] sm:$0xf]
  %v4711 = vld [vmem:[%s1 + $0x30] sm:$0xf]
  %v4712 = vld [vmem:[%s1 + $0x34] sm:$0xf]
  %v4713 = vld [vmem:[%s1 + $0x38] sm:$0xf]
  %v4714 = vld [vmem:[%s1 + $0x3c] sm:$0xf]
  %v4779 = vunpack.c.l.b16 %v4635
  %v4780 = vunpack.c.l.b16 %v4636
  %v4781 = vunpack.c.l.b16 %v4637
  %v4782 = vunpack.c.l.b16 %v4638
  %v4783 = vunpack.c.l.b16 %v4639
  %v4784 = vunpack.c.l.b16 %v4640
  %v4785 = vunpack.c.l.b16 %v4641
  %v4786 = vunpack.c.l.b16 %v4642
  %v4787 = vunpack.c.l.b16 %v4643
  %v4788 = vunpack.c.l.b16 %v4644
  %v4789 = vunpack.c.l.b16 %v4645
  %v4790 = vunpack.c.l.b16 %v4646
  %v4791 = vunpack.c.l.b16 %v4647
  %v4792 = vunpack.c.l.b16 %v4648
  %v4793 = vunpack.c.l.b16 %v4649
  %v4794 = vunpack.c.l.b16 %v4650
  %v4795 = vunpack.c.l.b16 %v4651
  %v4796 = vunpack.c.l.b16 %v4652
  %v4797 = vunpack.c.l.b16 %v4653
  %v4798 = vunpack.c.l.b16 %v4654
  %v4799 = vunpack.c.l.b16 %v4655
  %v4800 = vunpack.c.l.b16 %v4656
  %v4801 = vunpack.c.l.b16 %v4657
  %v4802 = vunpack.c.l.b16 %v4658
  %v4803 = vunpack.c.l.b16 %v4659
  %v4804 = vunpack.c.l.b16 %v4660
  %v4805 = vunpack.c.l.b16 %v4661
  %v4806 = vunpack.c.l.b16 %v4662
  %v4807 = vunpack.c.l.b16 %v4663
  %v4808 = vunpack.c.l.b16 %v4664
  %v4809 = vunpack.c.l.b16 %v4665
  %v4810 = vunpack.c.l.b16 %v4666
  %v4811 = vunpack.c.l.b16 %v4667
  %v4812 = vunpack.c.l.b16 %v4668
  %v4813 = vunpack.c.l.b16 %v4669
  %v4814 = vunpack.c.l.b16 %v4670
  %v4815 = vunpack.c.l.b16 %v4671
  %v4816 = vunpack.c.l.b16 %v4672
  %v4817 = vunpack.c.l.b16 %v4673
  %v4818 = vunpack.c.l.b16 %v4674
  %v4819 = vunpack.c.l.b16 %v4675
  %v4820 = vunpack.c.l.b16 %v4676
  %v4821 = vunpack.c.l.b16 %v4677
  %v4822 = vunpack.c.l.b16 %v4678
  %v4823 = vunpack.c.l.b16 %v4679
  %v4824 = vunpack.c.l.b16 %v4680
  %v4825 = vunpack.c.l.b16 %v4681
  %v4826 = vunpack.c.l.b16 %v4682
  %v4827 = vunpack.c.l.b16 %v4683
  %v4828 = vunpack.c.l.b16 %v4684
  %v4829 = vunpack.c.l.b16 %v4685
  %v4830 = vunpack.c.l.b16 %v4686
  %v4831 = vunpack.c.l.b16 %v4687
  %v4832 = vunpack.c.l.b16 %v4688
  %v4833 = vunpack.c.l.b16 %v4689
  %v4834 = vunpack.c.l.b16 %v4690
  %v4835 = vunpack.c.l.b16 %v4691
  %v4836 = vunpack.c.l.b16 %v4692
  %v4837 = vunpack.c.l.b16 %v4693
  %v4838 = vunpack.c.l.b16 %v4694
  %v4839 = vunpack.c.l.b16 %v4695
  %v4840 = vunpack.c.l.b16 %v4696
  %v4841 = vunpack.c.l.b16 %v4697
  %v4842 = vunpack.c.l.b16 %v4698
  %v4843 = vpack.c.b16 %v4780, %v4779
  %v4844 = vpack.c.b16 %v4782, %v4781
  %v4845 = vpack.c.b16 %v4784, %v4783
  %v4846 = vpack.c.b16 %v4786, %v4785
  %v4847 = vpack.c.b16 %v4788, %v4787
  %v4848 = vpack.c.b16 %v4790, %v4789
  %v4849 = vpack.c.b16 %v4792, %v4791
  %v4850 = vpack.c.b16 %v4794, %v4793
  %v4851 = vpack.c.b16 %v4796, %v4795
  %v4852 = vpack.c.b16 %v4798, %v4797
  %v4853 = vpack.c.b16 %v4800, %v4799
  %v4854 = vpack.c.b16 %v4802, %v4801
  %v4855 = vpack.c.b16 %v4804, %v4803
  %v4856 = vpack.c.b16 %v4806, %v4805
  %v4857 = vpack.c.b16 %v4808, %v4807
  %v4858 = vpack.c.b16 %v4810, %v4809
  %v4859 = vpack.c.b16 %v4812, %v4811
  %v4860 = vpack.c.b16 %v4814, %v4813
  %v4861 = vpack.c.b16 %v4816, %v4815
  %v4862 = vpack.c.b16 %v4818, %v4817
  %v4863 = vpack.c.b16 %v4820, %v4819
  %v4864 = vpack.c.b16 %v4822, %v4821
  %v4865 = vpack.c.b16 %v4824, %v4823
  %v4866 = vpack.c.b16 %v4826, %v4825
  %v4867 = vpack.c.b16 %v4828, %v4827
  %v4868 = vpack.c.b16 %v4830, %v4829
  %v4869 = vpack.c.b16 %v4832, %v4831
  %v4870 = vpack.c.b16 %v4834, %v4833
  %v4871 = vpack.c.b16 %v4836, %v4835
  %v4872 = vpack.c.b16 %v4838, %v4837
  %v4873 = vpack.c.b16 %v4840, %v4839
  %v4874 = vpack.c.b16 %v4842, %v4841
  %v4923 = vunpack.c.l.b16 %v4699
  %v4924 = vunpack.c.l.b16 %v4700
  %v4925 = vunpack.c.l.b16 %v4701
  %v4926 = vunpack.c.l.b16 %v4702
  %v4927 = vunpack.c.l.b16 %v4703
  %v4928 = vunpack.c.l.b16 %v4704
  %v4929 = vunpack.c.l.b16 %v4705
  %v4930 = vunpack.c.l.b16 %v4706
  %v4931 = vunpack.c.l.b16 %v4707
  %v4932 = vunpack.c.l.b16 %v4708
  %v4933 = vunpack.c.l.b16 %v4709
  %v4934 = vunpack.c.l.b16 %v4710
  %v4935 = vunpack.c.l.b16 %v4711
  %v4936 = vunpack.c.l.b16 %v4712
  %v4937 = vunpack.c.l.b16 %v4713
  %v4938 = vunpack.c.l.b16 %v4714
  %v4939 = vpack.c.b16 %v4924, %v4923
  %v4940 = vpack.c.b16 %v4926, %v4925
  %v4941 = vpack.c.b16 %v4928, %v4927
  %v4942 = vpack.c.b16 %v4930, %v4929
  %v4943 = vpack.c.b16 %v4932, %v4931
  %v4944 = vpack.c.b16 %v4934, %v4933
  %v4945 = vpack.c.b16 %v4936, %v4935
  %v4946 = vpack.c.b16 %v4938, %v4937
  %4955 = vmatprep.subr.bf16.mxu0 0
  %4956 = vmatpush1.bf16.msra.mxu0 %v4939
  %4957 = vmatprep.subr.bf16.mxu0 0
  %4958 = vmatpush1.bf16.msra.mxu0 %v4940
  %4959 = vmatprep.subr.bf16.mxu0 0
  %4960 = vmatpush1.bf16.msra.mxu0 %v4941
  %4961 = vmatprep.subr.bf16.mxu0 0
  %4962 = vmatpush1.bf16.msra.mxu0 %v4942
  %4963 = vmatprep.subr.bf16.mxu0 0
  %4964 = vmatpush1.bf16.msra.mxu0 %v4943
  %4965 = vmatprep.subr.bf16.mxu0 0
  %4966 = vmatpush1.bf16.msra.mxu0 %v4944
  %4967 = vmatprep.subr.bf16.mxu0 0
  %4968 = vmatpush1.bf16.msra.mxu0 %v4945
  %4969 = vmatprep.subr.bf16.mxu0 0
  %4970 = vmatpush1.bf16.msra.mxu0 %v4946
  %4971 = vmatprep.subr.bf16.mxu0 0
  %4972 = vmatpush1.bf16.msra.mxu0 0
  %4973 = vmatprep.subr.bf16.mxu0 0
  %4974 = vmatpush1.bf16.msra.mxu0 0
  %4975 = vmatprep.subr.bf16.mxu0 0
  %4976 = vmatpush1.bf16.msra.mxu0 0
  %4977 = vmatprep.subr.bf16.mxu0 0
  %4978 = vmatpush1.bf16.msra.mxu0 0
  %4979 = vmatprep.subr.bf16.mxu0 0
  %4980 = vmatpush1.bf16.msra.mxu0 0
  %4981 = vmatprep.subr.bf16.mxu0 0
  %4982 = vmatpush1.bf16.msra.mxu0 0
  %4983 = vmatprep.subr.bf16.mxu0 0
  %4984 = vmatpush1.bf16.msra.mxu0 0
  %4985 = vmatprep.subr.bf16.mxu0 0
  %4986 = vmatpush1.bf16.msra.mxu0 0
  %4987 = vmatprep.mubr.bf16.mxu0 0
  %4988 = vmatmul.mubr.bf16.gmra.mrb[0].mxu0 %v4843
  %v4989 = vpop.f32.mrb[0].mxu0
  %v4990 = vadd.f32 0.0, %v4989
  %v4991 = vpop.f32.mrb[0].mxu0
  %v4992 = vpop.f32.mrb[0].mxu0
  %v4993 = vadd.f32 0.0, %v4992
  %v4994 = vpop.f32.mrb[0].mxu0
  %4995 = vmatprep.mubr.bf16.mxu0 0
  %4996 = vmatmul.mubr.bf16.gmra.mrb[0].mxu0 %v4844
  %v4997 = vpop.f32.mrb[0].mxu0
  %v4998 = vadd.f32 0.0, %v4997
  %v4999 = vpop.f32.mrb[0].mxu0
  %v5000 = vpop.f32.mrb[0].mxu0
  %v5001 = vadd.f32 0.0, %v5000
  %v5002 = vpop.f32.mrb[0].mxu0
  %5003 = vmatprep.mubr.bf16.mxu0 0
  %5004 = vmatmul.mubr.bf16.gmra.mrb[0].mxu0 %v4845
  %v5005 = vpop.f32.mrb[0].mxu0
  %v5006 = vadd.f32 0.0, %v5005
  %v5007 = vpop.f32.mrb[0].mxu0
  %v5008 = vpop.f32.mrb[0].mxu0
  %v5009 = vadd.f32 0.0, %v5008
  %v5010 = vpop.f32.mrb[0].mxu0
  %5011 = vmatprep.mubr.bf16.mxu0 0
  %5012 = vmatmul.mubr.bf16.gmra.mrb[0].mxu0 %v4846
  %v5013 = vpop.f32.mrb[0].mxu0
  %v5014 = vadd.f32 0.0, %v5013
  %v5015 = vpop.f32.mrb[0].mxu0
  %v5016 = vpop.f32.mrb[0].mxu0
  %v5017 = vadd.f32 0.0, %v5016
  %v5018 = vpop.f32.mrb[0].mxu0
  %5019 = vmatprep.mubr.bf16.mxu0 0
  %5020 = vmatmul.mubr.bf16.gmra.mrb[0].mxu0 %v4847
  %v5021 = vpop.f32.mrb[0].mxu0
  %v5022 = vadd.f32 0.0, %v5021
  %v5023 = vpop.f32.mrb[0].mxu0
  %v5024 = vpop.f32.mrb[0].mxu0
  %v5025 = vadd.f32 0.0, %v5024
  %v5026 = vpop.f32.mrb[0].mxu0
  %5027 = vmatprep.mubr.bf16.mxu0 0
  %5028 = vmatmul.mubr.bf16.gmra.mrb[0].mxu0 %v4848
  %v5029 = vpop.f32.mrb[0].mxu0
  %v5030 = vadd.f32 0.0, %v5029
  %v5031 = vpop.f32.mrb[0].mxu0
  %v5032 = vpop.f32.mrb[0].mxu0
  %v5033 = vadd.f32 0.0, %v5032
  %v5034 = vpop.f32.mrb[0].mxu0
  %5035 = vmatprep.mubr.bf16.mxu0 0
  %5036 = vmatmul.mubr.bf16.gmra.mrb[0].mxu0 %v4849
  %v5037 = vpop.f32.mrb[0].mxu0
  %v5038 = vadd.f32 0.0, %v5037
  %v5039 = vpop.f32.mrb[0].mxu0
  %v5040 = vpop.f32.mrb[0].mxu0
  %v5041 = vadd.f32 0.0, %v5040
  %v5042 = vpop.f32.mrb[0].mxu0
  %5043 = vmatprep.mubr.bf16.mxu0 0
  %5044 = vmatmul.mubr.bf16.gmra.mrb[0].mxu0 %v4850
  %v5045 = vpop.f32.mrb[0].mxu0
  %v5046 = vadd.f32 0.0, %v5045
  %v5047 = vpop.f32.mrb[0].mxu0
  %v5048 = vpop.f32.mrb[0].mxu0
  %v5049 = vadd.f32 0.0, %v5048
  %v5050 = vpop.f32.mrb[0].mxu0
  %5051 = vmatprep.mubr.bf16.mxu0 0
  %5052 = vmatmul.mubr.bf16.gmra.mrb[0].mxu0 %v4851
  %v5053 = vpop.f32.mrb[0].mxu0
  %v5054 = vadd.f32 0.0, %v5053
  %v5055 = vpop.f32.mrb[0].mxu0
  %v5056 = vpop.f32.mrb[0].mxu0
  %v5057 = vadd.f32 0.0, %v5056
  %v5058 = vpop.f32.mrb[0].mxu0
  %5059 = vmatprep.mubr.bf16.mxu0 0
  %5060 = vmatmul.mubr.bf16.gmra.mrb[0].mxu0 %v4852
  %v5061 = vpop.f32.mrb[0].mxu0
  %v5062 = vadd.f32 0.0, %v5061
  %v5063 = vpop.f32.mrb[0].mxu0
  %v5064 = vpop.f32.mrb[0].mxu0
  %v5065 = vadd.f32 0.0, %v5064
  %v5066 = vpop.f32.mrb[0].mxu0
  %5067 = vmatprep.mubr.bf16.mxu0 0
  %5068 = vmatmul.mubr.bf16.gmra.mrb[0].mxu0 %v4853
  %v5069 = vpop.f32.mrb[0].mxu0
  %v5070 = vadd.f32 0.0, %v5069
  %v5071 = vpop.f32.mrb[0].mxu0
  %v5072 = vpop.f32.mrb[0].mxu0
  %v5073 = vadd.f32 0.0, %v5072
  %v5074 = vpop.f32.mrb[0].mxu0
  %5075 = vmatprep.mubr.bf16.mxu0 0
  %5076 = vmatmul.mubr.bf16.gmra.mrb[0].mxu0 %v4854
  %v5077 = vpop.f32.mrb[0].mxu0
  %v5078 = vadd.f32 0.0, %v5077
  %v5079 = vpop.f32.mrb[0].mxu0
  %v5080 = vpop.f32.mrb[0].mxu0
  %v5081 = vadd.f32 0.0, %v5080
  %v5082 = vpop.f32.mrb[0].mxu0
  %5083 = vmatprep.mubr.bf16.mxu0 0
  %5084 = vmatmul.mubr.bf16.gmra.mrb[0].mxu0 %v4855
  %v5085 = vpop.f32.mrb[0].mxu0
  %v5086 = vadd.f32 0.0, %v5085
  %v5087 = vpop.f32.mrb[0].mxu0
  %v5088 = vpop.f32.mrb[0].mxu0
  %v5089 = vadd.f32 0.0, %v5088
  %v5090 = vpop.f32.mrb[0].mxu0
  %5091 = vmatprep.mubr.bf16.mxu0 0
  %5092 = vmatmul.mubr.bf16.gmra.mrb[0].mxu0 %v4856
  %v5093 = vpop.f32.mrb[0].mxu0
  %v5094 = vadd.f32 0.0, %v5093
  %v5095 = vpop.f32.mrb[0].mxu0
  %v5096 = vpop.f32.mrb[0].mxu0
  %v5097 = vadd.f32 0.0, %v5096
  %v5098 = vpop.f32.mrb[0].mxu0
  %5099 = vmatprep.mubr.bf16.mxu0 0
  %5100 = vmatmul.mubr.bf16.gmra.mrb[0].mxu0 %v4857
  %v5101 = vpop.f32.mrb[0].mxu0
  %v5102 = vadd.f32 0.0, %v5101
  %v5103 = vpop.f32.mrb[0].mxu0
  %v5104 = vpop.f32.mrb[0].mxu0
  %v5105 = vadd.f32 0.0, %v5104
  %v5106 = vpop.f32.mrb[0].mxu0
  %5107 = vmatprep.mubr.bf16.mxu0 0
  %5108 = vmatmul.mubr.bf16.gmra.mrb[0].mxu0 %v4858
  %v5109 = vpop.f32.mrb[0].mxu0
  %v5110 = vadd.f32 0.0, %v5109
  %v5111 = vpop.f32.mrb[0].mxu0
  %v5112 = vpop.f32.mrb[0].mxu0
  %v5113 = vadd.f32 0.0, %v5112
  %v5114 = vpop.f32.mrb[0].mxu0
  %5115 = vmatprep.mubr.bf16.mxu0 0
  %5116 = vmatmul.mubr.bf16.gmra.mrb[0].mxu0 %v4859
  %v5117 = vpop.f32.mrb[0].mxu0
  %v5118 = vadd.f32 0.0, %v5117
  %v5119 = vpop.f32.mrb[0].mxu0
  %v5120 = vpop.f32.mrb[0].mxu0
  %v5121 = vadd.f32 0.0, %v5120
  %v5122 = vpop.f32.mrb[0].mxu0
  %5123 = vmatprep.mubr.bf16.mxu0 0
  %5124 = vmatmul.mubr.bf16.gmra.mrb[0].mxu0 %v4860
  %v5125 = vpop.f32.mrb[0].mxu0
  %v5126 = vadd.f32 0.0, %v5125
  %v5127 = vpop.f32.mrb[0].mxu0
  %v5128 = vpop.f32.mrb[0].mxu0
  %v5129 = vadd.f32 0.0, %v5128
  %v5130 = vpop.f32.mrb[0].mxu0
  %5131 = vmatprep.mubr.bf16.mxu0 0
  %5132 = vmatmul.mubr.bf16.gmra.mrb[0].mxu0 %v4861
  %v5133 = vpop.f32.mrb[0].mxu0
  %v5134 = vadd.f32 0.0, %v5133
  %v5135 = vpop.f32.mrb[0].mxu0
  %v5136 = vpop.f32.mrb[0].mxu0
  %v5137 = vadd.f32 0.0, %v5136
  %v5138 = vpop.f32.mrb[0].mxu0
  %5139 = vmatprep.mubr.bf16.mxu0 0
  %5140 = vmatmul.mubr.bf16.gmra.mrb[0].mxu0 %v4862
  %v5141 = vpop.f32.mrb[0].mxu0
  %v5142 = vadd.f32 0.0, %v5141
  %v5143 = vpop.f32.mrb[0].mxu0
  %v5144 = vpop.f32.mrb[0].mxu0
  %v5145 = vadd.f32 0.0, %v5144
  %v5146 = vpop.f32.mrb[0].mxu0
  %5147 = vmatprep.mubr.bf16.mxu0 0
  %5148 = vmatmul.mubr.bf16.gmra.mrb[0].mxu0 %v4863
  %v5149 = vpop.f32.mrb[0].mxu0
  %v5150 = vadd.f32 0.0, %v5149
  %v5151 = vpop.f32.mrb[0].mxu0
  %v5152 = vpop.f32.mrb[0].mxu0
  %v5153 = vadd.f32 0.0, %v5152
  %v5154 = vpop.f32.mrb[0].mxu0
  %5155 = vmatprep.mubr.bf16.mxu0 0
  %5156 = vmatmul.mubr.bf16.gmra.mrb[0].mxu0 %v4864
  %v5157 = vpop.f32.mrb[0].mxu0
  %v5158 = vadd.f32 0.0, %v5157
  %v5159 = vpop.f32.mrb[0].mxu0
  %v5160 = vpop.f32.mrb[0].mxu0
  %v5161 = vadd.f32 0.0, %v5160
  %v5162 = vpop.f32.mrb[0].mxu0
  %5163 = vmatprep.mubr.bf16.mxu0 0
  %5164 = vmatmul.mubr.bf16.gmra.mrb[0].mxu0 %v4865
  %v5165 = vpop.f32.mrb[0].mxu0
  %v5166 = vadd.f32 0.0, %v5165
  %v5167 = vpop.f32.mrb[0].mxu0
  %v5168 = vpop.f32.mrb[0].mxu0
  %v5169 = vadd.f32 0.0, %v5168
  %v5170 = vpop.f32.mrb[0].mxu0
  %5171 = vmatprep.mubr.bf16.mxu0 0
  %5172 = vmatmul.mubr.bf16.gmra.mrb[0].mxu0 %v4866
  %v5173 = vpop.f32.mrb[0].mxu0
  %v5174 = vadd.f32 0.0, %v5173
  %v5175 = vpop.f32.mrb[0].mxu0
  %v5176 = vpop.f32.mrb[0].mxu0
  %v5177 = vadd.f32 0.0, %v5176
  %v5178 = vpop.f32.mrb[0].mxu0
  %5179 = vmatprep.mubr.bf16.mxu0 0
  %5180 = vmatmul.mubr.bf16.gmra.mrb[0].mxu0 %v4867
  %v5181 = vpop.f32.mrb[0].mxu0
  %v5182 = vadd.f32 0.0, %v5181
  %v5183 = vpop.f32.mrb[0].mxu0
  %v5184 = vpop.f32.mrb[0].mxu0
  %v5185 = vadd.f32 0.0, %v5184
  %v5186 = vpop.f32.mrb[0].mxu0
  %5187 = vmatprep.mubr.bf16.mxu0 0
  %5188 = vmatmul.mubr.bf16.gmra.mrb[0].mxu0 %v4868
  %v5189 = vpop.f32.mrb[0].mxu0
  %v5190 = vadd.f32 0.0, %v5189
  %v5191 = vpop.f32.mrb[0].mxu0
  %v5192 = vpop.f32.mrb[0].mxu0
  %v5193 = vadd.f32 0.0, %v5192
  %v5194 = vpop.f32.mrb[0].mxu0
  %5195 = vmatprep.mubr.bf16.mxu0 0
  %5196 = vmatmul.mubr.bf16.gmra.mrb[0].mxu0 %v4869
  %v5197 = vpop.f32.mrb[0].mxu0
  %v5198 = vadd.f32 0.0, %v5197
  %v5199 = vpop.f32.mrb[0].mxu0
  %v5200 = vpop.f32.mrb[0].mxu0
  %v5201 = vadd.f32 0.0, %v5200
  %v5202 = vpop.f32.mrb[0].mxu0
  %5203 = vmatprep.mubr.bf16.mxu0 0
  %5204 = vmatmul.mubr.bf16.gmra.mrb[0].mxu0 %v4870
  %v5205 = vpop.f32.mrb[0].mxu0
  %v5206 = vadd.f32 0.0, %v5205
  %v5207 = vpop.f32.mrb[0].mxu0
  %v5208 = vpop.f32.mrb[0].mxu0
  %v5209 = vadd.f32 0.0, %v5208
  %v5210 = vpop.f32.mrb[0].mxu0
  %5211 = vmatprep.mubr.bf16.mxu0 0
  %5212 = vmatmul.mubr.bf16.gmra.mrb[0].mxu0 %v4871
  %v5213 = vpop.f32.mrb[0].mxu0
  %v5214 = vadd.f32 0.0, %v5213
  %v5215 = vpop.f32.mrb[0].mxu0
  %v5216 = vpop.f32.mrb[0].mxu0
  %v5217 = vadd.f32 0.0, %v5216
  %v5218 = vpop.f32.mrb[0].mxu0
  %5219 = vmatprep.mubr.bf16.mxu0 0
  %5220 = vmatmul.mubr.bf16.gmra.mrb[0].mxu0 %v4872
  %v5221 = vpop.f32.mrb[0].mxu0
  %v5222 = vadd.f32 0.0, %v5221
  %v5223 = vpop.f32.mrb[0].mxu0
  %v5224 = vpop.f32.mrb[0].mxu0
  %v5225 = vadd.f32 0.0, %v5224
  %v5226 = vpop.f32.mrb[0].mxu0
  %5227 = vmatprep.mubr.bf16.mxu0 0
  %5228 = vmatmul.mubr.bf16.gmra.mrb[0].mxu0 %v4873
  %v5229 = vpop.f32.mrb[0].mxu0
  %v5230 = vadd.f32 0.0, %v5229
  %v5231 = vpop.f32.mrb[0].mxu0
  %v5232 = vpop.f32.mrb[0].mxu0
  %v5233 = vadd.f32 0.0, %v5232
  %v5234 = vpop.f32.mrb[0].mxu0
  %5235 = vmatprep.mubr.bf16.mxu0 0
  %5236 = vmatmul.mubr.bf16.gmra.mrb[0].mxu0 %v4874
  %v5237 = vpop.f32.mrb[0].mxu0
  %v5238 = vadd.f32 0.0, %v5237
  %v5239 = vpop.f32.mrb[0].mxu0
  %v5240 = vpop.f32.mrb[0].mxu0
  %v5241 = vadd.f32 0.0, %v5240
  %v5242 = vpop.f32.mrb[0].mxu0
  %5243 = vdwg.mxu0
  %v5244 = vadd.f32 %v4990, %v4993
  %v5245 = vadd.f32 %v5244, %v4998
  %v5246 = vadd.f32 %v5245, %v5001
  %v5247 = vadd.f32 %v5246, %v5006
  %v5248 = vadd.f32 %v5247, %v5009
  %v5249 = vadd.f32 %v5248, %v5014
  %v5250 = vadd.f32 %v5249, %v5017
  %v5251 = vadd.f32 %v5250, %v5022
  %v5252 = vadd.f32 %v5251, %v5025
  %v5253 = vadd.f32 %v5252, %v5030
  %v5254 = vadd.f32 %v5253, %v5033
  %v5255 = vadd.f32 %v5254, %v5038
  %v5256 = vadd.f32 %v5255, %v5041
  %v5257 = vadd.f32 %v5256, %v5046
  %v5258 = vadd.f32 %v5257, %v5049
  %v5259 = vadd.f32 %v5258, %v5054
  %v5260 = vadd.f32 %v5259, %v5057
  %v5261 = vadd.f32 %v5260, %v5062
  %v5262 = vadd.f32 %v5261, %v5065
  %v5263 = vadd.f32 %v5262, %v5070
  %v5264 = vadd.f32 %v5263, %v5073
  %v5265 = vadd.f32 %v5264, %v5078
  %v5266 = vadd.f32 %v5265, %v5081
  %v5267 = vadd.f32 %v5266, %v5086
  %v5268 = vadd.f32 %v5267, %v5089
  %v5269 = vadd.f32 %v5268, %v5094
  %v5270 = vadd.f32 %v5269, %v5097
  %v5271 = vadd.f32 %v5270, %v5102
  %v5272 = vadd.f32 %v5271, %v5105
  %v5273 = vadd.f32 %v5272, %v5110
  %v5274 = vadd.f32 %v5273, %v5113
  %v5275 = vadd.f32 %v5274, %v5118
  %v5276 = vadd.f32 %v5275, %v5121
  %v5277 = vadd.f32 %v5276, %v5126
  %v5278 = vadd.f32 %v5277, %v5129
  %v5279 = vadd.f32 %v5278, %v5134
  %v5280 = vadd.f32 %v5279, %v5137
  %v5281 = vadd.f32 %v5280, %v5142
  %v5282 = vadd.f32 %v5281, %v5145
  %v5283 = vadd.f32 %v5282, %v5150
  %v5284 = vadd.f32 %v5283, %v5153
  %v5285 = vadd.f32 %v5284, %v5158
  %v5286 = vadd.f32 %v5285, %v5161
  %v5287 = vadd.f32 %v5286, %v5166
  %v5288 = vadd.f32 %v5287, %v5169
  %v5289 = vadd.f32 %v5288, %v5174
  %v5290 = vadd.f32 %v5289, %v5177
  %v5291 = vadd.f32 %v5290, %v5182
  %v5292 = vadd.f32 %v5291, %v5185
  %v5293 = vadd.f32 %v5292, %v5190
  %v5294 = vadd.f32 %v5293, %v5193
  %v5295 = vadd.f32 %v5294, %v5198
  %v5296 = vadd.f32 %v5295, %v5201
  %v5297 = vadd.f32 %v5296, %v5206
  %v5298 = vadd.f32 %v5297, %v5209
  %v5299 = vadd.f32 %v5298, %v5214
  %v5300 = vadd.f32 %v5299, %v5217
  %v5301 = vadd.f32 %v5300, %v5222
  %v5302 = vadd.f32 %v5301, %v5225
  %v5303 = vadd.f32 %v5302, %v5230
  %v5304 = vadd.f32 %v5303, %v5233
  %v5305 = vadd.f32 %v5304, %v5238
  %v5306 = vadd.f32 %v5305, %v5241
  %v5307 = vrot.slane %v5306, 4
  %v5308 = vadd.f32 %v5306, %v5307
  %v5309 = vrot.slane %v5308, 2
  %v5310 = vadd.f32 %v5308, %v5309
  %v5311 = vrot.slane %v5310, 1
  %v5312 = vadd.f32 %v5310, %v5311
  %v5313 = vmul.f32 %v5312, 0.001953125
  %v5314 = vsub.f32 %v4990, %v5313
  %v5315 = vsub.f32 %v4993, %v5313
  %v5316 = vsub.f32 %v4998, %v5313
  %v5317 = vsub.f32 %v5001, %v5313
  %v5318 = vsub.f32 %v5006, %v5313
  %v5319 = vsub.f32 %v5009, %v5313
  %v5320 = vsub.f32 %v5014, %v5313
  %v5321 = vsub.f32 %v5017, %v5313
  %v5322 = vsub.f32 %v5022, %v5313
  %v5323 = vsub.f32 %v5025, %v5313
  %v5324 = vsub.f32 %v5030, %v5313
  %v5325 = vsub.f32 %v5033, %v5313
  %v5326 = vsub.f32 %v5038, %v5313
  %v5327 = vsub.f32 %v5041, %v5313
  %v5328 = vsub.f32 %v5046, %v5313
  %v5329 = vsub.f32 %v5049, %v5313
  %v5330 = vsub.f32 %v5054, %v5313
  %v5331 = vsub.f32 %v5057, %v5313
  %v5332 = vsub.f32 %v5062, %v5313
  %v5333 = vsub.f32 %v5065, %v5313
  %v5334 = vsub.f32 %v5070, %v5313
  %v5335 = vsub.f32 %v5073, %v5313
  %v5336 = vsub.f32 %v5078, %v5313
  %v5337 = vsub.f32 %v5081, %v5313
  %v5338 = vsub.f32 %v5086, %v5313
  %v5339 = vsub.f32 %v5089, %v5313
  %v5340 = vsub.f32 %v5094, %v5313
  %v5341 = vsub.f32 %v5097, %v5313
  %v5342 = vsub.f32 %v5102, %v5313
  %v5343 = vsub.f32 %v5105, %v5313
  %v5344 = vsub.f32 %v5110, %v5313
  %v5345 = vsub.f32 %v5113, %v5313
  %v5346 = vsub.f32 %v5118, %v5313
  %v5347 = vsub.f32 %v5121, %v5313
  %v5348 = vsub.f32 %v5126, %v5313
  %v5349 = vsub.f32 %v5129, %v5313
  %v5350 = vsub.f32 %v5134, %v5313
  %v5351 = vsub.f32 %v5137, %v5313
  %v5352 = vsub.f32 %v5142, %v5313
  %v5353 = vsub.f32 %v5145, %v5313
  %v5354 = vsub.f32 %v5150, %v5313
  %v5355 = vsub.f32 %v5153, %v5313
  %v5356 = vsub.f32 %v5158, %v5313
  %v5357 = vsub.f32 %v5161, %v5313
  %v5358 = vsub.f32 %v5166, %v5313
  %v5359 = vsub.f32 %v5169, %v5313
  %v5360 = vsub.f32 %v5174, %v5313
  %v5361 = vsub.f32 %v5177, %v5313
  %v5362 = vsub.f32 %v5182, %v5313
  %v5363 = vsub.f32 %v5185, %v5313
  %v5364 = vsub.f32 %v5190, %v5313
  %v5365 = vsub.f32 %v5193, %v5313
  %v5366 = vsub.f32 %v5198, %v5313
  %v5367 = vsub.f32 %v5201, %v5313
  %v5368 = vsub.f32 %v5206, %v5313
  %v5369 = vsub.f32 %v5209, %v5313
  %v5370 = vsub.f32 %v5214, %v5313
  %v5371 = vsub.f32 %v5217, %v5313
  %v5372 = vsub.f32 %v5222, %v5313
  %v5373 = vsub.f32 %v5225, %v5313
  %v5374 = vsub.f32 %v5230, %v5313
  %v5375 = vsub.f32 %v5233, %v5313
  %v5376 = vsub.f32 %v5238, %v5313
  %v5377 = vsub.f32 %v5241, %v5313
  %v5378 = vmul.f32 %v5314, %v5314
  %v5379 = vmul.f32 %v5315, %v5315
  %v5380 = vmul.f32 %v5316, %v5316
  %v5381 = vmul.f32 %v5317, %v5317
  %v5382 = vmul.f32 %v5318, %v5318
  %v5383 = vmul.f32 %v5319, %v5319
  %v5384 = vmul.f32 %v5320, %v5320
  %v5385 = vmul.f32 %v5321, %v5321
  %v5386 = vmul.f32 %v5322, %v5322
  %v5387 = vmul.f32 %v5323, %v5323
  %v5388 = vmul.f32 %v5324, %v5324
  %v5389 = vmul.f32 %v5325, %v5325
  %v5390 = vmul.f32 %v5326, %v5326
  %v5391 = vmul.f32 %v5327, %v5327
  %v5392 = vmul.f32 %v5328, %v5328
  %v5393 = vmul.f32 %v5329, %v5329
  %v5394 = vmul.f32 %v5330, %v5330
  %v5395 = vmul.f32 %v5331, %v5331
  %v5396 = vmul.f32 %v5332, %v5332
  %v5397 = vmul.f32 %v5333, %v5333
  %v5398 = vmul.f32 %v5334, %v5334
  %v5399 = vmul.f32 %v5335, %v5335
  %v5400 = vmul.f32 %v5336, %v5336
  %v5401 = vmul.f32 %v5337, %v5337
  %v5402 = vmul.f32 %v5338, %v5338
  %v5403 = vmul.f32 %v5339, %v5339
  %v5404 = vmul.f32 %v5340, %v5340
  %v5405 = vmul.f32 %v5341, %v5341
  %v5406 = vmul.f32 %v5342, %v5342
  %v5407 = vmul.f32 %v5343, %v5343
  %v5408 = vmul.f32 %v5344, %v5344
  %v5409 = vmul.f32 %v5345, %v5345
  %v5410 = vmul.f32 %v5346, %v5346
  %v5411 = vmul.f32 %v5347, %v5347
  %v5412 = vmul.f32 %v5348, %v5348
  %v5413 = vmul.f32 %v5349, %v5349
  %v5414 = vmul.f32 %v5350, %v5350
  %v5415 = vmul.f32 %v5351, %v5351
  %v5416 = vmul.f32 %v5352, %v5352
  %v5417 = vmul.f32 %v5353, %v5353
  %v5418 = vmul.f32 %v5354, %v5354
  %v5419 = vmul.f32 %v5355, %v5355
  %v5420 = vmul.f32 %v5356, %v5356
  %v5421 = vmul.f32 %v5357, %v5357
  %v5422 = vmul.f32 %v5358, %v5358
  %v5423 = vmul.f32 %v5359, %v5359
  %v5424 = vmul.f32 %v5360, %v5360
  %v5425 = vmul.f32 %v5361, %v5361
  %v5426 = vmul.f32 %v5362, %v5362
  %v5427 = vmul.f32 %v5363, %v5363
  %v5428 = vmul.f32 %v5364, %v5364
  %v5429 = vmul.f32 %v5365, %v5365
  %v5430 = vmul.f32 %v5366, %v5366
  %v5431 = vmul.f32 %v5367, %v5367
  %v5432 = vmul.f32 %v5368, %v5368
  %v5433 = vmul.f32 %v5369, %v5369
  %v5434 = vmul.f32 %v5370, %v5370
  %v5435 = vmul.f32 %v5371, %v5371
  %v5436 = vmul.f32 %v5372, %v5372
  %v5437 = vmul.f32 %v5373, %v5373
  %v5438 = vmul.f32 %v5374, %v5374
  %v5439 = vmul.f32 %v5375, %v5375
  %v5440 = vmul.f32 %v5376, %v5376
  %v5441 = vmul.f32 %v5377, %v5377
  %v5442 = vadd.f32 %v5378, %v5379
  %v5443 = vadd.f32 %v5442, %v5380
  %v5444 = vadd.f32 %v5443, %v5381
  %v5445 = vadd.f32 %v5444, %v5382
  %v5446 = vadd.f32 %v5445, %v5383
  %v5447 = vadd.f32 %v5446, %v5384
  %v5448 = vadd.f32 %v5447, %v5385
  %v5449 = vadd.f32 %v5448, %v5386
  %v5450 = vadd.f32 %v5449, %v5387
  %v5451 = vadd.f32 %v5450, %v5388
  %v5452 = vadd.f32 %v5451, %v5389
  %v5453 = vadd.f32 %v5452, %v5390
  %v5454 = vadd.f32 %v5453, %v5391
  %v5455 = vadd.f32 %v5454, %v5392
  %v5456 = vadd.f32 %v5455, %v5393
  %v5457 = vadd.f32 %v5456, %v5394
  %v5458 = vadd.f32 %v5457, %v5395
  %v5459 = vadd.f32 %v5458, %v5396
  %v5460 = vadd.f32 %v5459, %v5397
  %v5461 = vadd.f32 %v5460, %v5398
  %v5462 = vadd.f32 %v5461, %v5399
  %v5463 = vadd.f32 %v5462, %v5400
  %v5464 = vadd.f32 %v5463, %v5401
  %v5465 = vadd.f32 %v5464, %v5402
  %v5466 = vadd.f32 %v5465, %v5403
  %v5467 = vadd.f32 %v5466, %v5404
  %v5468 = vadd.f32 %v5467, %v5405
  %v5469 = vadd.f32 %v5468, %v5406
  %v5470 = vadd.f32 %v5469, %v5407
  %v5471 = vadd.f32 %v5470, %v5408
  %v5472 = vadd.f32 %v5471, %v5409
  %v5473 = vadd.f32 %v5472, %v5410
  %v5474 = vadd.f32 %v5473, %v5411
  %v5475 = vadd.f32 %v5474, %v5412
  %v5476 = vadd.f32 %v5475, %v5413
  %v5477 = vadd.f32 %v5476, %v5414
  %v5478 = vadd.f32 %v5477, %v5415
  %v5479 = vadd.f32 %v5478, %v5416
  %v5480 = vadd.f32 %v5479, %v5417
  %v5481 = vadd.f32 %v5480, %v5418
  %v5482 = vadd.f32 %v5481, %v5419
  %v5483 = vadd.f32 %v5482, %v5420
  %v5484 = vadd.f32 %v5483, %v5421
  %v5485 = vadd.f32 %v5484, %v5422
  %v5486 = vadd.f32 %v5485, %v5423
  %v5487 = vadd.f32 %v5486, %v5424
  %v5488 = vadd.f32 %v5487, %v5425
  %v5489 = vadd.f32 %v5488, %v5426
  %v5490 = vadd.f32 %v5489, %v5427
  %v5491 = vadd.f32 %v5490, %v5428
  %v5492 = vadd.f32 %v5491, %v5429
  %v5493 = vadd.f32 %v5492, %v5430
  %v5494 = vadd.f32 %v5493, %v5431
  %v5495 = vadd.f32 %v5494, %v5432
  %v5496 = vadd.f32 %v5495, %v5433
  %v5497 = vadd.f32 %v5496, %v5434
  %v5498 = vadd.f32 %v5497, %v5435
  %v5499 = vadd.f32 %v5498, %v5436
  %v5500 = vadd.f32 %v5499, %v5437
  %v5501 = vadd.f32 %v5500, %v5438
  %v5502 = vadd.f32 %v5501, %v5439
  %v5503 = vadd.f32 %v5502, %v5440
  %v5504 = vadd.f32 %v5503, %v5441
  %v5505 = vrot.slane %v5504, 4
  %v5506 = vadd.f32 %v5504, %v5505
  %v5507 = vrot.slane %v5506, 2
  %v5508 = vadd.f32 %v5506, %v5507
  %v5509 = vrot.slane %v5508, 1
  %v5510 = vadd.f32 %v5508, %v5509
  %v5511 = vmul.f32 %v5510, 0.001953125
  %v5512 = vld [vmem:[%s2] sm:$0x1]
  %v5513 = vadd.f32 %v5511, 1e-05
  %v5514 = vrsqrt.pop %v5513
  %v5515 = vmul.f32 %v5512, %v5514
  %v5517 = vlaneseq
  %v5518 = vshrl.u32 %v5517, 7
  %v5519 = vsub.s32 0, %v5518
  %v5520 = vrot.slane %v5515, %v5519
  %v5522 = vmul.f32 %v5314, %v5520
  %v5523 = vmul.f32 %v5315, %v5520
  %v5524 = vmul.f32 %v5316, %v5520
  %v5525 = vmul.f32 %v5317, %v5520
  %v5526 = vmul.f32 %v5318, %v5520
  %v5527 = vmul.f32 %v5319, %v5520
  %v5528 = vmul.f32 %v5320, %v5520
  %v5529 = vmul.f32 %v5321, %v5520
  %v5530 = vmul.f32 %v5322, %v5520
  %v5531 = vmul.f32 %v5323, %v5520
  %v5532 = vmul.f32 %v5324, %v5520
  %v5533 = vmul.f32 %v5325, %v5520
  %v5534 = vmul.f32 %v5326, %v5520
  %v5535 = vmul.f32 %v5327, %v5520
  %v5536 = vmul.f32 %v5328, %v5520
  %v5537 = vmul.f32 %v5329, %v5520
  %v5538 = vmul.f32 %v5330, %v5520
  %v5539 = vmul.f32 %v5331, %v5520
  %v5540 = vmul.f32 %v5332, %v5520
  %v5541 = vmul.f32 %v5333, %v5520
  %v5542 = vmul.f32 %v5334, %v5520
  %v5543 = vmul.f32 %v5335, %v5520
  %v5544 = vmul.f32 %v5336, %v5520
  %v5545 = vmul.f32 %v5337, %v5520
  %v5546 = vmul.f32 %v5338, %v5520
  %v5547 = vmul.f32 %v5339, %v5520
  %v5548 = vmul.f32 %v5340, %v5520
  %v5549 = vmul.f32 %v5341, %v5520
  %v5550 = vmul.f32 %v5342, %v5520
  %v5551 = vmul.f32 %v5343, %v5520
  %v5552 = vmul.f32 %v5344, %v5520
  %v5553 = vmul.f32 %v5345, %v5520
  %v5554 = vmul.f32 %v5346, %v5520
  %v5555 = vmul.f32 %v5347, %v5520
  %v5556 = vmul.f32 %v5348, %v5520
  %v5557 = vmul.f32 %v5349, %v5520
  %v5558 = vmul.f32 %v5350, %v5520
  %v5559 = vmul.f32 %v5351, %v5520
  %v5560 = vmul.f32 %v5352, %v5520
  %v5561 = vmul.f32 %v5353, %v5520
  %v5562 = vmul.f32 %v5354, %v5520
  %v5563 = vmul.f32 %v5355, %v5520
  %v5564 = vmul.f32 %v5356, %v5520
  %v5565 = vmul.f32 %v5357, %v5520
  %v5566 = vmul.f32 %v5358, %v5520
  %v5567 = vmul.f32 %v5359, %v5520
  %v5568 = vmul.f32 %v5360, %v5520
  %v5569 = vmul.f32 %v5361, %v5520
  %v5570 = vmul.f32 %v5362, %v5520
  %v5571 = vmul.f32 %v5363, %v5520
  %v5572 = vmul.f32 %v5364, %v5520
  %v5573 = vmul.f32 %v5365, %v5520
  %v5574 = vmul.f32 %v5366, %v5520
  %v5575 = vmul.f32 %v5367, %v5520
  %v5576 = vmul.f32 %v5368, %v5520
  %v5577 = vmul.f32 %v5369, %v5520
  %v5578 = vmul.f32 %v5370, %v5520
  %v5579 = vmul.f32 %v5371, %v5520
  %v5580 = vmul.f32 %v5372, %v5520
  %v5581 = vmul.f32 %v5373, %v5520
  %v5582 = vmul.f32 %v5374, %v5520
  %v5583 = vmul.f32 %v5375, %v5520
  %v5584 = vmul.f32 %v5376, %v5520
  %v5585 = vmul.f32 %v5377, %v5520
  %v5586 = vld [vmem:[%s3] sm:$0x1]
  %v5588 = vlaneseq
  %v5589 = vshrl.u32 %v5588, 7
  %v5590 = vsub.s32 0, %v5589
  %v5591 = vrot.slane %v5586, %v5590
  %v5593 = vadd.f32 %v5522, %v5591
  %v5594 = vadd.f32 %v5523, %v5591
  %v5595 = vadd.f32 %v5524, %v5591
  %v5596 = vadd.f32 %v5525, %v5591
  %v5597 = vadd.f32 %v5526, %v5591
  %v5598 = vadd.f32 %v5527, %v5591
  %v5599 = vadd.f32 %v5528, %v5591
  %v5600 = vadd.f32 %v5529, %v5591
  %v5601 = vadd.f32 %v5530, %v5591
  %v5602 = vadd.f32 %v5531, %v5591
  %v5603 = vadd.f32 %v5532, %v5591
  %v5604 = vadd.f32 %v5533, %v5591
  %v5605 = vadd.f32 %v5534, %v5591
  %v5606 = vadd.f32 %v5535, %v5591
  %v5607 = vadd.f32 %v5536, %v5591
  %v5608 = vadd.f32 %v5537, %v5591
  %v5609 = vadd.f32 %v5538, %v5591
  %v5610 = vadd.f32 %v5539, %v5591
  %v5611 = vadd.f32 %v5540, %v5591
  %v5612 = vadd.f32 %v5541, %v5591
  %v5613 = vadd.f32 %v5542, %v5591
  %v5614 = vadd.f32 %v5543, %v5591
  %v5615 = vadd.f32 %v5544, %v5591
  %v5616 = vadd.f32 %v5545, %v5591
  %v5617 = vadd.f32 %v5546, %v5591
  %v5618 = vadd.f32 %v5547, %v5591
  %v5619 = vadd.f32 %v5548, %v5591
  %v5620 = vadd.f32 %v5549, %v5591
  %v5621 = vadd.f32 %v5550, %v5591
  %v5622 = vadd.f32 %v5551, %v5591
  %v5623 = vadd.f32 %v5552, %v5591
  %v5624 = vadd.f32 %v5553, %v5591
  %v5625 = vadd.f32 %v5554, %v5591
  %v5626 = vadd.f32 %v5555, %v5591
  %v5627 = vadd.f32 %v5556, %v5591
  %v5628 = vadd.f32 %v5557, %v5591
  %v5629 = vadd.f32 %v5558, %v5591
  %v5630 = vadd.f32 %v5559, %v5591
  %v5631 = vadd.f32 %v5560, %v5591
  %v5632 = vadd.f32 %v5561, %v5591
  %v5633 = vadd.f32 %v5562, %v5591
  %v5634 = vadd.f32 %v5563, %v5591
  %v5635 = vadd.f32 %v5564, %v5591
  %v5636 = vadd.f32 %v5565, %v5591
  %v5637 = vadd.f32 %v5566, %v5591
  %v5638 = vadd.f32 %v5567, %v5591
  %v5639 = vadd.f32 %v5568, %v5591
  %v5640 = vadd.f32 %v5569, %v5591
  %v5641 = vadd.f32 %v5570, %v5591
  %v5642 = vadd.f32 %v5571, %v5591
  %v5643 = vadd.f32 %v5572, %v5591
  %v5644 = vadd.f32 %v5573, %v5591
  %v5645 = vadd.f32 %v5574, %v5591
  %v5646 = vadd.f32 %v5575, %v5591
  %v5647 = vadd.f32 %v5576, %v5591
  %v5648 = vadd.f32 %v5577, %v5591
  %v5649 = vadd.f32 %v5578, %v5591
  %v5650 = vadd.f32 %v5579, %v5591
  %v5651 = vadd.f32 %v5580, %v5591
  %v5652 = vadd.f32 %v5581, %v5591
  %v5653 = vadd.f32 %v5582, %v5591
  %v5654 = vadd.f32 %v5583, %v5591
  %v5655 = vadd.f32 %v5584, %v5591
  %v5656 = vadd.f32 %v5585, %v5591
  %v5657 = vmax.f32 %v5593, 0.0
  %v5658 = vmax.f32 %v5594, 0.0
  %v5659 = vmax.f32 %v5595, 0.0
  %v5660 = vmax.f32 %v5596, 0.0
  %v5661 = vmax.f32 %v5597, 0.0
  %v5662 = vmax.f32 %v5598, 0.0
  %v5663 = vmax.f32 %v5599, 0.0
  %v5664 = vmax.f32 %v5600, 0.0
  %v5665 = vmax.f32 %v5601, 0.0
  %v5666 = vmax.f32 %v5602, 0.0
  %v5667 = vmax.f32 %v5603, 0.0
  %v5668 = vmax.f32 %v5604, 0.0
  %v5669 = vmax.f32 %v5605, 0.0
  %v5670 = vmax.f32 %v5606, 0.0
  %v5671 = vmax.f32 %v5607, 0.0
  %v5672 = vmax.f32 %v5608, 0.0
  %v5673 = vmax.f32 %v5609, 0.0
  %v5674 = vmax.f32 %v5610, 0.0
  %v5675 = vmax.f32 %v5611, 0.0
  %v5676 = vmax.f32 %v5612, 0.0
  %v5677 = vmax.f32 %v5613, 0.0
  %v5678 = vmax.f32 %v5614, 0.0
  %v5679 = vmax.f32 %v5615, 0.0
  %v5680 = vmax.f32 %v5616, 0.0
  %v5681 = vmax.f32 %v5617, 0.0
  %v5682 = vmax.f32 %v5618, 0.0
  %v5683 = vmax.f32 %v5619, 0.0
  %v5684 = vmax.f32 %v5620, 0.0
  %v5685 = vmax.f32 %v5621, 0.0
  %v5686 = vmax.f32 %v5622, 0.0
  %v5687 = vmax.f32 %v5623, 0.0
  %v5688 = vmax.f32 %v5624, 0.0
  %v5689 = vmax.f32 %v5625, 0.0
  %v5690 = vmax.f32 %v5626, 0.0
  %v5691 = vmax.f32 %v5627, 0.0
  %v5692 = vmax.f32 %v5628, 0.0
  %v5693 = vmax.f32 %v5629, 0.0
  %v5694 = vmax.f32 %v5630, 0.0
  %v5695 = vmax.f32 %v5631, 0.0
  %v5696 = vmax.f32 %v5632, 0.0
  %v5697 = vmax.f32 %v5633, 0.0
  %v5698 = vmax.f32 %v5634, 0.0
  %v5699 = vmax.f32 %v5635, 0.0
  %v5700 = vmax.f32 %v5636, 0.0
  %v5701 = vmax.f32 %v5637, 0.0
  %v5702 = vmax.f32 %v5638, 0.0
  %v5703 = vmax.f32 %v5639, 0.0
  %v5704 = vmax.f32 %v5640, 0.0
  %v5705 = vmax.f32 %v5641, 0.0
  %v5706 = vmax.f32 %v5642, 0.0
  %v5707 = vmax.f32 %v5643, 0.0
  %v5708 = vmax.f32 %v5644, 0.0
  %v5709 = vmax.f32 %v5645, 0.0
  %v5710 = vmax.f32 %v5646, 0.0
  %v5711 = vmax.f32 %v5647, 0.0
  %v5712 = vmax.f32 %v5648, 0.0
  %v5713 = vmax.f32 %v5649, 0.0
  %v5714 = vmax.f32 %v5650, 0.0
  %v5715 = vmax.f32 %v5651, 0.0
  %v5716 = vmax.f32 %v5652, 0.0
  %v5717 = vmax.f32 %v5653, 0.0
  %v5718 = vmax.f32 %v5654, 0.0
  %v5719 = vmax.f32 %v5655, 0.0
  %v5720 = vmax.f32 %v5656, 0.0
  %5721 = vst [vmem:[#allocation2] sm:$0xf] 0
  %5722 = vst [vmem:[#allocation2 + $0x4] sm:$0xf] 0
  %5723 = vst [vmem:[#allocation2 + $0x8] sm:$0x1] 0
  %5724 = vst [vmem:[#allocation2 + $0xc] sm:$0xf] 0
  %5725 = vst [vmem:[#allocation2 + $0x10] sm:$0xf] 0
  %5726 = vst [vmem:[#allocation2 + $0x14] sm:$0x1] 0
  %5727 = vst [vmem:[#allocation2 + $0x18] sm:$0xf] 0
  %5728 = vst [vmem:[#allocation2 + $0x1c] sm:$0xf] 0
  %5729 = vst [vmem:[#allocation2 + $0x20] sm:$0x1] 0
  %5730 = vst [vmem:[#allocation2 + $0x24] sm:$0xf] 0
  %5731 = vst [vmem:[#allocation2 + $0x28] sm:$0xf] 0
  %5732 = vst [vmem:[#allocation2 + $0x2c] sm:$0x1] 0
  %5733 = vst [vmem:[#allocation2 + $0x30] sm:$0xf] 0
  %5734 = vst [vmem:[#allocation2 + $0x34] sm:$0xf] 0
  %5735 = vst [vmem:[#allocation2 + $0x38] sm:$0x1] 0
  %5736 = vst [vmem:[#allocation2 + $0x3c] sm:$0xf] 0
  %5737 = vst [vmem:[#allocation2 + $0x40] sm:$0xf] 0
  %5738 = vst [vmem:[#allocation2 + $0x44] sm:$0x1] 0
  %5739 = vst [vmem:[#allocation2 + $0x48] sm:$0xf] 0
  %5740 = vst [vmem:[#allocation2 + $0x4c] sm:$0xf] 0
  %5741 = vst [vmem:[#allocation2 + $0x50] sm:$0x1] 0
  %5742 = vst [vmem:[#allocation2 + $0x54] sm:$0xf] 0
  %5743 = vst [vmem:[#allocation2 + $0x58] sm:$0xf] 0
  %5744 = vst [vmem:[#allocation2 + $0x5c] sm:$0x1] 0
  %5745 = vst [vmem:[#allocation2 + $0x60] sm:$0xf] 0
  %5746 = vst [vmem:[#allocation2 + $0x64] sm:$0xf] 0
  %5747 = vst [vmem:[#allocation2 + $0x68] sm:$0x1] 0
  %5748 = vst [vmem:[#allocation2 + $0x6c] sm:$0xf] 0
  %5749 = vst [vmem:[#allocation2 + $0x70] sm:$0xf] 0
  %5750 = vst [vmem:[#allocation2 + $0x74] sm:$0x1] 0
  %5751 = vst [vmem:[#allocation2 + $0x78] sm:$0xf] 0
  %5752 = vst [vmem:[#allocation2 + $0x7c] sm:$0xf] 0
  %5753 = vst [vmem:[#allocation2 + $0x80] sm:$0x1] 0
  %5754 = vst [vmem:[#allocation2 + $0x84] sm:$0xf] 0
  %5755 = vst [vmem:[#allocation2 + $0x88] sm:$0xf] 0
  %5756 = vst [vmem:[#allocation2 + $0x8c] sm:$0x1] 0
  %5757 = vst [vmem:[#allocation2 + $0x90] sm:$0xf] 0
  %5758 = vst [vmem:[#allocation2 + $0x94] sm:$0xf] 0
  %5759 = vst [vmem:[#allocation2 + $0x98] sm:$0x1] 0
  %5760 = vst [vmem:[#allocation2 + $0x9c] sm:$0xf] 0
  %5761 = vst [vmem:[#allocation2 + $0xa0] sm:$0xf] 0
  %5762 = vst [vmem:[#allocation2 + $0xa4] sm:$0x1] 0
  %5763 = vst [vmem:[#allocation2 + $0xa8] sm:$0xf] 0
  %5764 = vst [vmem:[#allocation2 + $0xac] sm:$0xf] 0
  %5765 = vst [vmem:[#allocation2 + $0xb0] sm:$0x1] 0
  %5766 = vst [vmem:[#allocation2 + $0xb4] sm:$0xf] 0
  %5767 = vst [vmem:[#allocation2 + $0xb8] sm:$0xf] 0
  %5768 = vst [vmem:[#allocation2 + $0xbc] sm:$0x1] 0
  %5769 = vst [vmem:[#allocation2 + $0xc0] sm:$0xf] 0
  %5770 = vst [vmem:[#allocation2 + $0xc4] sm:$0xf] 0
  %5771 = vst [vmem:[#allocation2 + $0xc8] sm:$0x1] 0
  %5772 = vst [vmem:[#allocation2 + $0xcc] sm:$0xf] 0
  %5773 = vst [vmem:[#allocation2 + $0xd0] sm:$0xf] 0
  %5774 = vst [vmem:[#allocation2 + $0xd4] sm:$0x1] 0
  %5775 = vst [vmem:[#allocation2 + $0xd8] sm:$0xf] 0
  %5776 = vst [vmem:[#allocation2 + $0xdc] sm:$0xf] 0
  %5777 = vst [vmem:[#allocation2 + $0xe0] sm:$0x1] 0
  %5778 = vst [vmem:[#allocation2 + $0xe4] sm:$0xf] 0
  %5779 = vst [vmem:[#allocation2 + $0xe8] sm:$0xf] 0
  %5780 = vst [vmem:[#allocation2 + $0xec] sm:$0x1] 0
  %5781 = vst [vmem:[#allocation2 + $0xf0] sm:$0xf] 0
  %5782 = vst [vmem:[#allocation2 + $0xf4] sm:$0xf] 0
  %5783 = vst [vmem:[#allocation2 + $0xf8] sm:$0x1] 0
  %5784 = vst [vmem:[#allocation2 + $0xfc] sm:$0xf] 0
  %5785 = vst [vmem:[#allocation2 + $0x100] sm:$0xf] 0
  %5786 = vst [vmem:[#allocation2 + $0x104] sm:$0x1] 0
  %5787 = vst [vmem:[#allocation2 + $0x108] sm:$0xf] 0
  %5788 = vst [vmem:[#allocation2 + $0x10c] sm:$0xf] 0
  %5789 = vst [vmem:[#allocation2 + $0x110] sm:$0x1] 0
  %5790 = vst [vmem:[#allocation2 + $0x114] sm:$0xf] 0
  %5791 = vst [vmem:[#allocation2 + $0x118] sm:$0xf] 0
  %5792 = vst [vmem:[#allocation2 + $0x11c] sm:$0x1] 0
  %5793 = vst [vmem:[#allocation2 + $0x120] sm:$0xf] 0
  %5794 = vst [vmem:[#allocation2 + $0x124] sm:$0xf] 0
  %5795 = vst [vmem:[#allocation2 + $0x128] sm:$0x1] 0
  %5796 = vst [vmem:[#allocation2 + $0x12c] sm:$0xf] 0
  %5797 = vst [vmem:[#allocation2 + $0x130] sm:$0xf] 0
  %5798 = vst [vmem:[#allocation2 + $0x134] sm:$0x1] 0
  %5799 = vst [vmem:[#allocation2 + $0x138] sm:$0xf] 0
  %5800 = vst [vmem:[#allocation2 + $0x13c] sm:$0xf] 0
  %5801 = vst [vmem:[#allocation2 + $0x140] sm:$0x1] 0
  %5802 = vst [vmem:[#allocation2 + $0x144] sm:$0xf] 0
  %5803 = vst [vmem:[#allocation2 + $0x148] sm:$0xf] 0
  %5804 = vst [vmem:[#allocation2 + $0x14c] sm:$0x1] 0
  %5805 = vst [vmem:[#allocation2 + $0x150] sm:$0xf] 0
  %5806 = vst [vmem:[#allocation2 + $0x154] sm:$0xf] 0
  %5807 = vst [vmem:[#allocation2 + $0x158] sm:$0x1] 0
  %5808 = vst [vmem:[#allocation2 + $0x15c] sm:$0xf] 0
  %5809 = vst [vmem:[#allocation2 + $0x160] sm:$0xf] 0
  %5810 = vst [vmem:[#allocation2 + $0x164] sm:$0x1] 0
  %5811 = vst [vmem:[#allocation2 + $0x168] sm:$0xf] 0
  %5812 = vst [vmem:[#allocation2 + $0x16c] sm:$0xf] 0
  %5813 = vst [vmem:[#allocation2 + $0x170] sm:$0x1] 0
  %5814 = vst [vmem:[#allocation2 + $0x174] sm:$0xf] 0
  %5815 = vst [vmem:[#allocation2 + $0x178] sm:$0xf] 0
  %5816 = vst [vmem:[#allocation2 + $0x17c] sm:$0x1] 0
  %5817 = vst [vmem:[#allocation2 + $0x180] sm:$0xf] 0
  %5818 = vst [vmem:[#allocation2 + $0x184] sm:$0xf] 0
  %5819 = vst [vmem:[#allocation2 + $0x188] sm:$0x1] 0
  %5820 = vst [vmem:[#allocation2 + $0x18c] sm:$0xf] 0
  %5821 = vst [vmem:[#allocation2 + $0x190] sm:$0xf] 0
  %5822 = vst [vmem:[#allocation2 + $0x194] sm:$0x1] 0
  %5823 = vst [vmem:[#allocation2 + $0x198] sm:$0xf] 0
  %5824 = vst [vmem:[#allocation2 + $0x19c] sm:$0xf] 0
  %5825 = vst [vmem:[#allocation2 + $0x1a0] sm:$0x1] 0
  %5826 = vst [vmem:[#allocation2 + $0x1a4] sm:$0xf] 0
  %5827 = vst [vmem:[#allocation2 + $0x1a8] sm:$0xf] 0
  %5828 = vst [vmem:[#allocation2 + $0x1ac] sm:$0x1] 0
  %v5829 = vpack.c.bf16 %v5658, %v5657
  %v5830 = vpack.c.bf16 %v5660, %v5659
  %v5831 = vpack.c.bf16 %v5662, %v5661
  %v5832 = vpack.c.bf16 %v5664, %v5663
  %v5833 = vpack.c.bf16 %v5666, %v5665
  %v5834 = vpack.c.bf16 %v5668, %v5667
  %v5835 = vpack.c.bf16 %v5670, %v5669
  %v5836 = vpack.c.bf16 %v5672, %v5671
  %v5837 = vpack.c.bf16 %v5674, %v5673
  %v5838 = vpack.c.bf16 %v5676, %v5675
  %v5839 = vpack.c.bf16 %v5678, %v5677
  %v5840 = vpack.c.bf16 %v5680, %v5679
  %v5841 = vpack.c.bf16 %v5682, %v5681
  %v5842 = vpack.c.bf16 %v5684, %v5683
  %v5843 = vpack.c.bf16 %v5686, %v5685
  %v5844 = vpack.c.bf16 %v5688, %v5687
  %v5845 = vpack.c.bf16 %v5690, %v5689
  %v5846 = vpack.c.bf16 %v5692, %v5691
  %v5847 = vpack.c.bf16 %v5694, %v5693
  %v5848 = vpack.c.bf16 %v5696, %v5695
  %v5849 = vpack.c.bf16 %v5698, %v5697
  %v5850 = vpack.c.bf16 %v5700, %v5699
  %v5851 = vpack.c.bf16 %v5702, %v5701
  %v5852 = vpack.c.bf16 %v5704, %v5703
  %v5853 = vpack.c.bf16 %v5706, %v5705
  %v5854 = vpack.c.bf16 %v5708, %v5707
  %v5855 = vpack.c.bf16 %v5710, %v5709
  %v5856 = vpack.c.bf16 %v5712, %v5711
  %v5857 = vpack.c.bf16 %v5714, %v5713
  %v5858 = vpack.c.bf16 %v5716, %v5715
  %v5859 = vpack.c.bf16 %v5718, %v5717
  %v5860 = vpack.c.bf16 %v5720, %v5719
  %v5893 = vunpack.c.l.b16 %v5829
  %v5894 = vunpack.c.h.b16 %v5829
  %v5895 = vunpack.c.l.b16 %v5830
  %v5896 = vunpack.c.h.b16 %v5830
  %v5897 = vunpack.c.l.b16 %v5831
  %v5898 = vunpack.c.h.b16 %v5831
  %v5899 = vunpack.c.l.b16 %v5832
  %v5900 = vunpack.c.h.b16 %v5832
  %v5901 = vunpack.c.l.b16 %v5833
  %v5902 = vunpack.c.h.b16 %v5833
  %v5903 = vunpack.c.l.b16 %v5834
  %v5904 = vunpack.c.h.b16 %v5834
  %v5905 = vunpack.c.l.b16 %v5835
  %v5906 = vunpack.c.h.b16 %v5835
  %v5907 = vunpack.c.l.b16 %v5836
  %v5908 = vunpack.c.h.b16 %v5836
  %v5909 = vunpack.c.l.b16 %v5837
  %v5910 = vunpack.c.h.b16 %v5837
  %v5911 = vunpack.c.l.b16 %v5838
  %v5912 = vunpack.c.h.b16 %v5838
  %v5913 = vunpack.c.l.b16 %v5839
  %v5914 = vunpack.c.h.b16 %v5839
  %v5915 = vunpack.c.l.b16 %v5840
  %v5916 = vunpack.c.h.b16 %v5840
  %v5917 = vunpack.c.l.b16 %v5841
  %v5918 = vunpack.c.h.b16 %v5841
  %v5919 = vunpack.c.l.b16 %v5842
  %v5920 = vunpack.c.h.b16 %v5842
  %v5921 = vunpack.c.l.b16 %v5843
  %v5922 = vunpack.c.h.b16 %v5843
  %v5923 = vunpack.c.l.b16 %v5844
  %v5924 = vunpack.c.h.b16 %v5844
  %v5925 = vunpack.c.l.b16 %v5845
  %v5926 = vunpack.c.h.b16 %v5845
  %v5927 = vunpack.c.l.b16 %v5846
  %v5928 = vunpack.c.h.b16 %v5846
  %v5929 = vunpack.c.l.b16 %v5847
  %v5930 = vunpack.c.h.b16 %v5847
  %v5931 = vunpack.c.l.b16 %v5848
  %v5932 = vunpack.c.h.b16 %v5848
  %v5933 = vunpack.c.l.b16 %v5849
  %v5934 = vunpack.c.h.b16 %v5849
  %v5935 = vunpack.c.l.b16 %v5850
  %v5936 = vunpack.c.h.b16 %v5850
  %v5937 = vunpack.c.l.b16 %v5851
  %v5938 = vunpack.c.h.b16 %v5851
  %v5939 = vunpack.c.l.b16 %v5852
  %v5940 = vunpack.c.h.b16 %v5852
  %v5941 = vunpack.c.l.b16 %v5853
  %v5942 = vunpack.c.h.b16 %v5853
  %v5943 = vunpack.c.l.b16 %v5854
  %v5944 = vunpack.c.h.b16 %v5854
  %v5945 = vunpack.c.l.b16 %v5855
  %v5946 = vunpack.c.h.b16 %v5855
  %v5947 = vunpack.c.l.b16 %v5856
  %v5948 = vunpack.c.h.b16 %v5856
  %v5949 = vunpack.c.l.b16 %v5857
  %v5950 = vunpack.c.h.b16 %v5857
  %v5951 = vunpack.c.l.b16 %v5858
  %v5952 = vunpack.c.h.b16 %v5858
  %v5953 = vunpack.c.l.b16 %v5859
  %v5954 = vunpack.c.h.b16 %v5859
  %v5955 = vunpack.c.l.b16 %v5860
  %v5956 = vunpack.c.h.b16 %v5860
  %v5957 = vpack.c.b16 %v5893, %v5893
  %v5958 = vpack.c.b16 %v5894, %v5894
  %v5959 = vpack.c.b16 %v5895, %v5895
  %v5960 = vpack.c.b16 %v5896, %v5896
  %v5961 = vpack.c.b16 %v5897, %v5897
  %v5962 = vpack.c.b16 %v5898, %v5898
  %v5963 = vpack.c.b16 %v5899, %v5899
  %v5964 = vpack.c.b16 %v5900, %v5900
  %v5965 = vpack.c.b16 %v5901, %v5901
  %v5966 = vpack.c.b16 %v5902, %v5902
  %v5967 = vpack.c.b16 %v5903, %v5903
  %v5968 = vpack.c.b16 %v5904, %v5904
  %v5969 = vpack.c.b16 %v5905, %v5905
  %v5970 = vpack.c.b16 %v5906, %v5906
  %v5971 = vpack.c.b16 %v5907, %v5907
  %v5972 = vpack.c.b16 %v5908, %v5908
  %v5973 = vpack.c.b16 %v5909, %v5909
  %v5974 = vpack.c.b16 %v5910, %v5910
  %v5975 = vpack.c.b16 %v5911, %v5911
  %v5976 = vpack.c.b16 %v5912, %v5912
  %v5977 = vpack.c.b16 %v5913, %v5913
  %v5978 = vpack.c.b16 %v5914, %v5914
  %v5979 = vpack.c.b16 %v5915, %v5915
  %v5980 = vpack.c.b16 %v5916, %v5916
  %v5981 = vpack.c.b16 %v5917, %v5917
  %v5982 = vpack.c.b16 %v5918, %v5918
  %v5983 = vpack.c.b16 %v5919, %v5919
  %v5984 = vpack.c.b16 %v5920, %v5920
  %v5985 = vpack.c.b16 %v5921, %v5921
  %v5986 = vpack.c.b16 %v5922, %v5922
  %v5987 = vpack.c.b16 %v5923, %v5923
  %v5988 = vpack.c.b16 %v5924, %v5924
  %v5989 = vpack.c.b16 %v5925, %v5925
  %v5990 = vpack.c.b16 %v5926, %v5926
  %v5991 = vpack.c.b16 %v5927, %v5927
  %v5992 = vpack.c.b16 %v5928, %v5928
  %v5993 = vpack.c.b16 %v5929, %v5929
  %v5994 = vpack.c.b16 %v5930, %v5930
  %v5995 = vpack.c.b16 %v5931, %v5931
  %v5996 = vpack.c.b16 %v5932, %v5932
  %v5997 = vpack.c.b16 %v5933, %v5933
  %v5998 = vpack.c.b16 %v5934, %v5934
  %v5999 = vpack.c.b16 %v5935, %v5935
  %v6000 = vpack.c.b16 %v5936, %v5936
  %v6001 = vpack.c.b16 %v5937, %v5937
  %v6002 = vpack.c.b16 %v5938, %v5938
  %v6003 = vpack.c.b16 %v5939, %v5939
  %v6004 = vpack.c.b16 %v5940, %v5940
  %v6005 = vpack.c.b16 %v5941, %v5941
  %v6006 = vpack.c.b16 %v5942, %v5942
  %v6007 = vpack.c.b16 %v5943, %v5943
  %v6008 = vpack.c.b16 %v5944, %v5944
  %v6009 = vpack.c.b16 %v5945, %v5945
  %v6010 = vpack.c.b16 %v5946, %v5946
  %v6011 = vpack.c.b16 %v5947, %v5947
  %v6012 = vpack.c.b16 %v5948, %v5948
  %v6013 = vpack.c.b16 %v5949, %v5949
  %v6014 = vpack.c.b16 %v5950, %v5950
  %v6015 = vpack.c.b16 %v5951, %v5951
  %v6016 = vpack.c.b16 %v5952, %v5952
  %v6017 = vpack.c.b16 %v5953, %v5953
  %v6018 = vpack.c.b16 %v5954, %v5954
  %v6019 = vpack.c.b16 %v5955, %v5955
  %v6020 = vpack.c.b16 %v5956, %v5956
  %vm6021 = vsmask.f32 256
  %vm6022 = vsmask.f32 4368
  %vm6023 = vmor %vm6021, %vm6022
  %v6025 = vshrl.u32 %v5957, 16
  %v6027 = vrot.slane %v6025, 7
  %v6028 = vshll.u32 %v5957, 16
  %v6030 = vor.u32 %v6027, %v6028
  %v6031 = vrot.slane %v6027, 4
  %v6033 = vshrl.u32 %v5958, 16
  %v6035 = vrot.slane %v6033, 7
  %v6036 = vshll.u32 %v5958, 16
  %v6038 = vor.u32 %v6035, %v6036
  %v6039 = vsel %vm6023, %v6031, %v6038
  %v6040 = vrot.slane %v6035, 4
  %v6042 = vshrl.u32 %v5959, 16
  %v6044 = vrot.slane %v6042, 7
  %v6045 = vshll.u32 %v5959, 16
  %v6047 = vor.u32 %v6044, %v6045
  %v6048 = vrot.slane %v6044, 4
  %v6050 = vshrl.u32 %v5960, 16
  %v6052 = vrot.slane %v6050, 7
  %v6053 = vshll.u32 %v5960, 16
  %v6055 = vor.u32 %v6052, %v6053
  %v6056 = vsel %vm6023, %v6048, %v6055
  %v6057 = vrot.slane %v6052, 4
  %v6059 = vshrl.u32 %v5961, 16
  %v6061 = vrot.slane %v6059, 7
  %v6062 = vshll.u32 %v5961, 16
  %v6064 = vor.u32 %v6061, %v6062
  %v6065 = vrot.slane %v6061, 4
  %v6067 = vshrl.u32 %v5962, 16
  %v6069 = vrot.slane %v6067, 7
  %v6070 = vshll.u32 %v5962, 16
  %v6072 = vor.u32 %v6069, %v6070
  %v6073 = vsel %vm6023, %v6065, %v6072
  %v6074 = vrot.slane %v6069, 4
  %v6076 = vshrl.u32 %v5963, 16
  %v6078 = vrot.slane %v6076, 7
  %v6079 = vshll.u32 %v5963, 16
  %v6081 = vor.u32 %v6078, %v6079
  %v6082 = vrot.slane %v6078, 4
  %v6084 = vshrl.u32 %v5964, 16
  %v6086 = vrot.slane %v6084, 7
  %v6087 = vshll.u32 %v5964, 16
  %v6089 = vor.u32 %v6086, %v6087
  %v6090 = vsel %vm6023, %v6082, %v6089
  %v6091 = vrot.slane %v6086, 4
  %v6093 = vshrl.u32 %v5965, 16
  %v6095 = vrot.slane %v6093, 7
  %v6096 = vshll.u32 %v5965, 16
  %v6098 = vor.u32 %v6095, %v6096
  %v6099 = vrot.slane %v6095, 4
  %v6101 = vshrl.u32 %v5966, 16
  %v6103 = vrot.slane %v6101, 7
  %v6104 = vshll.u32 %v5966, 16
  %v6106 = vor.u32 %v6103, %v6104
  %v6107 = vsel %vm6023, %v6099, %v6106
  %v6108 = vrot.slane %v6103, 4
  %v6110 = vshrl.u32 %v5967, 16
  %v6112 = vrot.slane %v6110, 7
  %v6113 = vshll.u32 %v5967, 16
  %v6115 = vor.u32 %v6112, %v6113
  %v6116 = vrot.slane %v6112, 4
  %v6118 = vshrl.u32 %v5968, 16
  %v6120 = vrot.slane %v6118, 7
  %v6121 = vshll.u32 %v5968, 16
  %v6123 = vor.u32 %v6120, %v6121
  %v6124 = vsel %vm6023, %v6116, %v6123
  %v6125 = vrot.slane %v6120, 4
  %v6127 = vshrl.u32 %v5969, 16
  %v6129 = vrot.slane %v6127, 7
  %v6130 = vshll.u32 %v5969, 16
  %v6132 = vor.u32 %v6129, %v6130
  %v6133 = vrot.slane %v6129, 4
  %v6135 = vshrl.u32 %v5970, 16
  %v6137 = vrot.slane %v6135, 7
  %v6138 = vshll.u32 %v5970, 16
  %v6140 = vor.u32 %v6137, %v6138
  %v6141 = vsel %vm6023, %v6133, %v6140
  %v6142 = vrot.slane %v6137, 4
  %v6144 = vshrl.u32 %v5971, 16
  %v6146 = vrot.slane %v6144, 7
  %v6147 = vshll.u32 %v5971, 16
  %v6149 = vor.u32 %v6146, %v6147
  %v6150 = vrot.slane %v6146, 4
  %v6152 = vshrl.u32 %v5972, 16
  %v6154 = vrot.slane %v6152, 7
  %v6155 = vshll.u32 %v5972, 16
  %v6157 = vor.u32 %v6154, %v6155
  %v6158 = vsel %vm6023, %v6150, %v6157
  %v6159 = vrot.slane %v6154, 4
  %v6161 = vshrl.u32 %v5973, 16
  %v6163 = vrot.slane %v6161, 7
  %v6164 = vshll.u32 %v5973, 16
  %v6166 = vor.u32 %v6163, %v6164
  %v6167 = vrot.slane %v6163, 4
  %v6169 = vshrl.u32 %v5974, 16
  %v6171 = vrot.slane %v6169, 7
  %v6172 = vshll.u32 %v5974, 16
  %v6174 = vor.u32 %v6171, %v6172
  %v6175 = vsel %vm6023, %v6167, %v6174
  %v6176 = vrot.slane %v6171, 4
  %v6178 = vshrl.u32 %v5975, 16
  %v6180 = vrot.slane %v6178, 7
  %v6181 = vshll.u32 %v5975, 16
  %v6183 = vor.u32 %v6180, %v6181
  %v6184 = vrot.slane %v6180, 4
  %v6186 = vshrl.u32 %v5976, 16
  %v6188 = vrot.slane %v6186, 7
  %v6189 = vshll.u32 %v5976, 16
  %v6191 = vor.u32 %v6188, %v6189
  %v6192 = vsel %vm6023, %v6184, %v6191
  %v6193 = vrot.slane %v6188, 4
  %v6195 = vshrl.u32 %v5977, 16
  %v6197 = vrot.slane %v6195, 7
  %v6198 = vshll.u32 %v5977, 16
  %v6200 = vor.u32 %v6197, %v6198
  %v6201 = vrot.slane %v6197, 4
  %v6203 = vshrl.u32 %v5978, 16
  %v6205 = vrot.slane %v6203, 7
  %v6206 = vshll.u32 %v5978, 16
  %v6208 = vor.u32 %v6205, %v6206
  %v6209 = vsel %vm6023, %v6201, %v6208
  %v6210 = vrot.slane %v6205, 4
  %v6212 = vshrl.u32 %v5979, 16
  %v6214 = vrot.slane %v6212, 7
  %v6215 = vshll.u32 %v5979, 16
  %v6217 = vor.u32 %v6214, %v6215
  %v6218 = vrot.slane %v6214, 4
  %v6220 = vshrl.u32 %v5980, 16
  %v6222 = vrot.slane %v6220, 7
  %v6223 = vshll.u32 %v5980, 16
  %v6225 = vor.u32 %v6222, %v6223
  %v6226 = vsel %vm6023, %v6218, %v6225
  %v6227 = vrot.slane %v6222, 4
  %v6229 = vshrl.u32 %v5981, 16
  %v6231 = vrot.slane %v6229, 7
  %v6232 = vshll.u32 %v5981, 16
  %v6234 = vor.u32 %v6231, %v6232
  %v6235 = vrot.slane %v6231, 4
  %v6237 = vshrl.u32 %v5982, 16
  %v6239 = vrot.slane %v6237, 7
  %v6240 = vshll.u32 %v5982, 16
  %v6242 = vor.u32 %v6239, %v6240
  %v6243 = vsel %vm6023, %v6235, %v6242
  %v6244 = vrot.slane %v6239, 4
  %v6246 = vshrl.u32 %v5983, 16
  %v6248 = vrot.slane %v6246, 7
  %v6249 = vshll.u32 %v5983, 16
  %v6251 = vor.u32 %v6248, %v6249
  %v6252 = vrot.slane %v6248, 4
  %v6254 = vshrl.u32 %v5984, 16
  %v6256 = vrot.slane %v6254, 7
  %v6257 = vshll.u32 %v5984, 16
  %v6259 = vor.u32 %v6256, %v6257
  %v6260 = vsel %vm6023, %v6252, %v6259
  %v6261 = vrot.slane %v6256, 4
  %v6263 = vshrl.u32 %v5985, 16
  %v6265 = vrot.slane %v6263, 7
  %v6266 = vshll.u32 %v5985, 16
  %v6268 = vor.u32 %v6265, %v6266
  %v6269 = vrot.slane %v6265, 4
  %v6271 = vshrl.u32 %v5986, 16
  %v6273 = vrot.slane %v6271, 7
  %v6274 = vshll.u32 %v5986, 16
  %v6276 = vor.u32 %v6273, %v6274
  %v6277 = vsel %vm6023, %v6269, %v6276
  %v6278 = vrot.slane %v6273, 4
  %v6280 = vshrl.u32 %v5987, 16
  %v6282 = vrot.slane %v6280, 7
  %v6283 = vshll.u32 %v5987, 16
  %v6285 = vor.u32 %v6282, %v6283
  %v6286 = vrot.slane %v6282, 4
  %v6288 = vshrl.u32 %v5988, 16
  %v6290 = vrot.slane %v6288, 7
  %v6291 = vshll.u32 %v5988, 16
  %v6293 = vor.u32 %v6290, %v6291
  %v6294 = vsel %vm6023, %v6286, %v6293
  %v6295 = vrot.slane %v6290, 4
  %v6297 = vshrl.u32 %v5989, 16
  %v6299 = vrot.slane %v6297, 7
  %v6300 = vshll.u32 %v5989, 16
  %v6302 = vor.u32 %v6299, %v6300
  %v6303 = vrot.slane %v6299, 4
  %v6305 = vshrl.u32 %v5990, 16
  %v6307 = vrot.slane %v6305, 7
  %v6308 = vshll.u32 %v5990, 16
  %v6310 = vor.u32 %v6307, %v6308
  %v6311 = vsel %vm6023, %v6303, %v6310
  %v6312 = vrot.slane %v6307, 4
  %v6314 = vshrl.u32 %v5991, 16
  %v6316 = vrot.slane %v6314, 7
  %v6317 = vshll.u32 %v5991, 16
  %v6319 = vor.u32 %v6316, %v6317
  %v6320 = vrot.slane %v6316, 4
  %v6322 = vshrl.u32 %v5992, 16
  %v6324 = vrot.slane %v6322, 7
  %v6325 = vshll.u32 %v5992, 16
  %v6327 = vor.u32 %v6324, %v6325
  %v6328 = vsel %vm6023, %v6320, %v6327
  %v6329 = vrot.slane %v6324, 4
  %v6331 = vshrl.u32 %v5993, 16
  %v6333 = vrot.slane %v6331, 7
  %v6334 = vshll.u32 %v5993, 16
  %v6336 = vor.u32 %v6333, %v6334
  %v6337 = vrot.slane %v6333, 4
  %v6339 = vshrl.u32 %v5994, 16
  %v6341 = vrot.slane %v6339, 7
  %v6342 = vshll.u32 %v5994, 16
  %v6344 = vor.u32 %v6341, %v6342
  %v6345 = vsel %vm6023, %v6337, %v6344
  %v6346 = vrot.slane %v6341, 4
  %v6348 = vshrl.u32 %v5995, 16
  %v6350 = vrot.slane %v6348, 7
  %v6351 = vshll.u32 %v5995, 16
  %v6353 = vor.u32 %v6350, %v6351
  %v6354 = vrot.slane %v6350, 4
  %v6356 = vshrl.u32 %v5996, 16
  %v6358 = vrot.slane %v6356, 7
  %v6359 = vshll.u32 %v5996, 16
  %v6361 = vor.u32 %v6358, %v6359
  %v6362 = vsel %vm6023, %v6354, %v6361
  %v6363 = vrot.slane %v6358, 4
  %v6365 = vshrl.u32 %v5997, 16
  %v6367 = vrot.slane %v6365, 7
  %v6368 = vshll.u32 %v5997, 16
  %v6370 = vor.u32 %v6367, %v6368
  %v6371 = vrot.slane %v6367, 4
  %v6373 = vshrl.u32 %v5998, 16
  %v6375 = vrot.slane %v6373, 7
  %v6376 = vshll.u32 %v5998, 16
  %v6378 = vor.u32 %v6375, %v6376
  %v6379 = vsel %vm6023, %v6371, %v6378
  %v6380 = vrot.slane %v6375, 4
  %v6382 = vshrl.u32 %v5999, 16
  %v6384 = vrot.slane %v6382, 7
  %v6385 = vshll.u32 %v5999, 16
  %v6387 = vor.u32 %v6384, %v6385
  %v6388 = vrot.slane %v6384, 4
  %v6390 = vshrl.u32 %v6000, 16
  %v6392 = vrot.slane %v6390, 7
  %v6393 = vshll.u32 %v6000, 16
  %v6395 = vor.u32 %v6392, %v6393
  %v6396 = vsel %vm6023, %v6388, %v6395
  %v6397 = vrot.slane %v6392, 4
  %v6399 = vshrl.u32 %v6001, 16
  %v6401 = vrot.slane %v6399, 7
  %v6402 = vshll.u32 %v6001, 16
  %v6404 = vor.u32 %v6401, %v6402
  %v6405 = vrot.slane %v6401, 4
  %v6407 = vshrl.u32 %v6002, 16
  %v6409 = vrot.slane %v6407, 7
  %v6410 = vshll.u32 %v6002, 16
  %v6412 = vor.u32 %v6409, %v6410
  %v6413 = vsel %vm6023, %v6405, %v6412
  %v6414 = vrot.slane %v6409, 4
  %v6416 = vshrl.u32 %v6003, 16
  %v6418 = vrot.slane %v6416, 7
  %v6419 = vshll.u32 %v6003, 16
  %v6421 = vor.u32 %v6418, %v6419
  %v6422 = vrot.slane %v6418, 4
  %v6424 = vshrl.u32 %v6004, 16
  %v6426 = vrot.slane %v6424, 7
  %v6427 = vshll.u32 %v6004, 16
  %v6429 = vor.u32 %v6426, %v6427
  %v6430 = vsel %vm6023, %v6422, %v6429
  %v6431 = vrot.slane %v6426, 4
  %v6433 = vshrl.u32 %v6005, 16
  %v6435 = vrot.slane %v6433, 7
  %v6436 = vshll.u32 %v6005, 16
  %v6438 = vor.u32 %v6435, %v6436
  %v6439 = vrot.slane %v6435, 4
  %v6441 = vshrl.u32 %v6006, 16
  %v6443 = vrot.slane %v6441, 7
  %v6444 = vshll.u32 %v6006, 16
  %v6446 = vor.u32 %v6443, %v6444
  %v6447 = vsel %vm6023, %v6439, %v6446
  %v6448 = vrot.slane %v6443, 4
  %v6450 = vshrl.u32 %v6007, 16
  %v6452 = vrot.slane %v6450, 7
  %v6453 = vshll.u32 %v6007, 16
  %v6455 = vor.u32 %v6452, %v6453
  %v6456 = vrot.slane %v6452, 4
  %v6458 = vshrl.u32 %v6008, 16
  %v6460 = vrot.slane %v6458, 7
  %v6461 = vshll.u32 %v6008, 16
  %v6463 = vor.u32 %v6460, %v6461
  %v6464 = vsel %vm6023, %v6456, %v6463
  %v6465 = vrot.slane %v6460, 4
  %v6467 = vshrl.u32 %v6009, 16
  %v6469 = vrot.slane %v6467, 7
  %v6470 = vshll.u32 %v6009, 16
  %v6472 = vor.u32 %v6469, %v6470
  %v6473 = vrot.slane %v6469, 4
  %v6475 = vshrl.u32 %v6010, 16
  %v6477 = vrot.slane %v6475, 7
  %v6478 = vshll.u32 %v6010, 16
  %v6480 = vor.u32 %v6477, %v6478
  %v6481 = vsel %vm6023, %v6473, %v6480
  %v6482 = vrot.slane %v6477, 4
  %v6484 = vshrl.u32 %v6011, 16
  %v6486 = vrot.slane %v6484, 7
  %v6487 = vshll.u32 %v6011, 16
  %v6489 = vor.u32 %v6486, %v6487
  %v6490 = vrot.slane %v6486, 4
  %v6492 = vshrl.u32 %v6012, 16
  %v6494 = vrot.slane %v6492, 7
  %v6495 = vshll.u32 %v6012, 16
  %v6497 = vor.u32 %v6494, %v6495
  %v6498 = vsel %vm6023, %v6490, %v6497
  %v6499 = vrot.slane %v6494, 4
  %v6501 = vshrl.u32 %v6013, 16
  %v6503 = vrot.slane %v6501, 7
  %v6504 = vshll.u32 %v6013, 16
  %v6506 = vor.u32 %v6503, %v6504
  %v6507 = vrot.slane %v6503, 4
  %v6509 = vshrl.u32 %v6014, 16
  %v6511 = vrot.slane %v6509, 7
  %v6512 = vshll.u32 %v6014, 16
  %v6514 = vor.u32 %v6511, %v6512
  %v6515 = vsel %vm6023, %v6507, %v6514
  %v6516 = vrot.slane %v6511, 4
  %v6518 = vshrl.u32 %v6015, 16
  %v6520 = vrot.slane %v6518, 7
  %v6521 = vshll.u32 %v6015, 16
  %v6523 = vor.u32 %v6520, %v6521
  %v6524 = vrot.slane %v6520, 4
  %v6526 = vshrl.u32 %v6016, 16
  %v6528 = vrot.slane %v6526, 7
  %v6529 = vshll.u32 %v6016, 16
  %v6531 = vor.u32 %v6528, %v6529
  %v6532 = vsel %vm6023, %v6524, %v6531
  %v6533 = vrot.slane %v6528, 4
  %v6535 = vshrl.u32 %v6017, 16
  %v6537 = vrot.slane %v6535, 7
  %v6538 = vshll.u32 %v6017, 16
  %v6540 = vor.u32 %v6537, %v6538
  %v6541 = vrot.slane %v6537, 4
  %v6543 = vshrl.u32 %v6018, 16
  %v6545 = vrot.slane %v6543, 7
  %v6546 = vshll.u32 %v6018, 16
  %v6548 = vor.u32 %v6545, %v6546
  %v6549 = vsel %vm6023, %v6541, %v6548
  %v6550 = vrot.slane %v6545, 4
  %v6552 = vshrl.u32 %v6019, 16
  %v6554 = vrot.slane %v6552, 7
  %v6555 = vshll.u32 %v6019, 16
  %v6557 = vor.u32 %v6554, %v6555
  %v6558 = vrot.slane %v6554, 4
  %v6560 = vshrl.u32 %v6020, 16
  %v6562 = vrot.slane %v6560, 7
  %v6563 = vshll.u32 %v6020, 16
  %v6565 = vor.u32 %v6562, %v6563
  %v6566 = vsel %vm6023, %v6558, %v6565
  %v6567 = vrot.slane %v6562, 4
  %s6664 = scalar_lea.vmem [#allocation2], 12
  %vm6665 = vcmask 1043456
  %vm6666 = vsmask.f32 7938
  %vm6667 = vmand %vm6665, %vm6666
  %v6668 = vld [vmem:[%s6664] sm:$0xf]
  %v6669 = vsel %vm6667, %v6030, %v6668
  %6670 = vst [vmem:[%s6664] sm:$0xf] %v6669
  %6671 = vst [vmem:[%s6664 + $0x4] sm:$0xf] %v6039
  %vm6672 = vcmask 1040384
  %vm6673 = vmand %vm6672, %vm6021
  %v6674 = vld [vmem:[%s6664 + $0x8] sm:$0x1]
  %v6675 = vsel %vm6673, %v6040, %v6674
  %6676 = vst [vmem:[%s6664 + $0x8] sm:$0x1] %v6675
  %v6677 = vld [vmem:[%s6664 + $0xc] sm:$0xf]
  %v6678 = vsel %vm6667, %v6047, %v6677
  %6679 = vst [vmem:[%s6664 + $0xc] sm:$0xf] %v6678
  %6680 = vst [vmem:[%s6664 + $0x10] sm:$0xf] %v6056
  %v6681 = vld [vmem:[%s6664 + $0x14] sm:$0x1]
  %v6682 = vsel %vm6673, %v6057, %v6681
  %6683 = vst [vmem:[%s6664 + $0x14] sm:$0x1] %v6682
  %v6684 = vld [vmem:[%s6664 + $0x18] sm:$0xf]
  %v6685 = vsel %vm6667, %v6064, %v6684
  %6686 = vst [vmem:[%s6664 + $0x18] sm:$0xf] %v6685
  %6687 = vst [vmem:[%s6664 + $0x1c] sm:$0xf] %v6073
  %v6688 = vld [vmem:[%s6664 + $0x20] sm:$0x1]
  %v6689 = vsel %vm6673, %v6074, %v6688
  %6690 = vst [vmem:[%s6664 + $0x20] sm:$0x1] %v6689
  %v6691 = vld [vmem:[%s6664 + $0x24] sm:$0xf]
  %v6692 = vsel %vm6667, %v6081, %v6691
  %6693 = vst [vmem:[%s6664 + $0x24] sm:$0xf] %v6692
  %6694 = vst [vmem:[%s6664 + $0x28] sm:$0xf] %v6090
  %v6695 = vld [vmem:[%s6664 + $0x2c] sm:$0x1]
  %v6696 = vsel %vm6673, %v6091, %v6695
  %6697 = vst [vmem:[%s6664 + $0x2c] sm:$0x1] %v6696
  %v6698 = vld [vmem:[%s6664 + $0x30] sm:$0xf]
  %v6699 = vsel %vm6667, %v6098, %v6698
  %6700 = vst [vmem:[%s6664 + $0x30] sm:$0xf] %v6699
  %6701 = vst [vmem:[%s6664 + $0x34] sm:$0xf] %v6107
  %v6702 = vld [vmem:[%s6664 + $0x38] sm:$0x1]
  %v6703 = vsel %vm6673, %v6108, %v6702
  %6704 = vst [vmem:[%s6664 + $0x38] sm:$0x1] %v6703
  %v6705 = vld [vmem:[%s6664 + $0x3c] sm:$0xf]
  %v6706 = vsel %vm6667, %v6115, %v6705
  %6707 = vst [vmem:[%s6664 + $0x3c] sm:$0xf] %v6706
  %6708 = vst [vmem:[%s6664 + $0x40] sm:$0xf] %v6124
  %v6709 = vld [vmem:[%s6664 + $0x44] sm:$0x1]
  %v6710 = vsel %vm6673, %v6125, %v6709
  %6711 = vst [vmem:[%s6664 + $0x44] sm:$0x1] %v6710
  %v6712 = vld [vmem:[%s6664 + $0x48] sm:$0xf]
  %v6713 = vsel %vm6667, %v6132, %v6712
  %6714 = vst [vmem:[%s6664 + $0x48] sm:$0xf] %v6713
  %6715 = vst [vmem:[%s6664 + $0x4c] sm:$0xf] %v6141
  %v6716 = vld [vmem:[%s6664 + $0x50] sm:$0x1]
  %v6717 = vsel %vm6673, %v6142, %v6716
  %6718 = vst [vmem:[%s6664 + $0x50] sm:$0x1] %v6717
  %v6719 = vld [vmem:[%s6664 + $0x54] sm:$0xf]
  %v6720 = vsel %vm6667, %v6149, %v6719
  %6721 = vst [vmem:[%s6664 + $0x54] sm:$0xf] %v6720
  %6722 = vst [vmem:[%s6664 + $0x58] sm:$0xf] %v6158
  %v6723 = vld [vmem:[%s6664 + $0x5c] sm:$0x1]
  %v6724 = vsel %vm6673, %v6159, %v6723
  %6725 = vst [vmem:[%s6664 + $0x5c] sm:$0x1] %v6724
  %v6726 = vld [vmem:[%s6664 + $0x60] sm:$0xf]
  %v6727 = vsel %vm6667, %v6166, %v6726
  %6728 = vst [vmem:[%s6664 + $0x60] sm:$0xf] %v6727
  %6729 = vst [vmem:[%s6664 + $0x64] sm:$0xf] %v6175
  %v6730 = vld [vmem:[%s6664 + $0x68] sm:$0x1]
  %v6731 = vsel %vm6673, %v6176, %v6730
  %6732 = vst [vmem:[%s6664 + $0x68] sm:$0x1] %v6731
  %v6733 = vld [vmem:[%s6664 + $0x6c] sm:$0xf]
  %v6734 = vsel %vm6667, %v6183, %v6733
  %6735 = vst [vmem:[%s6664 + $0x6c] sm:$0xf] %v6734
  %6736 = vst [vmem:[%s6664 + $0x70] sm:$0xf] %v6192
  %v6737 = vld [vmem:[%s6664 + $0x74] sm:$0x1]
  %v6738 = vsel %vm6673, %v6193, %v6737
  %6739 = vst [vmem:[%s6664 + $0x74] sm:$0x1] %v6738
  %v6740 = vld [vmem:[%s6664 + $0x78] sm:$0xf]
  %v6741 = vsel %vm6667, %v6200, %v6740
  %6742 = vst [vmem:[%s6664 + $0x78] sm:$0xf] %v6741
  %6743 = vst [vmem:[%s6664 + $0x7c] sm:$0xf] %v6209
  %v6744 = vld [vmem:[%s6664 + $0x80] sm:$0x1]
  %v6745 = vsel %vm6673, %v6210, %v6744
  %6746 = vst [vmem:[%s6664 + $0x80] sm:$0x1] %v6745
  %v6747 = vld [vmem:[%s6664 + $0x84] sm:$0xf]
  %v6748 = vsel %vm6667, %v6217, %v6747
  %6749 = vst [vmem:[%s6664 + $0x84] sm:$0xf] %v6748
  %6750 = vst [vmem:[%s6664 + $0x88] sm:$0xf] %v6226
  %v6751 = vld [vmem:[%s6664 + $0x8c] sm:$0x1]
  %v6752 = vsel %vm6673, %v6227, %v6751
  %6753 = vst [vmem:[%s6664 + $0x8c] sm:$0x1] %v6752
  %v6754 = vld [vmem:[%s6664 + $0x90] sm:$0xf]
  %v6755 = vsel %vm6667, %v6234, %v6754
  %6756 = vst [vmem:[%s6664 + $0x90] sm:$0xf] %v6755
  %6757 = vst [vmem:[%s6664 + $0x94] sm:$0xf] %v6243
  %v6758 = vld [vmem:[%s6664 + $0x98] sm:$0x1]
  %v6759 = vsel %vm6673, %v6244, %v6758
  %6760 = vst [vmem:[%s6664 + $0x98] sm:$0x1] %v6759
  %v6761 = vld [vmem:[%s6664 + $0x9c] sm:$0xf]
  %v6762 = vsel %vm6667, %v6251, %v6761
  %6763 = vst [vmem:[%s6664 + $0x9c] sm:$0xf] %v6762
  %6764 = vst [vmem:[%s6664 + $0xa0] sm:$0xf] %v6260
  %v6765 = vld [vmem:[%s6664 + $0xa4] sm:$0x1]
  %v6766 = vsel %vm6673, %v6261, %v6765
  %6767 = vst [vmem:[%s6664 + $0xa4] sm:$0x1] %v6766
  %v6768 = vld [vmem:[%s6664 + $0xa8] sm:$0xf]
  %v6769 = vsel %vm6667, %v6268, %v6768
  %6770 = vst [vmem:[%s6664 + $0xa8] sm:$0xf] %v6769
  %6771 = vst [vmem:[%s6664 + $0xac] sm:$0xf] %v6277
  %v6772 = vld [vmem:[%s6664 + $0xb0] sm:$0x1]
  %v6773 = vsel %vm6673, %v6278, %v6772
  %6774 = vst [vmem:[%s6664 + $0xb0] sm:$0x1] %v6773
  %v6775 = vld [vmem:[%s6664 + $0xb4] sm:$0xf]
  %v6776 = vsel %vm6667, %v6285, %v6775
  %6777 = vst [vmem:[%s6664 + $0xb4] sm:$0xf] %v6776
  %6778 = vst [vmem:[%s6664 + $0xb8] sm:$0xf] %v6294
  %v6779 = vld [vmem:[%s6664 + $0xbc] sm:$0x1]
  %v6780 = vsel %vm6673, %v6295, %v6779
  %6781 = vst [vmem:[%s6664 + $0xbc] sm:$0x1] %v6780
  %v6782 = vld [vmem:[%s6664 + $0xd8] sm:$0xf]
  %v6783 = vsel %vm6667, %v6302, %v6782
  %6784 = vst [vmem:[%s6664 + $0xd8] sm:$0xf] %v6783
  %6785 = vst [vmem:[%s6664 + $0xdc] sm:$0xf] %v6311
  %v6786 = vld [vmem:[%s6664 + $0xe0] sm:$0x1]
  %v6787 = vsel %vm6673, %v6312, %v6786
  %6788 = vst [vmem:[%s6664 + $0xe0] sm:$0x1] %v6787
  %v6789 = vld [vmem:[%s6664 + $0xe4] sm:$0xf]
  %v6790 = vsel %vm6667, %v6319, %v6789
  %6791 = vst [vmem:[%s6664 + $0xe4] sm:$0xf] %v6790
  %6792 = vst [vmem:[%s6664 + $0xe8] sm:$0xf] %v6328
  %v6793 = vld [vmem:[%s6664 + $0xec] sm:$0x1]
  %v6794 = vsel %vm6673, %v6329, %v6793
  %6795 = vst [vmem:[%s6664 + $0xec] sm:$0x1] %v6794
  %v6796 = vld [vmem:[%s6664 + $0xf0] sm:$0xf]
  %v6797 = vsel %vm6667, %v6336, %v6796
  %6798 = vst [vmem:[%s6664 + $0xf0] sm:$0xf] %v6797
  %6799 = vst [vmem:[%s6664 + $0xf4] sm:$0xf] %v6345
  %v6800 = vld [vmem:[%s6664 + $0xf8] sm:$0x1]
  %v6801 = vsel %vm6673, %v6346, %v6800
  %6802 = vst [vmem:[%s6664 + $0xf8] sm:$0x1] %v6801
  %v6803 = vld [vmem:[%s6664 + $0xfc] sm:$0xf]
  %v6804 = vsel %vm6667, %v6353, %v6803
  %6805 = vst [vmem:[%s6664 + $0xfc] sm:$0xf] %v6804
  %6806 = vst [vmem:[%s6664 + $0x100] sm:$0xf] %v6362
  %v6807 = vld [vmem:[%s6664 + $0x104] sm:$0x1]
  %v6808 = vsel %vm6673, %v6363, %v6807
  %6809 = vst [vmem:[%s6664 + $0x104] sm:$0x1] %v6808
  %v6810 = vld [vmem:[%s6664 + $0x108] sm:$0xf]
  %v6811 = vsel %vm6667, %v6370, %v6810
  %6812 = vst [vmem:[%s6664 + $0x108] sm:$0xf] %v6811
  %6813 = vst [vmem:[%s6664 + $0x10c] sm:$0xf] %v6379
  %v6814 = vld [vmem:[%s6664 + $0x110] sm:$0x1]
  %v6815 = vsel %vm6673, %v6380, %v6814
  %6816 = vst [vmem:[%s6664 + $0x110] sm:$0x1] %v6815
  %v6817 = vld [vmem:[%s6664 + $0x114] sm:$0xf]
  %v6818 = vsel %vm6667, %v6387, %v6817
  %6819 = vst [vmem:[%s6664 + $0x114] sm:$0xf] %v6818
  %6820 = vst [vmem:[%s6664 + $0x118] sm:$0xf] %v6396
  %v6821 = vld [vmem:[%s6664 + $0x11c] sm:$0x1]
  %v6822 = vsel %vm6673, %v6397, %v6821
  %6823 = vst [vmem:[%s6664 + $0x11c] sm:$0x1] %v6822
  %v6824 = vld [vmem:[%s6664 + $0x120] sm:$0xf]
  %v6825 = vsel %vm6667, %v6404, %v6824
  %6826 = vst [vmem:[%s6664 + $0x120] sm:$0xf] %v6825
  %6827 = vst [vmem:[%s6664 + $0x124] sm:$0xf] %v6413
  %v6828 = vld [vmem:[%s6664 + $0x128] sm:$0x1]
  %v6829 = vsel %vm6673, %v6414, %v6828
  %6830 = vst [vmem:[%s6664 + $0x128] sm:$0x1] %v6829
  %v6831 = vld [vmem:[%s6664 + $0x12c] sm:$0xf]
  %v6832 = vsel %vm6667, %v6421, %v6831
  %6833 = vst [vmem:[%s6664 + $0x12c] sm:$0xf] %v6832
  %6834 = vst [vmem:[%s6664 + $0x130] sm:$0xf] %v6430
  %v6835 = vld [vmem:[%s6664 + $0x134] sm:$0x1]
  %v6836 = vsel %vm6673, %v6431, %v6835
  %6837 = vst [vmem:[%s6664 + $0x134] sm:$0x1] %v6836
  %v6838 = vld [vmem:[%s6664 + $0x138] sm:$0xf]
  %v6839 = vsel %vm6667, %v6438, %v6838
  %6840 = vst [vmem:[%s6664 + $0x138] sm:$0xf] %v6839
  %6841 = vst [vmem:[%s6664 + $0x13c] sm:$0xf] %v6447
  %v6842 = vld [vmem:[%s6664 + $0x140] sm:$0x1]
  %v6843 = vsel %vm6673, %v6448, %v6842
  %6844 = vst [vmem:[%s6664 + $0x140] sm:$0x1] %v6843
  %v6845 = vld [vmem:[%s6664 + $0x144] sm:$0xf]
  %v6846 = vsel %vm6667, %v6455, %v6845
  %6847 = vst [vmem:[%s6664 + $0x144] sm:$0xf] %v6846
  %6848 = vst [vmem:[%s6664 + $0x148] sm:$0xf] %v6464
  %v6849 = vld [vmem:[%s6664 + $0x14c] sm:$0x1]
  %v6850 = vsel %vm6673, %v6465, %v6849
  %6851 = vst [vmem:[%s6664 + $0x14c] sm:$0x1] %v6850
  %v6852 = vld [vmem:[%s6664 + $0x150] sm:$0xf]
  %v6853 = vsel %vm6667, %v6472, %v6852
  %6854 = vst [vmem:[%s6664 + $0x150] sm:$0xf] %v6853
  %6855 = vst [vmem:[%s6664 + $0x154] sm:$0xf] %v6481
  %v6856 = vld [vmem:[%s6664 + $0x158] sm:$0x1]
  %v6857 = vsel %vm6673, %v6482, %v6856
  %6858 = vst [vmem:[%s6664 + $0x158] sm:$0x1] %v6857
  %v6859 = vld [vmem:[%s6664 + $0x15c] sm:$0xf]
  %v6860 = vsel %vm6667, %v6489, %v6859
  %6861 = vst [vmem:[%s6664 + $0x15c] sm:$0xf] %v6860
  %6862 = vst [vmem:[%s6664 + $0x160] sm:$0xf] %v6498
  %v6863 = vld [vmem:[%s6664 + $0x164] sm:$0x1]
  %v6864 = vsel %vm6673, %v6499, %v6863
  %6865 = vst [vmem:[%s6664 + $0x164] sm:$0x1] %v6864
  %v6866 = vld [vmem:[%s6664 + $0x168] sm:$0xf]
  %v6867 = vsel %vm6667, %v6506, %v6866
  %6868 = vst [vmem:[%s6664 + $0x168] sm:$0xf] %v6867
  %6869 = vst [vmem:[%s6664 + $0x16c] sm:$0xf] %v6515
  %v6870 = vld [vmem:[%s6664 + $0x170] sm:$0x1]
  %v6871 = vsel %vm6673, %v6516, %v6870
  %6872 = vst [vmem:[%s6664 + $0x170] sm:$0x1] %v6871
  %v6873 = vld [vmem:[%s6664 + $0x174] sm:$0xf]
  %v6874 = vsel %vm6667, %v6523, %v6873
  %6875 = vst [vmem:[%s6664 + $0x174] sm:$0xf] %v6874
  %6876 = vst [vmem:[%s6664 + $0x178] sm:$0xf] %v6532
  %v6877 = vld [vmem:[%s6664 + $0x17c] sm:$0x1]
  %v6878 = vsel %vm6673, %v6533, %v6877
  %6879 = vst [vmem:[%s6664 + $0x17c] sm:$0x1] %v6878
  %v6880 = vld [vmem:[%s6664 + $0x180] sm:$0xf]
  %v6881 = vsel %vm6667, %v6540, %v6880
  %6882 = vst [vmem:[%s6664 + $0x180] sm:$0xf] %v6881
  %6883 = vst [vmem:[%s6664 + $0x184] sm:$0xf] %v6549
  %v6884 = vld [vmem:[%s6664 + $0x188] sm:$0x1]
  %v6885 = vsel %vm6673, %v6550, %v6884
  %6886 = vst [vmem:[%s6664 + $0x188] sm:$0x1] %v6885
  %v6887 = vld [vmem:[%s6664 + $0x18c] sm:$0xf]
  %v6888 = vsel %vm6667, %v6557, %v6887
  %6889 = vst [vmem:[%s6664 + $0x18c] sm:$0xf] %v6888
  %6890 = vst [vmem:[%s6664 + $0x190] sm:$0xf] %v6566
  %v6891 = vld [vmem:[%s6664 + $0x194] sm:$0x1]
  %v6892 = vsel %vm6673, %v6567, %v6891
  %6893 = vst [vmem:[%s6664 + $0x194] sm:$0x1] %v6892
  %v6894 = vld [vmem:[#allocation2] sm:$0xf]
  %v6895 = vld [vmem:[#allocation2 + $0x4] sm:$0xf]
  %v6896 = vld [vmem:[#allocation2 + $0xc] sm:$0xf]
  %v6897 = vld [vmem:[#allocation2 + $0x10] sm:$0xf]
  %v6898 = vld [vmem:[#allocation2 + $0x18] sm:$0xf]
  %v6899 = vld [vmem:[#allocation2 + $0x1c] sm:$0xf]
  %v6900 = vld [vmem:[#allocation2 + $0x24] sm:$0xf]
  %v6901 = vld [vmem:[#allocation2 + $0x28] sm:$0xf]
  %v6902 = vld [vmem:[#allocation2 + $0x30] sm:$0xf]
  %v6903 = vld [vmem:[#allocation2 + $0x34] sm:$0xf]
  %v6904 = vld [vmem:[#allocation2 + $0x3c] sm:$0xf]
  %v6905 = vld [vmem:[#allocation2 + $0x40] sm:$0xf]
  %v6906 = vld [vmem:[#allocation2 + $0x48] sm:$0xf]
  %v6907 = vld [vmem:[#allocation2 + $0x4c] sm:$0xf]
  %v6908 = vld [vmem:[#allocation2 + $0x54] sm:$0xf]
  %v6909 = vld [vmem:[#allocation2 + $0x58] sm:$0xf]
  %v6910 = vld [vmem:[#allocation2 + $0x60] sm:$0xf]
  %v6911 = vld [vmem:[#allocation2 + $0x64] sm:$0xf]
  %v6912 = vld [vmem:[#allocation2 + $0x6c] sm:$0xf]
  %v6913 = vld [vmem:[#allocation2 + $0x70] sm:$0xf]
  %v6914 = vld [vmem:[#allocation2 + $0x78] sm:$0xf]
  %v6915 = vld [vmem:[#allocation2 + $0x7c] sm:$0xf]
  %v6916 = vld [vmem:[#allocation2 + $0x84] sm:$0xf]
  %v6917 = vld [vmem:[#allocation2 + $0x88] sm:$0xf]
  %v6918 = vld [vmem:[#allocation2 + $0x90] sm:$0xf]
  %v6919 = vld [vmem:[#allocation2 + $0x94] sm:$0xf]
  %v6920 = vld [vmem:[#allocation2 + $0x9c] sm:$0xf]
  %v6921 = vld [vmem:[#allocation2 + $0xa0] sm:$0xf]
  %v6922 = vld [vmem:[#allocation2 + $0xa8] sm:$0xf]
  %v6923 = vld [vmem:[#allocation2 + $0xac] sm:$0xf]
  %v6924 = vld [vmem:[#allocation2 + $0xb4] sm:$0xf]
  %v6925 = vld [vmem:[#allocation2 + $0xb8] sm:$0xf]
  %v6926 = vld [vmem:[#allocation2 + $0xd8] sm:$0xf]
  %v6927 = vld [vmem:[#allocation2 + $0xdc] sm:$0xf]
  %v6928 = vld [vmem:[#allocation2 + $0xe4] sm:$0xf]
  %v6929 = vld [vmem:[#allocation2 + $0xe8] sm:$0xf]
  %v6930 = vld [vmem:[#allocation2 + $0xf0] sm:$0xf]
  %v6931 = vld [vmem:[#allocation2 + $0xf4] sm:$0xf]
  %v6932 = vld [vmem:[#allocation2 + $0xfc] sm:$0xf]
  %v6933 = vld [vmem:[#allocation2 + $0x100] sm:$0xf]
  %v6934 = vld [vmem:[#allocation2 + $0x108] sm:$0xf]
  %v6935 = vld [vmem:[#allocation2 + $0x10c] sm:$0xf]
  %v6936 = vld [vmem:[#allocation2 + $0x114] sm:$0xf]
  %v6937 = vld [vmem:[#allocation2 + $0x118] sm:$0xf]
  %v6938 = vld [vmem:[#allocation2 + $0x120] sm:$0xf]
  %v6939 = vld [vmem:[#allocation2 + $0x124] sm:$0xf]
  %v6940 = vld [vmem:[#allocation2 + $0x12c] sm:$0xf]
  %v6941 = vld [vmem:[#allocation2 + $0x130] sm:$0xf]
  %v6942 = vld [vmem:[#allocation2 + $0x138] sm:$0xf]
  %v6943 = vld [vmem:[#allocation2 + $0x13c] sm:$0xf]
  %v6944 = vld [vmem:[#allocation2 + $0x144] sm:$0xf]
  %v6945 = vld [vmem:[#allocation2 + $0x148] sm:$0xf]
  %v6946 = vld [vmem:[#allocation2 + $0x150] sm:$0xf]
  %v6947 = vld [vmem:[#allocation2 + $0x154] sm:$0xf]
  %v6948 = vld [vmem:[#allocation2 + $0x15c] sm:$0xf]
  %v6949 = vld [vmem:[#allocation2 + $0x160] sm:$0xf]
  %v6950 = vld [vmem:[#allocation2 + $0x168] sm:$0xf]
  %v6951 = vld [vmem:[#allocation2 + $0x16c] sm:$0xf]
  %v6952 = vld [vmem:[#allocation2 + $0x174] sm:$0xf]
  %v6953 = vld [vmem:[#allocation2 + $0x178] sm:$0xf]
  %v6954 = vld [vmem:[#allocation2 + $0x180] sm:$0xf]
  %v6955 = vld [vmem:[#allocation2 + $0x184] sm:$0xf]
  %v6956 = vld [vmem:[#allocation2 + $0x18c] sm:$0xf]
  %v6957 = vld [vmem:[#allocation2 + $0x190] sm:$0xf]
  %vm6958 = vmand %vm93, %vm1031
  %v6959 = vsel %vm6958, 1, 0
  %vm6960 = vcmp.eq.s32.totalorder %v6959, 1
  %vm6961 = vmpackc.low %vm6960, %vm6960
  %v6962 = vsel %vm6961, %v6894, 0
  %v6963 = vsel %vm6961, %v6895, 0
  %v6964 = vsel %vm6961, %v6896, 0
  %v6965 = vsel %vm6961, %v6897, 0
  %v6966 = vsel %vm6961, %v6898, 0
  %v6967 = vsel %vm6961, %v6899, 0
  %v6968 = vsel %vm6961, %v6900, 0
  %v6969 = vsel %vm6961, %v6901, 0
  %v6970 = vsel %vm6961, %v6902, 0
  %v6971 = vsel %vm6961, %v6903, 0
  %v6972 = vsel %vm6961, %v6904, 0
  %v6973 = vsel %vm6961, %v6905, 0
  %v6974 = vsel %vm6961, %v6906, 0
  %v6975 = vsel %vm6961, %v6907, 0
  %v6976 = vsel %vm6961, %v6908, 0
  %v6977 = vsel %vm6961, %v6909, 0
  %v6978 = vsel %vm6961, %v6910, 0
  %v6979 = vsel %vm6961, %v6911, 0
  %v6980 = vsel %vm6961, %v6912, 0
  %v6981 = vsel %vm6961, %v6913, 0
  %v6982 = vsel %vm6961, %v6914, 0
  %v6983 = vsel %vm6961, %v6915, 0
  %v6984 = vsel %vm6961, %v6916, 0
  %v6985 = vsel %vm6961, %v6917, 0
  %v6986 = vsel %vm6961, %v6918, 0
  %v6987 = vsel %vm6961, %v6919, 0
  %v6988 = vsel %vm6961, %v6920, 0
  %v6989 = vsel %vm6961, %v6921, 0
  %v6990 = vsel %vm6961, %v6922, 0
  %v6991 = vsel %vm6961, %v6923, 0
  %v6992 = vsel %vm6961, %v6924, 0
  %v6993 = vsel %vm6961, %v6925, 0
  %v6994 = vsel %vm6961, %v6926, 0
  %v6995 = vsel %vm6961, %v6927, 0
  %v6996 = vsel %vm6961, %v6928, 0
  %v6997 = vsel %vm6961, %v6929, 0
  %v6998 = vsel %vm6961, %v6930, 0
  %v6999 = vsel %vm6961, %v6931, 0
  %v7000 = vsel %vm6961, %v6932, 0
  %v7001 = vsel %vm6961, %v6933, 0
  %v7002 = vsel %vm6961, %v6934, 0
  %v7003 = vsel %vm6961, %v6935, 0
  %v7004 = vsel %vm6961, %v6936, 0
  %v7005 = vsel %vm6961, %v6937, 0
  %v7006 = vsel %vm6961, %v6938, 0
  %v7007 = vsel %vm6961, %v6939, 0
  %v7008 = vsel %vm6961, %v6940, 0
  %v7009 = vsel %vm6961, %v6941, 0
  %v7010 = vsel %vm6961, %v6942, 0
  %v7011 = vsel %vm6961, %v6943, 0
  %v7012 = vsel %vm6961, %v6944, 0
  %v7013 = vsel %vm6961, %v6945, 0
  %v7014 = vsel %vm6961, %v6946, 0
  %v7015 = vsel %vm6961, %v6947, 0
  %v7016 = vsel %vm6961, %v6948, 0
  %v7017 = vsel %vm6961, %v6949, 0
  %v7018 = vsel %vm6961, %v6950, 0
  %v7019 = vsel %vm6961, %v6951, 0
  %v7020 = vsel %vm6961, %v6952, 0
  %v7021 = vsel %vm6961, %v6953, 0
  %v7022 = vsel %vm6961, %v6954, 0
  %v7023 = vsel %vm6961, %v6955, 0
  %v7024 = vsel %vm6961, %v6956, 0
  %v7025 = vsel %vm6961, %v6957, 0
  %v7026 = vld [vmem:[#allocation2 + $0x8] sm:$0x1]
  %v7027 = vld [vmem:[#allocation2 + $0x14] sm:$0x1]
  %v7028 = vld [vmem:[#allocation2 + $0x20] sm:$0x1]
  %v7029 = vld [vmem:[#allocation2 + $0x2c] sm:$0x1]
  %v7030 = vld [vmem:[#allocation2 + $0x38] sm:$0x1]
  %v7031 = vld [vmem:[#allocation2 + $0x44] sm:$0x1]
  %v7032 = vld [vmem:[#allocation2 + $0x50] sm:$0x1]
  %v7033 = vld [vmem:[#allocation2 + $0x5c] sm:$0x1]
  %v7034 = vld [vmem:[#allocation2 + $0x68] sm:$0x1]
  %v7035 = vld [vmem:[#allocation2 + $0x74] sm:$0x1]
  %v7036 = vld [vmem:[#allocation2 + $0x80] sm:$0x1]
  %v7037 = vld [vmem:[#allocation2 + $0x8c] sm:$0x1]
  %v7038 = vld [vmem:[#allocation2 + $0x98] sm:$0x1]
  %v7039 = vld [vmem:[#allocation2 + $0xa4] sm:$0x1]
  %v7040 = vld [vmem:[#allocation2 + $0xb0] sm:$0x1]
  %v7041 = vld [vmem:[#allocation2 + $0xbc] sm:$0x1]
  %v7042 = vld [vmem:[#allocation2 + $0xe0] sm:$0x1]
  %v7043 = vld [vmem:[#allocation2 + $0xec] sm:$0x1]
  %v7044 = vld [vmem:[#allocation2 + $0xf8] sm:$0x1]
  %v7045 = vld [vmem:[#allocation2 + $0x104] sm:$0x1]
  %v7046 = vld [vmem:[#allocation2 + $0x110] sm:$0x1]
  %v7047 = vld [vmem:[#allocation2 + $0x11c] sm:$0x1]
  %v7048 = vld [vmem:[#allocation2 + $0x128] sm:$0x1]
  %v7049 = vld [vmem:[#allocation2 + $0x134] sm:$0x1]
  %v7050 = vld [vmem:[#allocation2 + $0x140] sm:$0x1]
  %v7051 = vld [vmem:[#allocation2 + $0x14c] sm:$0x1]
  %v7052 = vld [vmem:[#allocation2 + $0x158] sm:$0x1]
  %v7053 = vld [vmem:[#allocation2 + $0x164] sm:$0x1]
  %v7054 = vld [vmem:[#allocation2 + $0x170] sm:$0x1]
  %v7055 = vld [vmem:[#allocation2 + $0x17c] sm:$0x1]
  %v7056 = vld [vmem:[#allocation2 + $0x188] sm:$0x1]
  %v7057 = vld [vmem:[#allocation2 + $0x194] sm:$0x1]
  %v7059 = vshrl.u32 %v6894, 16
  %v7061 = vrot.slane %v7059, 4
  %v7062 = vshll.u32 %v6894, 16
  %v7064 = vrot.slane %v7062, 5
  %v7065 = vor.u32 %v7061, %v7064
  %v7066 = vrot.slane %v7065, 4
  %v7068 = vshll.u32 %v6895, 16
  %v7070 = vrot.slane %v7068, 5
  %v7071 = vsel %vm197, %v7066, %v7070
  %v7072 = vshrl.u32 %v6895, 16
  %v7074 = vrot.slane %v7072, 4
  %v7075 = vor.u32 %v7074, %v7070
  %v7076 = vrot.slane %v7075, 4
  %v7078 = vshll.u32 %v7026, 16
  %v7080 = vrot.slane %v7078, 5
  %v7081 = vsel %vm197, %v7076, %v7080
  %v7083 = vshrl.u32 %v6896, 16
  %v7085 = vrot.slane %v7083, 4
  %v7086 = vshll.u32 %v6896, 16
  %v7088 = vrot.slane %v7086, 5
  %v7089 = vor.u32 %v7085, %v7088
  %v7090 = vrot.slane %v7089, 4
  %v7092 = vshll.u32 %v6897, 16
  %v7094 = vrot.slane %v7092, 5
  %v7095 = vsel %vm197, %v7090, %v7094
  %v7096 = vshrl.u32 %v6897, 16
  %v7098 = vrot.slane %v7096, 4
  %v7099 = vor.u32 %v7098, %v7094
  %v7100 = vrot.slane %v7099, 4
  %v7102 = vshll.u32 %v7027, 16
  %v7104 = vrot.slane %v7102, 5
  %v7105 = vsel %vm197, %v7100, %v7104
  %v7107 = vshrl.u32 %v6898, 16
  %v7109 = vrot.slane %v7107, 4
  %v7110 = vshll.u32 %v6898, 16
  %v7112 = vrot.slane %v7110, 5
  %v7113 = vor.u32 %v7109, %v7112
  %v7114 = vrot.slane %v7113, 4
  %v7116 = vshll.u32 %v6899, 16
  %v7118 = vrot.slane %v7116, 5
  %v7119 = vsel %vm197, %v7114, %v7118
  %v7120 = vshrl.u32 %v6899, 16
  %v7122 = vrot.slane %v7120, 4
  %v7123 = vor.u32 %v7122, %v7118
  %v7124 = vrot.slane %v7123, 4
  %v7126 = vshll.u32 %v7028, 16
  %v7128 = vrot.slane %v7126, 5
  %v7129 = vsel %vm197, %v7124, %v7128
  %v7131 = vshrl.u32 %v6900, 16
  %v7133 = vrot.slane %v7131, 4
  %v7134 = vshll.u32 %v6900, 16
  %v7136 = vrot.slane %v7134, 5
  %v7137 = vor.u32 %v7133, %v7136
  %v7138 = vrot.slane %v7137, 4
  %v7140 = vshll.u32 %v6901, 16
  %v7142 = vrot.slane %v7140, 5
  %v7143 = vsel %vm197, %v7138, %v7142
  %v7144 = vshrl.u32 %v6901, 16
  %v7146 = vrot.slane %v7144, 4
  %v7147 = vor.u32 %v7146, %v7142
  %v7148 = vrot.slane %v7147, 4
  %v7150 = vshll.u32 %v7029, 16
  %v7152 = vrot.slane %v7150, 5
  %v7153 = vsel %vm197, %v7148, %v7152
  %v7155 = vshrl.u32 %v6902, 16
  %v7157 = vrot.slane %v7155, 4
  %v7158 = vshll.u32 %v6902, 16
  %v7160 = vrot.slane %v7158, 5
  %v7161 = vor.u32 %v7157, %v7160
  %v7162 = vrot.slane %v7161, 4
  %v7164 = vshll.u32 %v6903, 16
  %v7166 = vrot.slane %v7164, 5
  %v7167 = vsel %vm197, %v7162, %v7166
  %v7168 = vshrl.u32 %v6903, 16
  %v7170 = vrot.slane %v7168, 4
  %v7171 = vor.u32 %v7170, %v7166
  %v7172 = vrot.slane %v7171, 4
  %v7174 = vshll.u32 %v7030, 16
  %v7176 = vrot.slane %v7174, 5
  %v7177 = vsel %vm197, %v7172, %v7176
  %v7179 = vshrl.u32 %v6904, 16
  %v7181 = vrot.slane %v7179, 4
  %v7182 = vshll.u32 %v6904, 16
  %v7184 = vrot.slane %v7182, 5
  %v7185 = vor.u32 %v7181, %v7184
  %v7186 = vrot.slane %v7185, 4
  %v7188 = vshll.u32 %v6905, 16
  %v7190 = vrot.slane %v7188, 5
  %v7191 = vsel %vm197, %v7186, %v7190
  %v7192 = vshrl.u32 %v6905, 16
  %v7194 = vrot.slane %v7192, 4
  %v7195 = vor.u32 %v7194, %v7190
  %v7196 = vrot.slane %v7195, 4
  %v7198 = vshll.u32 %v7031, 16
  %v7200 = vrot.slane %v7198, 5
  %v7201 = vsel %vm197, %v7196, %v7200
  %v7203 = vshrl.u32 %v6906, 16
  %v7205 = vrot.slane %v7203, 4
  %v7206 = vshll.u32 %v6906, 16
  %v7208 = vrot.slane %v7206, 5
  %v7209 = vor.u32 %v7205, %v7208
  %v7210 = vrot.slane %v7209, 4
  %v7212 = vshll.u32 %v6907, 16
  %v7214 = vrot.slane %v7212, 5
  %v7215 = vsel %vm197, %v7210, %v7214
  %v7216 = vshrl.u32 %v6907, 16
  %v7218 = vrot.slane %v7216, 4
  %v7219 = vor.u32 %v7218, %v7214
  %v7220 = vrot.slane %v7219, 4
  %v7222 = vshll.u32 %v7032, 16
  %v7224 = vrot.slane %v7222, 5
  %v7225 = vsel %vm197, %v7220, %v7224
  %v7227 = vshrl.u32 %v6908, 16
  %v7229 = vrot.slane %v7227, 4
  %v7230 = vshll.u32 %v6908, 16
  %v7232 = vrot.slane %v7230, 5
  %v7233 = vor.u32 %v7229, %v7232
  %v7234 = vrot.slane %v7233, 4
  %v7236 = vshll.u32 %v6909, 16
  %v7238 = vrot.slane %v7236, 5
  %v7239 = vsel %vm197, %v7234, %v7238
  %v7240 = vshrl.u32 %v6909, 16
  %v7242 = vrot.slane %v7240, 4
  %v7243 = vor.u32 %v7242, %v7238
  %v7244 = vrot.slane %v7243, 4
  %v7246 = vshll.u32 %v7033, 16
  %v7248 = vrot.slane %v7246, 5
  %v7249 = vsel %vm197, %v7244, %v7248
  %v7251 = vshrl.u32 %v6910, 16
  %v7253 = vrot.slane %v7251, 4
  %v7254 = vshll.u32 %v6910, 16
  %v7256 = vrot.slane %v7254, 5
  %v7257 = vor.u32 %v7253, %v7256
  %v7258 = vrot.slane %v7257, 4
  %v7260 = vshll.u32 %v6911, 16
  %v7262 = vrot.slane %v7260, 5
  %v7263 = vsel %vm197, %v7258, %v7262
  %v7264 = vshrl.u32 %v6911, 16
  %v7266 = vrot.slane %v7264, 4
  %v7267 = vor.u32 %v7266, %v7262
  %v7268 = vrot.slane %v7267, 4
  %v7270 = vshll.u32 %v7034, 16
  %v7272 = vrot.slane %v7270, 5
  %v7273 = vsel %vm197, %v7268, %v7272
  %v7275 = vshrl.u32 %v6912, 16
  %v7277 = vrot.slane %v7275, 4
  %v7278 = vshll.u32 %v6912, 16
  %v7280 = vrot.slane %v7278, 5
  %v7281 = vor.u32 %v7277, %v7280
  %v7282 = vrot.slane %v7281, 4
  %v7284 = vshll.u32 %v6913, 16
  %v7286 = vrot.slane %v7284, 5
  %v7287 = vsel %vm197, %v7282, %v7286
  %v7288 = vshrl.u32 %v6913, 16
  %v7290 = vrot.slane %v7288, 4
  %v7291 = vor.u32 %v7290, %v7286
  %v7292 = vrot.slane %v7291, 4
  %v7294 = vshll.u32 %v7035, 16
  %v7296 = vrot.slane %v7294, 5
  %v7297 = vsel %vm197, %v7292, %v7296
  %v7299 = vshrl.u32 %v6914, 16
  %v7301 = vrot.slane %v7299, 4
  %v7302 = vshll.u32 %v6914, 16
  %v7304 = vrot.slane %v7302, 5
  %v7305 = vor.u32 %v7301, %v7304
  %v7306 = vrot.slane %v7305, 4
  %v7308 = vshll.u32 %v6915, 16
  %v7310 = vrot.slane %v7308, 5
  %v7311 = vsel %vm197, %v7306, %v7310
  %v7312 = vshrl.u32 %v6915, 16
  %v7314 = vrot.slane %v7312, 4
  %v7315 = vor.u32 %v7314, %v7310
  %v7316 = vrot.slane %v7315, 4
  %v7318 = vshll.u32 %v7036, 16
  %v7320 = vrot.slane %v7318, 5
  %v7321 = vsel %vm197, %v7316, %v7320
  %v7323 = vshrl.u32 %v6916, 16
  %v7325 = vrot.slane %v7323, 4
  %v7326 = vshll.u32 %v6916, 16
  %v7328 = vrot.slane %v7326, 5
  %v7329 = vor.u32 %v7325, %v7328
  %v7330 = vrot.slane %v7329, 4
  %v7332 = vshll.u32 %v6917, 16
  %v7334 = vrot.slane %v7332, 5
  %v7335 = vsel %vm197, %v7330, %v7334
  %v7336 = vshrl.u32 %v6917, 16
  %v7338 = vrot.slane %v7336, 4
  %v7339 = vor.u32 %v7338, %v7334
  %v7340 = vrot.slane %v7339, 4
  %v7342 = vshll.u32 %v7037, 16
  %v7344 = vrot.slane %v7342, 5
  %v7345 = vsel %vm197, %v7340, %v7344
  %v7347 = vshrl.u32 %v6918, 16
  %v7349 = vrot.slane %v7347, 4
  %v7350 = vshll.u32 %v6918, 16
  %v7352 = vrot.slane %v7350, 5
  %v7353 = vor.u32 %v7349, %v7352
  %v7354 = vrot.slane %v7353, 4
  %v7356 = vshll.u32 %v6919, 16
  %v7358 = vrot.slane %v7356, 5
  %v7359 = vsel %vm197, %v7354, %v7358
  %v7360 = vshrl.u32 %v6919, 16
  %v7362 = vrot.slane %v7360, 4
  %v7363 = vor.u32 %v7362, %v7358
  %v7364 = vrot.slane %v7363, 4
  %v7366 = vshll.u32 %v7038, 16
  %v7368 = vrot.slane %v7366, 5
  %v7369 = vsel %vm197, %v7364, %v7368
  %v7371 = vshrl.u32 %v6920, 16
  %v7373 = vrot.slane %v7371, 4
  %v7374 = vshll.u32 %v6920, 16
  %v7376 = vrot.slane %v7374, 5
  %v7377 = vor.u32 %v7373, %v7376
  %v7378 = vrot.slane %v7377, 4
  %v7380 = vshll.u32 %v6921, 16
  %v7382 = vrot.slane %v7380, 5
  %v7383 = vsel %vm197, %v7378, %v7382
  %v7384 = vshrl.u32 %v6921, 16
  %v7386 = vrot.slane %v7384, 4
  %v7387 = vor.u32 %v7386, %v7382
  %v7388 = vrot.slane %v7387, 4
  %v7390 = vshll.u32 %v7039, 16
  %v7392 = vrot.slane %v7390, 5
  %v7393 = vsel %vm197, %v7388, %v7392
  %v7395 = vshrl.u32 %v6922, 16
  %v7397 = vrot.slane %v7395, 4
  %v7398 = vshll.u32 %v6922, 16
  %v7400 = vrot.slane %v7398, 5
  %v7401 = vor.u32 %v7397, %v7400
  %v7402 = vrot.slane %v7401, 4
  %v7404 = vshll.u32 %v6923, 16
  %v7406 = vrot.slane %v7404, 5
  %v7407 = vsel %vm197, %v7402, %v7406
  %v7408 = vshrl.u32 %v6923, 16
  %v7410 = vrot.slane %v7408, 4
  %v7411 = vor.u32 %v7410, %v7406
  %v7412 = vrot.slane %v7411, 4
  %v7414 = vshll.u32 %v7040, 16
  %v7416 = vrot.slane %v7414, 5
  %v7417 = vsel %vm197, %v7412, %v7416
  %v7419 = vshrl.u32 %v6924, 16
  %v7421 = vrot.slane %v7419, 4
  %v7422 = vshll.u32 %v6924, 16
  %v7424 = vrot.slane %v7422, 5
  %v7425 = vor.u32 %v7421, %v7424
  %v7426 = vrot.slane %v7425, 4
  %v7428 = vshll.u32 %v6925, 16
  %v7430 = vrot.slane %v7428, 5
  %v7431 = vsel %vm197, %v7426, %v7430
  %v7432 = vshrl.u32 %v6925, 16
  %v7434 = vrot.slane %v7432, 4
  %v7435 = vor.u32 %v7434, %v7430
  %v7436 = vrot.slane %v7435, 4
  %v7438 = vshll.u32 %v7041, 16
  %v7440 = vrot.slane %v7438, 5
  %v7441 = vsel %vm197, %v7436, %v7440
  %v7443 = vshrl.u32 %v6926, 16
  %v7445 = vrot.slane %v7443, 4
  %v7446 = vshll.u32 %v6926, 16
  %v7448 = vrot.slane %v7446, 5
  %v7449 = vor.u32 %v7445, %v7448
  %v7450 = vrot.slane %v7449, 4
  %v7452 = vshll.u32 %v6927, 16
  %v7454 = vrot.slane %v7452, 5
  %v7455 = vsel %vm197, %v7450, %v7454
  %v7456 = vshrl.u32 %v6927, 16
  %v7458 = vrot.slane %v7456, 4
  %v7459 = vor.u32 %v7458, %v7454
  %v7460 = vrot.slane %v7459, 4
  %v7462 = vshll.u32 %v7042, 16
  %v7464 = vrot.slane %v7462, 5
  %v7465 = vsel %vm197, %v7460, %v7464
  %v7467 = vshrl.u32 %v6928, 16
  %v7469 = vrot.slane %v7467, 4
  %v7470 = vshll.u32 %v6928, 16
  %v7472 = vrot.slane %v7470, 5
  %v7473 = vor.u32 %v7469, %v7472
  %v7474 = vrot.slane %v7473, 4
  %v7476 = vshll.u32 %v6929, 16
  %v7478 = vrot.slane %v7476, 5
  %v7479 = vsel %vm197, %v7474, %v7478
  %v7480 = vshrl.u32 %v6929, 16
  %v7482 = vrot.slane %v7480, 4
  %v7483 = vor.u32 %v7482, %v7478
  %v7484 = vrot.slane %v7483, 4
  %v7486 = vshll.u32 %v7043, 16
  %v7488 = vrot.slane %v7486, 5
  %v7489 = vsel %vm197, %v7484, %v7488
  %v7491 = vshrl.u32 %v6930, 16
  %v7493 = vrot.slane %v7491, 4
  %v7494 = vshll.u32 %v6930, 16
  %v7496 = vrot.slane %v7494, 5
  %v7497 = vor.u32 %v7493, %v7496
  %v7498 = vrot.slane %v7497, 4
  %v7500 = vshll.u32 %v6931, 16
  %v7502 = vrot.slane %v7500, 5
  %v7503 = vsel %vm197, %v7498, %v7502
  %v7504 = vshrl.u32 %v6931, 16
  %v7506 = vrot.slane %v7504, 4
  %v7507 = vor.u32 %v7506, %v7502
  %v7508 = vrot.slane %v7507, 4
  %v7510 = vshll.u32 %v7044, 16
  %v7512 = vrot.slane %v7510, 5
  %v7513 = vsel %vm197, %v7508, %v7512
  %v7515 = vshrl.u32 %v6932, 16
  %v7517 = vrot.slane %v7515, 4
  %v7518 = vshll.u32 %v6932, 16
  %v7520 = vrot.slane %v7518, 5
  %v7521 = vor.u32 %v7517, %v7520
  %v7522 = vrot.slane %v7521, 4
  %v7524 = vshll.u32 %v6933, 16
  %v7526 = vrot.slane %v7524, 5
  %v7527 = vsel %vm197, %v7522, %v7526
  %v7528 = vshrl.u32 %v6933, 16
  %v7530 = vrot.slane %v7528, 4
  %v7531 = vor.u32 %v7530, %v7526
  %v7532 = vrot.slane %v7531, 4
  %v7534 = vshll.u32 %v7045, 16
  %v7536 = vrot.slane %v7534, 5
  %v7537 = vsel %vm197, %v7532, %v7536
  %v7539 = vshrl.u32 %v6934, 16
  %v7541 = vrot.slane %v7539, 4
  %v7542 = vshll.u32 %v6934, 16
  %v7544 = vrot.slane %v7542, 5
  %v7545 = vor.u32 %v7541, %v7544
  %v7546 = vrot.slane %v7545, 4
  %v7548 = vshll.u32 %v6935, 16
  %v7550 = vrot.slane %v7548, 5
  %v7551 = vsel %vm197, %v7546, %v7550
  %v7552 = vshrl.u32 %v6935, 16
  %v7554 = vrot.slane %v7552, 4
  %v7555 = vor.u32 %v7554, %v7550
  %v7556 = vrot.slane %v7555, 4
  %v7558 = vshll.u32 %v7046, 16
  %v7560 = vrot.slane %v7558, 5
  %v7561 = vsel %vm197, %v7556, %v7560
  %v7563 = vshrl.u32 %v6936, 16
  %v7565 = vrot.slane %v7563, 4
  %v7566 = vshll.u32 %v6936, 16
  %v7568 = vrot.slane %v7566, 5
  %v7569 = vor.u32 %v7565, %v7568
  %v7570 = vrot.slane %v7569, 4
  %v7572 = vshll.u32 %v6937, 16
  %v7574 = vrot.slane %v7572, 5
  %v7575 = vsel %vm197, %v7570, %v7574
  %v7576 = vshrl.u32 %v6937, 16
  %v7578 = vrot.slane %v7576, 4
  %v7579 = vor.u32 %v7578, %v7574
  %v7580 = vrot.slane %v7579, 4
  %v7582 = vshll.u32 %v7047, 16
  %v7584 = vrot.slane %v7582, 5
  %v7585 = vsel %vm197, %v7580, %v7584
  %v7587 = vshrl.u32 %v6938, 16
  %v7589 = vrot.slane %v7587, 4
  %v7590 = vshll.u32 %v6938, 16
  %v7592 = vrot.slane %v7590, 5
  %v7593 = vor.u32 %v7589, %v7592
  %v7594 = vrot.slane %v7593, 4
  %v7596 = vshll.u32 %v6939, 16
  %v7598 = vrot.slane %v7596, 5
  %v7599 = vsel %vm197, %v7594, %v7598
  %v7600 = vshrl.u32 %v6939, 16
  %v7602 = vrot.slane %v7600, 4
  %v7603 = vor.u32 %v7602, %v7598
  %v7604 = vrot.slane %v7603, 4
  %v7606 = vshll.u32 %v7048, 16
  %v7608 = vrot.slane %v7606, 5
  %v7609 = vsel %vm197, %v7604, %v7608
  %v7611 = vshrl.u32 %v6940, 16
  %v7613 = vrot.slane %v7611, 4
  %v7614 = vshll.u32 %v6940, 16
  %v7616 = vrot.slane %v7614, 5
  %v7617 = vor.u32 %v7613, %v7616
  %v7618 = vrot.slane %v7617, 4
  %v7620 = vshll.u32 %v6941, 16
  %v7622 = vrot.slane %v7620, 5
  %v7623 = vsel %vm197, %v7618, %v7622
  %v7624 = vshrl.u32 %v6941, 16
  %v7626 = vrot.slane %v7624, 4
  %v7627 = vor.u32 %v7626, %v7622
  %v7628 = vrot.slane %v7627, 4
  %v7630 = vshll.u32 %v7049, 16
  %v7632 = vrot.slane %v7630, 5
  %v7633 = vsel %vm197, %v7628, %v7632
  %v7635 = vshrl.u32 %v6942, 16
  %v7637 = vrot.slane %v7635, 4
  %v7638 = vshll.u32 %v6942, 16
  %v7640 = vrot.slane %v7638, 5
  %v7641 = vor.u32 %v7637, %v7640
  %v7642 = vrot.slane %v7641, 4
  %v7644 = vshll.u32 %v6943, 16
  %v7646 = vrot.slane %v7644, 5
  %v7647 = vsel %vm197, %v7642, %v7646
  %v7648 = vshrl.u32 %v6943, 16
  %v7650 = vrot.slane %v7648, 4
  %v7651 = vor.u32 %v7650, %v7646
  %v7652 = vrot.slane %v7651, 4
  %v7654 = vshll.u32 %v7050, 16
  %v7656 = vrot.slane %v7654, 5
  %v7657 = vsel %vm197, %v7652, %v7656
  %v7659 = vshrl.u32 %v6944, 16
  %v7661 = vrot.slane %v7659, 4
  %v7662 = vshll.u32 %v6944, 16
  %v7664 = vrot.slane %v7662, 5
  %v7665 = vor.u32 %v7661, %v7664
  %v7666 = vrot.slane %v7665, 4
  %v7668 = vshll.u32 %v6945, 16
  %v7670 = vrot.slane %v7668, 5
  %v7671 = vsel %vm197, %v7666, %v7670
  %v7672 = vshrl.u32 %v6945, 16
  %v7674 = vrot.slane %v7672, 4
  %v7675 = vor.u32 %v7674, %v7670
  %v7676 = vrot.slane %v7675, 4
  %v7678 = vshll.u32 %v7051, 16
  %v7680 = vrot.slane %v7678, 5
  %v7681 = vsel %vm197, %v7676, %v7680
  %v7683 = vshrl.u32 %v6946, 16
  %v7685 = vrot.slane %v7683, 4
  %v7686 = vshll.u32 %v6946, 16
  %v7688 = vrot.slane %v7686, 5
  %v7689 = vor.u32 %v7685, %v7688
  %v7690 = vrot.slane %v7689, 4
  %v7692 = vshll.u32 %v6947, 16
  %v7694 = vrot.slane %v7692, 5
  %v7695 = vsel %vm197, %v7690, %v7694
  %v7696 = vshrl.u32 %v6947, 16
  %v7698 = vrot.slane %v7696, 4
  %v7699 = vor.u32 %v7698, %v7694
  %v7700 = vrot.slane %v7699, 4
  %v7702 = vshll.u32 %v7052, 16
  %v7704 = vrot.slane %v7702, 5
  %v7705 = vsel %vm197, %v7700, %v7704
  %v7707 = vshrl.u32 %v6948, 16
  %v7709 = vrot.slane %v7707, 4
  %v7710 = vshll.u32 %v6948, 16
  %v7712 = vrot.slane %v7710, 5
  %v7713 = vor.u32 %v7709, %v7712
  %v7714 = vrot.slane %v7713, 4
  %v7716 = vshll.u32 %v6949, 16
  %v7718 = vrot.slane %v7716, 5
  %v7719 = vsel %vm197, %v7714, %v7718
  %v7720 = vshrl.u32 %v6949, 16
  %v7722 = vrot.slane %v7720, 4
  %v7723 = vor.u32 %v7722, %v7718
  %v7724 = vrot.slane %v7723, 4
  %v7726 = vshll.u32 %v7053, 16
  %v7728 = vrot.slane %v7726, 5
  %v7729 = vsel %vm197, %v7724, %v7728
  %v7731 = vshrl.u32 %v6950, 16
  %v7733 = vrot.slane %v7731, 4
  %v7734 = vshll.u32 %v6950, 16
  %v7736 = vrot.slane %v7734, 5
  %v7737 = vor.u32 %v7733, %v7736
  %v7738 = vrot.slane %v7737, 4
  %v7740 = vshll.u32 %v6951, 16
  %v7742 = vrot.slane %v7740, 5
  %v7743 = vsel %vm197, %v7738, %v7742
  %v7744 = vshrl.u32 %v6951, 16
  %v7746 = vrot.slane %v7744, 4
  %v7747 = vor.u32 %v7746, %v7742
  %v7748 = vrot.slane %v7747, 4
  %v7750 = vshll.u32 %v7054, 16
  %v7752 = vrot.slane %v7750, 5
  %v7753 = vsel %vm197, %v7748, %v7752
  %v7755 = vshrl.u32 %v6952, 16
  %v7757 = vrot.slane %v7755, 4
  %v7758 = vshll.u32 %v6952, 16
  %v7760 = vrot.slane %v7758, 5
  %v7761 = vor.u32 %v7757, %v7760
  %v7762 = vrot.slane %v7761, 4
  %v7764 = vshll.u32 %v6953, 16
  %v7766 = vrot.slane %v7764, 5
  %v7767 = vsel %vm197, %v7762, %v7766
  %v7768 = vshrl.u32 %v6953, 16
  %v7770 = vrot.slane %v7768, 4
  %v7771 = vor.u32 %v7770, %v7766
  %v7772 = vrot.slane %v7771, 4
  %v7774 = vshll.u32 %v7055, 16
  %v7776 = vrot.slane %v7774, 5
  %v7777 = vsel %vm197, %v7772, %v7776
  %v7779 = vshrl.u32 %v6954, 16
  %v7781 = vrot.slane %v7779, 4
  %v7782 = vshll.u32 %v6954, 16
  %v7784 = vrot.slane %v7782, 5
  %v7785 = vor.u32 %v7781, %v7784
  %v7786 = vrot.slane %v7785, 4
  %v7788 = vshll.u32 %v6955, 16
  %v7790 = vrot.slane %v7788, 5
  %v7791 = vsel %vm197, %v7786, %v7790
  %v7792 = vshrl.u32 %v6955, 16
  %v7794 = vrot.slane %v7792, 4
  %v7795 = vor.u32 %v7794, %v7790
  %v7796 = vrot.slane %v7795, 4
  %v7798 = vshll.u32 %v7056, 16
  %v7800 = vrot.slane %v7798, 5
  %v7801 = vsel %vm197, %v7796, %v7800
  %v7803 = vshrl.u32 %v6956, 16
  %v7805 = vrot.slane %v7803, 4
  %v7806 = vshll.u32 %v6956, 16
  %v7808 = vrot.slane %v7806, 5
  %v7809 = vor.u32 %v7805, %v7808
  %v7810 = vrot.slane %v7809, 4
  %v7812 = vshll.u32 %v6957, 16
  %v7814 = vrot.slane %v7812, 5
  %v7815 = vsel %vm197, %v7810, %v7814
  %v7816 = vshrl.u32 %v6957, 16
  %v7818 = vrot.slane %v7816, 4
  %v7819 = vor.u32 %v7818, %v7814
  %v7820 = vrot.slane %v7819, 4
  %v7822 = vshll.u32 %v7057, 16
  %v7824 = vrot.slane %v7822, 5
  %v7825 = vsel %vm197, %v7820, %v7824
  %vm7890 = vmand %vm1519, %vm1655
  %v7891 = vsel %vm7890, 1, 0
  %vm7892 = vcmp.eq.s32.totalorder %v7891, 1
  %vm7893 = vmpackc.low %vm7892, %vm7892
  %v7894 = vsel %vm7893, %v7071, %v6962
  %v7895 = vsel %vm7893, %v7081, %v6963
  %v7896 = vsel %vm7893, %v7095, %v6964
  %v7897 = vsel %vm7893, %v7105, %v6965
  %v7898 = vsel %vm7893, %v7119, %v6966
  %v7899 = vsel %vm7893, %v7129, %v6967
  %v7900 = vsel %vm7893, %v7143, %v6968
  %v7901 = vsel %vm7893, %v7153, %v6969
  %v7902 = vsel %vm7893, %v7167, %v6970
  %v7903 = vsel %vm7893, %v7177, %v6971
  %v7904 = vsel %vm7893, %v7191, %v6972
  %v7905 = vsel %vm7893, %v7201, %v6973
  %v7906 = vsel %vm7893, %v7215, %v6974
  %v7907 = vsel %vm7893, %v7225, %v6975
  %v7908 = vsel %vm7893, %v7239, %v6976
  %v7909 = vsel %vm7893, %v7249, %v6977
  %v7910 = vsel %vm7893, %v7263, %v6978
  %v7911 = vsel %vm7893, %v7273, %v6979
  %v7912 = vsel %vm7893, %v7287, %v6980
  %v7913 = vsel %vm7893, %v7297, %v6981
  %v7914 = vsel %vm7893, %v7311, %v6982
  %v7915 = vsel %vm7893, %v7321, %v6983
  %v7916 = vsel %vm7893, %v7335, %v6984
  %v7917 = vsel %vm7893, %v7345, %v6985
  %v7918 = vsel %vm7893, %v7359, %v6986
  %v7919 = vsel %vm7893, %v7369, %v6987
  %v7920 = vsel %vm7893, %v7383, %v6988
  %v7921 = vsel %vm7893, %v7393, %v6989
  %v7922 = vsel %vm7893, %v7407, %v6990
  %v7923 = vsel %vm7893, %v7417, %v6991
  %v7924 = vsel %vm7893, %v7431, %v6992
  %v7925 = vsel %vm7893, %v7441, %v6993
  %v7926 = vsel %vm7893, %v7455, %v6994
  %v7927 = vsel %vm7893, %v7465, %v6995
  %v7928 = vsel %vm7893, %v7479, %v6996
  %v7929 = vsel %vm7893, %v7489, %v6997
  %v7930 = vsel %vm7893, %v7503, %v6998
  %v7931 = vsel %vm7893, %v7513, %v6999
  %v7932 = vsel %vm7893, %v7527, %v7000
  %v7933 = vsel %vm7893, %v7537, %v7001
  %v7934 = vsel %vm7893, %v7551, %v7002
  %v7935 = vsel %vm7893, %v7561, %v7003
  %v7936 = vsel %vm7893, %v7575, %v7004
  %v7937 = vsel %vm7893, %v7585, %v7005
  %v7938 = vsel %vm7893, %v7599, %v7006
  %v7939 = vsel %vm7893, %v7609, %v7007
  %v7940 = vsel %vm7893, %v7623, %v7008
  %v7941 = vsel %vm7893, %v7633, %v7009
  %v7942 = vsel %vm7893, %v7647, %v7010
  %v7943 = vsel %vm7893, %v7657, %v7011
  %v7944 = vsel %vm7893, %v7671, %v7012
  %v7945 = vsel %vm7893, %v7681, %v7013
  %v7946 = vsel %vm7893, %v7695, %v7014
  %v7947 = vsel %vm7893, %v7705, %v7015
  %v7948 = vsel %vm7893, %v7719, %v7016
  %v7949 = vsel %vm7893, %v7729, %v7017
  %v7950 = vsel %vm7893, %v7743, %v7018
  %v7951 = vsel %vm7893, %v7753, %v7019
  %v7952 = vsel %vm7893, %v7767, %v7020
  %v7953 = vsel %vm7893, %v7777, %v7021
  %v7954 = vsel %vm7893, %v7791, %v7022
  %v7955 = vsel %vm7893, %v7801, %v7023
  %v7956 = vsel %vm7893, %v7815, %v7024
  %v7957 = vsel %vm7893, %v7825, %v7025
  %v7958 = vld [vmem:[#allocation2] sm:$0xe]
  %v7959 = vld [vmem:[#allocation2 + $0xc] sm:$0xe]
  %v7960 = vld [vmem:[#allocation2 + $0x18] sm:$0xe]
  %v7961 = vld [vmem:[#allocation2 + $0x24] sm:$0xe]
  %v7962 = vld [vmem:[#allocation2 + $0x30] sm:$0xe]
  %v7963 = vld [vmem:[#allocation2 + $0x3c] sm:$0xe]
  %v7964 = vld [vmem:[#allocation2 + $0x48] sm:$0xe]
  %v7965 = vld [vmem:[#allocation2 + $0x54] sm:$0xe]
  %v7966 = vld [vmem:[#allocation2 + $0x60] sm:$0xe]
  %v7967 = vld [vmem:[#allocation2 + $0x6c] sm:$0xe]
  %v7968 = vld [vmem:[#allocation2 + $0x78] sm:$0xe]
  %v7969 = vld [vmem:[#allocation2 + $0x84] sm:$0xe]
  %v7970 = vld [vmem:[#allocation2 + $0x90] sm:$0xe]
  %v7971 = vld [vmem:[#allocation2 + $0x9c] sm:$0xe]
  %v7972 = vld [vmem:[#allocation2 + $0xa8] sm:$0xe]
  %v7973 = vld [vmem:[#allocation2 + $0xb4] sm:$0xe]
  %v7974 = vld [vmem:[#allocation2 + $0xd8] sm:$0xe]
  %v7975 = vld [vmem:[#allocation2 + $0xe4] sm:$0xe]
  %v7976 = vld [vmem:[#allocation2 + $0xf0] sm:$0xe]
  %v7977 = vld [vmem:[#allocation2 + $0xfc] sm:$0xe]
  %v7978 = vld [vmem:[#allocation2 + $0x108] sm:$0xe]
  %v7979 = vld [vmem:[#allocation2 + $0x114] sm:$0xe]
  %v7980 = vld [vmem:[#allocation2 + $0x120] sm:$0xe]
  %v7981 = vld [vmem:[#allocation2 + $0x12c] sm:$0xe]
  %v7982 = vld [vmem:[#allocation2 + $0x138] sm:$0xe]
  %v7983 = vld [vmem:[#allocation2 + $0x144] sm:$0xe]
  %v7984 = vld [vmem:[#allocation2 + $0x150] sm:$0xe]
  %v7985 = vld [vmem:[#allocation2 + $0x15c] sm:$0xe]
  %v7986 = vld [vmem:[#allocation2 + $0x168] sm:$0xe]
  %v7987 = vld [vmem:[#allocation2 + $0x174] sm:$0xe]
  %v7988 = vld [vmem:[#allocation2 + $0x180] sm:$0xe]
  %v7989 = vld [vmem:[#allocation2 + $0x18c] sm:$0xe]
  %v8086 = vrot.slane %v7958, 5
  %v8087 = vrot.slane %v8086, 4
  %v8088 = vrot.slane %v6895, 5
  %v8089 = vsel %vm1230, %v8087, %v8088
  %v8090 = vrot.slane %v8088, 4
  %v8091 = vrot.slane %v7026, 5
  %v8092 = vsel %vm1230, %v8090, %v8091
  %v8093 = vrot.slane %v7959, 5
  %v8094 = vrot.slane %v8093, 4
  %v8095 = vrot.slane %v6897, 5
  %v8096 = vsel %vm1230, %v8094, %v8095
  %v8097 = vrot.slane %v8095, 4
  %v8098 = vrot.slane %v7027, 5
  %v8099 = vsel %vm1230, %v8097, %v8098
  %v8100 = vrot.slane %v7960, 5
  %v8101 = vrot.slane %v8100, 4
  %v8102 = vrot.slane %v6899, 5
  %v8103 = vsel %vm1230, %v8101, %v8102
  %v8104 = vrot.slane %v8102, 4
  %v8105 = vrot.slane %v7028, 5
  %v8106 = vsel %vm1230, %v8104, %v8105
  %v8107 = vrot.slane %v7961, 5
  %v8108 = vrot.slane %v8107, 4
  %v8109 = vrot.slane %v6901, 5
  %v8110 = vsel %vm1230, %v8108, %v8109
  %v8111 = vrot.slane %v8109, 4
  %v8112 = vrot.slane %v7029, 5
  %v8113 = vsel %vm1230, %v8111, %v8112
  %v8114 = vrot.slane %v7962, 5
  %v8115 = vrot.slane %v8114, 4
  %v8116 = vrot.slane %v6903, 5
  %v8117 = vsel %vm1230, %v8115, %v8116
  %v8118 = vrot.slane %v8116, 4
  %v8119 = vrot.slane %v7030, 5
  %v8120 = vsel %vm1230, %v8118, %v8119
  %v8121 = vrot.slane %v7963, 5
  %v8122 = vrot.slane %v8121, 4
  %v8123 = vrot.slane %v6905, 5
  %v8124 = vsel %vm1230, %v8122, %v8123
  %v8125 = vrot.slane %v8123, 4
  %v8126 = vrot.slane %v7031, 5
  %v8127 = vsel %vm1230, %v8125, %v8126
  %v8128 = vrot.slane %v7964, 5
  %v8129 = vrot.slane %v8128, 4
  %v8130 = vrot.slane %v6907, 5
  %v8131 = vsel %vm1230, %v8129, %v8130
  %v8132 = vrot.slane %v8130, 4
  %v8133 = vrot.slane %v7032, 5
  %v8134 = vsel %vm1230, %v8132, %v8133
  %v8135 = vrot.slane %v7965, 5
  %v8136 = vrot.slane %v8135, 4
  %v8137 = vrot.slane %v6909, 5
  %v8138 = vsel %vm1230, %v8136, %v8137
  %v8139 = vrot.slane %v8137, 4
  %v8140 = vrot.slane %v7033, 5
  %v8141 = vsel %vm1230, %v8139, %v8140
  %v8142 = vrot.slane %v7966, 5
  %v8143 = vrot.slane %v8142, 4
  %v8144 = vrot.slane %v6911, 5
  %v8145 = vsel %vm1230, %v8143, %v8144
  %v8146 = vrot.slane %v8144, 4
  %v8147 = vrot.slane %v7034, 5
  %v8148 = vsel %vm1230, %v8146, %v8147
  %v8149 = vrot.slane %v7967, 5
  %v8150 = vrot.slane %v8149, 4
  %v8151 = vrot.slane %v6913, 5
  %v8152 = vsel %vm1230, %v8150, %v8151
  %v8153 = vrot.slane %v8151, 4
  %v8154 = vrot.slane %v7035, 5
  %v8155 = vsel %vm1230, %v8153, %v8154
  %v8156 = vrot.slane %v7968, 5
  %v8157 = vrot.slane %v8156, 4
  %v8158 = vrot.slane %v6915, 5
  %v8159 = vsel %vm1230, %v8157, %v8158
  %v8160 = vrot.slane %v8158, 4
  %v8161 = vrot.slane %v7036, 5
  %v8162 = vsel %vm1230, %v8160, %v8161
  %v8163 = vrot.slane %v7969, 5
  %v8164 = vrot.slane %v8163, 4
  %v8165 = vrot.slane %v6917, 5
  %v8166 = vsel %vm1230, %v8164, %v8165
  %v8167 = vrot.slane %v8165, 4
  %v8168 = vrot.slane %v7037, 5
  %v8169 = vsel %vm1230, %v8167, %v8168
  %v8170 = vrot.slane %v7970, 5
  %v8171 = vrot.slane %v8170, 4
  %v8172 = vrot.slane %v6919, 5
  %v8173 = vsel %vm1230, %v8171, %v8172
  %v8174 = vrot.slane %v8172, 4
  %v8175 = vrot.slane %v7038, 5
  %v8176 = vsel %vm1230, %v8174, %v8175
  %v8177 = vrot.slane %v7971, 5
  %v8178 = vrot.slane %v8177, 4
  %v8179 = vrot.slane %v6921, 5
  %v8180 = vsel %vm1230, %v8178, %v8179
  %v8181 = vrot.slane %v8179, 4
  %v8182 = vrot.slane %v7039, 5
  %v8183 = vsel %vm1230, %v8181, %v8182
  %v8184 = vrot.slane %v7972, 5
  %v8185 = vrot.slane %v8184, 4
  %v8186 = vrot.slane %v6923, 5
  %v8187 = vsel %vm1230, %v8185, %v8186
  %v8188 = vrot.slane %v8186, 4
  %v8189 = vrot.slane %v7040, 5
  %v8190 = vsel %vm1230, %v8188, %v8189
  %v8191 = vrot.slane %v7973, 5
  %v8192 = vrot.slane %v8191, 4
  %v8193 = vrot.slane %v6925, 5
  %v8194 = vsel %vm1230, %v8192, %v8193
  %v8195 = vrot.slane %v8193, 4
  %v8196 = vrot.slane %v7041, 5
  %v8197 = vsel %vm1230, %v8195, %v8196
  %v8198 = vrot.slane %v7974, 5
  %v8199 = vrot.slane %v8198, 4
  %v8200 = vrot.slane %v6927, 5
  %v8201 = vsel %vm1230, %v8199, %v8200
  %v8202 = vrot.slane %v8200, 4
  %v8203 = vrot.slane %v7042, 5
  %v8204 = vsel %vm1230, %v8202, %v8203
  %v8205 = vrot.slane %v7975, 5
  %v8206 = vrot.slane %v8205, 4
  %v8207 = vrot.slane %v6929, 5
  %v8208 = vsel %vm1230, %v8206, %v8207
  %v8209 = vrot.slane %v8207, 4
  %v8210 = vrot.slane %v7043, 5
  %v8211 = vsel %vm1230, %v8209, %v8210
  %v8212 = vrot.slane %v7976, 5
  %v8213 = vrot.slane %v8212, 4
  %v8214 = vrot.slane %v6931, 5
  %v8215 = vsel %vm1230, %v8213, %v8214
  %v8216 = vrot.slane %v8214, 4
  %v8217 = vrot.slane %v7044, 5
  %v8218 = vsel %vm1230, %v8216, %v8217
  %v8219 = vrot.slane %v7977, 5
  %v8220 = vrot.slane %v8219, 4
  %v8221 = vrot.slane %v6933, 5
  %v8222 = vsel %vm1230, %v8220, %v8221
  %v8223 = vrot.slane %v8221, 4
  %v8224 = vrot.slane %v7045, 5
  %v8225 = vsel %vm1230, %v8223, %v8224
  %v8226 = vrot.slane %v7978, 5
  %v8227 = vrot.slane %v8226, 4
  %v8228 = vrot.slane %v6935, 5
  %v8229 = vsel %vm1230, %v8227, %v8228
  %v8230 = vrot.slane %v8228, 4
  %v8231 = vrot.slane %v7046, 5
  %v8232 = vsel %vm1230, %v8230, %v8231
  %v8233 = vrot.slane %v7979, 5
  %v8234 = vrot.slane %v8233, 4
  %v8235 = vrot.slane %v6937, 5
  %v8236 = vsel %vm1230, %v8234, %v8235
  %v8237 = vrot.slane %v8235, 4
  %v8238 = vrot.slane %v7047, 5
  %v8239 = vsel %vm1230, %v8237, %v8238
  %v8240 = vrot.slane %v7980, 5
  %v8241 = vrot.slane %v8240, 4
  %v8242 = vrot.slane %v6939, 5
  %v8243 = vsel %vm1230, %v8241, %v8242
  %v8244 = vrot.slane %v8242, 4
  %v8245 = vrot.slane %v7048, 5
  %v8246 = vsel %vm1230, %v8244, %v8245
  %v8247 = vrot.slane %v7981, 5
  %v8248 = vrot.slane %v8247, 4
  %v8249 = vrot.slane %v6941, 5
  %v8250 = vsel %vm1230, %v8248, %v8249
  %v8251 = vrot.slane %v8249, 4
  %v8252 = vrot.slane %v7049, 5
  %v8253 = vsel %vm1230, %v8251, %v8252
  %v8254 = vrot.slane %v7982, 5
  %v8255 = vrot.slane %v8254, 4
  %v8256 = vrot.slane %v6943, 5
  %v8257 = vsel %vm1230, %v8255, %v8256
  %v8258 = vrot.slane %v8256, 4
  %v8259 = vrot.slane %v7050, 5
  %v8260 = vsel %vm1230, %v8258, %v8259
  %v8261 = vrot.slane %v7983, 5
  %v8262 = vrot.slane %v8261, 4
  %v8263 = vrot.slane %v6945, 5
  %v8264 = vsel %vm1230, %v8262, %v8263
  %v8265 = vrot.slane %v8263, 4
  %v8266 = vrot.slane %v7051, 5
  %v8267 = vsel %vm1230, %v8265, %v8266
  %v8268 = vrot.slane %v7984, 5
  %v8269 = vrot.slane %v8268, 4
  %v8270 = vrot.slane %v6947, 5
  %v8271 = vsel %vm1230, %v8269, %v8270
  %v8272 = vrot.slane %v8270, 4
  %v8273 = vrot.slane %v7052, 5
  %v8274 = vsel %vm1230, %v8272, %v8273
  %v8275 = vrot.slane %v7985, 5
  %v8276 = vrot.slane %v8275, 4
  %v8277 = vrot.slane %v6949, 5
  %v8278 = vsel %vm1230, %v8276, %v8277
  %v8279 = vrot.slane %v8277, 4
  %v8280 = vrot.slane %v7053, 5
  %v8281 = vsel %vm1230, %v8279, %v8280
  %v8282 = vrot.slane %v7986, 5
  %v8283 = vrot.slane %v8282, 4
  %v8284 = vrot.slane %v6951, 5
  %v8285 = vsel %vm1230, %v8283, %v8284
  %v8286 = vrot.slane %v8284, 4
  %v8287 = vrot.slane %v7054, 5
  %v8288 = vsel %vm1230, %v8286, %v8287
  %v8289 = vrot.slane %v7987, 5
  %v8290 = vrot.slane %v8289, 4
  %v8291 = vrot.slane %v6953, 5
  %v8292 = vsel %vm1230, %v8290, %v8291
  %v8293 = vrot.slane %v8291, 4
  %v8294 = vrot.slane %v7055, 5
  %v8295 = vsel %vm1230, %v8293, %v8294
  %v8296 = vrot.slane %v7988, 5
  %v8297 = vrot.slane %v8296, 4
  %v8298 = vrot.slane %v6955, 5
  %v8299 = vsel %vm1230, %v8297, %v8298
  %v8300 = vrot.slane %v8298, 4
  %v8301 = vrot.slane %v7056, 5
  %v8302 = vsel %vm1230, %v8300, %v8301
  %v8303 = vrot.slane %v7989, 5
  %v8304 = vrot.slane %v8303, 4
  %v8305 = vrot.slane %v6957, 5
  %v8306 = vsel %vm1230, %v8304, %v8305
  %v8307 = vrot.slane %v8305, 4
  %v8308 = vrot.slane %v7057, 5
  %v8309 = vsel %vm1230, %v8307, %v8308
  %vm8374 = vmand %vm2588, %vm3075
  %v8375 = vsel %vm8374, 1, 0
  %vm8376 = vcmp.eq.s32.totalorder %v8375, 1
  %vm8377 = vmpackc.low %vm8376, %vm8376
  %v8378 = vsel %vm8377, %v8089, %v7894
  %v8379 = vsel %vm8377, %v8092, %v7895
  %v8380 = vsel %vm8377, %v8096, %v7896
  %v8381 = vsel %vm8377, %v8099, %v7897
  %v8382 = vsel %vm8377, %v8103, %v7898
  %v8383 = vsel %vm8377, %v8106, %v7899
  %v8384 = vsel %vm8377, %v8110, %v7900
  %v8385 = vsel %vm8377, %v8113, %v7901
  %v8386 = vsel %vm8377, %v8117, %v7902
  %v8387 = vsel %vm8377, %v8120, %v7903
  %v8388 = vsel %vm8377, %v8124, %v7904
  %v8389 = vsel %vm8377, %v8127, %v7905
  %v8390 = vsel %vm8377, %v8131, %v7906
  %v8391 = vsel %vm8377, %v8134, %v7907
  %v8392 = vsel %vm8377, %v8138, %v7908
  %v8393 = vsel %vm8377, %v8141, %v7909
  %v8394 = vsel %vm8377, %v8145, %v7910
  %v8395 = vsel %vm8377, %v8148, %v7911
  %v8396 = vsel %vm8377, %v8152, %v7912
  %v8397 = vsel %vm8377, %v8155, %v7913
  %v8398 = vsel %vm8377, %v8159, %v7914
  %v8399 = vsel %vm8377, %v8162, %v7915
  %v8400 = vsel %vm8377, %v8166, %v7916
  %v8401 = vsel %vm8377, %v8169, %v7917
  %v8402 = vsel %vm8377, %v8173, %v7918
  %v8403 = vsel %vm8377, %v8176, %v7919
  %v8404 = vsel %vm8377, %v8180, %v7920
  %v8405 = vsel %vm8377, %v8183, %v7921
  %v8406 = vsel %vm8377, %v8187, %v7922
  %v8407 = vsel %vm8377, %v8190, %v7923
  %v8408 = vsel %vm8377, %v8194, %v7924
  %v8409 = vsel %vm8377, %v8197, %v7925
  %v8410 = vsel %vm8377, %v8201, %v7926
  %v8411 = vsel %vm8377, %v8204, %v7927
  %v8412 = vsel %vm8377, %v8208, %v7928
  %v8413 = vsel %vm8377, %v8211, %v7929
  %v8414 = vsel %vm8377, %v8215, %v7930
  %v8415 = vsel %vm8377, %v8218, %v7931
  %v8416 = vsel %vm8377, %v8222, %v7932
  %v8417 = vsel %vm8377, %v8225, %v7933
  %v8418 = vsel %vm8377, %v8229, %v7934
  %v8419 = vsel %vm8377, %v8232, %v7935
  %v8420 = vsel %vm8377, %v8236, %v7936
  %v8421 = vsel %vm8377, %v8239, %v7937
  %v8422 = vsel %vm8377, %v8243, %v7938
  %v8423 = vsel %vm8377, %v8246, %v7939
  %v8424 = vsel %vm8377, %v8250, %v7940
  %v8425 = vsel %vm8377, %v8253, %v7941
  %v8426 = vsel %vm8377, %v8257, %v7942
  %v8427 = vsel %vm8377, %v8260, %v7943
  %v8428 = vsel %vm8377, %v8264, %v7944
  %v8429 = vsel %vm8377, %v8267, %v7945
  %v8430 = vsel %vm8377, %v8271, %v7946
  %v8431 = vsel %vm8377, %v8274, %v7947
  %v8432 = vsel %vm8377, %v8278, %v7948
  %v8433 = vsel %vm8377, %v8281, %v7949
  %v8434 = vsel %vm8377, %v8285, %v7950
  %v8435 = vsel %vm8377, %v8288, %v7951
  %v8436 = vsel %vm8377, %v8292, %v7952
  %v8437 = vsel %vm8377, %v8295, %v7953
  %v8438 = vsel %vm8377, %v8299, %v7954
  %v8439 = vsel %vm8377, %v8302, %v7955
  %v8440 = vsel %vm8377, %v8306, %v7956
  %v8441 = vsel %vm8377, %v8309, %v7957
  %v8442 = vld [vmem:[%s6664] sm:$0xf]
  %v8443 = vld [vmem:[%s6664 + $0x4] sm:$0xf]
  %v8444 = vld [vmem:[%s6664 + $0xc] sm:$0xf]
  %v8445 = vld [vmem:[%s6664 + $0x10] sm:$0xf]
  %v8446 = vld [vmem:[%s6664 + $0x18] sm:$0xf]
  %v8447 = vld [vmem:[%s6664 + $0x1c] sm:$0xf]
  %v8448 = vld [vmem:[%s6664 + $0x24] sm:$0xf]
  %v8449 = vld [vmem:[%s6664 + $0x28] sm:$0xf]
  %v8450 = vld [vmem:[%s6664 + $0x30] sm:$0xf]
  %v8451 = vld [vmem:[%s6664 + $0x34] sm:$0xf]
  %v8452 = vld [vmem:[%s6664 + $0x3c] sm:$0xf]
  %v8453 = vld [vmem:[%s6664 + $0x40] sm:$0xf]
  %v8454 = vld [vmem:[%s6664 + $0x48] sm:$0xf]
  %v8455 = vld [vmem:[%s6664 + $0x4c] sm:$0xf]
  %v8456 = vld [vmem:[%s6664 + $0x54] sm:$0xf]
  %v8457 = vld [vmem:[%s6664 + $0x58] sm:$0xf]
  %v8458 = vld [vmem:[%s6664 + $0x60] sm:$0xf]
  %v8459 = vld [vmem:[%s6664 + $0x64] sm:$0xf]
  %v8460 = vld [vmem:[%s6664 + $0x6c] sm:$0xf]
  %v8461 = vld [vmem:[%s6664 + $0x70] sm:$0xf]
  %v8462 = vld [vmem:[%s6664 + $0x78] sm:$0xf]
  %v8463 = vld [vmem:[%s6664 + $0x7c] sm:$0xf]
  %v8464 = vld [vmem:[%s6664 + $0x84] sm:$0xf]
  %v8465 = vld [vmem:[%s6664 + $0x88] sm:$0xf]
  %v8466 = vld [vmem:[%s6664 + $0x90] sm:$0xf]
  %v8467 = vld [vmem:[%s6664 + $0x94] sm:$0xf]
  %v8468 = vld [vmem:[%s6664 + $0x9c] sm:$0xf]
  %v8469 = vld [vmem:[%s6664 + $0xa0] sm:$0xf]
  %v8470 = vld [vmem:[%s6664 + $0xa8] sm:$0xf]
  %v8471 = vld [vmem:[%s6664 + $0xac] sm:$0xf]
  %v8472 = vld [vmem:[%s6664 + $0xb4] sm:$0xf]
  %v8473 = vld [vmem:[%s6664 + $0xb8] sm:$0xf]
  %v8474 = vld [vmem:[%s6664 + $0xd8] sm:$0xf]
  %v8475 = vld [vmem:[%s6664 + $0xdc] sm:$0xf]
  %v8476 = vld [vmem:[%s6664 + $0xe4] sm:$0xf]
  %v8477 = vld [vmem:[%s6664 + $0xe8] sm:$0xf]
  %v8478 = vld [vmem:[%s6664 + $0xf0] sm:$0xf]
  %v8479 = vld [vmem:[%s6664 + $0xf4] sm:$0xf]
  %v8480 = vld [vmem:[%s6664 + $0xfc] sm:$0xf]
  %v8481 = vld [vmem:[%s6664 + $0x100] sm:$0xf]
  %v8482 = vld [vmem:[%s6664 + $0x108] sm:$0xf]
  %v8483 = vld [vmem:[%s6664 + $0x10c] sm:$0xf]
  %v8484 = vld [vmem:[%s6664 + $0x114] sm:$0xf]
  %v8485 = vld [vmem:[%s6664 + $0x118] sm:$0xf]
  %v8486 = vld [vmem:[%s6664 + $0x120] sm:$0xf]
  %v8487 = vld [vmem:[%s6664 + $0x124] sm:$0xf]
  %v8488 = vld [vmem:[%s6664 + $0x12c] sm:$0xf]
  %v8489 = vld [vmem:[%s6664 + $0x130] sm:$0xf]
  %v8490 = vld [vmem:[%s6664 + $0x138] sm:$0xf]
  %v8491 = vld [vmem:[%s6664 + $0x13c] sm:$0xf]
  %v8492 = vld [vmem:[%s6664 + $0x144] sm:$0xf]
  %v8493 = vld [vmem:[%s6664 + $0x148] sm:$0xf]
  %v8494 = vld [vmem:[%s6664 + $0x150] sm:$0xf]
  %v8495 = vld [vmem:[%s6664 + $0x154] sm:$0xf]
  %v8496 = vld [vmem:[%s6664 + $0x15c] sm:$0xf]
  %v8497 = vld [vmem:[%s6664 + $0x160] sm:$0xf]
  %v8498 = vld [vmem:[%s6664 + $0x168] sm:$0xf]
  %v8499 = vld [vmem:[%s6664 + $0x16c] sm:$0xf]
  %v8500 = vld [vmem:[%s6664 + $0x174] sm:$0xf]
  %v8501 = vld [vmem:[%s6664 + $0x178] sm:$0xf]
  %v8502 = vld [vmem:[%s6664 + $0x180] sm:$0xf]
  %v8503 = vld [vmem:[%s6664 + $0x184] sm:$0xf]
  %v8504 = vld [vmem:[%s6664 + $0x18c] sm:$0xf]
  %v8505 = vld [vmem:[%s6664 + $0x190] sm:$0xf]
  %vm8506 = vmand %vm3209, %vm4144
  %v8507 = vsel %vm8506, 1, 0
  %vm8508 = vcmp.eq.s32.totalorder %v8507, 1
  %vm8509 = vmpackc.low %vm8508, %vm8508
  %v8510 = vsel %vm8509, %v8442, %v8378
  %v8511 = vsel %vm8509, %v8443, %v8379
  %v8512 = vsel %vm8509, %v8444, %v8380
  %v8513 = vsel %vm8509, %v8445, %v8381
  %v8514 = vsel %vm8509, %v8446, %v8382
  %v8515 = vsel %vm8509, %v8447, %v8383
  %v8516 = vsel %vm8509, %v8448, %v8384
  %v8517 = vsel %vm8509, %v8449, %v8385
  %v8518 = vsel %vm8509, %v8450, %v8386
  %v8519 = vsel %vm8509, %v8451, %v8387
  %v8520 = vsel %vm8509, %v8452, %v8388
  %v8521 = vsel %vm8509, %v8453, %v8389
  %v8522 = vsel %vm8509, %v8454, %v8390
  %v8523 = vsel %vm8509, %v8455, %v8391
  %v8524 = vsel %vm8509, %v8456, %v8392
  %v8525 = vsel %vm8509, %v8457, %v8393
  %v8526 = vsel %vm8509, %v8458, %v8394
  %v8527 = vsel %vm8509, %v8459, %v8395
  %v8528 = vsel %vm8509, %v8460, %v8396
  %v8529 = vsel %vm8509, %v8461, %v8397
  %v8530 = vsel %vm8509, %v8462, %v8398
  %v8531 = vsel %vm8509, %v8463, %v8399
  %v8532 = vsel %vm8509, %v8464, %v8400
  %v8533 = vsel %vm8509, %v8465, %v8401
  %v8534 = vsel %vm8509, %v8466, %v8402
  %v8535 = vsel %vm8509, %v8467, %v8403
  %v8536 = vsel %vm8509, %v8468, %v8404
  %v8537 = vsel %vm8509, %v8469, %v8405
  %v8538 = vsel %vm8509, %v8470, %v8406
  %v8539 = vsel %vm8509, %v8471, %v8407
  %v8540 = vsel %vm8509, %v8472, %v8408
  %v8541 = vsel %vm8509, %v8473, %v8409
  %v8542 = vsel %vm8509, %v8474, %v8410
  %v8543 = vsel %vm8509, %v8475, %v8411
  %v8544 = vsel %vm8509, %v8476, %v8412
  %v8545 = vsel %vm8509, %v8477, %v8413
  %v8546 = vsel %vm8509, %v8478, %v8414
  %v8547 = vsel %vm8509, %v8479, %v8415
  %v8548 = vsel %vm8509, %v8480, %v8416
  %v8549 = vsel %vm8509, %v8481, %v8417
  %v8550 = vsel %vm8509, %v8482, %v8418
  %v8551 = vsel %vm8509, %v8483, %v8419
  %v8552 = vsel %vm8509, %v8484, %v8420
  %v8553 = vsel %vm8509, %v8485, %v8421
  %v8554 = vsel %vm8509, %v8486, %v8422
  %v8555 = vsel %vm8509, %v8487, %v8423
  %v8556 = vsel %vm8509, %v8488, %v8424
  %v8557 = vsel %vm8509, %v8489, %v8425
  %v8558 = vsel %vm8509, %v8490, %v8426
  %v8559 = vsel %vm8509, %v8491, %v8427
  %v8560 = vsel %vm8509, %v8492, %v8428
  %v8561 = vsel %vm8509, %v8493, %v8429
  %v8562 = vsel %vm8509, %v8494, %v8430
  %v8563 = vsel %vm8509, %v8495, %v8431
  %v8564 = vsel %vm8509, %v8496, %v8432
  %v8565 = vsel %vm8509, %v8497, %v8433
  %v8566 = vsel %vm8509, %v8498, %v8434
  %v8567 = vsel %vm8509, %v8499, %v8435
  %v8568 = vsel %vm8509, %v8500, %v8436
  %v8569 = vsel %vm8509, %v8501, %v8437
  %v8570 = vsel %vm8509, %v8502, %v8438
  %v8571 = vsel %vm8509, %v8503, %v8439
  %v8572 = vsel %vm8509, %v8504, %v8440
  %v8573 = vsel %vm8509, %v8505, %v8441
  %v8574 = vld [vmem:[%s6664 + $0x8] sm:$0x1]
  %v8575 = vld [vmem:[%s6664 + $0x14] sm:$0x1]
  %v8576 = vld [vmem:[%s6664 + $0x20] sm:$0x1]
  %v8577 = vld [vmem:[%s6664 + $0x2c] sm:$0x1]
  %v8578 = vld [vmem:[%s6664 + $0x38] sm:$0x1]
  %v8579 = vld [vmem:[%s6664 + $0x44] sm:$0x1]
  %v8580 = vld [vmem:[%s6664 + $0x50] sm:$0x1]
  %v8581 = vld [vmem:[%s6664 + $0x5c] sm:$0x1]
  %v8582 = vld [vmem:[%s6664 + $0x68] sm:$0x1]
  %v8583 = vld [vmem:[%s6664 + $0x74] sm:$0x1]
  %v8584 = vld [vmem:[%s6664 + $0x80] sm:$0x1]
  %v8585 = vld [vmem:[%s6664 + $0x8c] sm:$0x1]
  %v8586 = vld [vmem:[%s6664 + $0x98] sm:$0x1]
  %v8587 = vld [vmem:[%s6664 + $0xa4] sm:$0x1]
  %v8588 = vld [vmem:[%s6664 + $0xb0] sm:$0x1]
  %v8589 = vld [vmem:[%s6664 + $0xbc] sm:$0x1]
  %v8590 = vld [vmem:[%s6664 + $0xe0] sm:$0x1]
  %v8591 = vld [vmem:[%s6664 + $0xec] sm:$0x1]
  %v8592 = vld [vmem:[%s6664 + $0xf8] sm:$0x1]
  %v8593 = vld [vmem:[%s6664 + $0x104] sm:$0x1]
  %v8594 = vld [vmem:[%s6664 + $0x110] sm:$0x1]
  %v8595 = vld [vmem:[%s6664 + $0x11c] sm:$0x1]
  %v8596 = vld [vmem:[%s6664 + $0x128] sm:$0x1]
  %v8597 = vld [vmem:[%s6664 + $0x134] sm:$0x1]
  %v8598 = vld [vmem:[%s6664 + $0x140] sm:$0x1]
  %v8599 = vld [vmem:[%s6664 + $0x14c] sm:$0x1]
  %v8600 = vld [vmem:[%s6664 + $0x158] sm:$0x1]
  %v8601 = vld [vmem:[%s6664 + $0x164] sm:$0x1]
  %v8602 = vld [vmem:[%s6664 + $0x170] sm:$0x1]
  %v8603 = vld [vmem:[%s6664 + $0x17c] sm:$0x1]
  %v8604 = vld [vmem:[%s6664 + $0x188] sm:$0x1]
  %v8605 = vld [vmem:[%s6664 + $0x194] sm:$0x1]
  %v8607 = vshrl.u32 %v8442, 16
  %v8609 = vrot.slane %v8607, 4
  %v8610 = vshll.u32 %v8442, 16
  %v8612 = vrot.slane %v8610, 5
  %v8613 = vor.u32 %v8609, %v8612
  %v8614 = vrot.slane %v8613, 4
  %v8616 = vshll.u32 %v8443, 16
  %v8618 = vrot.slane %v8616, 5
  %v8619 = vsel %vm197, %v8614, %v8618
  %v8620 = vshrl.u32 %v8443, 16
  %v8622 = vrot.slane %v8620, 4
  %v8623 = vor.u32 %v8622, %v8618
  %v8624 = vrot.slane %v8623, 4
  %v8626 = vshll.u32 %v8574, 16
  %v8628 = vrot.slane %v8626, 5
  %v8629 = vsel %vm197, %v8624, %v8628
  %v8631 = vshrl.u32 %v8444, 16
  %v8633 = vrot.slane %v8631, 4
  %v8634 = vshll.u32 %v8444, 16
  %v8636 = vrot.slane %v8634, 5
  %v8637 = vor.u32 %v8633, %v8636
  %v8638 = vrot.slane %v8637, 4
  %v8640 = vshll.u32 %v8445, 16
  %v8642 = vrot.slane %v8640, 5
  %v8643 = vsel %vm197, %v8638, %v8642
  %v8644 = vshrl.u32 %v8445, 16
  %v8646 = vrot.slane %v8644, 4
  %v8647 = vor.u32 %v8646, %v8642
  %v8648 = vrot.slane %v8647, 4
  %v8650 = vshll.u32 %v8575, 16
  %v8652 = vrot.slane %v8650, 5
  %v8653 = vsel %vm197, %v8648, %v8652
  %v8655 = vshrl.u32 %v8446, 16
  %v8657 = vrot.slane %v8655, 4
  %v8658 = vshll.u32 %v8446, 16
  %v8660 = vrot.slane %v8658, 5
  %v8661 = vor.u32 %v8657, %v8660
  %v8662 = vrot.slane %v8661, 4
  %v8664 = vshll.u32 %v8447, 16
  %v8666 = vrot.slane %v8664, 5
  %v8667 = vsel %vm197, %v8662, %v8666
  %v8668 = vshrl.u32 %v8447, 16
  %v8670 = vrot.slane %v8668, 4
  %v8671 = vor.u32 %v8670, %v8666
  %v8672 = vrot.slane %v8671, 4
  %v8674 = vshll.u32 %v8576, 16
  %v8676 = vrot.slane %v8674, 5
  %v8677 = vsel %vm197, %v8672, %v8676
  %v8679 = vshrl.u32 %v8448, 16
  %v8681 = vrot.slane %v8679, 4
  %v8682 = vshll.u32 %v8448, 16
  %v8684 = vrot.slane %v8682, 5
  %v8685 = vor.u32 %v8681, %v8684
  %v8686 = vrot.slane %v8685, 4
  %v8688 = vshll.u32 %v8449, 16
  %v8690 = vrot.slane %v8688, 5
  %v8691 = vsel %vm197, %v8686, %v8690
  %v8692 = vshrl.u32 %v8449, 16
  %v8694 = vrot.slane %v8692, 4
  %v8695 = vor.u32 %v8694, %v8690
  %v8696 = vrot.slane %v8695, 4
  %v8698 = vshll.u32 %v8577, 16
  %v8700 = vrot.slane %v8698, 5
  %v8701 = vsel %vm197, %v8696, %v8700
  %v8703 = vshrl.u32 %v8450, 16
  %v8705 = vrot.slane %v8703, 4
  %v8706 = vshll.u32 %v8450, 16
  %v8708 = vrot.slane %v8706, 5
  %v8709 = vor.u32 %v8705, %v8708
  %v8710 = vrot.slane %v8709, 4
  %v8712 = vshll.u32 %v8451, 16
  %v8714 = vrot.slane %v8712, 5
  %v8715 = vsel %vm197, %v8710, %v8714
  %v8716 = vshrl.u32 %v8451, 16
  %v8718 = vrot.slane %v8716, 4
  %v8719 = vor.u32 %v8718, %v8714
  %v8720 = vrot.slane %v8719, 4
  %v8722 = vshll.u32 %v8578, 16
  %v8724 = vrot.slane %v8722, 5
  %v8725 = vsel %vm197, %v8720, %v8724
  %v8727 = vshrl.u32 %v8452, 16
  %v8729 = vrot.slane %v8727, 4
  %v8730 = vshll.u32 %v8452, 16
  %v8732 = vrot.slane %v8730, 5
  %v8733 = vor.u32 %v8729, %v8732
  %v8734 = vrot.slane %v8733, 4
  %v8736 = vshll.u32 %v8453, 16
  %v8738 = vrot.slane %v8736, 5
  %v8739 = vsel %vm197, %v8734, %v8738
  %v8740 = vshrl.u32 %v8453, 16
  %v8742 = vrot.slane %v8740, 4
  %v8743 = vor.u32 %v8742, %v8738
  %v8744 = vrot.slane %v8743, 4
  %v8746 = vshll.u32 %v8579, 16
  %v8748 = vrot.slane %v8746, 5
  %v8749 = vsel %vm197, %v8744, %v8748
  %v8751 = vshrl.u32 %v8454, 16
  %v8753 = vrot.slane %v8751, 4
  %v8754 = vshll.u32 %v8454, 16
  %v8756 = vrot.slane %v8754, 5
  %v8757 = vor.u32 %v8753, %v8756
  %v8758 = vrot.slane %v8757, 4
  %v8760 = vshll.u32 %v8455, 16
  %v8762 = vrot.slane %v8760, 5
  %v8763 = vsel %vm197, %v8758, %v8762
  %v8764 = vshrl.u32 %v8455, 16
  %v8766 = vrot.slane %v8764, 4
  %v8767 = vor.u32 %v8766, %v8762
  %v8768 = vrot.slane %v8767, 4
  %v8770 = vshll.u32 %v8580, 16
  %v8772 = vrot.slane %v8770, 5
  %v8773 = vsel %vm197, %v8768, %v8772
  %v8775 = vshrl.u32 %v8456, 16
  %v8777 = vrot.slane %v8775, 4
  %v8778 = vshll.u32 %v8456, 16
  %v8780 = vrot.slane %v8778, 5
  %v8781 = vor.u32 %v8777, %v8780
  %v8782 = vrot.slane %v8781, 4
  %v8784 = vshll.u32 %v8457, 16
  %v8786 = vrot.slane %v8784, 5
  %v8787 = vsel %vm197, %v8782, %v8786
  %v8788 = vshrl.u32 %v8457, 16
  %v8790 = vrot.slane %v8788, 4
  %v8791 = vor.u32 %v8790, %v8786
  %v8792 = vrot.slane %v8791, 4
  %v8794 = vshll.u32 %v8581, 16
  %v8796 = vrot.slane %v8794, 5
  %v8797 = vsel %vm197, %v8792, %v8796
  %v8799 = vshrl.u32 %v8458, 16
  %v8801 = vrot.slane %v8799, 4
  %v8802 = vshll.u32 %v8458, 16
  %v8804 = vrot.slane %v8802, 5
  %v8805 = vor.u32 %v8801, %v8804
  %v8806 = vrot.slane %v8805, 4
  %v8808 = vshll.u32 %v8459, 16
  %v8810 = vrot.slane %v8808, 5
  %v8811 = vsel %vm197, %v8806, %v8810
  %v8812 = vshrl.u32 %v8459, 16
  %v8814 = vrot.slane %v8812, 4
  %v8815 = vor.u32 %v8814, %v8810
  %v8816 = vrot.slane %v8815, 4
  %v8818 = vshll.u32 %v8582, 16
  %v8820 = vrot.slane %v8818, 5
  %v8821 = vsel %vm197, %v8816, %v8820
  %v8823 = vshrl.u32 %v8460, 16
  %v8825 = vrot.slane %v8823, 4
  %v8826 = vshll.u32 %v8460, 16
  %v8828 = vrot.slane %v8826, 5
  %v8829 = vor.u32 %v8825, %v8828
  %v8830 = vrot.slane %v8829, 4
  %v8832 = vshll.u32 %v8461, 16
  %v8834 = vrot.slane %v8832, 5
  %v8835 = vsel %vm197, %v8830, %v8834
  %v8836 = vshrl.u32 %v8461, 16
  %v8838 = vrot.slane %v8836, 4
  %v8839 = vor.u32 %v8838, %v8834
  %v8840 = vrot.slane %v8839, 4
  %v8842 = vshll.u32 %v8583, 16
  %v8844 = vrot.slane %v8842, 5
  %v8845 = vsel %vm197, %v8840, %v8844
  %v8847 = vshrl.u32 %v8462, 16
  %v8849 = vrot.slane %v8847, 4
  %v8850 = vshll.u32 %v8462, 16
  %v8852 = vrot.slane %v8850, 5
  %v8853 = vor.u32 %v8849, %v8852
  %v8854 = vrot.slane %v8853, 4
  %v8856 = vshll.u32 %v8463, 16
  %v8858 = vrot.slane %v8856, 5
  %v8859 = vsel %vm197, %v8854, %v8858
  %v8860 = vshrl.u32 %v8463, 16
  %v8862 = vrot.slane %v8860, 4
  %v8863 = vor.u32 %v8862, %v8858
  %v8864 = vrot.slane %v8863, 4
  %v8866 = vshll.u32 %v8584, 16
  %v8868 = vrot.slane %v8866, 5
  %v8869 = vsel %vm197, %v8864, %v8868
  %v8871 = vshrl.u32 %v8464, 16
  %v8873 = vrot.slane %v8871, 4
  %v8874 = vshll.u32 %v8464, 16
  %v8876 = vrot.slane %v8874, 5
  %v8877 = vor.u32 %v8873, %v8876
  %v8878 = vrot.slane %v8877, 4
  %v8880 = vshll.u32 %v8465, 16
  %v8882 = vrot.slane %v8880, 5
  %v8883 = vsel %vm197, %v8878, %v8882
  %v8884 = vshrl.u32 %v8465, 16
  %v8886 = vrot.slane %v8884, 4
  %v8887 = vor.u32 %v8886, %v8882
  %v8888 = vrot.slane %v8887, 4
  %v8890 = vshll.u32 %v8585, 16
  %v8892 = vrot.slane %v8890, 5
  %v8893 = vsel %vm197, %v8888, %v8892
  %v8895 = vshrl.u32 %v8466, 16
  %v8897 = vrot.slane %v8895, 4
  %v8898 = vshll.u32 %v8466, 16
  %v8900 = vrot.slane %v8898, 5
  %v8901 = vor.u32 %v8897, %v8900
  %v8902 = vrot.slane %v8901, 4
  %v8904 = vshll.u32 %v8467, 16
  %v8906 = vrot.slane %v8904, 5
  %v8907 = vsel %vm197, %v8902, %v8906
  %v8908 = vshrl.u32 %v8467, 16
  %v8910 = vrot.slane %v8908, 4
  %v8911 = vor.u32 %v8910, %v8906
  %v8912 = vrot.slane %v8911, 4
  %v8914 = vshll.u32 %v8586, 16
  %v8916 = vrot.slane %v8914, 5
  %v8917 = vsel %vm197, %v8912, %v8916
  %v8919 = vshrl.u32 %v8468, 16
  %v8921 = vrot.slane %v8919, 4
  %v8922 = vshll.u32 %v8468, 16
  %v8924 = vrot.slane %v8922, 5
  %v8925 = vor.u32 %v8921, %v8924
  %v8926 = vrot.slane %v8925, 4
  %v8928 = vshll.u32 %v8469, 16
  %v8930 = vrot.slane %v8928, 5
  %v8931 = vsel %vm197, %v8926, %v8930
  %v8932 = vshrl.u32 %v8469, 16
  %v8934 = vrot.slane %v8932, 4
  %v8935 = vor.u32 %v8934, %v8930
  %v8936 = vrot.slane %v8935, 4
  %v8938 = vshll.u32 %v8587, 16
  %v8940 = vrot.slane %v8938, 5
  %v8941 = vsel %vm197, %v8936, %v8940
  %v8943 = vshrl.u32 %v8470, 16
  %v8945 = vrot.slane %v8943, 4
  %v8946 = vshll.u32 %v8470, 16
  %v8948 = vrot.slane %v8946, 5
  %v8949 = vor.u32 %v8945, %v8948
  %v8950 = vrot.slane %v8949, 4
  %v8952 = vshll.u32 %v8471, 16
  %v8954 = vrot.slane %v8952, 5
  %v8955 = vsel %vm197, %v8950, %v8954
  %v8956 = vshrl.u32 %v8471, 16
  %v8958 = vrot.slane %v8956, 4
  %v8959 = vor.u32 %v8958, %v8954
  %v8960 = vrot.slane %v8959, 4
  %v8962 = vshll.u32 %v8588, 16
  %v8964 = vrot.slane %v8962, 5
  %v8965 = vsel %vm197, %v8960, %v8964
  %v8967 = vshrl.u32 %v8472, 16
  %v8969 = vrot.slane %v8967, 4
  %v8970 = vshll.u32 %v8472, 16
  %v8972 = vrot.slane %v8970, 5
  %v8973 = vor.u32 %v8969, %v8972
  %v8974 = vrot.slane %v8973, 4
  %v8976 = vshll.u32 %v8473, 16
  %v8978 = vrot.slane %v8976, 5
  %v8979 = vsel %vm197, %v8974, %v8978
  %v8980 = vshrl.u32 %v8473, 16
  %v8982 = vrot.slane %v8980, 4
  %v8983 = vor.u32 %v8982, %v8978
  %v8984 = vrot.slane %v8983, 4
  %v8986 = vshll.u32 %v8589, 16
  %v8988 = vrot.slane %v8986, 5
  %v8989 = vsel %vm197, %v8984, %v8988
  %v8991 = vshrl.u32 %v8474, 16
  %v8993 = vrot.slane %v8991, 4
  %v8994 = vshll.u32 %v8474, 16
  %v8996 = vrot.slane %v8994, 5
  %v8997 = vor.u32 %v8993, %v8996
  %v8998 = vrot.slane %v8997, 4
  %v9000 = vshll.u32 %v8475, 16
  %v9002 = vrot.slane %v9000, 5
  %v9003 = vsel %vm197, %v8998, %v9002
  %v9004 = vshrl.u32 %v8475, 16
  %v9006 = vrot.slane %v9004, 4
  %v9007 = vor.u32 %v9006, %v9002
  %v9008 = vrot.slane %v9007, 4
  %v9010 = vshll.u32 %v8590, 16
  %v9012 = vrot.slane %v9010, 5
  %v9013 = vsel %vm197, %v9008, %v9012
  %v9015 = vshrl.u32 %v8476, 16
  %v9017 = vrot.slane %v9015, 4
  %v9018 = vshll.u32 %v8476, 16
  %v9020 = vrot.slane %v9018, 5
  %v9021 = vor.u32 %v9017, %v9020
  %v9022 = vrot.slane %v9021, 4
  %v9024 = vshll.u32 %v8477, 16
  %v9026 = vrot.slane %v9024, 5
  %v9027 = vsel %vm197, %v9022, %v9026
  %v9028 = vshrl.u32 %v8477, 16
  %v9030 = vrot.slane %v9028, 4
  %v9031 = vor.u32 %v9030, %v9026
  %v9032 = vrot.slane %v9031, 4
  %v9034 = vshll.u32 %v8591, 16
  %v9036 = vrot.slane %v9034, 5
  %v9037 = vsel %vm197, %v9032, %v9036
  %v9039 = vshrl.u32 %v8478, 16
  %v9041 = vrot.slane %v9039, 4
  %v9042 = vshll.u32 %v8478, 16
  %v9044 = vrot.slane %v9042, 5
  %v9045 = vor.u32 %v9041, %v9044
  %v9046 = vrot.slane %v9045, 4
  %v9048 = vshll.u32 %v8479, 16
  %v9050 = vrot.slane %v9048, 5
  %v9051 = vsel %vm197, %v9046, %v9050
  %v9052 = vshrl.u32 %v8479, 16
  %v9054 = vrot.slane %v9052, 4
  %v9055 = vor.u32 %v9054, %v9050
  %v9056 = vrot.slane %v9055, 4
  %v9058 = vshll.u32 %v8592, 16
  %v9060 = vrot.slane %v9058, 5
  %v9061 = vsel %vm197, %v9056, %v9060
  %v9063 = vshrl.u32 %v8480, 16
  %v9065 = vrot.slane %v9063, 4
  %v9066 = vshll.u32 %v8480, 16
  %v9068 = vrot.slane %v9066, 5
  %v9069 = vor.u32 %v9065, %v9068
  %v9070 = vrot.slane %v9069, 4
  %v9072 = vshll.u32 %v8481, 16
  %v9074 = vrot.slane %v9072, 5
  %v9075 = vsel %vm197, %v9070, %v9074
  %v9076 = vshrl.u32 %v8481, 16
  %v9078 = vrot.slane %v9076, 4
  %v9079 = vor.u32 %v9078, %v9074
  %v9080 = vrot.slane %v9079, 4
  %v9082 = vshll.u32 %v8593, 16
  %v9084 = vrot.slane %v9082, 5
  %v9085 = vsel %vm197, %v9080, %v9084
  %v9087 = vshrl.u32 %v8482, 16
  %v9089 = vrot.slane %v9087, 4
  %v9090 = vshll.u32 %v8482, 16
  %v9092 = vrot.slane %v9090, 5
  %v9093 = vor.u32 %v9089, %v9092
  %v9094 = vrot.slane %v9093, 4
  %v9096 = vshll.u32 %v8483, 16
  %v9098 = vrot.slane %v9096, 5
  %v9099 = vsel %vm197, %v9094, %v9098
  %v9100 = vshrl.u32 %v8483, 16
  %v9102 = vrot.slane %v9100, 4
  %v9103 = vor.u32 %v9102, %v9098
  %v9104 = vrot.slane %v9103, 4
  %v9106 = vshll.u32 %v8594, 16
  %v9108 = vrot.slane %v9106, 5
  %v9109 = vsel %vm197, %v9104, %v9108
  %v9111 = vshrl.u32 %v8484, 16
  %v9113 = vrot.slane %v9111, 4
  %v9114 = vshll.u32 %v8484, 16
  %v9116 = vrot.slane %v9114, 5
  %v9117 = vor.u32 %v9113, %v9116
  %v9118 = vrot.slane %v9117, 4
  %v9120 = vshll.u32 %v8485, 16
  %v9122 = vrot.slane %v9120, 5
  %v9123 = vsel %vm197, %v9118, %v9122
  %v9124 = vshrl.u32 %v8485, 16
  %v9126 = vrot.slane %v9124, 4
  %v9127 = vor.u32 %v9126, %v9122
  %v9128 = vrot.slane %v9127, 4
  %v9130 = vshll.u32 %v8595, 16
  %v9132 = vrot.slane %v9130, 5
  %v9133 = vsel %vm197, %v9128, %v9132
  %v9135 = vshrl.u32 %v8486, 16
  %v9137 = vrot.slane %v9135, 4
  %v9138 = vshll.u32 %v8486, 16
  %v9140 = vrot.slane %v9138, 5
  %v9141 = vor.u32 %v9137, %v9140
  %v9142 = vrot.slane %v9141, 4
  %v9144 = vshll.u32 %v8487, 16
  %v9146 = vrot.slane %v9144, 5
  %v9147 = vsel %vm197, %v9142, %v9146
  %v9148 = vshrl.u32 %v8487, 16
  %v9150 = vrot.slane %v9148, 4
  %v9151 = vor.u32 %v9150, %v9146
  %v9152 = vrot.slane %v9151, 4
  %v9154 = vshll.u32 %v8596, 16
  %v9156 = vrot.slane %v9154, 5
  %v9157 = vsel %vm197, %v9152, %v9156
  %v9159 = vshrl.u32 %v8488, 16
  %v9161 = vrot.slane %v9159, 4
  %v9162 = vshll.u32 %v8488, 16
  %v9164 = vrot.slane %v9162, 5
  %v9165 = vor.u32 %v9161, %v9164
  %v9166 = vrot.slane %v9165, 4
  %v9168 = vshll.u32 %v8489, 16
  %v9170 = vrot.slane %v9168, 5
  %v9171 = vsel %vm197, %v9166, %v9170
  %v9172 = vshrl.u32 %v8489, 16
  %v9174 = vrot.slane %v9172, 4
  %v9175 = vor.u32 %v9174, %v9170
  %v9176 = vrot.slane %v9175, 4
  %v9178 = vshll.u32 %v8597, 16
  %v9180 = vrot.slane %v9178, 5
  %v9181 = vsel %vm197, %v9176, %v9180
  %v9183 = vshrl.u32 %v8490, 16
  %v9185 = vrot.slane %v9183, 4
  %v9186 = vshll.u32 %v8490, 16
  %v9188 = vrot.slane %v9186, 5
  %v9189 = vor.u32 %v9185, %v9188
  %v9190 = vrot.slane %v9189, 4
  %v9192 = vshll.u32 %v8491, 16
  %v9194 = vrot.slane %v9192, 5
  %v9195 = vsel %vm197, %v9190, %v9194
  %v9196 = vshrl.u32 %v8491, 16
  %v9198 = vrot.slane %v9196, 4
  %v9199 = vor.u32 %v9198, %v9194
  %v9200 = vrot.slane %v9199, 4
  %v9202 = vshll.u32 %v8598, 16
  %v9204 = vrot.slane %v9202, 5
  %v9205 = vsel %vm197, %v9200, %v9204
  %v9207 = vshrl.u32 %v8492, 16
  %v9209 = vrot.slane %v9207, 4
  %v9210 = vshll.u32 %v8492, 16
  %v9212 = vrot.slane %v9210, 5
  %v9213 = vor.u32 %v9209, %v9212
  %v9214 = vrot.slane %v9213, 4
  %v9216 = vshll.u32 %v8493, 16
  %v9218 = vrot.slane %v9216, 5
  %v9219 = vsel %vm197, %v9214, %v9218
  %v9220 = vshrl.u32 %v8493, 16
  %v9222 = vrot.slane %v9220, 4
  %v9223 = vor.u32 %v9222, %v9218
  %v9224 = vrot.slane %v9223, 4
  %v9226 = vshll.u32 %v8599, 16
  %v9228 = vrot.slane %v9226, 5
  %v9229 = vsel %vm197, %v9224, %v9228
  %v9231 = vshrl.u32 %v8494, 16
  %v9233 = vrot.slane %v9231, 4
  %v9234 = vshll.u32 %v8494, 16
  %v9236 = vrot.slane %v9234, 5
  %v9237 = vor.u32 %v9233, %v9236
  %v9238 = vrot.slane %v9237, 4
  %v9240 = vshll.u32 %v8495, 16
  %v9242 = vrot.slane %v9240, 5
  %v9243 = vsel %vm197, %v9238, %v9242
  %v9244 = vshrl.u32 %v8495, 16
  %v9246 = vrot.slane %v9244, 4
  %v9247 = vor.u32 %v9246, %v9242
  %v9248 = vrot.slane %v9247, 4
  %v9250 = vshll.u32 %v8600, 16
  %v9252 = vrot.slane %v9250, 5
  %v9253 = vsel %vm197, %v9248, %v9252
  %v9255 = vshrl.u32 %v8496, 16
  %v9257 = vrot.slane %v9255, 4
  %v9258 = vshll.u32 %v8496, 16
  %v9260 = vrot.slane %v9258, 5
  %v9261 = vor.u32 %v9257, %v9260
  %v9262 = vrot.slane %v9261, 4
  %v9264 = vshll.u32 %v8497, 16
  %v9266 = vrot.slane %v9264, 5
  %v9267 = vsel %vm197, %v9262, %v9266
  %v9268 = vshrl.u32 %v8497, 16
  %v9270 = vrot.slane %v9268, 4
  %v9271 = vor.u32 %v9270, %v9266
  %v9272 = vrot.slane %v9271, 4
  %v9274 = vshll.u32 %v8601, 16
  %v9276 = vrot.slane %v9274, 5
  %v9277 = vsel %vm197, %v9272, %v9276
  %v9279 = vshrl.u32 %v8498, 16
  %v9281 = vrot.slane %v9279, 4
  %v9282 = vshll.u32 %v8498, 16
  %v9284 = vrot.slane %v9282, 5
  %v9285 = vor.u32 %v9281, %v9284
  %v9286 = vrot.slane %v9285, 4
  %v9288 = vshll.u32 %v8499, 16
  %v9290 = vrot.slane %v9288, 5
  %v9291 = vsel %vm197, %v9286, %v9290
  %v9292 = vshrl.u32 %v8499, 16
  %v9294 = vrot.slane %v9292, 4
  %v9295 = vor.u32 %v9294, %v9290
  %v9296 = vrot.slane %v9295, 4
  %v9298 = vshll.u32 %v8602, 16
  %v9300 = vrot.slane %v9298, 5
  %v9301 = vsel %vm197, %v9296, %v9300
  %v9303 = vshrl.u32 %v8500, 16
  %v9305 = vrot.slane %v9303, 4
  %v9306 = vshll.u32 %v8500, 16
  %v9308 = vrot.slane %v9306, 5
  %v9309 = vor.u32 %v9305, %v9308
  %v9310 = vrot.slane %v9309, 4
  %v9312 = vshll.u32 %v8501, 16
  %v9314 = vrot.slane %v9312, 5
  %v9315 = vsel %vm197, %v9310, %v9314
  %v9316 = vshrl.u32 %v8501, 16
  %v9318 = vrot.slane %v9316, 4
  %v9319 = vor.u32 %v9318, %v9314
  %v9320 = vrot.slane %v9319, 4
  %v9322 = vshll.u32 %v8603, 16
  %v9324 = vrot.slane %v9322, 5
  %v9325 = vsel %vm197, %v9320, %v9324
  %v9327 = vshrl.u32 %v8502, 16
  %v9329 = vrot.slane %v9327, 4
  %v9330 = vshll.u32 %v8502, 16
  %v9332 = vrot.slane %v9330, 5
  %v9333 = vor.u32 %v9329, %v9332
  %v9334 = vrot.slane %v9333, 4
  %v9336 = vshll.u32 %v8503, 16
  %v9338 = vrot.slane %v9336, 5
  %v9339 = vsel %vm197, %v9334, %v9338
  %v9340 = vshrl.u32 %v8503, 16
  %v9342 = vrot.slane %v9340, 4
  %v9343 = vor.u32 %v9342, %v9338
  %v9344 = vrot.slane %v9343, 4
  %v9346 = vshll.u32 %v8604, 16
  %v9348 = vrot.slane %v9346, 5
  %v9349 = vsel %vm197, %v9344, %v9348
  %v9351 = vshrl.u32 %v8504, 16
  %v9353 = vrot.slane %v9351, 4
  %v9354 = vshll.u32 %v8504, 16
  %v9356 = vrot.slane %v9354, 5
  %v9357 = vor.u32 %v9353, %v9356
  %v9358 = vrot.slane %v9357, 4
  %v9360 = vshll.u32 %v8505, 16
  %v9362 = vrot.slane %v9360, 5
  %v9363 = vsel %vm197, %v9358, %v9362
  %v9364 = vshrl.u32 %v8505, 16
  %v9366 = vrot.slane %v9364, 4
  %v9367 = vor.u32 %v9366, %v9362
  %v9368 = vrot.slane %v9367, 4
  %v9370 = vshll.u32 %v8605, 16
  %v9372 = vrot.slane %v9370, 5
  %v9373 = vsel %vm197, %v9368, %v9372
  %vm9438 = vcmp.lt.s32.totalorder %v28, 40
  %vm9439 = vmand %vm4629, %vm9438
  %v9440 = vsel %vm9439, 1, 0
  %vm9441 = vcmp.eq.s32.totalorder %v9440, 1
  %vm9442 = vmpackc.low %vm9441, %vm9441
  %v9443 = vsel %vm9442, %v8619, %v8510
  %v9444 = vsel %vm9442, %v8629, %v8511
  %v9445 = vsel %vm9442, %v8643, %v8512
  %v9446 = vsel %vm9442, %v8653, %v8513
  %v9447 = vsel %vm9442, %v8667, %v8514
  %v9448 = vsel %vm9442, %v8677, %v8515
  %v9449 = vsel %vm9442, %v8691, %v8516
  %v9450 = vsel %vm9442, %v8701, %v8517
  %v9451 = vsel %vm9442, %v8715, %v8518
  %v9452 = vsel %vm9442, %v8725, %v8519
  %v9453 = vsel %vm9442, %v8739, %v8520
  %v9454 = vsel %vm9442, %v8749, %v8521
  %v9455 = vsel %vm9442, %v8763, %v8522
  %v9456 = vsel %vm9442, %v8773, %v8523
  %v9457 = vsel %vm9442, %v8787, %v8524
  %v9458 = vsel %vm9442, %v8797, %v8525
  %v9459 = vsel %vm9442, %v8811, %v8526
  %v9460 = vsel %vm9442, %v8821, %v8527
  %v9461 = vsel %vm9442, %v8835, %v8528
  %v9462 = vsel %vm9442, %v8845, %v8529
  %v9463 = vsel %vm9442, %v8859, %v8530
  %v9464 = vsel %vm9442, %v8869, %v8531
  %v9465 = vsel %vm9442, %v8883, %v8532
  %v9466 = vsel %vm9442, %v8893, %v8533
  %v9467 = vsel %vm9442, %v8907, %v8534
  %v9468 = vsel %vm9442, %v8917, %v8535
  %v9469 = vsel %vm9442, %v8931, %v8536
  %v9470 = vsel %vm9442, %v8941, %v8537
  %v9471 = vsel %vm9442, %v8955, %v8538
  %v9472 = vsel %vm9442, %v8965, %v8539
  %v9473 = vsel %vm9442, %v8979, %v8540
  %v9474 = vsel %vm9442, %v8989, %v8541
  %v9475 = vsel %vm9442, %v9003, %v8542
  %v9476 = vsel %vm9442, %v9013, %v8543
  %v9477 = vsel %vm9442, %v9027, %v8544
  %v9478 = vsel %vm9442, %v9037, %v8545
  %v9479 = vsel %vm9442, %v9051, %v8546
  %v9480 = vsel %vm9442, %v9061, %v8547
  %v9481 = vsel %vm9442, %v9075, %v8548
  %v9482 = vsel %vm9442, %v9085, %v8549
  %v9483 = vsel %vm9442, %v9099, %v8550
  %v9484 = vsel %vm9442, %v9109, %v8551
  %v9485 = vsel %vm9442, %v9123, %v8552
  %v9486 = vsel %vm9442, %v9133, %v8553
  %v9487 = vsel %vm9442, %v9147, %v8554
  %v9488 = vsel %vm9442, %v9157, %v8555
  %v9489 = vsel %vm9442, %v9171, %v8556
  %v9490 = vsel %vm9442, %v9181, %v8557
  %v9491 = vsel %vm9442, %v9195, %v8558
  %v9492 = vsel %vm9442, %v9205, %v8559
  %v9493 = vsel %vm9442, %v9219, %v8560
  %v9494 = vsel %vm9442, %v9229, %v8561
  %v9495 = vsel %vm9442, %v9243, %v8562
  %v9496 = vsel %vm9442, %v9253, %v8563
  %v9497 = vsel %vm9442, %v9267, %v8564
  %v9498 = vsel %vm9442, %v9277, %v8565
  %v9499 = vsel %vm9442, %v9291, %v8566
  %v9500 = vsel %vm9442, %v9301, %v8567
  %v9501 = vsel %vm9442, %v9315, %v8568
  %v9502 = vsel %vm9442, %v9325, %v8569
  %v9503 = vsel %vm9442, %v9339, %v8570
  %v9504 = vsel %vm9442, %v9349, %v8571
  %v9505 = vsel %vm9442, %v9363, %v8572
  %v9506 = vsel %vm9442, %v9373, %v8573
  %v9507 = vld [vmem:[%s6664] sm:$0xe]
  %v9508 = vld [vmem:[%s6664 + $0xc] sm:$0xe]
  %v9509 = vld [vmem:[%s6664 + $0x18] sm:$0xe]
  %v9510 = vld [vmem:[%s6664 + $0x24] sm:$0xe]
  %v9511 = vld [vmem:[%s6664 + $0x30] sm:$0xe]
  %v9512 = vld [vmem:[%s6664 + $0x3c] sm:$0xe]
  %v9513 = vld [vmem:[%s6664 + $0x48] sm:$0xe]
  %v9514 = vld [vmem:[%s6664 + $0x54] sm:$0xe]
  %v9515 = vld [vmem:[%s6664 + $0x60] sm:$0xe]
  %v9516 = vld [vmem:[%s6664 + $0x6c] sm:$0xe]
  %v9517 = vld [vmem:[%s6664 + $0x78] sm:$0xe]
  %v9518 = vld [vmem:[%s6664 + $0x84] sm:$0xe]
  %v9519 = vld [vmem:[%s6664 + $0x90] sm:$0xe]
  %v9520 = vld [vmem:[%s6664 + $0x9c] sm:$0xe]
  %v9521 = vld [vmem:[%s6664 + $0xa8] sm:$0xe]
  %v9522 = vld [vmem:[%s6664 + $0xb4] sm:$0xe]
  %v9523 = vld [vmem:[%s6664 + $0xd8] sm:$0xe]
  %v9524 = vld [vmem:[%s6664 + $0xe4] sm:$0xe]
  %v9525 = vld [vmem:[%s6664 + $0xf0] sm:$0xe]
  %v9526 = vld [vmem:[%s6664 + $0xfc] sm:$0xe]
  %v9527 = vld [vmem:[%s6664 + $0x108] sm:$0xe]
  %v9528 = vld [vmem:[%s6664 + $0x114] sm:$0xe]
  %v9529 = vld [vmem:[%s6664 + $0x120] sm:$0xe]
  %v9530 = vld [vmem:[%s6664 + $0x12c] sm:$0xe]
  %v9531 = vld [vmem:[%s6664 + $0x138] sm:$0xe]
  %v9532 = vld [vmem:[%s6664 + $0x144] sm:$0xe]
  %v9533 = vld [vmem:[%s6664 + $0x150] sm:$0xe]
  %v9534 = vld [vmem:[%s6664 + $0x15c] sm:$0xe]
  %v9535 = vld [vmem:[%s6664 + $0x168] sm:$0xe]
  %v9536 = vld [vmem:[%s6664 + $0x174] sm:$0xe]
  %v9537 = vld [vmem:[%s6664 + $0x180] sm:$0xe]
  %v9538 = vld [vmem:[%s6664 + $0x18c] sm:$0xe]
  %v9635 = vrot.slane %v9507, 5
  %v9636 = vrot.slane %v9635, 4
  %v9637 = vrot.slane %v8443, 5
  %v9638 = vsel %vm1230, %v9636, %v9637
  %v9639 = vrot.slane %v9637, 4
  %v9640 = vrot.slane %v8574, 5
  %v9641 = vsel %vm1230, %v9639, %v9640
  %v9642 = vrot.slane %v9508, 5
  %v9643 = vrot.slane %v9642, 4
  %v9644 = vrot.slane %v8445, 5
  %v9645 = vsel %vm1230, %v9643, %v9644
  %v9646 = vrot.slane %v9644, 4
  %v9647 = vrot.slane %v8575, 5
  %v9648 = vsel %vm1230, %v9646, %v9647
  %v9649 = vrot.slane %v9509, 5
  %v9650 = vrot.slane %v9649, 4
  %v9651 = vrot.slane %v8447, 5
  %v9652 = vsel %vm1230, %v9650, %v9651
  %v9653 = vrot.slane %v9651, 4
  %v9654 = vrot.slane %v8576, 5
  %v9655 = vsel %vm1230, %v9653, %v9654
  %v9656 = vrot.slane %v9510, 5
  %v9657 = vrot.slane %v9656, 4
  %v9658 = vrot.slane %v8449, 5
  %v9659 = vsel %vm1230, %v9657, %v9658
  %v9660 = vrot.slane %v9658, 4
  %v9661 = vrot.slane %v8577, 5
  %v9662 = vsel %vm1230, %v9660, %v9661
  %v9663 = vrot.slane %v9511, 5
  %v9664 = vrot.slane %v9663, 4
  %v9665 = vrot.slane %v8451, 5
  %v9666 = vsel %vm1230, %v9664, %v9665
  %v9667 = vrot.slane %v9665, 4
  %v9668 = vrot.slane %v8578, 5
  %v9669 = vsel %vm1230, %v9667, %v9668
  %v9670 = vrot.slane %v9512, 5
  %v9671 = vrot.slane %v9670, 4
  %v9672 = vrot.slane %v8453, 5
  %v9673 = vsel %vm1230, %v9671, %v9672
  %v9674 = vrot.slane %v9672, 4
  %v9675 = vrot.slane %v8579, 5
  %v9676 = vsel %vm1230, %v9674, %v9675
  %v9677 = vrot.slane %v9513, 5
  %v9678 = vrot.slane %v9677, 4
  %v9679 = vrot.slane %v8455, 5
  %v9680 = vsel %vm1230, %v9678, %v9679
  %v9681 = vrot.slane %v9679, 4
  %v9682 = vrot.slane %v8580, 5
  %v9683 = vsel %vm1230, %v9681, %v9682
  %v9684 = vrot.slane %v9514, 5
  %v9685 = vrot.slane %v9684, 4
  %v9686 = vrot.slane %v8457, 5
  %v9687 = vsel %vm1230, %v9685, %v9686
  %v9688 = vrot.slane %v9686, 4
  %v9689 = vrot.slane %v8581, 5
  %v9690 = vsel %vm1230, %v9688, %v9689
  %v9691 = vrot.slane %v9515, 5
  %v9692 = vrot.slane %v9691, 4
  %v9693 = vrot.slane %v8459, 5
  %v9694 = vsel %vm1230, %v9692, %v9693
  %v9695 = vrot.slane %v9693, 4
  %v9696 = vrot.slane %v8582, 5
  %v9697 = vsel %vm1230, %v9695, %v9696
  %v9698 = vrot.slane %v9516, 5
  %v9699 = vrot.slane %v9698, 4
  %v9700 = vrot.slane %v8461, 5
  %v9701 = vsel %vm1230, %v9699, %v9700
  %v9702 = vrot.slane %v9700, 4
  %v9703 = vrot.slane %v8583, 5
  %v9704 = vsel %vm1230, %v9702, %v9703
  %v9705 = vrot.slane %v9517, 5
  %v9706 = vrot.slane %v9705, 4
  %v9707 = vrot.slane %v8463, 5
  %v9708 = vsel %vm1230, %v9706, %v9707
  %v9709 = vrot.slane %v9707, 4
  %v9710 = vrot.slane %v8584, 5
  %v9711 = vsel %vm1230, %v9709, %v9710
  %v9712 = vrot.slane %v9518, 5
  %v9713 = vrot.slane %v9712, 4
  %v9714 = vrot.slane %v8465, 5
  %v9715 = vsel %vm1230, %v9713, %v9714
  %v9716 = vrot.slane %v9714, 4
  %v9717 = vrot.slane %v8585, 5
  %v9718 = vsel %vm1230, %v9716, %v9717
  %v9719 = vrot.slane %v9519, 5
  %v9720 = vrot.slane %v9719, 4
  %v9721 = vrot.slane %v8467, 5
  %v9722 = vsel %vm1230, %v9720, %v9721
  %v9723 = vrot.slane %v9721, 4
  %v9724 = vrot.slane %v8586, 5
  %v9725 = vsel %vm1230, %v9723, %v9724
  %v9726 = vrot.slane %v9520, 5
  %v9727 = vrot.slane %v9726, 4
  %v9728 = vrot.slane %v8469, 5
  %v9729 = vsel %vm1230, %v9727, %v9728
  %v9730 = vrot.slane %v9728, 4
  %v9731 = vrot.slane %v8587, 5
  %v9732 = vsel %vm1230, %v9730, %v9731
  %v9733 = vrot.slane %v9521, 5
  %v9734 = vrot.slane %v9733, 4
  %v9735 = vrot.slane %v8471, 5
  %v9736 = vsel %vm1230, %v9734, %v9735
  %v9737 = vrot.slane %v9735, 4
  %v9738 = vrot.slane %v8588, 5
  %v9739 = vsel %vm1230, %v9737, %v9738
  %v9740 = vrot.slane %v9522, 5
  %v9741 = vrot.slane %v9740, 4
  %v9742 = vrot.slane %v8473, 5
  %v9743 = vsel %vm1230, %v9741, %v9742
  %v9744 = vrot.slane %v9742, 4
  %v9745 = vrot.slane %v8589, 5
  %v9746 = vsel %vm1230, %v9744, %v9745
  %v9747 = vrot.slane %v9523, 5
  %v9748 = vrot.slane %v9747, 4
  %v9749 = vrot.slane %v8475, 5
  %v9750 = vsel %vm1230, %v9748, %v9749
  %v9751 = vrot.slane %v9749, 4
  %v9752 = vrot.slane %v8590, 5
  %v9753 = vsel %vm1230, %v9751, %v9752
  %v9754 = vrot.slane %v9524, 5
  %v9755 = vrot.slane %v9754, 4
  %v9756 = vrot.slane %v8477, 5
  %v9757 = vsel %vm1230, %v9755, %v9756
  %v9758 = vrot.slane %v9756, 4
  %v9759 = vrot.slane %v8591, 5
  %v9760 = vsel %vm1230, %v9758, %v9759
  %v9761 = vrot.slane %v9525, 5
  %v9762 = vrot.slane %v9761, 4
  %v9763 = vrot.slane %v8479, 5
  %v9764 = vsel %vm1230, %v9762, %v9763
  %v9765 = vrot.slane %v9763, 4
  %v9766 = vrot.slane %v8592, 5
  %v9767 = vsel %vm1230, %v9765, %v9766
  %v9768 = vrot.slane %v9526, 5
  %v9769 = vrot.slane %v9768, 4
  %v9770 = vrot.slane %v8481, 5
  %v9771 = vsel %vm1230, %v9769, %v9770
  %v9772 = vrot.slane %v9770, 4
  %v9773 = vrot.slane %v8593, 5
  %v9774 = vsel %vm1230, %v9772, %v9773
  %v9775 = vrot.slane %v9527, 5
  %v9776 = vrot.slane %v9775, 4
  %v9777 = vrot.slane %v8483, 5
  %v9778 = vsel %vm1230, %v9776, %v9777
  %v9779 = vrot.slane %v9777, 4
  %v9780 = vrot.slane %v8594, 5
  %v9781 = vsel %vm1230, %v9779, %v9780
  %v9782 = vrot.slane %v9528, 5
  %v9783 = vrot.slane %v9782, 4
  %v9784 = vrot.slane %v8485, 5
  %v9785 = vsel %vm1230, %v9783, %v9784
  %v9786 = vrot.slane %v9784, 4
  %v9787 = vrot.slane %v8595, 5
  %v9788 = vsel %vm1230, %v9786, %v9787
  %v9789 = vrot.slane %v9529, 5
  %v9790 = vrot.slane %v9789, 4
  %v9791 = vrot.slane %v8487, 5
  %v9792 = vsel %vm1230, %v9790, %v9791
  %v9793 = vrot.slane %v9791, 4
  %v9794 = vrot.slane %v8596, 5
  %v9795 = vsel %vm1230, %v9793, %v9794
  %v9796 = vrot.slane %v9530, 5
  %v9797 = vrot.slane %v9796, 4
  %v9798 = vrot.slane %v8489, 5
  %v9799 = vsel %vm1230, %v9797, %v9798
  %v9800 = vrot.slane %v9798, 4
  %v9801 = vrot.slane %v8597, 5
  %v9802 = vsel %vm1230, %v9800, %v9801
  %v9803 = vrot.slane %v9531, 5
  %v9804 = vrot.slane %v9803, 4
  %v9805 = vrot.slane %v8491, 5
  %v9806 = vsel %vm1230, %v9804, %v9805
  %v9807 = vrot.slane %v9805, 4
  %v9808 = vrot.slane %v8598, 5
  %v9809 = vsel %vm1230, %v9807, %v9808
  %v9810 = vrot.slane %v9532, 5
  %v9811 = vrot.slane %v9810, 4
  %v9812 = vrot.slane %v8493, 5
  %v9813 = vsel %vm1230, %v9811, %v9812
  %v9814 = vrot.slane %v9812, 4
  %v9815 = vrot.slane %v8599, 5
  %v9816 = vsel %vm1230, %v9814, %v9815
  %v9817 = vrot.slane %v9533, 5
  %v9818 = vrot.slane %v9817, 4
  %v9819 = vrot.slane %v8495, 5
  %v9820 = vsel %vm1230, %v9818, %v9819
  %v9821 = vrot.slane %v9819, 4
  %v9822 = vrot.slane %v8600, 5
  %v9823 = vsel %vm1230, %v9821, %v9822
  %v9824 = vrot.slane %v9534, 5
  %v9825 = vrot.slane %v9824, 4
  %v9826 = vrot.slane %v8497, 5
  %v9827 = vsel %vm1230, %v9825, %v9826
  %v9828 = vrot.slane %v9826, 4
  %v9829 = vrot.slane %v8601, 5
  %v9830 = vsel %vm1230, %v9828, %v9829
  %v9831 = vrot.slane %v9535, 5
  %v9832 = vrot.slane %v9831, 4
  %v9833 = vrot.slane %v8499, 5
  %v9834 = vsel %vm1230, %v9832, %v9833
  %v9835 = vrot.slane %v9833, 4
  %v9836 = vrot.slane %v8602, 5
  %v9837 = vsel %vm1230, %v9835, %v9836
  %v9838 = vrot.slane %v9536, 5
  %v9839 = vrot.slane %v9838, 4
  %v9840 = vrot.slane %v8501, 5
  %v9841 = vsel %vm1230, %v9839, %v9840
  %v9842 = vrot.slane %v9840, 4
  %v9843 = vrot.slane %v8603, 5
  %v9844 = vsel %vm1230, %v9842, %v9843
  %v9845 = vrot.slane %v9537, 5
  %v9846 = vrot.slane %v9845, 4
  %v9847 = vrot.slane %v8503, 5
  %v9848 = vsel %vm1230, %v9846, %v9847
  %v9849 = vrot.slane %v9847, 4
  %v9850 = vrot.slane %v8604, 5
  %v9851 = vsel %vm1230, %v9849, %v9850
  %v9852 = vrot.slane %v9538, 5
  %v9853 = vrot.slane %v9852, 4
  %v9854 = vrot.slane %v8505, 5
  %v9855 = vsel %vm1230, %v9853, %v9854
  %v9856 = vrot.slane %v9854, 4
  %v9857 = vrot.slane %v8605, 5
  %v9858 = vsel %vm1230, %v9856, %v9857
  %vm9923 = vcmp.ge.s32.totalorder %v28, 40
  %vm9924 = vcmp.lt.s32.totalorder %v28, 48
  %vm9925 = vmand %vm9923, %vm9924
  %v9926 = vsel %vm9925, 1, 0
  %vm9927 = vcmp.eq.s32.totalorder %v9926, 1
  %vm9928 = vmpackc.low %vm9927, %vm9927
  %v9929 = vsel %vm9928, %v9638, %v9443
  %v9930 = vsel %vm9928, %v9641, %v9444
  %v9931 = vsel %vm9928, %v9645, %v9445
  %v9932 = vsel %vm9928, %v9648, %v9446
  %v9933 = vsel %vm9928, %v9652, %v9447
  %v9934 = vsel %vm9928, %v9655, %v9448
  %v9935 = vsel %vm9928, %v9659, %v9449
  %v9936 = vsel %vm9928, %v9662, %v9450
  %v9937 = vsel %vm9928, %v9666, %v9451
  %v9938 = vsel %vm9928, %v9669, %v9452
  %v9939 = vsel %vm9928, %v9673, %v9453
  %v9940 = vsel %vm9928, %v9676, %v9454
  %v9941 = vsel %vm9928, %v9680, %v9455
  %v9942 = vsel %vm9928, %v9683, %v9456
  %v9943 = vsel %vm9928, %v9687, %v9457
  %v9944 = vsel %vm9928, %v9690, %v9458
  %v9945 = vsel %vm9928, %v9694, %v9459
  %v9946 = vsel %vm9928, %v9697, %v9460
  %v9947 = vsel %vm9928, %v9701, %v9461
  %v9948 = vsel %vm9928, %v9704, %v9462
  %v9949 = vsel %vm9928, %v9708, %v9463
  %v9950 = vsel %vm9928, %v9711, %v9464
  %v9951 = vsel %vm9928, %v9715, %v9465
  %v9952 = vsel %vm9928, %v9718, %v9466
  %v9953 = vsel %vm9928, %v9722, %v9467
  %v9954 = vsel %vm9928, %v9725, %v9468
  %v9955 = vsel %vm9928, %v9729, %v9469
  %v9956 = vsel %vm9928, %v9732, %v9470
  %v9957 = vsel %vm9928, %v9736, %v9471
  %v9958 = vsel %vm9928, %v9739, %v9472
  %v9959 = vsel %vm9928, %v9743, %v9473
  %v9960 = vsel %vm9928, %v9746, %v9474
  %v9961 = vsel %vm9928, %v9750, %v9475
  %v9962 = vsel %vm9928, %v9753, %v9476
  %v9963 = vsel %vm9928, %v9757, %v9477
  %v9964 = vsel %vm9928, %v9760, %v9478
  %v9965 = vsel %vm9928, %v9764, %v9479
  %v9966 = vsel %vm9928, %v9767, %v9480
  %v9967 = vsel %vm9928, %v9771, %v9481
  %v9968 = vsel %vm9928, %v9774, %v9482
  %v9969 = vsel %vm9928, %v9778, %v9483
  %v9970 = vsel %vm9928, %v9781, %v9484
  %v9971 = vsel %vm9928, %v9785, %v9485
  %v9972 = vsel %vm9928, %v9788, %v9486
  %v9973 = vsel %vm9928, %v9792, %v9487
  %v9974 = vsel %vm9928, %v9795, %v9488
  %v9975 = vsel %vm9928, %v9799, %v9489
  %v9976 = vsel %vm9928, %v9802, %v9490
  %v9977 = vsel %vm9928, %v9806, %v9491
  %v9978 = vsel %vm9928, %v9809, %v9492
  %v9979 = vsel %vm9928, %v9813, %v9493
  %v9980 = vsel %vm9928, %v9816, %v9494
  %v9981 = vsel %vm9928, %v9820, %v9495
  %v9982 = vsel %vm9928, %v9823, %v9496
  %v9983 = vsel %vm9928, %v9827, %v9497
  %v9984 = vsel %vm9928, %v9830, %v9498
  %v9985 = vsel %vm9928, %v9834, %v9499
  %v9986 = vsel %vm9928, %v9837, %v9500
  %v9987 = vsel %vm9928, %v9841, %v9501
  %v9988 = vsel %vm9928, %v9844, %v9502
  %v9989 = vsel %vm9928, %v9848, %v9503
  %v9990 = vsel %vm9928, %v9851, %v9504
  %v9991 = vsel %vm9928, %v9855, %v9505
  %v9992 = vsel %vm9928, %v9858, %v9506
  %s9993 = scalar_lea.vmem [#allocation2], 24
  %v9994 = vld [vmem:[%s9993] sm:$0xf]
  %v9995 = vld [vmem:[%s9993 + $0x4] sm:$0xf]
  %v9996 = vld [vmem:[%s9993 + $0xc] sm:$0xf]
  %v9997 = vld [vmem:[%s9993 + $0x10] sm:$0xf]
  %v9998 = vld [vmem:[%s9993 + $0x18] sm:$0xf]
  %v9999 = vld [vmem:[%s9993 + $0x1c] sm:$0xf]
  %v10000 = vld [vmem:[%s9993 + $0x24] sm:$0xf]
  %v10001 = vld [vmem:[%s9993 + $0x28] sm:$0xf]
  %v10002 = vld [vmem:[%s9993 + $0x30] sm:$0xf]
  %v10003 = vld [vmem:[%s9993 + $0x34] sm:$0xf]
  %v10004 = vld [vmem:[%s9993 + $0x3c] sm:$0xf]
  %v10005 = vld [vmem:[%s9993 + $0x40] sm:$0xf]
  %v10006 = vld [vmem:[%s9993 + $0x48] sm:$0xf]
  %v10007 = vld [vmem:[%s9993 + $0x4c] sm:$0xf]
  %v10008 = vld [vmem:[%s9993 + $0x54] sm:$0xf]
  %v10009 = vld [vmem:[%s9993 + $0x58] sm:$0xf]
  %v10010 = vld [vmem:[%s9993 + $0x60] sm:$0xf]
  %v10011 = vld [vmem:[%s9993 + $0x64] sm:$0xf]
  %v10012 = vld [vmem:[%s9993 + $0x6c] sm:$0xf]
  %v10013 = vld [vmem:[%s9993 + $0x70] sm:$0xf]
  %v10014 = vld [vmem:[%s9993 + $0x78] sm:$0xf]
  %v10015 = vld [vmem:[%s9993 + $0x7c] sm:$0xf]
  %v10016 = vld [vmem:[%s9993 + $0x84] sm:$0xf]
  %v10017 = vld [vmem:[%s9993 + $0x88] sm:$0xf]
  %v10018 = vld [vmem:[%s9993 + $0x90] sm:$0xf]
  %v10019 = vld [vmem:[%s9993 + $0x94] sm:$0xf]
  %v10020 = vld [vmem:[%s9993 + $0x9c] sm:$0xf]
  %v10021 = vld [vmem:[%s9993 + $0xa0] sm:$0xf]
  %v10022 = vld [vmem:[%s9993 + $0xa8] sm:$0xf]
  %v10023 = vld [vmem:[%s9993 + $0xac] sm:$0xf]
  %v10024 = vld [vmem:[%s9993 + $0xb4] sm:$0xf]
  %v10025 = vld [vmem:[%s9993 + $0xb8] sm:$0xf]
  %v10026 = vld [vmem:[%s9993 + $0xd8] sm:$0xf]
  %v10027 = vld [vmem:[%s9993 + $0xdc] sm:$0xf]
  %v10028 = vld [vmem:[%s9993 + $0xe4] sm:$0xf]
  %v10029 = vld [vmem:[%s9993 + $0xe8] sm:$0xf]
  %v10030 = vld [vmem:[%s9993 + $0xf0] sm:$0xf]
  %v10031 = vld [vmem:[%s9993 + $0xf4] sm:$0xf]
  %v10032 = vld [vmem:[%s9993 + $0xfc] sm:$0xf]
  %v10033 = vld [vmem:[%s9993 + $0x100] sm:$0xf]
  %v10034 = vld [vmem:[%s9993 + $0x108] sm:$0xf]
  %v10035 = vld [vmem:[%s9993 + $0x10c] sm:$0xf]
  %v10036 = vld [vmem:[%s9993 + $0x114] sm:$0xf]
  %v10037 = vld [vmem:[%s9993 + $0x118] sm:$0xf]
  %v10038 = vld [vmem:[%s9993 + $0x120] sm:$0xf]
  %v10039 = vld [vmem:[%s9993 + $0x124] sm:$0xf]
  %v10040 = vld [vmem:[%s9993 + $0x12c] sm:$0xf]
  %v10041 = vld [vmem:[%s9993 + $0x130] sm:$0xf]
  %v10042 = vld [vmem:[%s9993 + $0x138] sm:$0xf]
  %v10043 = vld [vmem:[%s9993 + $0x13c] sm:$0xf]
  %v10044 = vld [vmem:[%s9993 + $0x144] sm:$0xf]
  %v10045 = vld [vmem:[%s9993 + $0x148] sm:$0xf]
  %v10046 = vld [vmem:[%s9993 + $0x150] sm:$0xf]
  %v10047 = vld [vmem:[%s9993 + $0x154] sm:$0xf]
  %v10048 = vld [vmem:[%s9993 + $0x15c] sm:$0xf]
  %v10049 = vld [vmem:[%s9993 + $0x160] sm:$0xf]
  %v10050 = vld [vmem:[%s9993 + $0x168] sm:$0xf]
  %v10051 = vld [vmem:[%s9993 + $0x16c] sm:$0xf]
  %v10052 = vld [vmem:[%s9993 + $0x174] sm:$0xf]
  %v10053 = vld [vmem:[%s9993 + $0x178] sm:$0xf]
  %v10054 = vld [vmem:[%s9993 + $0x180] sm:$0xf]
  %v10055 = vld [vmem:[%s9993 + $0x184] sm:$0xf]
  %v10056 = vld [vmem:[%s9993 + $0x18c] sm:$0xf]
  %v10057 = vld [vmem:[%s9993 + $0x190] sm:$0xf]
  %vm10058 = vcmp.ge.s32.totalorder %v28, 48
  %vm10059 = vcmp.lt.s32.totalorder %v28, 56
  %vm10060 = vmand %vm10058, %vm10059
  %v10061 = vsel %vm10060, 1, 0
  %vm10062 = vcmp.eq.s32.totalorder %v10061, 1
  %vm10063 = vmpackc.low %vm10062, %vm10062
  %v10064 = vsel %vm10063, %v9994, %v9929
  %v10065 = vsel %vm10063, %v9995, %v9930
  %v10066 = vsel %vm10063, %v9996, %v9931
  %v10067 = vsel %vm10063, %v9997, %v9932
  %v10068 = vsel %vm10063, %v9998, %v9933
  %v10069 = vsel %vm10063, %v9999, %v9934
  %v10070 = vsel %vm10063, %v10000, %v9935
  %v10071 = vsel %vm10063, %v10001, %v9936
  %v10072 = vsel %vm10063, %v10002, %v9937
  %v10073 = vsel %vm10063, %v10003, %v9938
  %v10074 = vsel %vm10063, %v10004, %v9939
  %v10075 = vsel %vm10063, %v10005, %v9940
  %v10076 = vsel %vm10063, %v10006, %v9941
  %v10077 = vsel %vm10063, %v10007, %v9942
  %v10078 = vsel %vm10063, %v10008, %v9943
  %v10079 = vsel %vm10063, %v10009, %v9944
  %v10080 = vsel %vm10063, %v10010, %v9945
  %v10081 = vsel %vm10063, %v10011, %v9946
  %v10082 = vsel %vm10063, %v10012, %v9947
  %v10083 = vsel %vm10063, %v10013, %v9948
  %v10084 = vsel %vm10063, %v10014, %v9949
  %v10085 = vsel %vm10063, %v10015, %v9950
  %v10086 = vsel %vm10063, %v10016, %v9951
  %v10087 = vsel %vm10063, %v10017, %v9952
  %v10088 = vsel %vm10063, %v10018, %v9953
  %v10089 = vsel %vm10063, %v10019, %v9954
  %v10090 = vsel %vm10063, %v10020, %v9955
  %v10091 = vsel %vm10063, %v10021, %v9956
  %v10092 = vsel %vm10063, %v10022, %v9957
  %v10093 = vsel %vm10063, %v10023, %v9958
  %v10094 = vsel %vm10063, %v10024, %v9959
  %v10095 = vsel %vm10063, %v10025, %v9960
  %v10096 = vsel %vm10063, %v10026, %v9961
  %v10097 = vsel %vm10063, %v10027, %v9962
  %v10098 = vsel %vm10063, %v10028, %v9963
  %v10099 = vsel %vm10063, %v10029, %v9964
  %v10100 = vsel %vm10063, %v10030, %v9965
  %v10101 = vsel %vm10063, %v10031, %v9966
  %v10102 = vsel %vm10063, %v10032, %v9967
  %v10103 = vsel %vm10063, %v10033, %v9968
  %v10104 = vsel %vm10063, %v10034, %v9969
  %v10105 = vsel %vm10063, %v10035, %v9970
  %v10106 = vsel %vm10063, %v10036, %v9971
  %v10107 = vsel %vm10063, %v10037, %v9972
  %v10108 = vsel %vm10063, %v10038, %v9973
  %v10109 = vsel %vm10063, %v10039, %v9974
  %v10110 = vsel %vm10063, %v10040, %v9975
  %v10111 = vsel %vm10063, %v10041, %v9976
  %v10112 = vsel %vm10063, %v10042, %v9977
  %v10113 = vsel %vm10063, %v10043, %v9978
  %v10114 = vsel %vm10063, %v10044, %v9979
  %v10115 = vsel %vm10063, %v10045, %v9980
  %v10116 = vsel %vm10063, %v10046, %v9981
  %v10117 = vsel %vm10063, %v10047, %v9982
  %v10118 = vsel %vm10063, %v10048, %v9983
  %v10119 = vsel %vm10063, %v10049, %v9984
  %v10120 = vsel %vm10063, %v10050, %v9985
  %v10121 = vsel %vm10063, %v10051, %v9986
  %v10122 = vsel %vm10063, %v10052, %v9987
  %v10123 = vsel %vm10063, %v10053, %v9988
  %v10124 = vsel %vm10063, %v10054, %v9989
  %v10125 = vsel %vm10063, %v10055, %v9990
  %v10126 = vsel %vm10063, %v10056, %v9991
  %v10127 = vsel %vm10063, %v10057, %v9992
  %v10128 = vld [vmem:[%s9993 + $0x8] sm:$0x1]
  %v10129 = vld [vmem:[%s9993 + $0x14] sm:$0x1]
  %v10130 = vld [vmem:[%s9993 + $0x20] sm:$0x1]
  %v10131 = vld [vmem:[%s9993 + $0x2c] sm:$0x1]
  %v10132 = vld [vmem:[%s9993 + $0x38] sm:$0x1]
  %v10133 = vld [vmem:[%s9993 + $0x44] sm:$0x1]
  %v10134 = vld [vmem:[%s9993 + $0x50] sm:$0x1]
  %v10135 = vld [vmem:[%s9993 + $0x5c] sm:$0x1]
  %v10136 = vld [vmem:[%s9993 + $0x68] sm:$0x1]
  %v10137 = vld [vmem:[%s9993 + $0x74] sm:$0x1]
  %v10138 = vld [vmem:[%s9993 + $0x80] sm:$0x1]
  %v10139 = vld [vmem:[%s9993 + $0x8c] sm:$0x1]
  %v10140 = vld [vmem:[%s9993 + $0x98] sm:$0x1]
  %v10141 = vld [vmem:[%s9993 + $0xa4] sm:$0x1]
  %v10142 = vld [vmem:[%s9993 + $0xb0] sm:$0x1]
  %v10143 = vld [vmem:[%s9993 + $0xbc] sm:$0x1]
  %v10144 = vld [vmem:[%s9993 + $0xe0] sm:$0x1]
  %v10145 = vld [vmem:[%s9993 + $0xec] sm:$0x1]
  %v10146 = vld [vmem:[%s9993 + $0xf8] sm:$0x1]
  %v10147 = vld [vmem:[%s9993 + $0x104] sm:$0x1]
  %v10148 = vld [vmem:[%s9993 + $0x110] sm:$0x1]
  %v10149 = vld [vmem:[%s9993 + $0x11c] sm:$0x1]
  %v10150 = vld [vmem:[%s9993 + $0x128] sm:$0x1]
  %v10151 = vld [vmem:[%s9993 + $0x134] sm:$0x1]
  %v10152 = vld [vmem:[%s9993 + $0x140] sm:$0x1]
  %v10153 = vld [vmem:[%s9993 + $0x14c] sm:$0x1]
  %v10154 = vld [vmem:[%s9993 + $0x158] sm:$0x1]
  %v10155 = vld [vmem:[%s9993 + $0x164] sm:$0x1]
  %v10156 = vld [vmem:[%s9993 + $0x170] sm:$0x1]
  %v10157 = vld [vmem:[%s9993 + $0x17c] sm:$0x1]
  %v10158 = vld [vmem:[%s9993 + $0x188] sm:$0x1]
  %v10159 = vld [vmem:[%s9993 + $0x194] sm:$0x1]
  %v10161 = vshrl.u32 %v9994, 16
  %v10163 = vrot.slane %v10161, 4
  %v10164 = vshll.u32 %v9994, 16
  %v10166 = vrot.slane %v10164, 5
  %v10167 = vor.u32 %v10163, %v10166
  %v10168 = vrot.slane %v10167, 4
  %v10170 = vshll.u32 %v9995, 16
  %v10172 = vrot.slane %v10170, 5
  %v10173 = vsel %vm197, %v10168, %v10172
  %v10174 = vshrl.u32 %v9995, 16
  %v10176 = vrot.slane %v10174, 4
  %v10177 = vor.u32 %v10176, %v10172
  %v10178 = vrot.slane %v10177, 4
  %v10180 = vshll.u32 %v10128, 16
  %v10182 = vrot.slane %v10180, 5
  %v10183 = vsel %vm197, %v10178, %v10182
  %v10185 = vshrl.u32 %v9996, 16
  %v10187 = vrot.slane %v10185, 4
  %v10188 = vshll.u32 %v9996, 16
  %v10190 = vrot.slane %v10188, 5
  %v10191 = vor.u32 %v10187, %v10190
  %v10192 = vrot.slane %v10191, 4
  %v10194 = vshll.u32 %v9997, 16
  %v10196 = vrot.slane %v10194, 5
  %v10197 = vsel %vm197, %v10192, %v10196
  %v10198 = vshrl.u32 %v9997, 16
  %v10200 = vrot.slane %v10198, 4
  %v10201 = vor.u32 %v10200, %v10196
  %v10202 = vrot.slane %v10201, 4
  %v10204 = vshll.u32 %v10129, 16
  %v10206 = vrot.slane %v10204, 5
  %v10207 = vsel %vm197, %v10202, %v10206
  %v10209 = vshrl.u32 %v9998, 16
  %v10211 = vrot.slane %v10209, 4
  %v10212 = vshll.u32 %v9998, 16
  %v10214 = vrot.slane %v10212, 5
  %v10215 = vor.u32 %v10211, %v10214
  %v10216 = vrot.slane %v10215, 4
  %v10218 = vshll.u32 %v9999, 16
  %v10220 = vrot.slane %v10218, 5
  %v10221 = vsel %vm197, %v10216, %v10220
  %v10222 = vshrl.u32 %v9999, 16
  %v10224 = vrot.slane %v10222, 4
  %v10225 = vor.u32 %v10224, %v10220
  %v10226 = vrot.slane %v10225, 4
  %v10228 = vshll.u32 %v10130, 16
  %v10230 = vrot.slane %v10228, 5
  %v10231 = vsel %vm197, %v10226, %v10230
  %v10233 = vshrl.u32 %v10000, 16
  %v10235 = vrot.slane %v10233, 4
  %v10236 = vshll.u32 %v10000, 16
  %v10238 = vrot.slane %v10236, 5
  %v10239 = vor.u32 %v10235, %v10238
  %v10240 = vrot.slane %v10239, 4
  %v10242 = vshll.u32 %v10001, 16
  %v10244 = vrot.slane %v10242, 5
  %v10245 = vsel %vm197, %v10240, %v10244
  %v10246 = vshrl.u32 %v10001, 16
  %v10248 = vrot.slane %v10246, 4
  %v10249 = vor.u32 %v10248, %v10244
  %v10250 = vrot.slane %v10249, 4
  %v10252 = vshll.u32 %v10131, 16
  %v10254 = vrot.slane %v10252, 5
  %v10255 = vsel %vm197, %v10250, %v10254
  %v10257 = vshrl.u32 %v10002, 16
  %v10259 = vrot.slane %v10257, 4
  %v10260 = vshll.u32 %v10002, 16
  %v10262 = vrot.slane %v10260, 5
  %v10263 = vor.u32 %v10259, %v10262
  %v10264 = vrot.slane %v10263, 4
  %v10266 = vshll.u32 %v10003, 16
  %v10268 = vrot.slane %v10266, 5
  %v10269 = vsel %vm197, %v10264, %v10268
  %v10270 = vshrl.u32 %v10003, 16
  %v10272 = vrot.slane %v10270, 4
  %v10273 = vor.u32 %v10272, %v10268
  %v10274 = vrot.slane %v10273, 4
  %v10276 = vshll.u32 %v10132, 16
  %v10278 = vrot.slane %v10276, 5
  %v10279 = vsel %vm197, %v10274, %v10278
  %v10281 = vshrl.u32 %v10004, 16
  %v10283 = vrot.slane %v10281, 4
  %v10284 = vshll.u32 %v10004, 16
  %v10286 = vrot.slane %v10284, 5
  %v10287 = vor.u32 %v10283, %v10286
  %v10288 = vrot.slane %v10287, 4
  %v10290 = vshll.u32 %v10005, 16
  %v10292 = vrot.slane %v10290, 5
  %v10293 = vsel %vm197, %v10288, %v10292
  %v10294 = vshrl.u32 %v10005, 16
  %v10296 = vrot.slane %v10294, 4
  %v10297 = vor.u32 %v10296, %v10292
  %v10298 = vrot.slane %v10297, 4
  %v10300 = vshll.u32 %v10133, 16
  %v10302 = vrot.slane %v10300, 5
  %v10303 = vsel %vm197, %v10298, %v10302
  %v10305 = vshrl.u32 %v10006, 16
  %v10307 = vrot.slane %v10305, 4
  %v10308 = vshll.u32 %v10006, 16
  %v10310 = vrot.slane %v10308, 5
  %v10311 = vor.u32 %v10307, %v10310
  %v10312 = vrot.slane %v10311, 4
  %v10314 = vshll.u32 %v10007, 16
  %v10316 = vrot.slane %v10314, 5
  %v10317 = vsel %vm197, %v10312, %v10316
  %v10318 = vshrl.u32 %v10007, 16
  %v10320 = vrot.slane %v10318, 4
  %v10321 = vor.u32 %v10320, %v10316
  %v10322 = vrot.slane %v10321, 4
  %v10324 = vshll.u32 %v10134, 16
  %v10326 = vrot.slane %v10324, 5
  %v10327 = vsel %vm197, %v10322, %v10326
  %v10329 = vshrl.u32 %v10008, 16
  %v10331 = vrot.slane %v10329, 4
  %v10332 = vshll.u32 %v10008, 16
  %v10334 = vrot.slane %v10332, 5
  %v10335 = vor.u32 %v10331, %v10334
  %v10336 = vrot.slane %v10335, 4
  %v10338 = vshll.u32 %v10009, 16
  %v10340 = vrot.slane %v10338, 5
  %v10341 = vsel %vm197, %v10336, %v10340
  %v10342 = vshrl.u32 %v10009, 16
  %v10344 = vrot.slane %v10342, 4
  %v10345 = vor.u32 %v10344, %v10340
  %v10346 = vrot.slane %v10345, 4
  %v10348 = vshll.u32 %v10135, 16
  %v10350 = vrot.slane %v10348, 5
  %v10351 = vsel %vm197, %v10346, %v10350
  %v10353 = vshrl.u32 %v10010, 16
  %v10355 = vrot.slane %v10353, 4
  %v10356 = vshll.u32 %v10010, 16
  %v10358 = vrot.slane %v10356, 5
  %v10359 = vor.u32 %v10355, %v10358
  %v10360 = vrot.slane %v10359, 4
  %v10362 = vshll.u32 %v10011, 16
  %v10364 = vrot.slane %v10362, 5
  %v10365 = vsel %vm197, %v10360, %v10364
  %v10366 = vshrl.u32 %v10011, 16
  %v10368 = vrot.slane %v10366, 4
  %v10369 = vor.u32 %v10368, %v10364
  %v10370 = vrot.slane %v10369, 4
  %v10372 = vshll.u32 %v10136, 16
  %v10374 = vrot.slane %v10372, 5
  %v10375 = vsel %vm197, %v10370, %v10374
  %v10377 = vshrl.u32 %v10012, 16
  %v10379 = vrot.slane %v10377, 4
  %v10380 = vshll.u32 %v10012, 16
  %v10382 = vrot.slane %v10380, 5
  %v10383 = vor.u32 %v10379, %v10382
  %v10384 = vrot.slane %v10383, 4
  %v10386 = vshll.u32 %v10013, 16
  %v10388 = vrot.slane %v10386, 5
  %v10389 = vsel %vm197, %v10384, %v10388
  %v10390 = vshrl.u32 %v10013, 16
  %v10392 = vrot.slane %v10390, 4
  %v10393 = vor.u32 %v10392, %v10388
  %v10394 = vrot.slane %v10393, 4
  %v10396 = vshll.u32 %v10137, 16
  %v10398 = vrot.slane %v10396, 5
  %v10399 = vsel %vm197, %v10394, %v10398
  %v10401 = vshrl.u32 %v10014, 16
  %v10403 = vrot.slane %v10401, 4
  %v10404 = vshll.u32 %v10014, 16
  %v10406 = vrot.slane %v10404, 5
  %v10407 = vor.u32 %v10403, %v10406
  %v10408 = vrot.slane %v10407, 4
  %v10410 = vshll.u32 %v10015, 16
  %v10412 = vrot.slane %v10410, 5
  %v10413 = vsel %vm197, %v10408, %v10412
  %v10414 = vshrl.u32 %v10015, 16
  %v10416 = vrot.slane %v10414, 4
  %v10417 = vor.u32 %v10416, %v10412
  %v10418 = vrot.slane %v10417, 4
  %v10420 = vshll.u32 %v10138, 16
  %v10422 = vrot.slane %v10420, 5
  %v10423 = vsel %vm197, %v10418, %v10422
  %v10425 = vshrl.u32 %v10016, 16
  %v10427 = vrot.slane %v10425, 4
  %v10428 = vshll.u32 %v10016, 16
  %v10430 = vrot.slane %v10428, 5
  %v10431 = vor.u32 %v10427, %v10430
  %v10432 = vrot.slane %v10431, 4
  %v10434 = vshll.u32 %v10017, 16
  %v10436 = vrot.slane %v10434, 5
  %v10437 = vsel %vm197, %v10432, %v10436
  %v10438 = vshrl.u32 %v10017, 16
  %v10440 = vrot.slane %v10438, 4
  %v10441 = vor.u32 %v10440, %v10436
  %v10442 = vrot.slane %v10441, 4
  %v10444 = vshll.u32 %v10139, 16
  %v10446 = vrot.slane %v10444, 5
  %v10447 = vsel %vm197, %v10442, %v10446
  %v10449 = vshrl.u32 %v10018, 16
  %v10451 = vrot.slane %v10449, 4
  %v10452 = vshll.u32 %v10018, 16
  %v10454 = vrot.slane %v10452, 5
  %v10455 = vor.u32 %v10451, %v10454
  %v10456 = vrot.slane %v10455, 4
  %v10458 = vshll.u32 %v10019, 16
  %v10460 = vrot.slane %v10458, 5
  %v10461 = vsel %vm197, %v10456, %v10460
  %v10462 = vshrl.u32 %v10019, 16
  %v10464 = vrot.slane %v10462, 4
  %v10465 = vor.u32 %v10464, %v10460
  %v10466 = vrot.slane %v10465, 4
  %v10468 = vshll.u32 %v10140, 16
  %v10470 = vrot.slane %v10468, 5
  %v10471 = vsel %vm197, %v10466, %v10470
  %v10473 = vshrl.u32 %v10020, 16
  %v10475 = vrot.slane %v10473, 4
  %v10476 = vshll.u32 %v10020, 16
  %v10478 = vrot.slane %v10476, 5
  %v10479 = vor.u32 %v10475, %v10478
  %v10480 = vrot.slane %v10479, 4
  %v10482 = vshll.u32 %v10021, 16
  %v10484 = vrot.slane %v10482, 5
  %v10485 = vsel %vm197, %v10480, %v10484
  %v10486 = vshrl.u32 %v10021, 16
  %v10488 = vrot.slane %v10486, 4
  %v10489 = vor.u32 %v10488, %v10484
  %v10490 = vrot.slane %v10489, 4
  %v10492 = vshll.u32 %v10141, 16
  %v10494 = vrot.slane %v10492, 5
  %v10495 = vsel %vm197, %v10490, %v10494
  %v10497 = vshrl.u32 %v10022, 16
  %v10499 = vrot.slane %v10497, 4
  %v10500 = vshll.u32 %v10022, 16
  %v10502 = vrot.slane %v10500, 5
  %v10503 = vor.u32 %v10499, %v10502
  %v10504 = vrot.slane %v10503, 4
  %v10506 = vshll.u32 %v10023, 16
  %v10508 = vrot.slane %v10506, 5
  %v10509 = vsel %vm197, %v10504, %v10508
  %v10510 = vshrl.u32 %v10023, 16
  %v10512 = vrot.slane %v10510, 4
  %v10513 = vor.u32 %v10512, %v10508
  %v10514 = vrot.slane %v10513, 4
  %v10516 = vshll.u32 %v10142, 16
  %v10518 = vrot.slane %v10516, 5
  %v10519 = vsel %vm197, %v10514, %v10518
  %v10521 = vshrl.u32 %v10024, 16
  %v10523 = vrot.slane %v10521, 4
  %v10524 = vshll.u32 %v10024, 16
  %v10526 = vrot.slane %v10524, 5
  %v10527 = vor.u32 %v10523, %v10526
  %v10528 = vrot.slane %v10527, 4
  %v10530 = vshll.u32 %v10025, 16
  %v10532 = vrot.slane %v10530, 5
  %v10533 = vsel %vm197, %v10528, %v10532
  %v10534 = vshrl.u32 %v10025, 16
  %v10536 = vrot.slane %v10534, 4
  %v10537 = vor.u32 %v10536, %v10532
  %v10538 = vrot.slane %v10537, 4
  %v10540 = vshll.u32 %v10143, 16
  %v10542 = vrot.slane %v10540, 5
  %v10543 = vsel %vm197, %v10538, %v10542
  %v10545 = vshrl.u32 %v10026, 16
  %v10547 = vrot.slane %v10545, 4
  %v10548 = vshll.u32 %v10026, 16
  %v10550 = vrot.slane %v10548, 5
  %v10551 = vor.u32 %v10547, %v10550
  %v10552 = vrot.slane %v10551, 4
  %v10554 = vshll.u32 %v10027, 16
  %v10556 = vrot.slane %v10554, 5
  %v10557 = vsel %vm197, %v10552, %v10556
  %v10558 = vshrl.u32 %v10027, 16
  %v10560 = vrot.slane %v10558, 4
  %v10561 = vor.u32 %v10560, %v10556
  %v10562 = vrot.slane %v10561, 4
  %v10564 = vshll.u32 %v10144, 16
  %v10566 = vrot.slane %v10564, 5
  %v10567 = vsel %vm197, %v10562, %v10566
  %v10569 = vshrl.u32 %v10028, 16
  %v10571 = vrot.slane %v10569, 4
  %v10572 = vshll.u32 %v10028, 16
  %v10574 = vrot.slane %v10572, 5
  %v10575 = vor.u32 %v10571, %v10574
  %v10576 = vrot.slane %v10575, 4
  %v10578 = vshll.u32 %v10029, 16
  %v10580 = vrot.slane %v10578, 5
  %v10581 = vsel %vm197, %v10576, %v10580
  %v10582 = vshrl.u32 %v10029, 16
  %v10584 = vrot.slane %v10582, 4
  %v10585 = vor.u32 %v10584, %v10580
  %v10586 = vrot.slane %v10585, 4
  %v10588 = vshll.u32 %v10145, 16
  %v10590 = vrot.slane %v10588, 5
  %v10591 = vsel %vm197, %v10586, %v10590
  %v10593 = vshrl.u32 %v10030, 16
  %v10595 = vrot.slane %v10593, 4
  %v10596 = vshll.u32 %v10030, 16
  %v10598 = vrot.slane %v10596, 5
  %v10599 = vor.u32 %v10595, %v10598
  %v10600 = vrot.slane %v10599, 4
  %v10602 = vshll.u32 %v10031, 16
  %v10604 = vrot.slane %v10602, 5
  %v10605 = vsel %vm197, %v10600, %v10604
  %v10606 = vshrl.u32 %v10031, 16
  %v10608 = vrot.slane %v10606, 4
  %v10609 = vor.u32 %v10608, %v10604
  %v10610 = vrot.slane %v10609, 4
  %v10612 = vshll.u32 %v10146, 16
  %v10614 = vrot.slane %v10612, 5
  %v10615 = vsel %vm197, %v10610, %v10614
  %v10617 = vshrl.u32 %v10032, 16
  %v10619 = vrot.slane %v10617, 4
  %v10620 = vshll.u32 %v10032, 16
  %v10622 = vrot.slane %v10620, 5
  %v10623 = vor.u32 %v10619, %v10622
  %v10624 = vrot.slane %v10623, 4
  %v10626 = vshll.u32 %v10033, 16
  %v10628 = vrot.slane %v10626, 5
  %v10629 = vsel %vm197, %v10624, %v10628
  %v10630 = vshrl.u32 %v10033, 16
  %v10632 = vrot.slane %v10630, 4
  %v10633 = vor.u32 %v10632, %v10628
  %v10634 = vrot.slane %v10633, 4
  %v10636 = vshll.u32 %v10147, 16
  %v10638 = vrot.slane %v10636, 5
  %v10639 = vsel %vm197, %v10634, %v10638
  %v10641 = vshrl.u32 %v10034, 16
  %v10643 = vrot.slane %v10641, 4
  %v10644 = vshll.u32 %v10034, 16
  %v10646 = vrot.slane %v10644, 5
  %v10647 = vor.u32 %v10643, %v10646
  %v10648 = vrot.slane %v10647, 4
  %v10650 = vshll.u32 %v10035, 16
  %v10652 = vrot.slane %v10650, 5
  %v10653 = vsel %vm197, %v10648, %v10652
  %v10654 = vshrl.u32 %v10035, 16
  %v10656 = vrot.slane %v10654, 4
  %v10657 = vor.u32 %v10656, %v10652
  %v10658 = vrot.slane %v10657, 4
  %v10660 = vshll.u32 %v10148, 16
  %v10662 = vrot.slane %v10660, 5
  %v10663 = vsel %vm197, %v10658, %v10662
  %v10665 = vshrl.u32 %v10036, 16
  %v10667 = vrot.slane %v10665, 4
  %v10668 = vshll.u32 %v10036, 16
  %v10670 = vrot.slane %v10668, 5
  %v10671 = vor.u32 %v10667, %v10670
  %v10672 = vrot.slane %v10671, 4
  %v10674 = vshll.u32 %v10037, 16
  %v10676 = vrot.slane %v10674, 5
  %v10677 = vsel %vm197, %v10672, %v10676
  %v10678 = vshrl.u32 %v10037, 16
  %v10680 = vrot.slane %v10678, 4
  %v10681 = vor.u32 %v10680, %v10676
  %v10682 = vrot.slane %v10681, 4
  %v10684 = vshll.u32 %v10149, 16
  %v10686 = vrot.slane %v10684, 5
  %v10687 = vsel %vm197, %v10682, %v10686
  %v10689 = vshrl.u32 %v10038, 16
  %v10691 = vrot.slane %v10689, 4
  %v10692 = vshll.u32 %v10038, 16
  %v10694 = vrot.slane %v10692, 5
  %v10695 = vor.u32 %v10691, %v10694
  %v10696 = vrot.slane %v10695, 4
  %v10698 = vshll.u32 %v10039, 16
  %v10700 = vrot.slane %v10698, 5
  %v10701 = vsel %vm197, %v10696, %v10700
  %v10702 = vshrl.u32 %v10039, 16
  %v10704 = vrot.slane %v10702, 4
  %v10705 = vor.u32 %v10704, %v10700
  %v10706 = vrot.slane %v10705, 4
  %v10708 = vshll.u32 %v10150, 16
  %v10710 = vrot.slane %v10708, 5
  %v10711 = vsel %vm197, %v10706, %v10710
  %v10713 = vshrl.u32 %v10040, 16
  %v10715 = vrot.slane %v10713, 4
  %v10716 = vshll.u32 %v10040, 16
  %v10718 = vrot.slane %v10716, 5
  %v10719 = vor.u32 %v10715, %v10718
  %v10720 = vrot.slane %v10719, 4
  %v10722 = vshll.u32 %v10041, 16
  %v10724 = vrot.slane %v10722, 5
  %v10725 = vsel %vm197, %v10720, %v10724
  %v10726 = vshrl.u32 %v10041, 16
  %v10728 = vrot.slane %v10726, 4
  %v10729 = vor.u32 %v10728, %v10724
  %v10730 = vrot.slane %v10729, 4
  %v10732 = vshll.u32 %v10151, 16
  %v10734 = vrot.slane %v10732, 5
  %v10735 = vsel %vm197, %v10730, %v10734
  %v10737 = vshrl.u32 %v10042, 16
  %v10739 = vrot.slane %v10737, 4
  %v10740 = vshll.u32 %v10042, 16
  %v10742 = vrot.slane %v10740, 5
  %v10743 = vor.u32 %v10739, %v10742
  %v10744 = vrot.slane %v10743, 4
  %v10746 = vshll.u32 %v10043, 16
  %v10748 = vrot.slane %v10746, 5
  %v10749 = vsel %vm197, %v10744, %v10748
  %v10750 = vshrl.u32 %v10043, 16
  %v10752 = vrot.slane %v10750, 4
  %v10753 = vor.u32 %v10752, %v10748
  %v10754 = vrot.slane %v10753, 4
  %v10756 = vshll.u32 %v10152, 16
  %v10758 = vrot.slane %v10756, 5
  %v10759 = vsel %vm197, %v10754, %v10758
  %v10761 = vshrl.u32 %v10044, 16
  %v10763 = vrot.slane %v10761, 4
  %v10764 = vshll.u32 %v10044, 16
  %v10766 = vrot.slane %v10764, 5
  %v10767 = vor.u32 %v10763, %v10766
  %v10768 = vrot.slane %v10767, 4
  %v10770 = vshll.u32 %v10045, 16
  %v10772 = vrot.slane %v10770, 5
  %v10773 = vsel %vm197, %v10768, %v10772
  %v10774 = vshrl.u32 %v10045, 16
  %v10776 = vrot.slane %v10774, 4
  %v10777 = vor.u32 %v10776, %v10772
  %v10778 = vrot.slane %v10777, 4
  %v10780 = vshll.u32 %v10153, 16
  %v10782 = vrot.slane %v10780, 5
  %v10783 = vsel %vm197, %v10778, %v10782
  %v10785 = vshrl.u32 %v10046, 16
  %v10787 = vrot.slane %v10785, 4
  %v10788 = vshll.u32 %v10046, 16
  %v10790 = vrot.slane %v10788, 5
  %v10791 = vor.u32 %v10787, %v10790
  %v10792 = vrot.slane %v10791, 4
  %v10794 = vshll.u32 %v10047, 16
  %v10796 = vrot.slane %v10794, 5
  %v10797 = vsel %vm197, %v10792, %v10796
  %v10798 = vshrl.u32 %v10047, 16
  %v10800 = vrot.slane %v10798, 4
  %v10801 = vor.u32 %v10800, %v10796
  %v10802 = vrot.slane %v10801, 4
  %v10804 = vshll.u32 %v10154, 16
  %v10806 = vrot.slane %v10804, 5
  %v10807 = vsel %vm197, %v10802, %v10806
  %v10809 = vshrl.u32 %v10048, 16
  %v10811 = vrot.slane %v10809, 4
  %v10812 = vshll.u32 %v10048, 16
  %v10814 = vrot.slane %v10812, 5
  %v10815 = vor.u32 %v10811, %v10814
  %v10816 = vrot.slane %v10815, 4
  %v10818 = vshll.u32 %v10049, 16
  %v10820 = vrot.slane %v10818, 5
  %v10821 = vsel %vm197, %v10816, %v10820
  %v10822 = vshrl.u32 %v10049, 16
  %v10824 = vrot.slane %v10822, 4
  %v10825 = vor.u32 %v10824, %v10820
  %v10826 = vrot.slane %v10825, 4
  %v10828 = vshll.u32 %v10155, 16
  %v10830 = vrot.slane %v10828, 5
  %v10831 = vsel %vm197, %v10826, %v10830
  %v10833 = vshrl.u32 %v10050, 16
  %v10835 = vrot.slane %v10833, 4
  %v10836 = vshll.u32 %v10050, 16
  %v10838 = vrot.slane %v10836, 5
  %v10839 = vor.u32 %v10835, %v10838
  %v10840 = vrot.slane %v10839, 4
  %v10842 = vshll.u32 %v10051, 16
  %v10844 = vrot.slane %v10842, 5
  %v10845 = vsel %vm197, %v10840, %v10844
  %v10846 = vshrl.u32 %v10051, 16
  %v10848 = vrot.slane %v10846, 4
  %v10849 = vor.u32 %v10848, %v10844
  %v10850 = vrot.slane %v10849, 4
  %v10852 = vshll.u32 %v10156, 16
  %v10854 = vrot.slane %v10852, 5
  %v10855 = vsel %vm197, %v10850, %v10854
  %v10857 = vshrl.u32 %v10052, 16
  %v10859 = vrot.slane %v10857, 4
  %v10860 = vshll.u32 %v10052, 16
  %v10862 = vrot.slane %v10860, 5
  %v10863 = vor.u32 %v10859, %v10862
  %v10864 = vrot.slane %v10863, 4
  %v10866 = vshll.u32 %v10053, 16
  %v10868 = vrot.slane %v10866, 5
  %v10869 = vsel %vm197, %v10864, %v10868
  %v10870 = vshrl.u32 %v10053, 16
  %v10872 = vrot.slane %v10870, 4
  %v10873 = vor.u32 %v10872, %v10868
  %v10874 = vrot.slane %v10873, 4
  %v10876 = vshll.u32 %v10157, 16
  %v10878 = vrot.slane %v10876, 5
  %v10879 = vsel %vm197, %v10874, %v10878
  %v10881 = vshrl.u32 %v10054, 16
  %v10883 = vrot.slane %v10881, 4
  %v10884 = vshll.u32 %v10054, 16
  %v10886 = vrot.slane %v10884, 5
  %v10887 = vor.u32 %v10883, %v10886
  %v10888 = vrot.slane %v10887, 4
  %v10890 = vshll.u32 %v10055, 16
  %v10892 = vrot.slane %v10890, 5
  %v10893 = vsel %vm197, %v10888, %v10892
  %v10894 = vshrl.u32 %v10055, 16
  %v10896 = vrot.slane %v10894, 4
  %v10897 = vor.u32 %v10896, %v10892
  %v10898 = vrot.slane %v10897, 4
  %v10900 = vshll.u32 %v10158, 16
  %v10902 = vrot.slane %v10900, 5
  %v10903 = vsel %vm197, %v10898, %v10902
  %v10905 = vshrl.u32 %v10056, 16
  %v10907 = vrot.slane %v10905, 4
  %v10908 = vshll.u32 %v10056, 16
  %v10910 = vrot.slane %v10908, 5
  %v10911 = vor.u32 %v10907, %v10910
  %v10912 = vrot.slane %v10911, 4
  %v10914 = vshll.u32 %v10057, 16
  %v10916 = vrot.slane %v10914, 5
  %v10917 = vsel %vm197, %v10912, %v10916
  %v10918 = vshrl.u32 %v10057, 16
  %v10920 = vrot.slane %v10918, 4
  %v10921 = vor.u32 %v10920, %v10916
  %v10922 = vrot.slane %v10921, 4
  %v10924 = vshll.u32 %v10159, 16
  %v10926 = vrot.slane %v10924, 5
  %v10927 = vsel %vm197, %v10922, %v10926
  %vm10992 = vcmp.ge.s32.totalorder %v28, 56
  %vm10993 = vcmp.lt.s32.totalorder %v28, 64
  %vm10994 = vmand %vm10992, %vm10993
  %v10995 = vsel %vm10994, 1, 0
  %vm10996 = vcmp.eq.s32.totalorder %v10995, 1
  %vm10997 = vmpackc.low %vm10996, %vm10996
  %v10998 = vsel %vm10997, %v10173, %v10064
  %v10999 = vsel %vm10997, %v10183, %v10065
  %v11000 = vsel %vm10997, %v10197, %v10066
  %v11001 = vsel %vm10997, %v10207, %v10067
  %v11002 = vsel %vm10997, %v10221, %v10068
  %v11003 = vsel %vm10997, %v10231, %v10069
  %v11004 = vsel %vm10997, %v10245, %v10070
  %v11005 = vsel %vm10997, %v10255, %v10071
  %v11006 = vsel %vm10997, %v10269, %v10072
  %v11007 = vsel %vm10997, %v10279, %v10073
  %v11008 = vsel %vm10997, %v10293, %v10074
  %v11009 = vsel %vm10997, %v10303, %v10075
  %v11010 = vsel %vm10997, %v10317, %v10076
  %v11011 = vsel %vm10997, %v10327, %v10077
  %v11012 = vsel %vm10997, %v10341, %v10078
  %v11013 = vsel %vm10997, %v10351, %v10079
  %v11014 = vsel %vm10997, %v10365, %v10080
  %v11015 = vsel %vm10997, %v10375, %v10081
  %v11016 = vsel %vm10997, %v10389, %v10082
  %v11017 = vsel %vm10997, %v10399, %v10083
  %v11018 = vsel %vm10997, %v10413, %v10084
  %v11019 = vsel %vm10997, %v10423, %v10085
  %v11020 = vsel %vm10997, %v10437, %v10086
  %v11021 = vsel %vm10997, %v10447, %v10087
  %v11022 = vsel %vm10997, %v10461, %v10088
  %v11023 = vsel %vm10997, %v10471, %v10089
  %v11024 = vsel %vm10997, %v10485, %v10090
  %v11025 = vsel %vm10997, %v10495, %v10091
  %v11026 = vsel %vm10997, %v10509, %v10092
  %v11027 = vsel %vm10997, %v10519, %v10093
  %v11028 = vsel %vm10997, %v10533, %v10094
  %v11029 = vsel %vm10997, %v10543, %v10095
  %v11030 = vsel %vm10997, %v10557, %v10096
  %v11031 = vsel %vm10997, %v10567, %v10097
  %v11032 = vsel %vm10997, %v10581, %v10098
  %v11033 = vsel %vm10997, %v10591, %v10099
  %v11034 = vsel %vm10997, %v10605, %v10100
  %v11035 = vsel %vm10997, %v10615, %v10101
  %v11036 = vsel %vm10997, %v10629, %v10102
  %v11037 = vsel %vm10997, %v10639, %v10103
  %v11038 = vsel %vm10997, %v10653, %v10104
  %v11039 = vsel %vm10997, %v10663, %v10105
  %v11040 = vsel %vm10997, %v10677, %v10106
  %v11041 = vsel %vm10997, %v10687, %v10107
  %v11042 = vsel %vm10997, %v10701, %v10108
  %v11043 = vsel %vm10997, %v10711, %v10109
  %v11044 = vsel %vm10997, %v10725, %v10110
  %v11045 = vsel %vm10997, %v10735, %v10111
  %v11046 = vsel %vm10997, %v10749, %v10112
  %v11047 = vsel %vm10997, %v10759, %v10113
  %v11048 = vsel %vm10997, %v10773, %v10114
  %v11049 = vsel %vm10997, %v10783, %v10115
  %v11050 = vsel %vm10997, %v10797, %v10116
  %v11051 = vsel %vm10997, %v10807, %v10117
  %v11052 = vsel %vm10997, %v10821, %v10118
  %v11053 = vsel %vm10997, %v10831, %v10119
  %v11054 = vsel %vm10997, %v10845, %v10120
  %v11055 = vsel %vm10997, %v10855, %v10121
  %v11056 = vsel %vm10997, %v10869, %v10122
  %v11057 = vsel %vm10997, %v10879, %v10123
  %v11058 = vsel %vm10997, %v10893, %v10124
  %v11059 = vsel %vm10997, %v10903, %v10125
  %v11060 = vsel %vm10997, %v10917, %v10126
  %v11061 = vsel %vm10997, %v10927, %v10127
  %v11062 = vld [vmem:[%s9993] sm:$0xe]
  %v11063 = vld [vmem:[%s9993 + $0xc] sm:$0xe]
  %v11064 = vld [vmem:[%s9993 + $0x18] sm:$0xe]
  %v11065 = vld [vmem:[%s9993 + $0x24] sm:$0xe]
  %v11066 = vld [vmem:[%s9993 + $0x30] sm:$0xe]
  %v11067 = vld [vmem:[%s9993 + $0x3c] sm:$0xe]
  %v11068 = vld [vmem:[%s9993 + $0x48] sm:$0xe]
  %v11069 = vld [vmem:[%s9993 + $0x54] sm:$0xe]
  %v11070 = vld [vmem:[%s9993 + $0x60] sm:$0xe]
  %v11071 = vld [vmem:[%s9993 + $0x6c] sm:$0xe]
  %v11072 = vld [vmem:[%s9993 + $0x78] sm:$0xe]
  %v11073 = vld [vmem:[%s9993 + $0x84] sm:$0xe]
  %v11074 = vld [vmem:[%s9993 + $0x90] sm:$0xe]
  %v11075 = vld [vmem:[%s9993 + $0x9c] sm:$0xe]
  %v11076 = vld [vmem:[%s9993 + $0xa8] sm:$0xe]
  %v11077 = vld [vmem:[%s9993 + $0xb4] sm:$0xe]
  %v11078 = vld [vmem:[%s9993 + $0xd8] sm:$0xe]
  %v11079 = vld [vmem:[%s9993 + $0xe4] sm:$0xe]
  %v11080 = vld [vmem:[%s9993 + $0xf0] sm:$0xe]
  %v11081 = vld [vmem:[%s9993 + $0xfc] sm:$0xe]
  %v11082 = vld [vmem:[%s9993 + $0x108] sm:$0xe]
  %v11083 = vld [vmem:[%s9993 + $0x114] sm:$0xe]
  %v11084 = vld [vmem:[%s9993 + $0x120] sm:$0xe]
  %v11085 = vld [vmem:[%s9993 + $0x12c] sm:$0xe]
  %v11086 = vld [vmem:[%s9993 + $0x138] sm:$0xe]
  %v11087 = vld [vmem:[%s9993 + $0x144] sm:$0xe]
  %v11088 = vld [vmem:[%s9993 + $0x150] sm:$0xe]
  %v11089 = vld [vmem:[%s9993 + $0x15c] sm:$0xe]
  %v11090 = vld [vmem:[%s9993 + $0x168] sm:$0xe]
  %v11091 = vld [vmem:[%s9993 + $0x174] sm:$0xe]
  %v11092 = vld [vmem:[%s9993 + $0x180] sm:$0xe]
  %v11093 = vld [vmem:[%s9993 + $0x18c] sm:$0xe]
  %v11190 = vrot.slane %v11062, 5
  %v11191 = vrot.slane %v11190, 4
  %v11192 = vrot.slane %v9995, 5
  %v11193 = vsel %vm1230, %v11191, %v11192
  %v11194 = vrot.slane %v11192, 4
  %v11195 = vrot.slane %v10128, 5
  %v11196 = vsel %vm1230, %v11194, %v11195
  %v11197 = vrot.slane %v11063, 5
  %v11198 = vrot.slane %v11197, 4
  %v11199 = vrot.slane %v9997, 5
  %v11200 = vsel %vm1230, %v11198, %v11199
  %v11201 = vrot.slane %v11199, 4
  %v11202 = vrot.slane %v10129, 5
  %v11203 = vsel %vm1230, %v11201, %v11202
  %v11204 = vrot.slane %v11064, 5
  %v11205 = vrot.slane %v11204, 4
  %v11206 = vrot.slane %v9999, 5
  %v11207 = vsel %vm1230, %v11205, %v11206
  %v11208 = vrot.slane %v11206, 4
  %v11209 = vrot.slane %v10130, 5
  %v11210 = vsel %vm1230, %v11208, %v11209
  %v11211 = vrot.slane %v11065, 5
  %v11212 = vrot.slane %v11211, 4
  %v11213 = vrot.slane %v10001, 5
  %v11214 = vsel %vm1230, %v11212, %v11213
  %v11215 = vrot.slane %v11213, 4
  %v11216 = vrot.slane %v10131, 5
  %v11217 = vsel %vm1230, %v11215, %v11216
  %v11218 = vrot.slane %v11066, 5
  %v11219 = vrot.slane %v11218, 4
  %v11220 = vrot.slane %v10003, 5
  %v11221 = vsel %vm1230, %v11219, %v11220
  %v11222 = vrot.slane %v11220, 4
  %v11223 = vrot.slane %v10132, 5
  %v11224 = vsel %vm1230, %v11222, %v11223
  %v11225 = vrot.slane %v11067, 5
  %v11226 = vrot.slane %v11225, 4
  %v11227 = vrot.slane %v10005, 5
  %v11228 = vsel %vm1230, %v11226, %v11227
  %v11229 = vrot.slane %v11227, 4
  %v11230 = vrot.slane %v10133, 5
  %v11231 = vsel %vm1230, %v11229, %v11230
  %v11232 = vrot.slane %v11068, 5
  %v11233 = vrot.slane %v11232, 4
  %v11234 = vrot.slane %v10007, 5
  %v11235 = vsel %vm1230, %v11233, %v11234
  %v11236 = vrot.slane %v11234, 4
  %v11237 = vrot.slane %v10134, 5
  %v11238 = vsel %vm1230, %v11236, %v11237
  %v11239 = vrot.slane %v11069, 5
  %v11240 = vrot.slane %v11239, 4
  %v11241 = vrot.slane %v10009, 5
  %v11242 = vsel %vm1230, %v11240, %v11241
  %v11243 = vrot.slane %v11241, 4
  %v11244 = vrot.slane %v10135, 5
  %v11245 = vsel %vm1230, %v11243, %v11244
  %v11246 = vrot.slane %v11070, 5
  %v11247 = vrot.slane %v11246, 4
  %v11248 = vrot.slane %v10011, 5
  %v11249 = vsel %vm1230, %v11247, %v11248
  %v11250 = vrot.slane %v11248, 4
  %v11251 = vrot.slane %v10136, 5
  %v11252 = vsel %vm1230, %v11250, %v11251
  %v11253 = vrot.slane %v11071, 5
  %v11254 = vrot.slane %v11253, 4
  %v11255 = vrot.slane %v10013, 5
  %v11256 = vsel %vm1230, %v11254, %v11255
  %v11257 = vrot.slane %v11255, 4
  %v11258 = vrot.slane %v10137, 5
  %v11259 = vsel %vm1230, %v11257, %v11258
  %v11260 = vrot.slane %v11072, 5
  %v11261 = vrot.slane %v11260, 4
  %v11262 = vrot.slane %v10015, 5
  %v11263 = vsel %vm1230, %v11261, %v11262
  %v11264 = vrot.slane %v11262, 4
  %v11265 = vrot.slane %v10138, 5
  %v11266 = vsel %vm1230, %v11264, %v11265
  %v11267 = vrot.slane %v11073, 5
  %v11268 = vrot.slane %v11267, 4
  %v11269 = vrot.slane %v10017, 5
  %v11270 = vsel %vm1230, %v11268, %v11269
  %v11271 = vrot.slane %v11269, 4
  %v11272 = vrot.slane %v10139, 5
  %v11273 = vsel %vm1230, %v11271, %v11272
  %v11274 = vrot.slane %v11074, 5
  %v11275 = vrot.slane %v11274, 4
  %v11276 = vrot.slane %v10019, 5
  %v11277 = vsel %vm1230, %v11275, %v11276
  %v11278 = vrot.slane %v11276, 4
  %v11279 = vrot.slane %v10140, 5
  %v11280 = vsel %vm1230, %v11278, %v11279
  %v11281 = vrot.slane %v11075, 5
  %v11282 = vrot.slane %v11281, 4
  %v11283 = vrot.slane %v10021, 5
  %v11284 = vsel %vm1230, %v11282, %v11283
  %v11285 = vrot.slane %v11283, 4
  %v11286 = vrot.slane %v10141, 5
  %v11287 = vsel %vm1230, %v11285, %v11286
  %v11288 = vrot.slane %v11076, 5
  %v11289 = vrot.slane %v11288, 4
  %v11290 = vrot.slane %v10023, 5
  %v11291 = vsel %vm1230, %v11289, %v11290
  %v11292 = vrot.slane %v11290, 4
  %v11293 = vrot.slane %v10142, 5
  %v11294 = vsel %vm1230, %v11292, %v11293
  %v11295 = vrot.slane %v11077, 5
  %v11296 = vrot.slane %v11295, 4
  %v11297 = vrot.slane %v10025, 5
  %v11298 = vsel %vm1230, %v11296, %v11297
  %v11299 = vrot.slane %v11297, 4
  %v11300 = vrot.slane %v10143, 5
  %v11301 = vsel %vm1230, %v11299, %v11300
  %v11302 = vrot.slane %v11078, 5
  %v11303 = vrot.slane %v11302, 4
  %v11304 = vrot.slane %v10027, 5
  %v11305 = vsel %vm1230, %v11303, %v11304
  %v11306 = vrot.slane %v11304, 4
  %v11307 = vrot.slane %v10144, 5
  %v11308 = vsel %vm1230, %v11306, %v11307
  %v11309 = vrot.slane %v11079, 5
  %v11310 = vrot.slane %v11309, 4
  %v11311 = vrot.slane %v10029, 5
  %v11312 = vsel %vm1230, %v11310, %v11311
  %v11313 = vrot.slane %v11311, 4
  %v11314 = vrot.slane %v10145, 5
  %v11315 = vsel %vm1230, %v11313, %v11314
  %v11316 = vrot.slane %v11080, 5
  %v11317 = vrot.slane %v11316, 4
  %v11318 = vrot.slane %v10031, 5
  %v11319 = vsel %vm1230, %v11317, %v11318
  %v11320 = vrot.slane %v11318, 4
  %v11321 = vrot.slane %v10146, 5
  %v11322 = vsel %vm1230, %v11320, %v11321
  %v11323 = vrot.slane %v11081, 5
  %v11324 = vrot.slane %v11323, 4
  %v11325 = vrot.slane %v10033, 5
  %v11326 = vsel %vm1230, %v11324, %v11325
  %v11327 = vrot.slane %v11325, 4
  %v11328 = vrot.slane %v10147, 5
  %v11329 = vsel %vm1230, %v11327, %v11328
  %v11330 = vrot.slane %v11082, 5
  %v11331 = vrot.slane %v11330, 4
  %v11332 = vrot.slane %v10035, 5
  %v11333 = vsel %vm1230, %v11331, %v11332
  %v11334 = vrot.slane %v11332, 4
  %v11335 = vrot.slane %v10148, 5
  %v11336 = vsel %vm1230, %v11334, %v11335
  %v11337 = vrot.slane %v11083, 5
  %v11338 = vrot.slane %v11337, 4
  %v11339 = vrot.slane %v10037, 5
  %v11340 = vsel %vm1230, %v11338, %v11339
  %v11341 = vrot.slane %v11339, 4
  %v11342 = vrot.slane %v10149, 5
  %v11343 = vsel %vm1230, %v11341, %v11342
  %v11344 = vrot.slane %v11084, 5
  %v11345 = vrot.slane %v11344, 4
  %v11346 = vrot.slane %v10039, 5
  %v11347 = vsel %vm1230, %v11345, %v11346
  %v11348 = vrot.slane %v11346, 4
  %v11349 = vrot.slane %v10150, 5
  %v11350 = vsel %vm1230, %v11348, %v11349
  %v11351 = vrot.slane %v11085, 5
  %v11352 = vrot.slane %v11351, 4
  %v11353 = vrot.slane %v10041, 5
  %v11354 = vsel %vm1230, %v11352, %v11353
  %v11355 = vrot.slane %v11353, 4
  %v11356 = vrot.slane %v10151, 5
  %v11357 = vsel %vm1230, %v11355, %v11356
  %v11358 = vrot.slane %v11086, 5
  %v11359 = vrot.slane %v11358, 4
  %v11360 = vrot.slane %v10043, 5
  %v11361 = vsel %vm1230, %v11359, %v11360
  %v11362 = vrot.slane %v11360, 4
  %v11363 = vrot.slane %v10152, 5
  %v11364 = vsel %vm1230, %v11362, %v11363
  %v11365 = vrot.slane %v11087, 5
  %v11366 = vrot.slane %v11365, 4
  %v11367 = vrot.slane %v10045, 5
  %v11368 = vsel %vm1230, %v11366, %v11367
  %v11369 = vrot.slane %v11367, 4
  %v11370 = vrot.slane %v10153, 5
  %v11371 = vsel %vm1230, %v11369, %v11370
  %v11372 = vrot.slane %v11088, 5
  %v11373 = vrot.slane %v11372, 4
  %v11374 = vrot.slane %v10047, 5
  %v11375 = vsel %vm1230, %v11373, %v11374
  %v11376 = vrot.slane %v11374, 4
  %v11377 = vrot.slane %v10154, 5
  %v11378 = vsel %vm1230, %v11376, %v11377
  %v11379 = vrot.slane %v11089, 5
  %v11380 = vrot.slane %v11379, 4
  %v11381 = vrot.slane %v10049, 5
  %v11382 = vsel %vm1230, %v11380, %v11381
  %v11383 = vrot.slane %v11381, 4
  %v11384 = vrot.slane %v10155, 5
  %v11385 = vsel %vm1230, %v11383, %v11384
  %v11386 = vrot.slane %v11090, 5
  %v11387 = vrot.slane %v11386, 4
  %v11388 = vrot.slane %v10051, 5
  %v11389 = vsel %vm1230, %v11387, %v11388
  %v11390 = vrot.slane %v11388, 4
  %v11391 = vrot.slane %v10156, 5
  %v11392 = vsel %vm1230, %v11390, %v11391
  %v11393 = vrot.slane %v11091, 5
  %v11394 = vrot.slane %v11393, 4
  %v11395 = vrot.slane %v10053, 5
  %v11396 = vsel %vm1230, %v11394, %v11395
  %v11397 = vrot.slane %v11395, 4
  %v11398 = vrot.slane %v10157, 5
  %v11399 = vsel %vm1230, %v11397, %v11398
  %v11400 = vrot.slane %v11092, 5
  %v11401 = vrot.slane %v11400, 4
  %v11402 = vrot.slane %v10055, 5
  %v11403 = vsel %vm1230, %v11401, %v11402
  %v11404 = vrot.slane %v11402, 4
  %v11405 = vrot.slane %v10158, 5
  %v11406 = vsel %vm1230, %v11404, %v11405
  %v11407 = vrot.slane %v11093, 5
  %v11408 = vrot.slane %v11407, 4
  %v11409 = vrot.slane %v10057, 5
  %v11410 = vsel %vm1230, %v11408, %v11409
  %v11411 = vrot.slane %v11409, 4
  %v11412 = vrot.slane %v10159, 5
  %v11413 = vsel %vm1230, %v11411, %v11412
  %vm11478 = vcmp.ge.s32.totalorder %v28, 64
  %vm11479 = vcmp.lt.s32.totalorder %v28, 72
  %vm11480 = vmand %vm11478, %vm11479
  %v11481 = vsel %vm11480, 1, 0
  %vm11482 = vcmp.eq.s32.totalorder %v11481, 1
  %vm11483 = vmpackc.low %vm11482, %vm11482
  %v11484 = vsel %vm11483, %v11193, %v10998
  %v11485 = vsel %vm11483, %v11196, %v10999
  %v11486 = vsel %vm11483, %v11200, %v11000
  %v11487 = vsel %vm11483, %v11203, %v11001
  %v11488 = vsel %vm11483, %v11207, %v11002
  %v11489 = vsel %vm11483, %v11210, %v11003
  %v11490 = vsel %vm11483, %v11214, %v11004
  %v11491 = vsel %vm11483, %v11217, %v11005
  %v11492 = vsel %vm11483, %v11221, %v11006
  %v11493 = vsel %vm11483, %v11224, %v11007
  %v11494 = vsel %vm11483, %v11228, %v11008
  %v11495 = vsel %vm11483, %v11231, %v11009
  %v11496 = vsel %vm11483, %v11235, %v11010
  %v11497 = vsel %vm11483, %v11238, %v11011
  %v11498 = vsel %vm11483, %v11242, %v11012
  %v11499 = vsel %vm11483, %v11245, %v11013
  %v11500 = vsel %vm11483, %v11249, %v11014
  %v11501 = vsel %vm11483, %v11252, %v11015
  %v11502 = vsel %vm11483, %v11256, %v11016
  %v11503 = vsel %vm11483, %v11259, %v11017
  %v11504 = vsel %vm11483, %v11263, %v11018
  %v11505 = vsel %vm11483, %v11266, %v11019
  %v11506 = vsel %vm11483, %v11270, %v11020
  %v11507 = vsel %vm11483, %v11273, %v11021
  %v11508 = vsel %vm11483, %v11277, %v11022
  %v11509 = vsel %vm11483, %v11280, %v11023
  %v11510 = vsel %vm11483, %v11284, %v11024
  %v11511 = vsel %vm11483, %v11287, %v11025
  %v11512 = vsel %vm11483, %v11291, %v11026
  %v11513 = vsel %vm11483, %v11294, %v11027
  %v11514 = vsel %vm11483, %v11298, %v11028
  %v11515 = vsel %vm11483, %v11301, %v11029
  %v11516 = vsel %vm11483, %v11305, %v11030
  %v11517 = vsel %vm11483, %v11308, %v11031
  %v11518 = vsel %vm11483, %v11312, %v11032
  %v11519 = vsel %vm11483, %v11315, %v11033
  %v11520 = vsel %vm11483, %v11319, %v11034
  %v11521 = vsel %vm11483, %v11322, %v11035
  %v11522 = vsel %vm11483, %v11326, %v11036
  %v11523 = vsel %vm11483, %v11329, %v11037
  %v11524 = vsel %vm11483, %v11333, %v11038
  %v11525 = vsel %vm11483, %v11336, %v11039
  %v11526 = vsel %vm11483, %v11340, %v11040
  %v11527 = vsel %vm11483, %v11343, %v11041
  %v11528 = vsel %vm11483, %v11347, %v11042
  %v11529 = vsel %vm11483, %v11350, %v11043
  %v11530 = vsel %vm11483, %v11354, %v11044
  %v11531 = vsel %vm11483, %v11357, %v11045
  %v11532 = vsel %vm11483, %v11361, %v11046
  %v11533 = vsel %vm11483, %v11364, %v11047
  %v11534 = vsel %vm11483, %v11368, %v11048
  %v11535 = vsel %vm11483, %v11371, %v11049
  %v11536 = vsel %vm11483, %v11375, %v11050
  %v11537 = vsel %vm11483, %v11378, %v11051
  %v11538 = vsel %vm11483, %v11382, %v11052
  %v11539 = vsel %vm11483, %v11385, %v11053
  %v11540 = vsel %vm11483, %v11389, %v11054
  %v11541 = vsel %vm11483, %v11392, %v11055
  %v11542 = vsel %vm11483, %v11396, %v11056
  %v11543 = vsel %vm11483, %v11399, %v11057
  %v11544 = vsel %vm11483, %v11403, %v11058
  %v11545 = vsel %vm11483, %v11406, %v11059
  %v11546 = vsel %vm11483, %v11410, %v11060
  %v11547 = vsel %vm11483, %v11413, %v11061
  %v11548 = vld [vmem:[%s4] sm:$0xf]
  %v11549 = vld [vmem:[%s4 + $0x4] sm:$0xf]
  %v11550 = vld [vmem:[%s4 + $0x8] sm:$0xf]
  %v11551 = vld [vmem:[%s4 + $0xc] sm:$0xf]
  %v11552 = vld [vmem:[%s4 + $0x10] sm:$0xf]
  %v11553 = vld [vmem:[%s4 + $0x14] sm:$0xf]
  %v11554 = vld [vmem:[%s4 + $0x18] sm:$0xf]
  %v11555 = vld [vmem:[%s4 + $0x1c] sm:$0xf]
  %v11556 = vld [vmem:[%s4 + $0x20] sm:$0xf]
  %v11557 = vld [vmem:[%s4 + $0x24] sm:$0xf]
  %v11558 = vld [vmem:[%s4 + $0x28] sm:$0xf]
  %v11559 = vld [vmem:[%s4 + $0x2c] sm:$0xf]
  %v11560 = vld [vmem:[%s4 + $0x30] sm:$0xf]
  %v11561 = vld [vmem:[%s4 + $0x34] sm:$0xf]
  %v11562 = vld [vmem:[%s4 + $0x38] sm:$0xf]
  %v11563 = vld [vmem:[%s4 + $0x3c] sm:$0xf]
  %v11628 = vunpack.c.l.b16 %v11484
  %v11629 = vunpack.c.l.b16 %v11485
  %v11630 = vunpack.c.l.b16 %v11486
  %v11631 = vunpack.c.l.b16 %v11487
  %v11632 = vunpack.c.l.b16 %v11488
  %v11633 = vunpack.c.l.b16 %v11489
  %v11634 = vunpack.c.l.b16 %v11490
  %v11635 = vunpack.c.l.b16 %v11491
  %v11636 = vunpack.c.l.b16 %v11492
  %v11637 = vunpack.c.l.b16 %v11493
  %v11638 = vunpack.c.l.b16 %v11494
  %v11639 = vunpack.c.l.b16 %v11495
  %v11640 = vunpack.c.l.b16 %v11496
  %v11641 = vunpack.c.l.b16 %v11497
  %v11642 = vunpack.c.l.b16 %v11498
  %v11643 = vunpack.c.l.b16 %v11499
  %v11644 = vunpack.c.l.b16 %v11500
  %v11645 = vunpack.c.l.b16 %v11501
  %v11646 = vunpack.c.l.b16 %v11502
  %v11647 = vunpack.c.l.b16 %v11503
  %v11648 = vunpack.c.l.b16 %v11504
  %v11649 = vunpack.c.l.b16 %v11505
  %v11650 = vunpack.c.l.b16 %v11506
  %v11651 = vunpack.c.l.b16 %v11507
  %v11652 = vunpack.c.l.b16 %v11508
  %v11653 = vunpack.c.l.b16 %v11509
  %v11654 = vunpack.c.l.b16 %v11510
  %v11655 = vunpack.c.l.b16 %v11511
  %v11656 = vunpack.c.l.b16 %v11512
  %v11657 = vunpack.c.l.b16 %v11513
  %v11658 = vunpack.c.l.b16 %v11514
  %v11659 = vunpack.c.l.b16 %v11515
  %v11660 = vunpack.c.l.b16 %v11516
  %v11661 = vunpack.c.l.b16 %v11517
  %v11662 = vunpack.c.l.b16 %v11518
  %v11663 = vunpack.c.l.b16 %v11519
  %v11664 = vunpack.c.l.b16 %v11520
  %v11665 = vunpack.c.l.b16 %v11521
  %v11666 = vunpack.c.l.b16 %v11522
  %v11667 = vunpack.c.l.b16 %v11523
  %v11668 = vunpack.c.l.b16 %v11524
  %v11669 = vunpack.c.l.b16 %v11525
  %v11670 = vunpack.c.l.b16 %v11526
  %v11671 = vunpack.c.l.b16 %v11527
  %v11672 = vunpack.c.l.b16 %v11528
  %v11673 = vunpack.c.l.b16 %v11529
  %v11674 = vunpack.c.l.b16 %v11530
  %v11675 = vunpack.c.l.b16 %v11531
  %v11676 = vunpack.c.l.b16 %v11532
  %v11677 = vunpack.c.l.b16 %v11533
  %v11678 = vunpack.c.l.b16 %v11534
  %v11679 = vunpack.c.l.b16 %v11535
  %v11680 = vunpack.c.l.b16 %v11536
  %v11681 = vunpack.c.l.b16 %v11537
  %v11682 = vunpack.c.l.b16 %v11538
  %v11683 = vunpack.c.l.b16 %v11539
  %v11684 = vunpack.c.l.b16 %v11540
  %v11685 = vunpack.c.l.b16 %v11541
  %v11686 = vunpack.c.l.b16 %v11542
  %v11687 = vunpack.c.l.b16 %v11543
  %v11688 = vunpack.c.l.b16 %v11544
  %v11689 = vunpack.c.l.b16 %v11545
  %v11690 = vunpack.c.l.b16 %v11546
  %v11691 = vunpack.c.l.b16 %v11547
  %v11692 = vpack.c.b16 %v11629, %v11628
  %v11693 = vpack.c.b16 %v11631, %v11630
  %v11694 = vpack.c.b16 %v11633, %v11632
  %v11695 = vpack.c.b16 %v11635, %v11634
  %v11696 = vpack.c.b16 %v11637, %v11636
  %v11697 = vpack.c.b16 %v11639, %v11638
  %v11698 = vpack.c.b16 %v11641, %v11640
  %v11699 = vpack.c.b16 %v11643, %v11642
  %v11700 = vpack.c.b16 %v11645, %v11644
  %v11701 = vpack.c.b16 %v11647, %v11646
  %v11702 = vpack.c.b16 %v11649, %v11648
  %v11703 = vpack.c.b16 %v11651, %v11650
  %v11704 = vpack.c.b16 %v11653, %v11652
  %v11705 = vpack.c.b16 %v11655, %v11654
  %v11706 = vpack.c.b16 %v11657, %v11656
  %v11707 = vpack.c.b16 %v11659, %v11658
  %v11708 = vpack.c.b16 %v11661, %v11660
  %v11709 = vpack.c.b16 %v11663, %v11662
  %v11710 = vpack.c.b16 %v11665, %v11664
  %v11711 = vpack.c.b16 %v11667, %v11666
  %v11712 = vpack.c.b16 %v11669, %v11668
  %v11713 = vpack.c.b16 %v11671, %v11670
  %v11714 = vpack.c.b16 %v11673, %v11672
  %v11715 = vpack.c.b16 %v11675, %v11674
  %v11716 = vpack.c.b16 %v11677, %v11676
  %v11717 = vpack.c.b16 %v11679, %v11678
  %v11718 = vpack.c.b16 %v11681, %v11680
  %v11719 = vpack.c.b16 %v11683, %v11682
  %v11720 = vpack.c.b16 %v11685, %v11684
  %v11721 = vpack.c.b16 %v11687, %v11686
  %v11722 = vpack.c.b16 %v11689, %v11688
  %v11723 = vpack.c.b16 %v11691, %v11690
  %v11772 = vunpack.c.l.b16 %v11548
  %v11773 = vunpack.c.l.b16 %v11549
  %v11774 = vunpack.c.l.b16 %v11550
  %v11775 = vunpack.c.l.b16 %v11551
  %v11776 = vunpack.c.l.b16 %v11552
  %v11777 = vunpack.c.l.b16 %v11553
  %v11778 = vunpack.c.l.b16 %v11554
  %v11779 = vunpack.c.l.b16 %v11555
  %v11780 = vunpack.c.l.b16 %v11556
  %v11781 = vunpack.c.l.b16 %v11557
  %v11782 = vunpack.c.l.b16 %v11558
  %v11783 = vunpack.c.l.b16 %v11559
  %v11784 = vunpack.c.l.b16 %v11560
  %v11785 = vunpack.c.l.b16 %v11561
  %v11786 = vunpack.c.l.b16 %v11562
  %v11787 = vunpack.c.l.b16 %v11563
  %v11788 = vpack.c.b16 %v11773, %v11772
  %v11789 = vpack.c.b16 %v11775, %v11774
  %v11790 = vpack.c.b16 %v11777, %v11776
  %v11791 = vpack.c.b16 %v11779, %v11778
  %v11792 = vpack.c.b16 %v11781, %v11780
  %v11793 = vpack.c.b16 %v11783, %v11782
  %v11794 = vpack.c.b16 %v11785, %v11784
  %v11795 = vpack.c.b16 %v11787, %v11786
  %11804 = vmatprep.subr.bf16.mxu0 0
  %11805 = vmatpush1.bf16.msra.mxu0 %v11788
  %11806 = vmatprep.subr.bf16.mxu0 0
  %11807 = vmatpush1.bf16.msra.mxu0 %v11789
  %11808 = vmatprep.subr.bf16.mxu0 0
  %11809 = vmatpush1.bf16.msra.mxu0 %v11790
  %11810 = vmatprep.subr.bf16.mxu0 0
  %11811 = vmatpush1.bf16.msra.mxu0 %v11791
  %11812 = vmatprep.subr.bf16.mxu0 0
  %11813 = vmatpush1.bf16.msra.mxu0 %v11792
  %11814 = vmatprep.subr.bf16.mxu0 0
  %11815 = vmatpush1.bf16.msra.mxu0 %v11793
  %11816 = vmatprep.subr.bf16.mxu0 0
  %11817 = vmatpush1.bf16.msra.mxu0 %v11794
  %11818 = vmatprep.subr.bf16.mxu0 0
  %11819 = vmatpush1.bf16.msra.mxu0 %v11795
  %11820 = vmatprep.subr.bf16.mxu0 0
  %11821 = vmatpush1.bf16.msra.mxu0 0
  %11822 = vmatprep.subr.bf16.mxu0 0
  %11823 = vmatpush1.bf16.msra.mxu0 0
  %11824 = vmatprep.subr.bf16.mxu0 0
  %11825 = vmatpush1.bf16.msra.mxu0 0
  %11826 = vmatprep.subr.bf16.mxu0 0
  %11827 = vmatpush1.bf16.msra.mxu0 0
  %11828 = vmatprep.subr.bf16.mxu0 0
  %11829 = vmatpush1.bf16.msra.mxu0 0
  %11830 = vmatprep.subr.bf16.mxu0 0
  %11831 = vmatpush1.bf16.msra.mxu0 0
  %11832 = vmatprep.subr.bf16.mxu0 0
  %11833 = vmatpush1.bf16.msra.mxu0 0
  %11834 = vmatprep.subr.bf16.mxu0 0
  %11835 = vmatpush1.bf16.msra.mxu0 0
  %11836 = vmatprep.mubr.bf16.mxu0 0
  %11837 = vmatmul.mubr.bf16.gmra.mrb[0].mxu0 %v11692
  %v11838 = vpop.f32.mrb[0].mxu0
  %v11839 = vadd.f32 0.0, %v11838
  %v11840 = vpop.f32.mrb[0].mxu0
  %v11841 = vpop.f32.mrb[0].mxu0
  %v11842 = vadd.f32 0.0, %v11841
  %v11843 = vpop.f32.mrb[0].mxu0
  %11844 = vmatprep.mubr.bf16.mxu0 0
  %11845 = vmatmul.mubr.bf16.gmra.mrb[0].mxu0 %v11693
  %v11846 = vpop.f32.mrb[0].mxu0
  %v11847 = vadd.f32 0.0, %v11846
  %v11848 = vpop.f32.mrb[0].mxu0
  %v11849 = vpop.f32.mrb[0].mxu0
  %v11850 = vadd.f32 0.0, %v11849
  %v11851 = vpop.f32.mrb[0].mxu0
  %11852 = vmatprep.mubr.bf16.mxu0 0
  %11853 = vmatmul.mubr.bf16.gmra.mrb[0].mxu0 %v11694
  %v11854 = vpop.f32.mrb[0].mxu0
  %v11855 = vadd.f32 0.0, %v11854
  %v11856 = vpop.f32.mrb[0].mxu0
  %v11857 = vpop.f32.mrb[0].mxu0
  %v11858 = vadd.f32 0.0, %v11857
  %v11859 = vpop.f32.mrb[0].mxu0
  %11860 = vmatprep.mubr.bf16.mxu0 0
  %11861 = vmatmul.mubr.bf16.gmra.mrb[0].mxu0 %v11695
  %v11862 = vpop.f32.mrb[0].mxu0
  %v11863 = vadd.f32 0.0, %v11862
  %v11864 = vpop.f32.mrb[0].mxu0
  %v11865 = vpop.f32.mrb[0].mxu0
  %v11866 = vadd.f32 0.0, %v11865
  %v11867 = vpop.f32.mrb[0].mxu0
  %11868 = vmatprep.mubr.bf16.mxu0 0
  %11869 = vmatmul.mubr.bf16.gmra.mrb[0].mxu0 %v11696
  %v11870 = vpop.f32.mrb[0].mxu0
  %v11871 = vadd.f32 0.0, %v11870
  %v11872 = vpop.f32.mrb[0].mxu0
  %v11873 = vpop.f32.mrb[0].mxu0
  %v11874 = vadd.f32 0.0, %v11873
  %v11875 = vpop.f32.mrb[0].mxu0
  %11876 = vmatprep.mubr.bf16.mxu0 0
  %11877 = vmatmul.mubr.bf16.gmra.mrb[0].mxu0 %v11697
  %v11878 = vpop.f32.mrb[0].mxu0
  %v11879 = vadd.f32 0.0, %v11878
  %v11880 = vpop.f32.mrb[0].mxu0
  %v11881 = vpop.f32.mrb[0].mxu0
  %v11882 = vadd.f32 0.0, %v11881
  %v11883 = vpop.f32.mrb[0].mxu0
  %11884 = vmatprep.mubr.bf16.mxu0 0
  %11885 = vmatmul.mubr.bf16.gmra.mrb[0].mxu0 %v11698
  %v11886 = vpop.f32.mrb[0].mxu0
  %v11887 = vadd.f32 0.0, %v11886
  %v11888 = vpop.f32.mrb[0].mxu0
  %v11889 = vpop.f32.mrb[0].mxu0
  %v11890 = vadd.f32 0.0, %v11889
  %v11891 = vpop.f32.mrb[0].mxu0
  %11892 = vmatprep.mubr.bf16.mxu0 0
  %11893 = vmatmul.mubr.bf16.gmra.mrb[0].mxu0 %v11699
  %v11894 = vpop.f32.mrb[0].mxu0
  %v11895 = vadd.f32 0.0, %v11894
  %v11896 = vpop.f32.mrb[0].mxu0
  %v11897 = vpop.f32.mrb[0].mxu0
  %v11898 = vadd.f32 0.0, %v11897
  %v11899 = vpop.f32.mrb[0].mxu0
  %11900 = vmatprep.mubr.bf16.mxu0 0
  %11901 = vmatmul.mubr.bf16.gmra.mrb[0].mxu0 %v11700
  %v11902 = vpop.f32.mrb[0].mxu0
  %v11903 = vadd.f32 0.0, %v11902
  %v11904 = vpop.f32.mrb[0].mxu0
  %v11905 = vpop.f32.mrb[0].mxu0
  %v11906 = vadd.f32 0.0, %v11905
  %v11907 = vpop.f32.mrb[0].mxu0
  %11908 = vmatprep.mubr.bf16.mxu0 0
  %11909 = vmatmul.mubr.bf16.gmra.mrb[0].mxu0 %v11701
  %v11910 = vpop.f32.mrb[0].mxu0
  %v11911 = vadd.f32 0.0, %v11910
  %v11912 = vpop.f32.mrb[0].mxu0
  %v11913 = vpop.f32.mrb[0].mxu0
  %v11914 = vadd.f32 0.0, %v11913
  %v11915 = vpop.f32.mrb[0].mxu0
  %11916 = vmatprep.mubr.bf16.mxu0 0
  %11917 = vmatmul.mubr.bf16.gmra.mrb[0].mxu0 %v11702
  %v11918 = vpop.f32.mrb[0].mxu0
  %v11919 = vadd.f32 0.0, %v11918
  %v11920 = vpop.f32.mrb[0].mxu0
  %v11921 = vpop.f32.mrb[0].mxu0
  %v11922 = vadd.f32 0.0, %v11921
  %v11923 = vpop.f32.mrb[0].mxu0
  %11924 = vmatprep.mubr.bf16.mxu0 0
  %11925 = vmatmul.mubr.bf16.gmra.mrb[0].mxu0 %v11703
  %v11926 = vpop.f32.mrb[0].mxu0
  %v11927 = vadd.f32 0.0, %v11926
  %v11928 = vpop.f32.mrb[0].mxu0
  %v11929 = vpop.f32.mrb[0].mxu0
  %v11930 = vadd.f32 0.0, %v11929
  %v11931 = vpop.f32.mrb[0].mxu0
  %11932 = vmatprep.mubr.bf16.mxu0 0
  %11933 = vmatmul.mubr.bf16.gmra.mrb[0].mxu0 %v11704
  %v11934 = vpop.f32.mrb[0].mxu0
  %v11935 = vadd.f32 0.0, %v11934
  %v11936 = vpop.f32.mrb[0].mxu0
  %v11937 = vpop.f32.mrb[0].mxu0
  %v11938 = vadd.f32 0.0, %v11937
  %v11939 = vpop.f32.mrb[0].mxu0
  %11940 = vmatprep.mubr.bf16.mxu0 0
  %11941 = vmatmul.mubr.bf16.gmra.mrb[0].mxu0 %v11705
  %v11942 = vpop.f32.mrb[0].mxu0
  %v11943 = vadd.f32 0.0, %v11942
  %v11944 = vpop.f32.mrb[0].mxu0
  %v11945 = vpop.f32.mrb[0].mxu0
  %v11946 = vadd.f32 0.0, %v11945
  %v11947 = vpop.f32.mrb[0].mxu0
  %11948 = vmatprep.mubr.bf16.mxu0 0
  %11949 = vmatmul.mubr.bf16.gmra.mrb[0].mxu0 %v11706
  %v11950 = vpop.f32.mrb[0].mxu0
  %v11951 = vadd.f32 0.0, %v11950
  %v11952 = vpop.f32.mrb[0].mxu0
  %v11953 = vpop.f32.mrb[0].mxu0
  %v11954 = vadd.f32 0.0, %v11953
  %v11955 = vpop.f32.mrb[0].mxu0
  %11956 = vmatprep.mubr.bf16.mxu0 0
  %11957 = vmatmul.mubr.bf16.gmra.mrb[0].mxu0 %v11707
  %v11958 = vpop.f32.mrb[0].mxu0
  %v11959 = vadd.f32 0.0, %v11958
  %v11960 = vpop.f32.mrb[0].mxu0
  %v11961 = vpop.f32.mrb[0].mxu0
  %v11962 = vadd.f32 0.0, %v11961
  %v11963 = vpop.f32.mrb[0].mxu0
  %11964 = vmatprep.mubr.bf16.mxu0 0
  %11965 = vmatmul.mubr.bf16.gmra.mrb[0].mxu0 %v11708
  %v11966 = vpop.f32.mrb[0].mxu0
  %v11967 = vadd.f32 0.0, %v11966
  %v11968 = vpop.f32.mrb[0].mxu0
  %v11969 = vpop.f32.mrb[0].mxu0
  %v11970 = vadd.f32 0.0, %v11969
  %v11971 = vpop.f32.mrb[0].mxu0
  %11972 = vmatprep.mubr.bf16.mxu0 0
  %11973 = vmatmul.mubr.bf16.gmra.mrb[0].mxu0 %v11709
  %v11974 = vpop.f32.mrb[0].mxu0
  %v11975 = vadd.f32 0.0, %v11974
  %v11976 = vpop.f32.mrb[0].mxu0
  %v11977 = vpop.f32.mrb[0].mxu0
  %v11978 = vadd.f32 0.0, %v11977
  %v11979 = vpop.f32.mrb[0].mxu0
  %11980 = vmatprep.mubr.bf16.mxu0 0
  %11981 = vmatmul.mubr.bf16.gmra.mrb[0].mxu0 %v11710
  %v11982 = vpop.f32.mrb[0].mxu0
  %v11983 = vadd.f32 0.0, %v11982
  %v11984 = vpop.f32.mrb[0].mxu0
  %v11985 = vpop.f32.mrb[0].mxu0
  %v11986 = vadd.f32 0.0, %v11985
  %v11987 = vpop.f32.mrb[0].mxu0
  %11988 = vmatprep.mubr.bf16.mxu0 0
  %11989 = vmatmul.mubr.bf16.gmra.mrb[0].mxu0 %v11711
  %v11990 = vpop.f32.mrb[0].mxu0
  %v11991 = vadd.f32 0.0, %v11990
  %v11992 = vpop.f32.mrb[0].mxu0
  %v11993 = vpop.f32.mrb[0].mxu0
  %v11994 = vadd.f32 0.0, %v11993
  %v11995 = vpop.f32.mrb[0].mxu0
  %11996 = vmatprep.mubr.bf16.mxu0 0
  %11997 = vmatmul.mubr.bf16.gmra.mrb[0].mxu0 %v11712
  %v11998 = vpop.f32.mrb[0].mxu0
  %v11999 = vadd.f32 0.0, %v11998
  %v12000 = vpop.f32.mrb[0].mxu0
  %v12001 = vpop.f32.mrb[0].mxu0
  %v12002 = vadd.f32 0.0, %v12001
  %v12003 = vpop.f32.mrb[0].mxu0
  %12004 = vmatprep.mubr.bf16.mxu0 0
  %12005 = vmatmul.mubr.bf16.gmra.mrb[0].mxu0 %v11713
  %v12006 = vpop.f32.mrb[0].mxu0
  %v12007 = vadd.f32 0.0, %v12006
  %v12008 = vpop.f32.mrb[0].mxu0
  %v12009 = vpop.f32.mrb[0].mxu0
  %v12010 = vadd.f32 0.0, %v12009
  %v12011 = vpop.f32.mrb[0].mxu0
  %12012 = vmatprep.mubr.bf16.mxu0 0
  %12013 = vmatmul.mubr.bf16.gmra.mrb[0].mxu0 %v11714
  %v12014 = vpop.f32.mrb[0].mxu0
  %v12015 = vadd.f32 0.0, %v12014
  %v12016 = vpop.f32.mrb[0].mxu0
  %v12017 = vpop.f32.mrb[0].mxu0
  %v12018 = vadd.f32 0.0, %v12017
  %v12019 = vpop.f32.mrb[0].mxu0
  %12020 = vmatprep.mubr.bf16.mxu0 0
  %12021 = vmatmul.mubr.bf16.gmra.mrb[0].mxu0 %v11715
  %v12022 = vpop.f32.mrb[0].mxu0
  %v12023 = vadd.f32 0.0, %v12022
  %v12024 = vpop.f32.mrb[0].mxu0
  %v12025 = vpop.f32.mrb[0].mxu0
  %v12026 = vadd.f32 0.0, %v12025
  %v12027 = vpop.f32.mrb[0].mxu0
  %12028 = vmatprep.mubr.bf16.mxu0 0
  %12029 = vmatmul.mubr.bf16.gmra.mrb[0].mxu0 %v11716
  %v12030 = vpop.f32.mrb[0].mxu0
  %v12031 = vadd.f32 0.0, %v12030
  %v12032 = vpop.f32.mrb[0].mxu0
  %v12033 = vpop.f32.mrb[0].mxu0
  %v12034 = vadd.f32 0.0, %v12033
  %v12035 = vpop.f32.mrb[0].mxu0
  %12036 = vmatprep.mubr.bf16.mxu0 0
  %12037 = vmatmul.mubr.bf16.gmra.mrb[0].mxu0 %v11717
  %v12038 = vpop.f32.mrb[0].mxu0
  %v12039 = vadd.f32 0.0, %v12038
  %v12040 = vpop.f32.mrb[0].mxu0
  %v12041 = vpop.f32.mrb[0].mxu0
  %v12042 = vadd.f32 0.0, %v12041
  %v12043 = vpop.f32.mrb[0].mxu0
  %12044 = vmatprep.mubr.bf16.mxu0 0
  %12045 = vmatmul.mubr.bf16.gmra.mrb[0].mxu0 %v11718
  %v12046 = vpop.f32.mrb[0].mxu0
  %v12047 = vadd.f32 0.0, %v12046
  %v12048 = vpop.f32.mrb[0].mxu0
  %v12049 = vpop.f32.mrb[0].mxu0
  %v12050 = vadd.f32 0.0, %v12049
  %v12051 = vpop.f32.mrb[0].mxu0
  %12052 = vmatprep.mubr.bf16.mxu0 0
  %12053 = vmatmul.mubr.bf16.gmra.mrb[0].mxu0 %v11719
  %v12054 = vpop.f32.mrb[0].mxu0
  %v12055 = vadd.f32 0.0, %v12054
  %v12056 = vpop.f32.mrb[0].mxu0
  %v12057 = vpop.f32.mrb[0].mxu0
  %v12058 = vadd.f32 0.0, %v12057
  %v12059 = vpop.f32.mrb[0].mxu0
  %12060 = vmatprep.mubr.bf16.mxu0 0
  %12061 = vmatmul.mubr.bf16.gmra.mrb[0].mxu0 %v11720
  %v12062 = vpop.f32.mrb[0].mxu0
  %v12063 = vadd.f32 0.0, %v12062
  %v12064 = vpop.f32.mrb[0].mxu0
  %v12065 = vpop.f32.mrb[0].mxu0
  %v12066 = vadd.f32 0.0, %v12065
  %v12067 = vpop.f32.mrb[0].mxu0
  %12068 = vmatprep.mubr.bf16.mxu0 0
  %12069 = vmatmul.mubr.bf16.gmra.mrb[0].mxu0 %v11721
  %v12070 = vpop.f32.mrb[0].mxu0
  %v12071 = vadd.f32 0.0, %v12070
  %v12072 = vpop.f32.mrb[0].mxu0
  %v12073 = vpop.f32.mrb[0].mxu0
  %v12074 = vadd.f32 0.0, %v12073
  %v12075 = vpop.f32.mrb[0].mxu0
  %12076 = vmatprep.mubr.bf16.mxu0 0
  %12077 = vmatmul.mubr.bf16.gmra.mrb[0].mxu0 %v11722
  %v12078 = vpop.f32.mrb[0].mxu0
  %v12079 = vadd.f32 0.0, %v12078
  %v12080 = vpop.f32.mrb[0].mxu0
  %v12081 = vpop.f32.mrb[0].mxu0
  %v12082 = vadd.f32 0.0, %v12081
  %v12083 = vpop.f32.mrb[0].mxu0
  %12084 = vmatprep.mubr.bf16.mxu0 0
  %12085 = vmatmul.mubr.bf16.gmra.mrb[0].mxu0 %v11723
  %v12086 = vpop.f32.mrb[0].mxu0
  %v12087 = vadd.f32 0.0, %v12086
  %v12088 = vpop.f32.mrb[0].mxu0
  %v12089 = vpop.f32.mrb[0].mxu0
  %v12090 = vadd.f32 0.0, %v12089
  %v12091 = vpop.f32.mrb[0].mxu0
  %12092 = vdwg.mxu0
  %v12093 = vadd.f32 %v11839, %v11842
  %v12094 = vadd.f32 %v12093, %v11847
  %v12095 = vadd.f32 %v12094, %v11850
  %v12096 = vadd.f32 %v12095, %v11855
  %v12097 = vadd.f32 %v12096, %v11858
  %v12098 = vadd.f32 %v12097, %v11863
  %v12099 = vadd.f32 %v12098, %v11866
  %v12100 = vadd.f32 %v12099, %v11871
  %v12101 = vadd.f32 %v12100, %v11874
  %v12102 = vadd.f32 %v12101, %v11879
  %v12103 = vadd.f32 %v12102, %v11882
  %v12104 = vadd.f32 %v12103, %v11887
  %v12105 = vadd.f32 %v12104, %v11890
  %v12106 = vadd.f32 %v12105, %v11895
  %v12107 = vadd.f32 %v12106, %v11898
  %v12108 = vadd.f32 %v12107, %v11903
  %v12109 = vadd.f32 %v12108, %v11906
  %v12110 = vadd.f32 %v12109, %v11911
  %v12111 = vadd.f32 %v12110, %v11914
  %v12112 = vadd.f32 %v12111, %v11919
  %v12113 = vadd.f32 %v12112, %v11922
  %v12114 = vadd.f32 %v12113, %v11927
  %v12115 = vadd.f32 %v12114, %v11930
  %v12116 = vadd.f32 %v12115, %v11935
  %v12117 = vadd.f32 %v12116, %v11938
  %v12118 = vadd.f32 %v12117, %v11943
  %v12119 = vadd.f32 %v12118, %v11946
  %v12120 = vadd.f32 %v12119, %v11951
  %v12121 = vadd.f32 %v12120, %v11954
  %v12122 = vadd.f32 %v12121, %v11959
  %v12123 = vadd.f32 %v12122, %v11962
  %v12124 = vadd.f32 %v12123, %v11967
  %v12125 = vadd.f32 %v12124, %v11970
  %v12126 = vadd.f32 %v12125, %v11975
  %v12127 = vadd.f32 %v12126, %v11978
  %v12128 = vadd.f32 %v12127, %v11983
  %v12129 = vadd.f32 %v12128, %v11986
  %v12130 = vadd.f32 %v12129, %v11991
  %v12131 = vadd.f32 %v12130, %v11994
  %v12132 = vadd.f32 %v12131, %v11999
  %v12133 = vadd.f32 %v12132, %v12002
  %v12134 = vadd.f32 %v12133, %v12007
  %v12135 = vadd.f32 %v12134, %v12010
  %v12136 = vadd.f32 %v12135, %v12015
  %v12137 = vadd.f32 %v12136, %v12018
  %v12138 = vadd.f32 %v12137, %v12023
  %v12139 = vadd.f32 %v12138, %v12026
  %v12140 = vadd.f32 %v12139, %v12031
  %v12141 = vadd.f32 %v12140, %v12034
  %v12142 = vadd.f32 %v12141, %v12039
  %v12143 = vadd.f32 %v12142, %v12042
  %v12144 = vadd.f32 %v12143, %v12047
  %v12145 = vadd.f32 %v12144, %v12050
  %v12146 = vadd.f32 %v12145, %v12055
  %v12147 = vadd.f32 %v12146, %v12058
  %v12148 = vadd.f32 %v12147, %v12063
  %v12149 = vadd.f32 %v12148, %v12066
  %v12150 = vadd.f32 %v12149, %v12071
  %v12151 = vadd.f32 %v12150, %v12074
  %v12152 = vadd.f32 %v12151, %v12079
  %v12153 = vadd.f32 %v12152, %v12082
  %v12154 = vadd.f32 %v12153, %v12087
  %v12155 = vadd.f32 %v12154, %v12090
  %v12156 = vrot.slane %v12155, 4
  %v12157 = vadd.f32 %v12155, %v12156
  %v12158 = vrot.slane %v12157, 2
  %v12159 = vadd.f32 %v12157, %v12158
  %v12160 = vrot.slane %v12159, 1
  %v12161 = vadd.f32 %v12159, %v12160
  %v12162 = vmul.f32 %v12161, 0.001953125
  %v12163 = vsub.f32 %v11839, %v12162
  %v12164 = vsub.f32 %v11842, %v12162
  %v12165 = vsub.f32 %v11847, %v12162
  %v12166 = vsub.f32 %v11850, %v12162
  %v12167 = vsub.f32 %v11855, %v12162
  %v12168 = vsub.f32 %v11858, %v12162
  %v12169 = vsub.f32 %v11863, %v12162
  %v12170 = vsub.f32 %v11866, %v12162
  %v12171 = vsub.f32 %v11871, %v12162
  %v12172 = vsub.f32 %v11874, %v12162
  %v12173 = vsub.f32 %v11879, %v12162
  %v12174 = vsub.f32 %v11882, %v12162
  %v12175 = vsub.f32 %v11887, %v12162
  %v12176 = vsub.f32 %v11890, %v12162
  %v12177 = vsub.f32 %v11895, %v12162
  %v12178 = vsub.f32 %v11898, %v12162
  %v12179 = vsub.f32 %v11903, %v12162
  %v12180 = vsub.f32 %v11906, %v12162
  %v12181 = vsub.f32 %v11911, %v12162
  %v12182 = vsub.f32 %v11914, %v12162
  %v12183 = vsub.f32 %v11919, %v12162
  %v12184 = vsub.f32 %v11922, %v12162
  %v12185 = vsub.f32 %v11927, %v12162
  %v12186 = vsub.f32 %v11930, %v12162
  %v12187 = vsub.f32 %v11935, %v12162
  %v12188 = vsub.f32 %v11938, %v12162
  %v12189 = vsub.f32 %v11943, %v12162
  %v12190 = vsub.f32 %v11946, %v12162
  %v12191 = vsub.f32 %v11951, %v12162
  %v12192 = vsub.f32 %v11954, %v12162
  %v12193 = vsub.f32 %v11959, %v12162
  %v12194 = vsub.f32 %v11962, %v12162
  %v12195 = vsub.f32 %v11967, %v12162
  %v12196 = vsub.f32 %v11970, %v12162
  %v12197 = vsub.f32 %v11975, %v12162
  %v12198 = vsub.f32 %v11978, %v12162
  %v12199 = vsub.f32 %v11983, %v12162
  %v12200 = vsub.f32 %v11986, %v12162
  %v12201 = vsub.f32 %v11991, %v12162
  %v12202 = vsub.f32 %v11994, %v12162
  %v12203 = vsub.f32 %v11999, %v12162
  %v12204 = vsub.f32 %v12002, %v12162
  %v12205 = vsub.f32 %v12007, %v12162
  %v12206 = vsub.f32 %v12010, %v12162
  %v12207 = vsub.f32 %v12015, %v12162
  %v12208 = vsub.f32 %v12018, %v12162
  %v12209 = vsub.f32 %v12023, %v12162
  %v12210 = vsub.f32 %v12026, %v12162
  %v12211 = vsub.f32 %v12031, %v12162
  %v12212 = vsub.f32 %v12034, %v12162
  %v12213 = vsub.f32 %v12039, %v12162
  %v12214 = vsub.f32 %v12042, %v12162
  %v12215 = vsub.f32 %v12047, %v12162
  %v12216 = vsub.f32 %v12050, %v12162
  %v12217 = vsub.f32 %v12055, %v12162
  %v12218 = vsub.f32 %v12058, %v12162
  %v12219 = vsub.f32 %v12063, %v12162
  %v12220 = vsub.f32 %v12066, %v12162
  %v12221 = vsub.f32 %v12071, %v12162
  %v12222 = vsub.f32 %v12074, %v12162
  %v12223 = vsub.f32 %v12079, %v12162
  %v12224 = vsub.f32 %v12082, %v12162
  %v12225 = vsub.f32 %v12087, %v12162
  %v12226 = vsub.f32 %v12090, %v12162
  %v12227 = vmul.f32 %v12163, %v12163
  %v12228 = vmul.f32 %v12164, %v12164
  %v12229 = vmul.f32 %v12165, %v12165
  %v12230 = vmul.f32 %v12166, %v12166
  %v12231 = vmul.f32 %v12167, %v12167
  %v12232 = vmul.f32 %v12168, %v12168
  %v12233 = vmul.f32 %v12169, %v12169
  %v12234 = vmul.f32 %v12170, %v12170
  %v12235 = vmul.f32 %v12171, %v12171
  %v12236 = vmul.f32 %v12172, %v12172
  %v12237 = vmul.f32 %v12173, %v12173
  %v12238 = vmul.f32 %v12174, %v12174
  %v12239 = vmul.f32 %v12175, %v12175
  %v12240 = vmul.f32 %v12176, %v12176
  %v12241 = vmul.f32 %v12177, %v12177
  %v12242 = vmul.f32 %v12178, %v12178
  %v12243 = vmul.f32 %v12179, %v12179
  %v12244 = vmul.f32 %v12180, %v12180
  %v12245 = vmul.f32 %v12181, %v12181
  %v12246 = vmul.f32 %v12182, %v12182
  %v12247 = vmul.f32 %v12183, %v12183
  %v12248 = vmul.f32 %v12184, %v12184
  %v12249 = vmul.f32 %v12185, %v12185
  %v12250 = vmul.f32 %v12186, %v12186
  %v12251 = vmul.f32 %v12187, %v12187
  %v12252 = vmul.f32 %v12188, %v12188
  %v12253 = vmul.f32 %v12189, %v12189
  %v12254 = vmul.f32 %v12190, %v12190
  %v12255 = vmul.f32 %v12191, %v12191
  %v12256 = vmul.f32 %v12192, %v12192
  %v12257 = vmul.f32 %v12193, %v12193
  %v12258 = vmul.f32 %v12194, %v12194
  %v12259 = vmul.f32 %v12195, %v12195
  %v12260 = vmul.f32 %v12196, %v12196
  %v12261 = vmul.f32 %v12197, %v12197
  %v12262 = vmul.f32 %v12198, %v12198
  %v12263 = vmul.f32 %v12199, %v12199
  %v12264 = vmul.f32 %v12200, %v12200
  %v12265 = vmul.f32 %v12201, %v12201
  %v12266 = vmul.f32 %v12202, %v12202
  %v12267 = vmul.f32 %v12203, %v12203
  %v12268 = vmul.f32 %v12204, %v12204
  %v12269 = vmul.f32 %v12205, %v12205
  %v12270 = vmul.f32 %v12206, %v12206
  %v12271 = vmul.f32 %v12207, %v12207
  %v12272 = vmul.f32 %v12208, %v12208
  %v12273 = vmul.f32 %v12209, %v12209
  %v12274 = vmul.f32 %v12210, %v12210
  %v12275 = vmul.f32 %v12211, %v12211
  %v12276 = vmul.f32 %v12212, %v12212
  %v12277 = vmul.f32 %v12213, %v12213
  %v12278 = vmul.f32 %v12214, %v12214
  %v12279 = vmul.f32 %v12215, %v12215
  %v12280 = vmul.f32 %v12216, %v12216
  %v12281 = vmul.f32 %v12217, %v12217
  %v12282 = vmul.f32 %v12218, %v12218
  %v12283 = vmul.f32 %v12219, %v12219
  %v12284 = vmul.f32 %v12220, %v12220
  %v12285 = vmul.f32 %v12221, %v12221
  %v12286 = vmul.f32 %v12222, %v12222
  %v12287 = vmul.f32 %v12223, %v12223
  %v12288 = vmul.f32 %v12224, %v12224
  %v12289 = vmul.f32 %v12225, %v12225
  %v12290 = vmul.f32 %v12226, %v12226
  %v12291 = vadd.f32 %v12227, %v12228
  %v12292 = vadd.f32 %v12291, %v12229
  %v12293 = vadd.f32 %v12292, %v12230
  %v12294 = vadd.f32 %v12293, %v12231
  %v12295 = vadd.f32 %v12294, %v12232
  %v12296 = vadd.f32 %v12295, %v12233
  %v12297 = vadd.f32 %v12296, %v12234
  %v12298 = vadd.f32 %v12297, %v12235
  %v12299 = vadd.f32 %v12298, %v12236
  %v12300 = vadd.f32 %v12299, %v12237
  %v12301 = vadd.f32 %v12300, %v12238
  %v12302 = vadd.f32 %v12301, %v12239
  %v12303 = vadd.f32 %v12302, %v12240
  %v12304 = vadd.f32 %v12303, %v12241
  %v12305 = vadd.f32 %v12304, %v12242
  %v12306 = vadd.f32 %v12305, %v12243
  %v12307 = vadd.f32 %v12306, %v12244
  %v12308 = vadd.f32 %v12307, %v12245
  %v12309 = vadd.f32 %v12308, %v12246
  %v12310 = vadd.f32 %v12309, %v12247
  %v12311 = vadd.f32 %v12310, %v12248
  %v12312 = vadd.f32 %v12311, %v12249
  %v12313 = vadd.f32 %v12312, %v12250
  %v12314 = vadd.f32 %v12313, %v12251
  %v12315 = vadd.f32 %v12314, %v12252
  %v12316 = vadd.f32 %v12315, %v12253
  %v12317 = vadd.f32 %v12316, %v12254
  %v12318 = vadd.f32 %v12317, %v12255
  %v12319 = vadd.f32 %v12318, %v12256
  %v12320 = vadd.f32 %v12319, %v12257
  %v12321 = vadd.f32 %v12320, %v12258
  %v12322 = vadd.f32 %v12321, %v12259
  %v12323 = vadd.f32 %v12322, %v12260
  %v12324 = vadd.f32 %v12323, %v12261
  %v12325 = vadd.f32 %v12324, %v12262
  %v12326 = vadd.f32 %v12325, %v12263
  %v12327 = vadd.f32 %v12326, %v12264
  %v12328 = vadd.f32 %v12327, %v12265
  %v12329 = vadd.f32 %v12328, %v12266
  %v12330 = vadd.f32 %v12329, %v12267
  %v12331 = vadd.f32 %v12330, %v12268
  %v12332 = vadd.f32 %v12331, %v12269
  %v12333 = vadd.f32 %v12332, %v12270
  %v12334 = vadd.f32 %v12333, %v12271
  %v12335 = vadd.f32 %v12334, %v12272
  %v12336 = vadd.f32 %v12335, %v12273
  %v12337 = vadd.f32 %v12336, %v12274
  %v12338 = vadd.f32 %v12337, %v12275
  %v12339 = vadd.f32 %v12338, %v12276
  %v12340 = vadd.f32 %v12339, %v12277
  %v12341 = vadd.f32 %v12340, %v12278
  %v12342 = vadd.f32 %v12341, %v12279
  %v12343 = vadd.f32 %v12342, %v12280
  %v12344 = vadd.f32 %v12343, %v12281
  %v12345 = vadd.f32 %v12344, %v12282
  %v12346 = vadd.f32 %v12345, %v12283
  %v12347 = vadd.f32 %v12346, %v12284
  %v12348 = vadd.f32 %v12347, %v12285
  %v12349 = vadd.f32 %v12348, %v12286
  %v12350 = vadd.f32 %v12349, %v12287
  %v12351 = vadd.f32 %v12350, %v12288
  %v12352 = vadd.f32 %v12351, %v12289
  %v12353 = vadd.f32 %v12352, %v12290
  %v12354 = vrot.slane %v12353, 4
  %v12355 = vadd.f32 %v12353, %v12354
  %v12356 = vrot.slane %v12355, 2
  %v12357 = vadd.f32 %v12355, %v12356
  %v12358 = vrot.slane %v12357, 1
  %v12359 = vadd.f32 %v12357, %v12358
  %v12360 = vmul.f32 %v12359, 0.001953125
  %v12361 = vld [vmem:[%s5] sm:$0x1]
  %v12362 = vadd.f32 %v12360, 1e-05
  %v12363 = vrsqrt.pop %v12362
  %v12364 = vmul.f32 %v12361, %v12363
  %v12366 = vlaneseq
  %v12367 = vshrl.u32 %v12366, 7
  %v12368 = vsub.s32 0, %v12367
  %v12369 = vrot.slane %v12364, %v12368
  %v12371 = vmul.f32 %v12163, %v12369
  %v12372 = vmul.f32 %v12164, %v12369
  %v12373 = vmul.f32 %v12165, %v12369
  %v12374 = vmul.f32 %v12166, %v12369
  %v12375 = vmul.f32 %v12167, %v12369
  %v12376 = vmul.f32 %v12168, %v12369
  %v12377 = vmul.f32 %v12169, %v12369
  %v12378 = vmul.f32 %v12170, %v12369
  %v12379 = vmul.f32 %v12171, %v12369
  %v12380 = vmul.f32 %v12172, %v12369
  %v12381 = vmul.f32 %v12173, %v12369
  %v12382 = vmul.f32 %v12174, %v12369
  %v12383 = vmul.f32 %v12175, %v12369
  %v12384 = vmul.f32 %v12176, %v12369
  %v12385 = vmul.f32 %v12177, %v12369
  %v12386 = vmul.f32 %v12178, %v12369
  %v12387 = vmul.f32 %v12179, %v12369
  %v12388 = vmul.f32 %v12180, %v12369
  %v12389 = vmul.f32 %v12181, %v12369
  %v12390 = vmul.f32 %v12182, %v12369
  %v12391 = vmul.f32 %v12183, %v12369
  %v12392 = vmul.f32 %v12184, %v12369
  %v12393 = vmul.f32 %v12185, %v12369
  %v12394 = vmul.f32 %v12186, %v12369
  %v12395 = vmul.f32 %v12187, %v12369
  %v12396 = vmul.f32 %v12188, %v12369
  %v12397 = vmul.f32 %v12189, %v12369
  %v12398 = vmul.f32 %v12190, %v12369
  %v12399 = vmul.f32 %v12191, %v12369
  %v12400 = vmul.f32 %v12192, %v12369
  %v12401 = vmul.f32 %v12193, %v12369
  %v12402 = vmul.f32 %v12194, %v12369
  %v12403 = vmul.f32 %v12195, %v12369
  %v12404 = vmul.f32 %v12196, %v12369
  %v12405 = vmul.f32 %v12197, %v12369
  %v12406 = vmul.f32 %v12198, %v12369
  %v12407 = vmul.f32 %v12199, %v12369
  %v12408 = vmul.f32 %v12200, %v12369
  %v12409 = vmul.f32 %v12201, %v12369
  %v12410 = vmul.f32 %v12202, %v12369
  %v12411 = vmul.f32 %v12203, %v12369
  %v12412 = vmul.f32 %v12204, %v12369
  %v12413 = vmul.f32 %v12205, %v12369
  %v12414 = vmul.f32 %v12206, %v12369
  %v12415 = vmul.f32 %v12207, %v12369
  %v12416 = vmul.f32 %v12208, %v12369
  %v12417 = vmul.f32 %v12209, %v12369
  %v12418 = vmul.f32 %v12210, %v12369
  %v12419 = vmul.f32 %v12211, %v12369
  %v12420 = vmul.f32 %v12212, %v12369
  %v12421 = vmul.f32 %v12213, %v12369
  %v12422 = vmul.f32 %v12214, %v12369
  %v12423 = vmul.f32 %v12215, %v12369
  %v12424 = vmul.f32 %v12216, %v12369
  %v12425 = vmul.f32 %v12217, %v12369
  %v12426 = vmul.f32 %v12218, %v12369
  %v12427 = vmul.f32 %v12219, %v12369
  %v12428 = vmul.f32 %v12220, %v12369
  %v12429 = vmul.f32 %v12221, %v12369
  %v12430 = vmul.f32 %v12222, %v12369
  %v12431 = vmul.f32 %v12223, %v12369
  %v12432 = vmul.f32 %v12224, %v12369
  %v12433 = vmul.f32 %v12225, %v12369
  %v12434 = vmul.f32 %v12226, %v12369
  %v12435 = vld [vmem:[%s6] sm:$0x1]
  %v12437 = vlaneseq
  %v12438 = vshrl.u32 %v12437, 7
  %v12439 = vsub.s32 0, %v12438
  %v12440 = vrot.slane %v12435, %v12439
  %v12442 = vadd.f32 %v12371, %v12440
  %v12443 = vadd.f32 %v12372, %v12440
  %v12444 = vadd.f32 %v12373, %v12440
  %v12445 = vadd.f32 %v12374, %v12440
  %v12446 = vadd.f32 %v12375, %v12440
  %v12447 = vadd.f32 %v12376, %v12440
  %v12448 = vadd.f32 %v12377, %v12440
  %v12449 = vadd.f32 %v12378, %v12440
  %v12450 = vadd.f32 %v12379, %v12440
  %v12451 = vadd.f32 %v12380, %v12440
  %v12452 = vadd.f32 %v12381, %v12440
  %v12453 = vadd.f32 %v12382, %v12440
  %v12454 = vadd.f32 %v12383, %v12440
  %v12455 = vadd.f32 %v12384, %v12440
  %v12456 = vadd.f32 %v12385, %v12440
  %v12457 = vadd.f32 %v12386, %v12440
  %v12458 = vadd.f32 %v12387, %v12440
  %v12459 = vadd.f32 %v12388, %v12440
  %v12460 = vadd.f32 %v12389, %v12440
  %v12461 = vadd.f32 %v12390, %v12440
  %v12462 = vadd.f32 %v12391, %v12440
  %v12463 = vadd.f32 %v12392, %v12440
  %v12464 = vadd.f32 %v12393, %v12440
  %v12465 = vadd.f32 %v12394, %v12440
  %v12466 = vadd.f32 %v12395, %v12440
  %v12467 = vadd.f32 %v12396, %v12440
  %v12468 = vadd.f32 %v12397, %v12440
  %v12469 = vadd.f32 %v12398, %v12440
  %v12470 = vadd.f32 %v12399, %v12440
  %v12471 = vadd.f32 %v12400, %v12440
  %v12472 = vadd.f32 %v12401, %v12440
  %v12473 = vadd.f32 %v12402, %v12440
  %v12474 = vadd.f32 %v12403, %v12440
  %v12475 = vadd.f32 %v12404, %v12440
  %v12476 = vadd.f32 %v12405, %v12440
  %v12477 = vadd.f32 %v12406, %v12440
  %v12478 = vadd.f32 %v12407, %v12440
  %v12479 = vadd.f32 %v12408, %v12440
  %v12480 = vadd.f32 %v12409, %v12440
  %v12481 = vadd.f32 %v12410, %v12440
  %v12482 = vadd.f32 %v12411, %v12440
  %v12483 = vadd.f32 %v12412, %v12440
  %v12484 = vadd.f32 %v12413, %v12440
  %v12485 = vadd.f32 %v12414, %v12440
  %v12486 = vadd.f32 %v12415, %v12440
  %v12487 = vadd.f32 %v12416, %v12440
  %v12488 = vadd.f32 %v12417, %v12440
  %v12489 = vadd.f32 %v12418, %v12440
  %v12490 = vadd.f32 %v12419, %v12440
  %v12491 = vadd.f32 %v12420, %v12440
  %v12492 = vadd.f32 %v12421, %v12440
  %v12493 = vadd.f32 %v12422, %v12440
  %v12494 = vadd.f32 %v12423, %v12440
  %v12495 = vadd.f32 %v12424, %v12440
  %v12496 = vadd.f32 %v12425, %v12440
  %v12497 = vadd.f32 %v12426, %v12440
  %v12498 = vadd.f32 %v12427, %v12440
  %v12499 = vadd.f32 %v12428, %v12440
  %v12500 = vadd.f32 %v12429, %v12440
  %v12501 = vadd.f32 %v12430, %v12440
  %v12502 = vadd.f32 %v12431, %v12440
  %v12503 = vadd.f32 %v12432, %v12440
  %v12504 = vadd.f32 %v12433, %v12440
  %v12505 = vadd.f32 %v12434, %v12440
  %v12506 = vmax.f32 %v12442, 0.0
  %v12507 = vmax.f32 %v12443, 0.0
  %v12508 = vmax.f32 %v12444, 0.0
  %v12509 = vmax.f32 %v12445, 0.0
  %v12510 = vmax.f32 %v12446, 0.0
  %v12511 = vmax.f32 %v12447, 0.0
  %v12512 = vmax.f32 %v12448, 0.0
  %v12513 = vmax.f32 %v12449, 0.0
  %v12514 = vmax.f32 %v12450, 0.0
  %v12515 = vmax.f32 %v12451, 0.0
  %v12516 = vmax.f32 %v12452, 0.0
  %v12517 = vmax.f32 %v12453, 0.0
  %v12518 = vmax.f32 %v12454, 0.0
  %v12519 = vmax.f32 %v12455, 0.0
  %v12520 = vmax.f32 %v12456, 0.0
  %v12521 = vmax.f32 %v12457, 0.0
  %v12522 = vmax.f32 %v12458, 0.0
  %v12523 = vmax.f32 %v12459, 0.0
  %v12524 = vmax.f32 %v12460, 0.0
  %v12525 = vmax.f32 %v12461, 0.0
  %v12526 = vmax.f32 %v12462, 0.0
  %v12527 = vmax.f32 %v12463, 0.0
  %v12528 = vmax.f32 %v12464, 0.0
  %v12529 = vmax.f32 %v12465, 0.0
  %v12530 = vmax.f32 %v12466, 0.0
  %v12531 = vmax.f32 %v12467, 0.0
  %v12532 = vmax.f32 %v12468, 0.0
  %v12533 = vmax.f32 %v12469, 0.0
  %v12534 = vmax.f32 %v12470, 0.0
  %v12535 = vmax.f32 %v12471, 0.0
  %v12536 = vmax.f32 %v12472, 0.0
  %v12537 = vmax.f32 %v12473, 0.0
  %v12538 = vmax.f32 %v12474, 0.0
  %v12539 = vmax.f32 %v12475, 0.0
  %v12540 = vmax.f32 %v12476, 0.0
  %v12541 = vmax.f32 %v12477, 0.0
  %v12542 = vmax.f32 %v12478, 0.0
  %v12543 = vmax.f32 %v12479, 0.0
  %v12544 = vmax.f32 %v12480, 0.0
  %v12545 = vmax.f32 %v12481, 0.0
  %v12546 = vmax.f32 %v12482, 0.0
  %v12547 = vmax.f32 %v12483, 0.0
  %v12548 = vmax.f32 %v12484, 0.0
  %v12549 = vmax.f32 %v12485, 0.0
  %v12550 = vmax.f32 %v12486, 0.0
  %v12551 = vmax.f32 %v12487, 0.0
  %v12552 = vmax.f32 %v12488, 0.0
  %v12553 = vmax.f32 %v12489, 0.0
  %v12554 = vmax.f32 %v12490, 0.0
  %v12555 = vmax.f32 %v12491, 0.0
  %v12556 = vmax.f32 %v12492, 0.0
  %v12557 = vmax.f32 %v12493, 0.0
  %v12558 = vmax.f32 %v12494, 0.0
  %v12559 = vmax.f32 %v12495, 0.0
  %v12560 = vmax.f32 %v12496, 0.0
  %v12561 = vmax.f32 %v12497, 0.0
  %v12562 = vmax.f32 %v12498, 0.0
  %v12563 = vmax.f32 %v12499, 0.0
  %v12564 = vmax.f32 %v12500, 0.0
  %v12565 = vmax.f32 %v12501, 0.0
  %v12566 = vmax.f32 %v12502, 0.0
  %v12567 = vmax.f32 %v12503, 0.0
  %v12568 = vmax.f32 %v12504, 0.0
  %v12569 = vmax.f32 %v12505, 0.0
  %vm12570 = vcmask 64512
  %12571 = vst.msk [vmem:[%s7] sm:$0xff] %vm12570, %v12506
  %12572 = vst.msk [vmem:[%s7 + $0x8] sm:$0xff] %vm12570, %v12507
  %12573 = vst.msk [vmem:[%s7 + $0x10] sm:$0xff] %vm12570, %v12508
  %12574 = vst.msk [vmem:[%s7 + $0x18] sm:$0xff] %vm12570, %v12509
  %12575 = vst.msk [vmem:[%s7 + $0x20] sm:$0xff] %vm12570, %v12510
  %12576 = vst.msk [vmem:[%s7 + $0x28] sm:$0xff] %vm12570, %v12511
  %12577 = vst.msk [vmem:[%s7 + $0x30] sm:$0xff] %vm12570, %v12512
  %12578 = vst.msk [vmem:[%s7 + $0x38] sm:$0xff] %vm12570, %v12513
  %12579 = vst.msk [vmem:[%s7 + $0x40] sm:$0xff] %vm12570, %v12514
  %12580 = vst.msk [vmem:[%s7 + $0x48] sm:$0xff] %vm12570, %v12515
  %12581 = vst.msk [vmem:[%s7 + $0x50] sm:$0xff] %vm12570, %v12516
  %12582 = vst.msk [vmem:[%s7 + $0x58] sm:$0xff] %vm12570, %v12517
  %12583 = vst.msk [vmem:[%s7 + $0x60] sm:$0xff] %vm12570, %v12518
  %12584 = vst.msk [vmem:[%s7 + $0x68] sm:$0xff] %vm12570, %v12519
  %12585 = vst.msk [vmem:[%s7 + $0x70] sm:$0xff] %vm12570, %v12520
  %12586 = vst.msk [vmem:[%s7 + $0x78] sm:$0xff] %vm12570, %v12521
  %12587 = vst.msk [vmem:[%s7 + $0x80] sm:$0xff] %vm12570, %v12522
  %12588 = vst.msk [vmem:[%s7 + $0x88] sm:$0xff] %vm12570, %v12523
  %12589 = vst.msk [vmem:[%s7 + $0x90] sm:$0xff] %vm12570, %v12524
  %12590 = vst.msk [vmem:[%s7 + $0x98] sm:$0xff] %vm12570, %v12525
  %12591 = vst.msk [vmem:[%s7 + $0xa0] sm:$0xff] %vm12570, %v12526
  %12592 = vst.msk [vmem:[%s7 + $0xa8] sm:$0xff] %vm12570, %v12527
  %12593 = vst.msk [vmem:[%s7 + $0xb0] sm:$0xff] %vm12570, %v12528
  %12594 = vst.msk [vmem:[%s7 + $0xb8] sm:$0xff] %vm12570, %v12529
  %12595 = vst.msk [vmem:[%s7 + $0xc0] sm:$0xff] %vm12570, %v12530
  %12596 = vst.msk [vmem:[%s7 + $0xc8] sm:$0xff] %vm12570, %v12531
  %12597 = vst.msk [vmem:[%s7 + $0xd0] sm:$0xff] %vm12570, %v12532
  %12598 = vst.msk [vmem:[%s7 + $0xd8] sm:$0xff] %vm12570, %v12533
  %12599 = vst.msk [vmem:[%s7 + $0xe0] sm:$0xff] %vm12570, %v12534
  %12600 = vst.msk [vmem:[%s7 + $0xe8] sm:$0xff] %vm12570, %v12535
  %12601 = vst.msk [vmem:[%s7 + $0xf0] sm:$0xff] %vm12570, %v12536
  %12602 = vst.msk [vmem:[%s7 + $0xf8] sm:$0xff] %vm12570, %v12537
  %12603 = vst.msk [vmem:[%s7 + $0x100] sm:$0xff] %vm12570, %v12538
  %12604 = vst.msk [vmem:[%s7 + $0x108] sm:$0xff] %vm12570, %v12539
  %12605 = vst.msk [vmem:[%s7 + $0x110] sm:$0xff] %vm12570, %v12540
  %12606 = vst.msk [vmem:[%s7 + $0x118] sm:$0xff] %vm12570, %v12541
  %12607 = vst.msk [vmem:[%s7 + $0x120] sm:$0xff] %vm12570, %v12542
  %12608 = vst.msk [vmem:[%s7 + $0x128] sm:$0xff] %vm12570, %v12543
  %12609 = vst.msk [vmem:[%s7 + $0x130] sm:$0xff] %vm12570, %v12544
  %12610 = vst.msk [vmem:[%s7 + $0x138] sm:$0xff] %vm12570, %v12545
  %12611 = vst.msk [vmem:[%s7 + $0x140] sm:$0xff] %vm12570, %v12546
  %12612 = vst.msk [vmem:[%s7 + $0x148] sm:$0xff] %vm12570, %v12547
  %12613 = vst.msk [vmem:[%s7 + $0x150] sm:$0xff] %vm12570, %v12548
  %12614 = vst.msk [vmem:[%s7 + $0x158] sm:$0xff] %vm12570, %v12549
  %12615 = vst.msk [vmem:[%s7 + $0x160] sm:$0xff] %vm12570, %v12550
  %12616 = vst.msk [vmem:[%s7 + $0x168] sm:$0xff] %vm12570, %v12551
  %12617 = vst.msk [vmem:[%s7 + $0x170] sm:$0xff] %vm12570, %v12552
  %12618 = vst.msk [vmem:[%s7 + $0x178] sm:$0xff] %vm12570, %v12553
  %12619 = vst.msk [vmem:[%s7 + $0x180] sm:$0xff] %vm12570, %v12554
  %12620 = vst.msk [vmem:[%s7 + $0x188] sm:$0xff] %vm12570, %v12555
  %12621 = vst.msk [vmem:[%s7 + $0x190] sm:$0xff] %vm12570, %v12556
  %12622 = vst.msk [vmem:[%s7 + $0x198] sm:$0xff] %vm12570, %v12557
  %12623 = vst.msk [vmem:[%s7 + $0x1a0] sm:$0xff] %vm12570, %v12558
  %12624 = vst.msk [vmem:[%s7 + $0x1a8] sm:$0xff] %vm12570, %v12559
  %12625 = vst.msk [vmem:[%s7 + $0x1b0] sm:$0xff] %vm12570, %v12560
  %12626 = vst.msk [vmem:[%s7 + $0x1b8] sm:$0xff] %vm12570, %v12561
  %12627 = vst.msk [vmem:[%s7 + $0x1c0] sm:$0xff] %vm12570, %v12562
  %12628 = vst.msk [vmem:[%s7 + $0x1c8] sm:$0xff] %vm12570, %v12563
  %12629 = vst.msk [vmem:[%s7 + $0x1d0] sm:$0xff] %vm12570, %v12564
  %12630 = vst.msk [vmem:[%s7 + $0x1d8] sm:$0xff] %vm12570, %v12565
  %12631 = vst.msk [vmem:[%s7 + $0x1e0] sm:$0xff] %vm12570, %v12566
  %12632 = vst.msk [vmem:[%s7 + $0x1e8] sm:$0xff] %vm12570, %v12567
  %12633 = vst.msk [vmem:[%s7 + $0x1f0] sm:$0xff] %vm12570, %v12568
  %12634 = vst.msk [vmem:[%s7 + $0x1f8] sm:$0xff] %vm12570, %v12569
  // Predicated region
  $region30: #{tpu_custom_call.1} parent=0 // pred_check
    _
  $region31: #{tpu_custom_call.1} parent=0 // pred_check_branch
    %12636 = sbr.rel (0) target = $region33
  $region32: #{tpu_custom_call.1} parent=0 // pred_region
    _
  $region33: #{tpu_custom_call.1} parent=0 // pred_fallthru
    _
  // Predicated region
  $region34: #{tpu_custom_call.1} parent=0 // pred_check
    _
  $region35: #{tpu_custom_call.1} parent=0 // pred_check_branch
    %12638 = sbr.rel (0) target = $region37
  $region36: #{tpu_custom_call.1} parent=0 // pred_region
    _
  $region37: #{tpu_custom_call.1} parent=0 // pred_fallthru
    _

</llo_original>
